<compile_context>
chip_gen: v7x
topology: tpu7x:2x2x1
jax: 0.10.0
libtpu: 0.0.40
codegen_flags: <defaults>
</compile_context>

<pallas_src>
import functools

import jax
import jax.numpy as jnp
from jax.experimental import pallas as pl
from jax.experimental.pallas import tpu as pltpu

# ----------------------------- configuration --------------------------------
SRC_D = 16            # src feature dim
TGT_NUM_TOKENS = 12   # discrete target vocabulary
TGT_EMB_DIM = 32      # d_model
NHEAD = 4
DHID = 64             # feed-forward hidden dim
NLAYERS = 2
S_SRC = 8             # source sequence length
T_TGT = 8             # target token sequence length (as fed to forward)
BATCH = 2
EPS = 1e-5
NEG_INF = -1e9


# --------------------- in-kernel helpers (values, not refs) -------------------
def _bf16_dot(a, w):
    """MXU matmul: bf16 operands, f32 accumulate."""
    return jnp.dot(a.astype(jnp.bfloat16), w.astype(jnp.bfloat16),
                   preferred_element_type=jnp.float32)


def _layer_norm(x, g, b):
    mu = jnp.mean(x, axis=-1, keepdims=True)
    xc = x - mu
    var = jnp.mean(xc * xc, axis=-1, keepdims=True)
    return xc * jax.lax.rsqrt(var + EPS) * g + b


def _softmax_last(s):
    s = s - jnp.max(s, axis=-1, keepdims=True)
    p = jnp.exp(s)
    return p * pl.reciprocal(jnp.sum(p, axis=-1, keepdims=True), approx=True)


def _mha(x_q, x_kv, p, mask, *, nhead):
    """Multi-head attention on VMEM-resident values.

    x_q: (Lq, E). x_kv: None -> self-attention (single fused QKV GEMM),
    else (Lk, E) for cross-attention. mask: (Lq, Lk) additive f32 or None.
    """
    E = x_q.shape[-1]
    dh = E // nhead
    scale = 1.0 / float(dh) ** 0.5

    if x_kv is None:
        qkv = _bf16_dot(x_q, p["wqkv"]) + p["bqkv"]          # (Lq, 3E)
        q, k, v = qkv[:, :E], qkv[:, E:2 * E], qkv[:, 2 * E:]
    else:
        q = _bf16_dot(x_q, p["wq"]) + p["bq"]                # (Lq, E)
        kv = _bf16_dot(x_kv, p["wkv"]) + p["bkv"]            # (Lk, 2E)
        k, v = kv[:, :E], kv[:, E:]

    # Split heads in VMEM (static lane slices + stack) -> (H, L, dh).
    qh = jnp.stack([q[:, h * dh:(h + 1) * dh] for h in range(nhead)], axis=0)
    kh = jnp.stack([k[:, h * dh:(h + 1) * dh] for h in range(nhead)], axis=0)
    vh = jnp.stack([v[:, h * dh:(h + 1) * dh] for h in range(nhead)], axis=0)

    # Batched-head score / PV matmuls.
    s = jnp.einsum("hqd,hkd->hqk", qh.astype(jnp.bfloat16),
                   kh.astype(jnp.bfloat16),
                   preferred_element_type=jnp.float32) * scale
    if mask is not None:
        s = s + mask[None, :, :]
    pattn = _softmax_last(s)                                 # f32 softmax
    o = jnp.einsum("hqk,hkd->hqd", pattn.astype(jnp.bfloat16),
                   vh.astype(jnp.bfloat16),
                   preferred_element_type=jnp.float32)       # (H, Lq, dh)
    o = jnp.concatenate([o[h] for h in range(nhead)], axis=-1)  # (Lq, E)
    return _bf16_dot(o, p["wo"]) + p["bo"]


def _ffn(x, p):
    h = jnp.maximum(_bf16_dot(x, p["w1"]) + p["b1"], 0.0)
    return _bf16_dot(h, p["w2"]) + p["b2"]


def _encoder_layer(x, p, nhead):
    sa = _mha(x, None, p["attn"], None, nhead=nhead)
    x = _layer_norm(x + sa, p["ln1_g"], p["ln1_b"])
    return _layer_norm(x + _ffn(x, p), p["ln2_g"], p["ln2_b"])


def _decoder_layer(y, mem, p, causal, nhead):
    sa = _mha(y, None, p["self_attn"], causal, nhead=nhead)
    y = _layer_norm(y + sa, p["ln1_g"], p["ln1_b"])
    ca = _mha(y, mem, p["cross_attn"], None, nhead=nhead)
    y = _layer_norm(y + ca, p["ln2_g"], p["ln2_b"])
    return _layer_norm(y + _ffn(y, p), p["ln3_g"], p["ln3_b"])


# ------------------------------- fused kernel ---------------------------------
def _forward_kernel(src_ref, embs_ref, causal_ref, *rest, treedef, nhead):
    out_ref = rest[-1]
    leaves = [r[...] for r in rest[:-1]]           # all weights resident in VMEM
    p = jax.tree_util.tree_unflatten(treedef, leaves)

    src = src_ref[0]          # (S, SRC_D) f32  — one batch element per grid step
    y = embs_ref[0]           # (T, E)     f32
    causal = causal_ref[...]  # (T, T)     additive causal mask

    # Encoder: src projection -> post-norm layers -> final LayerNorm.
    x = _bf16_dot(src, p["src_proj_w"]) + p["src_proj_b"]
    for lp in p["enc_layers"]:
        x = _encoder_layer(x, lp, nhead)
    mem = _layer_norm(x, p["enc_norm_g"], p["enc_norm_b"])

    # Decoder: causal self-attn + cross-attn layers -> final LayerNorm -> logits.
    for lp in p["dec_layers"]:
        y = _decoder_layer(y, mem, lp, causal, nhead)
    y = _layer_norm(y, p["dec_norm_g"], p["dec_norm_b"])
    logits = _bf16_dot(y, p["out_w"]) + p["out_b"]

    out_ref[0] = logits.astype(out_ref.dtype)


# -------------------------- kernel parameter packing --------------------------
def _prep_kernel_params(params):
    """Pack weights for the fused kernel: bf16 matmul operands, fused QKV,
    all vectors reshaped to 2D (1, N) f32."""
    wt = lambda x: x.astype(jnp.bfloat16)
    vec = lambda x: x.reshape(1, -1).astype(jnp.float32)

    def attn_self(a):
        return {"wqkv": wt(jnp.concatenate([a["wq"], a["wk"], a["wv"]], axis=1)),
                "bqkv": vec(jnp.concatenate([a["bq"], a["bk"], a["bv"]])),
                "wo": wt(a["wo"]), "bo": vec(a["bo"])}

    def attn_cross(a):
        return {"wq": wt(a["wq"]), "bq": vec(a["bq"]),
                "wkv": wt(jnp.concatenate([a["wk"], a["wv"]], axis=1)),
                "bkv": vec(jnp.concatenate([a["bk"], a["bv"]])),
                "wo": wt(a["wo"]), "bo": vec(a["bo"])}

    def ffn_ln(lp, n_ln):
        d = {"w1": wt(lp["w1"]), "b1": vec(lp["b1"]),
             "w2": wt(lp["w2"]), "b2": vec(lp["b2"])}
        for i in range(1, n_ln + 1):
            d[f"ln{i}_g"] = vec(lp[f"ln{i}_g"])
            d[f"ln{i}_b"] = vec(lp[f"ln{i}_b"])
        return d

    enc_layers = [dict(attn=attn_self(lp["attn"]), **ffn_ln(lp, 2))
                  for lp in params["enc_layers"]]
    dec_layers = [dict(self_attn=attn_self(lp["self_attn"]),
                       cross_attn=attn_cross(lp["cross_attn"]),
                       **ffn_ln(lp, 3))
                  for lp in params["dec_layers"]]

    return {
        "src_proj_w": wt(params["src_proj_w"]),
        "src_proj_b": vec(params["src_proj_b"]),
        "out_w": wt(params["out_w"]), "out_b": vec(params["out_b"]),
        "enc_norm_g": vec(params["enc_norm_g"]),
        "enc_norm_b": vec(params["enc_norm_b"]),
        "dec_norm_g": vec(params["dec_norm_g"]),
        "dec_norm_b": vec(params["dec_norm_b"]),
        "enc_layers": enc_layers,
        "dec_layers": dec_layers,
    }


# ------------------------------- forward pass ---------------------------------
def cont_disc_transformer_forward(params, src, tgt_tokens):
    """src: (S, B, SRC_D) f32; tgt_tokens: (T, B) int32 -> (T, B, ntoken)."""
    S, B, _ = src.shape
    T = tgt_tokens.shape[0]
    E = TGT_EMB_DIM
    V = TGT_NUM_TOKENS

    # ContDiscTransformer front-end: tgt[:-1] -> embedding -> prepend first_input.
    tgt = tgt_tokens[:-1]                                        # (T-1, B)
    embs = jnp.take(params["embedding"], tgt, axis=0)            # (T-1, B, E)
    first = jnp.broadcast_to(params["first_input"], (1, B, E))   # (1, B, E)
    embs = jnp.concatenate([first, embs], axis=0)                # (T, B, E)

    # Batch-major so the (independent) batch dim is the parallel grid axis.
    src_b = jnp.transpose(src, (1, 0, 2))                        # (B, S, SRC_D)
    embs_b = jnp.transpose(embs, (1, 0, 2))                      # (B, T, E)

    causal = jnp.where(jnp.triu(jnp.ones((T, T), jnp.bool_), k=1),
                       NEG_INF, 0.0).astype(jnp.float32)

    kparams = _prep_kernel_params(params)
    leaves, treedef = jax.tree_util.tree_flatten(kparams)

    const2d = lambda b: (0, 0)
    in_specs = (
        [pl.BlockSpec((1, S, SRC_D), lambda b: (b, 0, 0)),
         pl.BlockSpec((1, T, E), lambda b: (b, 0, 0)),
         pl.BlockSpec((T, T), const2d)]
        + [pl.BlockSpec(leaf.shape, const2d) for leaf in leaves]
    )

    kernel = functools.partial(_forward_kernel, treedef=treedef, nhead=NHEAD)

    out = pl.pallas_call(
        kernel,
        out_shape=jax.ShapeDtypeStruct((B, T, V), jnp.float32),
        grid=(B,),
        in_specs=in_specs,
        out_specs=pl.BlockSpec((1, T, V), lambda b: (b, 0, 0)),
        compiler_params=pltpu.CompilerParams(
            dimension_semantics=("parallel",)),
    )(src_b, embs_b, causal, *leaves)

    return jnp.transpose(out, (1, 0, 2))                         # (T, B, V)


# ----------------------------- parameter creation -----------------------------
def _dense(key, fan_in, fan_out):
    return (jax.random.normal(key, (fan_in, fan_out), jnp.float32)
            * (1.0 / float(fan_in) ** 0.5))


def _init_attn(key, E):
    ks = jax.random.split(key, 4)
    z = jnp.zeros((E,), jnp.float32)
    return {"wq": _dense(ks[0], E, E), "bq": z,
            "wk": _dense(ks[1], E, E), "bk": z,
            "wv": _dense(ks[2], E, E), "bv": z,
            "wo": _dense(ks[3], E, E), "bo": z}


def _init_enc_layer(key, E, F):
    ks = jax.random.split(key, 3)
    return {"attn": _init_attn(ks[0], E),
            "w1": _dense(ks[1], E, F), "b1": jnp.zeros((F,), jnp.float32),
            "w2": _dense(ks[2], F, E), "b2": jnp.zeros((E,), jnp.float32),
            "ln1_g": jnp.ones((E,), jnp.float32), "ln1_b": jnp.zeros((E,), jnp.float32),
            "ln2_g": jnp.ones((E,), jnp.float32), "ln2_b": jnp.zeros((E,), jnp.float32)}


def _init_dec_layer(key, E, F):
    ks = jax.random.split(key, 4)
    return {"self_attn": _init_attn(ks[0], E),
            "cross_attn": _init_attn(ks[1], E),
            "w1": _dense(ks[2], E, F), "b1": jnp.zeros((F,), jnp.float32),
            "w2": _dense(ks[3], F, E), "b2": jnp.zeros((E,), jnp.float32),
            "ln1_g": jnp.ones((E,), jnp.float32), "ln1_b": jnp.zeros((E,), jnp.float32),
            "ln2_g": jnp.ones((E,), jnp.float32), "ln2_b": jnp.zeros((E,), jnp.float32),
            "ln3_g": jnp.ones((E,), jnp.float32), "ln3_b": jnp.zeros((E,), jnp.float32)}


def init_params(key):
    E, F = TGT_EMB_DIM, DHID
    keys = jax.random.split(key, 6 + 2 * NLAYERS)
    return {
        "embedding": jax.random.normal(keys[0], (TGT_NUM_TOKENS, E), jnp.float32),
        "first_input": jax.random.normal(keys[1], (1, 1, E), jnp.float32),
        "src_proj_w": _dense(keys[2], SRC_D, E),
        "src_proj_b": jnp.zeros((E,), jnp.float32),
        "out_w": _dense(keys[3], E, TGT_NUM_TOKENS),
        "out_b": jnp.zeros((TGT_NUM_TOKENS,), jnp.float32),
        "enc_norm_g": jnp.ones((E,), jnp.float32),
        "enc_norm_b": jnp.zeros((E,), jnp.float32),
        "dec_norm_g": jnp.ones((E,), jnp.float32),
        "dec_norm_b": jnp.zeros((E,), jnp.float32),
        "enc_layers": [_init_enc_layer(keys[4 + i], E, F) for i in range(NLAYERS)],
        "dec_layers": [_init_dec_layer(keys[4 + NLAYERS + i], E, F)
                       for i in range(NLAYERS)],
    }


# ------------------------------------ main -------------------------------------
if __name__ == "__main__":
    key = jax.random.PRNGKey(0)
    k_params, k_src, k_tgt = jax.random.split(key, 3)

    params = init_params(k_params)
    src = jax.random.normal(k_src, (S_SRC, BATCH, SRC_D), jnp.float32)
    tgt_tokens = jax.random.randint(k_tgt, (T_TGT, BATCH), 0, TGT_NUM_TOKENS,
                                    dtype=jnp.int32)

    fwd = jax.jit(cont_disc_transformer_forward)
    out = jax.block_until_ready(fwd(params, src, tgt_tokens))

    assert out.shape == (T_TGT, BATCH, TGT_NUM_TOKENS), out.shape
    assert bool(jnp.all(jnp.isfinite(out)))
    print("KERNEL_OK")
</pallas_src>

<mosaic_0001>
module attributes {stable_mosaic.version = 11 : i64} {
  func.func @_forward_kernel(%arg0: i32, %arg1: memref<1x8x16xf32, #tpu.memory_space<vmem>>, %arg2: memref<1x8x32xf32, #tpu.memory_space<vmem>>, %arg3: memref<8x8xf32, #tpu.memory_space<vmem>>, %arg4: memref<1x64xf32, #tpu.memory_space<vmem>>, %arg5: memref<1x32xf32, #tpu.memory_space<vmem>>, %arg6: memref<1x64xf32, #tpu.memory_space<vmem>>, %arg7: memref<1x32xf32, #tpu.memory_space<vmem>>, %arg8: memref<1x32xf32, #tpu.memory_space<vmem>>, %arg9: memref<32x64xbf16, #tpu.memory_space<vmem>>, %arg10: memref<32x32xbf16, #tpu.memory_space<vmem>>, %arg11: memref<32x32xbf16, #tpu.memory_space<vmem>>, %arg12: memref<1x32xf32, #tpu.memory_space<vmem>>, %arg13: memref<1x32xf32, #tpu.memory_space<vmem>>, %arg14: memref<1x32xf32, #tpu.memory_space<vmem>>, %arg15: memref<1x32xf32, #tpu.memory_space<vmem>>, %arg16: memref<1x32xf32, #tpu.memory_space<vmem>>, %arg17: memref<1x32xf32, #tpu.memory_space<vmem>>, %arg18: memref<1x32xf32, #tpu.memory_space<vmem>>, %arg19: memref<1x96xf32, #tpu.memory_space<vmem>>, %arg20: memref<32x32xbf16, #tpu.memory_space<vmem>>, %arg21: memref<32x96xbf16, #tpu.memory_space<vmem>>, %arg22: memref<32x64xbf16, #tpu.memory_space<vmem>>, %arg23: memref<64x32xbf16, #tpu.memory_space<vmem>>, %arg24: memref<1x64xf32, #tpu.memory_space<vmem>>, %arg25: memref<1x32xf32, #tpu.memory_space<vmem>>, %arg26: memref<1x64xf32, #tpu.memory_space<vmem>>, %arg27: memref<1x32xf32, #tpu.memory_space<vmem>>, %arg28: memref<1x32xf32, #tpu.memory_space<vmem>>, %arg29: memref<32x64xbf16, #tpu.memory_space<vmem>>, %arg30: memref<32x32xbf16, #tpu.memory_space<vmem>>, %arg31: memref<32x32xbf16, #tpu.memory_space<vmem>>, %arg32: memref<1x32xf32, #tpu.memory_space<vmem>>, %arg33: memref<1x32xf32, #tpu.memory_space<vmem>>, %arg34: memref<1x32xf32, #tpu.memory_space<vmem>>, %arg35: memref<1x32xf32, #tpu.memory_space<vmem>>, %arg36: memref<1x32xf32, #tpu.memory_space<vmem>>, %arg37: memref<1x32xf32, #tpu.memory_space<vmem>>, %arg38: memref<1x32xf32, #tpu.memory_space<vmem>>, %arg39: memref<1x96xf32, #tpu.memory_space<vmem>>, %arg40: memref<32x32xbf16, #tpu.memory_space<vmem>>, %arg41: memref<32x96xbf16, #tpu.memory_space<vmem>>, %arg42: memref<32x64xbf16, #tpu.memory_space<vmem>>, %arg43: memref<64x32xbf16, #tpu.memory_space<vmem>>, %arg44: memref<1x32xf32, #tpu.memory_space<vmem>>, %arg45: memref<1x32xf32, #tpu.memory_space<vmem>>, %arg46: memref<1x32xf32, #tpu.memory_space<vmem>>, %arg47: memref<1x96xf32, #tpu.memory_space<vmem>>, %arg48: memref<32x32xbf16, #tpu.memory_space<vmem>>, %arg49: memref<32x96xbf16, #tpu.memory_space<vmem>>, %arg50: memref<1x64xf32, #tpu.memory_space<vmem>>, %arg51: memref<1x32xf32, #tpu.memory_space<vmem>>, %arg52: memref<1x32xf32, #tpu.memory_space<vmem>>, %arg53: memref<1x32xf32, #tpu.memory_space<vmem>>, %arg54: memref<1x32xf32, #tpu.memory_space<vmem>>, %arg55: memref<1x32xf32, #tpu.memory_space<vmem>>, %arg56: memref<32x64xbf16, #tpu.memory_space<vmem>>, %arg57: memref<64x32xbf16, #tpu.memory_space<vmem>>, %arg58: memref<1x32xf32, #tpu.memory_space<vmem>>, %arg59: memref<1x96xf32, #tpu.memory_space<vmem>>, %arg60: memref<32x32xbf16, #tpu.memory_space<vmem>>, %arg61: memref<32x96xbf16, #tpu.memory_space<vmem>>, %arg62: memref<1x64xf32, #tpu.memory_space<vmem>>, %arg63: memref<1x32xf32, #tpu.memory_space<vmem>>, %arg64: memref<1x32xf32, #tpu.memory_space<vmem>>, %arg65: memref<1x32xf32, #tpu.memory_space<vmem>>, %arg66: memref<1x32xf32, #tpu.memory_space<vmem>>, %arg67: memref<1x32xf32, #tpu.memory_space<vmem>>, %arg68: memref<32x64xbf16, #tpu.memory_space<vmem>>, %arg69: memref<64x32xbf16, #tpu.memory_space<vmem>>, %arg70: memref<1x32xf32, #tpu.memory_space<vmem>>, %arg71: memref<1x32xf32, #tpu.memory_space<vmem>>, %arg72: memref<1x12xf32, #tpu.memory_space<vmem>>, %arg73: memref<32x12xbf16, #tpu.memory_space<vmem>>, %arg74: memref<1x32xf32, #tpu.memory_space<vmem>>, %arg75: memref<16x32xbf16, #tpu.memory_space<vmem>>, %arg76: memref<1x8x12xf32, #tpu.memory_space<vmem>>) attributes {dimension_semantics = [#tpu.dimension_semantics<parallel>], iteration_bounds = array<i64: 2>, scalar_prefetch = 0 : i64, scratch_operands = 0 : i64, tpu.core_type = #tpu.core_type<tc>, window_params = [{transform_indices = @transform_0, window_bounds = array<i64: 1, 8, 16>}, {transform_indices = @transform_1, window_bounds = array<i64: 1, 8, 32>}, {pipeline_mode = #tpu.pipeline_mode<synchronous>, transform_indices = @transform_2, window_bounds = array<i64: 8, 8>}, {pipeline_mode = #tpu.pipeline_mode<synchronous>, transform_indices = @transform_3, window_bounds = array<i64: 1, 64>}, {pipeline_mode = #tpu.pipeline_mode<synchronous>, transform_indices = @transform_4, window_bounds = array<i64: 1, 32>}, {pipeline_mode = #tpu.pipeline_mode<synchronous>, transform_indices = @transform_5, window_bounds = array<i64: 1, 64>}, {pipeline_mode = #tpu.pipeline_mode<synchronous>, transform_indices = @transform_6, window_bounds = array<i64: 1, 32>}, {pipeline_mode = #tpu.pipeline_mode<synchronous>, transform_indices = @transform_7, window_bounds = array<i64: 1, 32>}, {pipeline_mode = #tpu.pipeline_mode<synchronous>, transform_indices = @transform_8, window_bounds = array<i64: 32, 64>}, {pipeline_mode = #tpu.pipeline_mode<synchronous>, transform_indices = @transform_9, window_bounds = array<i64: 32, 32>}, {pipeline_mode = #tpu.pipeline_mode<synchronous>, transform_indices = @transform_10, window_bounds = array<i64: 32, 32>}, {pipeline_mode = #tpu.pipeline_mode<synchronous>, transform_indices = @transform_11, window_bounds = array<i64: 1, 32>}, {pipeline_mode = #tpu.pipeline_mode<synchronous>, transform_indices = @transform_12, window_bounds = array<i64: 1, 32>}, {pipeline_mode = #tpu.pipeline_mode<synchronous>, transform_indices = @transform_13, window_bounds = array<i64: 1, 32>}, {pipeline_mode = #tpu.pipeline_mode<synchronous>, transform_indices = @transform_14, window_bounds = array<i64: 1, 32>}, {pipeline_mode = #tpu.pipeline_mode<synchronous>, transform_indices = @transform_15, window_bounds = array<i64: 1, 32>}, {pipeline_mode = #tpu.pipeline_mode<synchronous>, transform_indices = @transform_16, window_bounds = array<i64: 1, 32>}, {pipeline_mode = #tpu.pipeline_mode<synchronous>, transform_indices = @transform_17, window_bounds = array<i64: 1, 32>}, {pipeline_mode = #tpu.pipeline_mode<synchronous>, transform_indices = @transform_18, window_bounds = array<i64: 1, 96>}, {pipeline_mode = #tpu.pipeline_mode<synchronous>, transform_indices = @transform_19, window_bounds = array<i64: 32, 32>}, {pipeline_mode = #tpu.pipeline_mode<synchronous>, transform_indices = @transform_20, window_bounds = array<i64: 32, 96>}, {pipeline_mode = #tpu.pipeline_mode<synchronous>, transform_indices = @transform_21, window_bounds = array<i64: 32, 64>}, {pipeline_mode = #tpu.pipeline_mode<synchronous>, transform_indices = @transform_22, window_bounds = array<i64: 64, 32>}, {pipeline_mode = #tpu.pipeline_mode<synchronous>, transform_indices = @transform_23, window_bounds = array<i64: 1, 64>}, {pipeline_mode = #tpu.pipeline_mode<synchronous>, transform_indices = @transform_24, window_bounds = array<i64: 1, 32>}, {pipeline_mode = #tpu.pipeline_mode<synchronous>, transform_indices = @transform_25, window_bounds = array<i64: 1, 64>}, {pipeline_mode = #tpu.pipeline_mode<synchronous>, transform_indices = @transform_26, window_bounds = array<i64: 1, 32>}, {pipeline_mode = #tpu.pipeline_mode<synchronous>, transform_indices = @transform_27, window_bounds = array<i64: 1, 32>}, {pipeline_mode = #tpu.pipeline_mode<synchronous>, transform_indices = @transform_28, window_bounds = array<i64: 32, 64>}, {pipeline_mode = #tpu.pipeline_mode<synchronous>, transform_indices = @transform_29, window_bounds = array<i64: 32, 32>}, {pipeline_mode = #tpu.pipeline_mode<synchronous>, transform_indices = @transform_30, window_bounds = array<i64: 32, 32>}, {pipeline_mode = #tpu.pipeline_mode<synchronous>, transform_indices = @transform_31, window_bounds = array<i64: 1, 32>}, {pipeline_mode = #tpu.pipeline_mode<synchronous>, transform_indices = @transform_32, window_bounds = array<i64: 1, 32>}, {pipeline_mode = #tpu.pipeline_mode<synchronous>, transform_indices = @transform_33, window_bounds = array<i64: 1, 32>}, {pipeline_mode = #tpu.pipeline_mode<synchronous>, transform_indices = @transform_34, window_bounds = array<i64: 1, 32>}, {pipeline_mode = #tpu.pipeline_mode<synchronous>, transform_indices = @transform_35, window_bounds = array<i64: 1, 32>}, {pipeline_mode = #tpu.pipeline_mode<synchronous>, transform_indices = @transform_36, window_bounds = array<i64: 1, 32>}, {pipeline_mode = #tpu.pipeline_mode<synchronous>, transform_indices = @transform_37, window_bounds = array<i64: 1, 32>}, {pipeline_mode = #tpu.pipeline_mode<synchronous>, transform_indices = @transform_38, window_bounds = array<i64: 1, 96>}, {pipeline_mode = #tpu.pipeline_mode<synchronous>, transform_indices = @transform_39, window_bounds = array<i64: 32, 32>}, {pipeline_mode = #tpu.pipeline_mode<synchronous>, transform_indices = @transform_40, window_bounds = array<i64: 32, 96>}, {pipeline_mode = #tpu.pipeline_mode<synchronous>, transform_indices = @transform_41, window_bounds = array<i64: 32, 64>}, {pipeline_mode = #tpu.pipeline_mode<synchronous>, transform_indices = @transform_42, window_bounds = array<i64: 64, 32>}, {pipeline_mode = #tpu.pipeline_mode<synchronous>, transform_indices = @transform_43, window_bounds = array<i64: 1, 32>}, {pipeline_mode = #tpu.pipeline_mode<synchronous>, transform_indices = @transform_44, window_bounds = array<i64: 1, 32>}, {pipeline_mode = #tpu.pipeline_mode<synchronous>, transform_indices = @transform_45, window_bounds = array<i64: 1, 32>}, {pipeline_mode = #tpu.pipeline_mode<synchronous>, transform_indices = @transform_46, window_bounds = array<i64: 1, 96>}, {pipeline_mode = #tpu.pipeline_mode<synchronous>, transform_indices = @transform_47, window_bounds = array<i64: 32, 32>}, {pipeline_mode = #tpu.pipeline_mode<synchronous>, transform_indices = @transform_48, window_bounds = array<i64: 32, 96>}, {pipeline_mode = #tpu.pipeline_mode<synchronous>, transform_indices = @transform_49, window_bounds = array<i64: 1, 64>}, {pipeline_mode = #tpu.pipeline_mode<synchronous>, transform_indices = @transform_50, window_bounds = array<i64: 1, 32>}, {pipeline_mode = #tpu.pipeline_mode<synchronous>, transform_indices = @transform_51, window_bounds = array<i64: 1, 32>}, {pipeline_mode = #tpu.pipeline_mode<synchronous>, transform_indices = @transform_52, window_bounds = array<i64: 1, 32>}, {pipeline_mode = #tpu.pipeline_mode<synchronous>, transform_indices = @transform_53, window_bounds = array<i64: 1, 32>}, {pipeline_mode = #tpu.pipeline_mode<synchronous>, transform_indices = @transform_54, window_bounds = array<i64: 1, 32>}, {pipeline_mode = #tpu.pipeline_mode<synchronous>, transform_indices = @transform_55, window_bounds = array<i64: 32, 64>}, {pipeline_mode = #tpu.pipeline_mode<synchronous>, transform_indices = @transform_56, window_bounds = array<i64: 64, 32>}, {pipeline_mode = #tpu.pipeline_mode<synchronous>, transform_indices = @transform_57, window_bounds = array<i64: 1, 32>}, {pipeline_mode = #tpu.pipeline_mode<synchronous>, transform_indices = @transform_58, window_bounds = array<i64: 1, 96>}, {pipeline_mode = #tpu.pipeline_mode<synchronous>, transform_indices = @transform_59, window_bounds = array<i64: 32, 32>}, {pipeline_mode = #tpu.pipeline_mode<synchronous>, transform_indices = @transform_60, window_bounds = array<i64: 32, 96>}, {pipeline_mode = #tpu.pipeline_mode<synchronous>, transform_indices = @transform_61, window_bounds = array<i64: 1, 64>}, {pipeline_mode = #tpu.pipeline_mode<synchronous>, transform_indices = @transform_62, window_bounds = array<i64: 1, 32>}, {pipeline_mode = #tpu.pipeline_mode<synchronous>, transform_indices = @transform_63, window_bounds = array<i64: 1, 32>}, {pipeline_mode = #tpu.pipeline_mode<synchronous>, transform_indices = @transform_64, window_bounds = array<i64: 1, 32>}, {pipeline_mode = #tpu.pipeline_mode<synchronous>, transform_indices = @transform_65, window_bounds = array<i64: 1, 32>}, {pipeline_mode = #tpu.pipeline_mode<synchronous>, transform_indices = @transform_66, window_bounds = array<i64: 1, 32>}, {pipeline_mode = #tpu.pipeline_mode<synchronous>, transform_indices = @transform_67, window_bounds = array<i64: 32, 64>}, {pipeline_mode = #tpu.pipeline_mode<synchronous>, transform_indices = @transform_68, window_bounds = array<i64: 64, 32>}, {pipeline_mode = #tpu.pipeline_mode<synchronous>, transform_indices = @transform_69, window_bounds = array<i64: 1, 32>}, {pipeline_mode = #tpu.pipeline_mode<synchronous>, transform_indices = @transform_70, window_bounds = array<i64: 1, 32>}, {pipeline_mode = #tpu.pipeline_mode<synchronous>, transform_indices = @transform_71, window_bounds = array<i64: 1, 12>}, {pipeline_mode = #tpu.pipeline_mode<synchronous>, transform_indices = @transform_72, window_bounds = array<i64: 32, 12>}, {pipeline_mode = #tpu.pipeline_mode<synchronous>, transform_indices = @transform_73, window_bounds = array<i64: 1, 32>}, {pipeline_mode = #tpu.pipeline_mode<synchronous>, transform_indices = @transform_74, window_bounds = array<i64: 16, 32>}, {transform_indices = @transform_75, window_bounds = array<i64: 1, 8, 12>}]} {
    %c0 = arith.constant 0 : index
    %c0_0 = arith.constant 0 : index
    %0 = vector.load %arg4[%c0, %c0_0] : memref<1x64xf32, #tpu.memory_space<vmem>>, vector<1x64xf32>
    %c0_1 = arith.constant 0 : index
    %c0_2 = arith.constant 0 : index
    %1 = vector.load %arg5[%c0_1, %c0_2] : memref<1x32xf32, #tpu.memory_space<vmem>>, vector<1x32xf32>
    %c0_3 = arith.constant 0 : index
    %c0_4 = arith.constant 0 : index
    %2 = vector.load %arg6[%c0_3, %c0_4] : memref<1x64xf32, #tpu.memory_space<vmem>>, vector<1x64xf32>
    %c0_5 = arith.constant 0 : index
    %c0_6 = arith.constant 0 : index
    %3 = vector.load %arg7[%c0_5, %c0_6] : memref<1x32xf32, #tpu.memory_space<vmem>>, vector<1x32xf32>
    %c0_7 = arith.constant 0 : index
    %c0_8 = arith.constant 0 : index
    %4 = vector.load %arg8[%c0_7, %c0_8] : memref<1x32xf32, #tpu.memory_space<vmem>>, vector<1x32xf32>
    %c0_9 = arith.constant 0 : index
    %c0_10 = arith.constant 0 : index
    %5 = vector.load %arg9[%c0_9, %c0_10] : memref<32x64xbf16, #tpu.memory_space<vmem>>, vector<32x64xbf16>
    %c0_11 = arith.constant 0 : index
    %c0_12 = arith.constant 0 : index
    %6 = vector.load %arg10[%c0_11, %c0_12] : memref<32x32xbf16, #tpu.memory_space<vmem>>, vector<32x32xbf16>
    %c0_13 = arith.constant 0 : index
    %c0_14 = arith.constant 0 : index
    %7 = vector.load %arg11[%c0_13, %c0_14] : memref<32x32xbf16, #tpu.memory_space<vmem>>, vector<32x32xbf16>
    %c0_15 = arith.constant 0 : index
    %c0_16 = arith.constant 0 : index
    %8 = vector.load %arg12[%c0_15, %c0_16] : memref<1x32xf32, #tpu.memory_space<vmem>>, vector<1x32xf32>
    %c0_17 = arith.constant 0 : index
    %c0_18 = arith.constant 0 : index
    %9 = vector.load %arg13[%c0_17, %c0_18] : memref<1x32xf32, #tpu.memory_space<vmem>>, vector<1x32xf32>
    %c0_19 = arith.constant 0 : index
    %c0_20 = arith.constant 0 : index
    %10 = vector.load %arg14[%c0_19, %c0_20] : memref<1x32xf32, #tpu.memory_space<vmem>>, vector<1x32xf32>
    %c0_21 = arith.constant 0 : index
    %c0_22 = arith.constant 0 : index
    %11 = vector.load %arg15[%c0_21, %c0_22] : memref<1x32xf32, #tpu.memory_space<vmem>>, vector<1x32xf32>
    %c0_23 = arith.constant 0 : index
    %c0_24 = arith.constant 0 : index
    %12 = vector.load %arg16[%c0_23, %c0_24] : memref<1x32xf32, #tpu.memory_space<vmem>>, vector<1x32xf32>
    %c0_25 = arith.constant 0 : index
    %c0_26 = arith.constant 0 : index
    %13 = vector.load %arg17[%c0_25, %c0_26] : memref<1x32xf32, #tpu.memory_space<vmem>>, vector<1x32xf32>
    %c0_27 = arith.constant 0 : index
    %c0_28 = arith.constant 0 : index
    %14 = vector.load %arg18[%c0_27, %c0_28] : memref<1x32xf32, #tpu.memory_space<vmem>>, vector<1x32xf32>
    %c0_29 = arith.constant 0 : index
    %c0_30 = arith.constant 0 : index
    %15 = vector.load %arg19[%c0_29, %c0_30] : memref<1x96xf32, #tpu.memory_space<vmem>>, vector<1x96xf32>
    %c0_31 = arith.constant 0 : index
    %c0_32 = arith.constant 0 : index
    %16 = vector.load %arg20[%c0_31, %c0_32] : memref<32x32xbf16, #tpu.memory_space<vmem>>, vector<32x32xbf16>
    %c0_33 = arith.constant 0 : index
    %c0_34 = arith.constant 0 : index
    %17 = vector.load %arg21[%c0_33, %c0_34] : memref<32x96xbf16, #tpu.memory_space<vmem>>, vector<32x96xbf16>
    %c0_35 = arith.constant 0 : index
    %c0_36 = arith.constant 0 : index
    %18 = vector.load %arg22[%c0_35, %c0_36] : memref<32x64xbf16, #tpu.memory_space<vmem>>, vector<32x64xbf16>
    %c0_37 = arith.constant 0 : index
    %c0_38 = arith.constant 0 : index
    %19 = vector.load %arg23[%c0_37, %c0_38] : memref<64x32xbf16, #tpu.memory_space<vmem>>, vector<64x32xbf16>
    %c0_39 = arith.constant 0 : index
    %c0_40 = arith.constant 0 : index
    %20 = vector.load %arg24[%c0_39, %c0_40] : memref<1x64xf32, #tpu.memory_space<vmem>>, vector<1x64xf32>
    %c0_41 = arith.constant 0 : index
    %c0_42 = arith.constant 0 : index
    %21 = vector.load %arg25[%c0_41, %c0_42] : memref<1x32xf32, #tpu.memory_space<vmem>>, vector<1x32xf32>
    %c0_43 = arith.constant 0 : index
    %c0_44 = arith.constant 0 : index
    %22 = vector.load %arg26[%c0_43, %c0_44] : memref<1x64xf32, #tpu.memory_space<vmem>>, vector<1x64xf32>
    %c0_45 = arith.constant 0 : index
    %c0_46 = arith.constant 0 : index
    %23 = vector.load %arg27[%c0_45, %c0_46] : memref<1x32xf32, #tpu.memory_space<vmem>>, vector<1x32xf32>
    %c0_47 = arith.constant 0 : index
    %c0_48 = arith.constant 0 : index
    %24 = vector.load %arg28[%c0_47, %c0_48] : memref<1x32xf32, #tpu.memory_space<vmem>>, vector<1x32xf32>
    %c0_49 = arith.constant 0 : index
    %c0_50 = arith.constant 0 : index
    %25 = vector.load %arg29[%c0_49, %c0_50] : memref<32x64xbf16, #tpu.memory_space<vmem>>, vector<32x64xbf16>
    %c0_51 = arith.constant 0 : index
    %c0_52 = arith.constant 0 : index
    %26 = vector.load %arg30[%c0_51, %c0_52] : memref<32x32xbf16, #tpu.memory_space<vmem>>, vector<32x32xbf16>
    %c0_53 = arith.constant 0 : index
    %c0_54 = arith.constant 0 : index
    %27 = vector.load %arg31[%c0_53, %c0_54] : memref<32x32xbf16, #tpu.memory_space<vmem>>, vector<32x32xbf16>
    %c0_55 = arith.constant 0 : index
    %c0_56 = arith.constant 0 : index
    %28 = vector.load %arg32[%c0_55, %c0_56] : memref<1x32xf32, #tpu.memory_space<vmem>>, vector<1x32xf32>
    %c0_57 = arith.constant 0 : index
    %c0_58 = arith.constant 0 : index
    %29 = vector.load %arg33[%c0_57, %c0_58] : memref<1x32xf32, #tpu.memory_space<vmem>>, vector<1x32xf32>
    %c0_59 = arith.constant 0 : index
    %c0_60 = arith.constant 0 : index
    %30 = vector.load %arg34[%c0_59, %c0_60] : memref<1x32xf32, #tpu.memory_space<vmem>>, vector<1x32xf32>
    %c0_61 = arith.constant 0 : index
    %c0_62 = arith.constant 0 : index
    %31 = vector.load %arg35[%c0_61, %c0_62] : memref<1x32xf32, #tpu.memory_space<vmem>>, vector<1x32xf32>
    %c0_63 = arith.constant 0 : index
    %c0_64 = arith.constant 0 : index
    %32 = vector.load %arg36[%c0_63, %c0_64] : memref<1x32xf32, #tpu.memory_space<vmem>>, vector<1x32xf32>
    %c0_65 = arith.constant 0 : index
    %c0_66 = arith.constant 0 : index
    %33 = vector.load %arg37[%c0_65, %c0_66] : memref<1x32xf32, #tpu.memory_space<vmem>>, vector<1x32xf32>
    %c0_67 = arith.constant 0 : index
    %c0_68 = arith.constant 0 : index
    %34 = vector.load %arg38[%c0_67, %c0_68] : memref<1x32xf32, #tpu.memory_space<vmem>>, vector<1x32xf32>
    %c0_69 = arith.constant 0 : index
    %c0_70 = arith.constant 0 : index
    %35 = vector.load %arg39[%c0_69, %c0_70] : memref<1x96xf32, #tpu.memory_space<vmem>>, vector<1x96xf32>
    %c0_71 = arith.constant 0 : index
    %c0_72 = arith.constant 0 : index
    %36 = vector.load %arg40[%c0_71, %c0_72] : memref<32x32xbf16, #tpu.memory_space<vmem>>, vector<32x32xbf16>
    %c0_73 = arith.constant 0 : index
    %c0_74 = arith.constant 0 : index
    %37 = vector.load %arg41[%c0_73, %c0_74] : memref<32x96xbf16, #tpu.memory_space<vmem>>, vector<32x96xbf16>
    %c0_75 = arith.constant 0 : index
    %c0_76 = arith.constant 0 : index
    %38 = vector.load %arg42[%c0_75, %c0_76] : memref<32x64xbf16, #tpu.memory_space<vmem>>, vector<32x64xbf16>
    %c0_77 = arith.constant 0 : index
    %c0_78 = arith.constant 0 : index
    %39 = vector.load %arg43[%c0_77, %c0_78] : memref<64x32xbf16, #tpu.memory_space<vmem>>, vector<64x32xbf16>
    %c0_79 = arith.constant 0 : index
    %c0_80 = arith.constant 0 : index
    %40 = vector.load %arg44[%c0_79, %c0_80] : memref<1x32xf32, #tpu.memory_space<vmem>>, vector<1x32xf32>
    %c0_81 = arith.constant 0 : index
    %c0_82 = arith.constant 0 : index
    %41 = vector.load %arg45[%c0_81, %c0_82] : memref<1x32xf32, #tpu.memory_space<vmem>>, vector<1x32xf32>
    %c0_83 = arith.constant 0 : index
    %c0_84 = arith.constant 0 : index
    %42 = vector.load %arg46[%c0_83, %c0_84] : memref<1x32xf32, #tpu.memory_space<vmem>>, vector<1x32xf32>
    %c0_85 = arith.constant 0 : index
    %c0_86 = arith.constant 0 : index
    %43 = vector.load %arg47[%c0_85, %c0_86] : memref<1x96xf32, #tpu.memory_space<vmem>>, vector<1x96xf32>
    %c0_87 = arith.constant 0 : index
    %c0_88 = arith.constant 0 : index
    %44 = vector.load %arg48[%c0_87, %c0_88] : memref<32x32xbf16, #tpu.memory_space<vmem>>, vector<32x32xbf16>
    %c0_89 = arith.constant 0 : index
    %c0_90 = arith.constant 0 : index
    %45 = vector.load %arg49[%c0_89, %c0_90] : memref<32x96xbf16, #tpu.memory_space<vmem>>, vector<32x96xbf16>
    %c0_91 = arith.constant 0 : index
    %c0_92 = arith.constant 0 : index
    %46 = vector.load %arg50[%c0_91, %c0_92] : memref<1x64xf32, #tpu.memory_space<vmem>>, vector<1x64xf32>
    %c0_93 = arith.constant 0 : index
    %c0_94 = arith.constant 0 : index
    %47 = vector.load %arg51[%c0_93, %c0_94] : memref<1x32xf32, #tpu.memory_space<vmem>>, vector<1x32xf32>
    %c0_95 = arith.constant 0 : index
    %c0_96 = arith.constant 0 : index
    %48 = vector.load %arg52[%c0_95, %c0_96] : memref<1x32xf32, #tpu.memory_space<vmem>>, vector<1x32xf32>
    %c0_97 = arith.constant 0 : index
    %c0_98 = arith.constant 0 : index
    %49 = vector.load %arg53[%c0_97, %c0_98] : memref<1x32xf32, #tpu.memory_space<vmem>>, vector<1x32xf32>
    %c0_99 = arith.constant 0 : index
    %c0_100 = arith.constant 0 : index
    %50 = vector.load %arg54[%c0_99, %c0_100] : memref<1x32xf32, #tpu.memory_space<vmem>>, vector<1x32xf32>
    %c0_101 = arith.constant 0 : index
    %c0_102 = arith.constant 0 : index
    %51 = vector.load %arg55[%c0_101, %c0_102] : memref<1x32xf32, #tpu.memory_space<vmem>>, vector<1x32xf32>
    %c0_103 = arith.constant 0 : index
    %c0_104 = arith.constant 0 : index
    %52 = vector.load %arg56[%c0_103, %c0_104] : memref<32x64xbf16, #tpu.memory_space<vmem>>, vector<32x64xbf16>
    %c0_105 = arith.constant 0 : index
    %c0_106 = arith.constant 0 : index
    %53 = vector.load %arg57[%c0_105, %c0_106] : memref<64x32xbf16, #tpu.memory_space<vmem>>, vector<64x32xbf16>
    %c0_107 = arith.constant 0 : index
    %c0_108 = arith.constant 0 : index
    %54 = vector.load %arg58[%c0_107, %c0_108] : memref<1x32xf32, #tpu.memory_space<vmem>>, vector<1x32xf32>
    %c0_109 = arith.constant 0 : index
    %c0_110 = arith.constant 0 : index
    %55 = vector.load %arg59[%c0_109, %c0_110] : memref<1x96xf32, #tpu.memory_space<vmem>>, vector<1x96xf32>
    %c0_111 = arith.constant 0 : index
    %c0_112 = arith.constant 0 : index
    %56 = vector.load %arg60[%c0_111, %c0_112] : memref<32x32xbf16, #tpu.memory_space<vmem>>, vector<32x32xbf16>
    %c0_113 = arith.constant 0 : index
    %c0_114 = arith.constant 0 : index
    %57 = vector.load %arg61[%c0_113, %c0_114] : memref<32x96xbf16, #tpu.memory_space<vmem>>, vector<32x96xbf16>
    %c0_115 = arith.constant 0 : index
    %c0_116 = arith.constant 0 : index
    %58 = vector.load %arg62[%c0_115, %c0_116] : memref<1x64xf32, #tpu.memory_space<vmem>>, vector<1x64xf32>
    %c0_117 = arith.constant 0 : index
    %c0_118 = arith.constant 0 : index
    %59 = vector.load %arg63[%c0_117, %c0_118] : memref<1x32xf32, #tpu.memory_space<vmem>>, vector<1x32xf32>
    %c0_119 = arith.constant 0 : index
    %c0_120 = arith.constant 0 : index
    %60 = vector.load %arg64[%c0_119, %c0_120] : memref<1x32xf32, #tpu.memory_space<vmem>>, vector<1x32xf32>
    %c0_121 = arith.constant 0 : index
    %c0_122 = arith.constant 0 : index
    %61 = vector.load %arg65[%c0_121, %c0_122] : memref<1x32xf32, #tpu.memory_space<vmem>>, vector<1x32xf32>
    %c0_123 = arith.constant 0 : index
    %c0_124 = arith.constant 0 : index
    %62 = vector.load %arg66[%c0_123, %c0_124] : memref<1x32xf32, #tpu.memory_space<vmem>>, vector<1x32xf32>
    %c0_125 = arith.constant 0 : index
    %c0_126 = arith.constant 0 : index
    %63 = vector.load %arg67[%c0_125, %c0_126] : memref<1x32xf32, #tpu.memory_space<vmem>>, vector<1x32xf32>
    %c0_127 = arith.constant 0 : index
    %c0_128 = arith.constant 0 : index
    %64 = vector.load %arg68[%c0_127, %c0_128] : memref<32x64xbf16, #tpu.memory_space<vmem>>, vector<32x64xbf16>
    %c0_129 = arith.constant 0 : index
    %c0_130 = arith.constant 0 : index
    %65 = vector.load %arg69[%c0_129, %c0_130] : memref<64x32xbf16, #tpu.memory_space<vmem>>, vector<64x32xbf16>
    %c0_131 = arith.constant 0 : index
    %c0_132 = arith.constant 0 : index
    %66 = vector.load %arg70[%c0_131, %c0_132] : memref<1x32xf32, #tpu.memory_space<vmem>>, vector<1x32xf32>
    %c0_133 = arith.constant 0 : index
    %c0_134 = arith.constant 0 : index
    %67 = vector.load %arg71[%c0_133, %c0_134] : memref<1x32xf32, #tpu.memory_space<vmem>>, vector<1x32xf32>
    %c0_135 = arith.constant 0 : index
    %c0_136 = arith.constant 0 : index
    %68 = vector.load %arg72[%c0_135, %c0_136] : memref<1x12xf32, #tpu.memory_space<vmem>>, vector<1x12xf32>
    %c0_137 = arith.constant 0 : index
    %c0_138 = arith.constant 0 : index
    %69 = vector.load %arg73[%c0_137, %c0_138] : memref<32x12xbf16, #tpu.memory_space<vmem>>, vector<32x12xbf16>
    %c0_139 = arith.constant 0 : index
    %c0_140 = arith.constant 0 : index
    %70 = vector.load %arg74[%c0_139, %c0_140] : memref<1x32xf32, #tpu.memory_space<vmem>>, vector<1x32xf32>
    %c0_141 = arith.constant 0 : index
    %c0_142 = arith.constant 0 : index
    %71 = vector.load %arg75[%c0_141, %c0_142] : memref<16x32xbf16, #tpu.memory_space<vmem>>, vector<16x32xbf16>
    %c0_143 = arith.constant 0 : index
    %c0_144 = arith.constant 0 : index
    %c0_145 = arith.constant 0 : index
    %72 = vector.load %arg1[%c0_143, %c0_144, %c0_145] : memref<1x8x16xf32, #tpu.memory_space<vmem>>, vector<1x8x16xf32>
    %73 = vector.shape_cast %72 : vector<1x8x16xf32> to vector<8x16xf32>
    %c0_146 = arith.constant 0 : index
    %c0_147 = arith.constant 0 : index
    %c0_148 = arith.constant 0 : index
    %74 = vector.load %arg2[%c0_146, %c0_147, %c0_148] : memref<1x8x32xf32, #tpu.memory_space<vmem>>, vector<1x8x32xf32>
    %75 = vector.shape_cast %74 : vector<1x8x32xf32> to vector<8x32xf32>
    %c0_149 = arith.constant 0 : index
    %c0_150 = arith.constant 0 : index
    %76 = vector.load %arg3[%c0_149, %c0_150] : memref<8x8xf32, #tpu.memory_space<vmem>>, vector<8x8xf32>
    %77 = arith.truncf %73 : vector<8x16xf32> to vector<8x16xbf16>
    %cst = arith.constant dense<0.000000e+00> : vector<8x32xf32>
    %78 = tpu.matmul %77, %71, %cst {dimension_numbers = #tpu.dot_dimension_numbers<[1], [0], [0], [1], [0, 0, 1, 1], [], []>} : vector<8x16xbf16>, vector<16x32xbf16>, vector<8x32xf32> -> vector<8x32xf32>
    %79 = vector.broadcast %70 : vector<1x32xf32> to vector<8x32xf32>
    %80 = arith.addf %78, %79 : vector<8x32xf32>
    %81 = arith.truncf %80 : vector<8x32xf32> to vector<8x32xbf16>
    %cst_151 = arith.constant dense<0.000000e+00> : vector<8x96xf32>
    %82 = tpu.matmul %81, %45, %cst_151 {dimension_numbers = #tpu.dot_dimension_numbers<[1], [0], [0], [1], [0, 0, 1, 1], [], []>} : vector<8x32xbf16>, vector<32x96xbf16>, vector<8x96xf32> -> vector<8x96xf32>
    %83 = vector.broadcast %43 : vector<1x96xf32> to vector<8x96xf32>
    %84 = arith.addf %82, %83 : vector<8x96xf32>
    %85 = vector.extract_strided_slice %84 {offsets = [0, 0], sizes = [8, 32], strides = [1, 1]} : vector<8x96xf32> to vector<8x32xf32>
    %86 = vector.extract_strided_slice %84 {offsets = [0, 32], sizes = [8, 32], strides = [1, 1]} : vector<8x96xf32> to vector<8x32xf32>
    %87 = vector.extract_strided_slice %84 {offsets = [0, 64], sizes = [8, 32], strides = [1, 1]} : vector<8x96xf32> to vector<8x32xf32>
    %88 = vector.extract_strided_slice %85 {offsets = [0, 0], sizes = [8, 8], strides = [1, 1]} : vector<8x32xf32> to vector<8x8xf32>
    %89 = vector.extract_strided_slice %85 {offsets = [0, 8], sizes = [8, 8], strides = [1, 1]} : vector<8x32xf32> to vector<8x8xf32>
    %90 = vector.extract_strided_slice %85 {offsets = [0, 16], sizes = [8, 8], strides = [1, 1]} : vector<8x32xf32> to vector<8x8xf32>
    %91 = vector.extract_strided_slice %85 {offsets = [0, 24], sizes = [8, 8], strides = [1, 1]} : vector<8x32xf32> to vector<8x8xf32>
    %92 = vector.shape_cast %88 : vector<8x8xf32> to vector<1x8x8xf32>
    %93 = vector.shape_cast %89 : vector<8x8xf32> to vector<1x8x8xf32>
    %94 = vector.shape_cast %90 : vector<8x8xf32> to vector<1x8x8xf32>
    %95 = vector.shape_cast %91 : vector<8x8xf32> to vector<1x8x8xf32>
    %96 = tpu.concatenate %92, %93, %94, %95 in 0 : vector<1x8x8xf32>, vector<1x8x8xf32>, vector<1x8x8xf32>, vector<1x8x8xf32> -> vector<4x8x8xf32>
    %97 = vector.extract_strided_slice %86 {offsets = [0, 0], sizes = [8, 8], strides = [1, 1]} : vector<8x32xf32> to vector<8x8xf32>
    %98 = vector.extract_strided_slice %86 {offsets = [0, 8], sizes = [8, 8], strides = [1, 1]} : vector<8x32xf32> to vector<8x8xf32>
    %99 = vector.extract_strided_slice %86 {offsets = [0, 16], sizes = [8, 8], strides = [1, 1]} : vector<8x32xf32> to vector<8x8xf32>
    %100 = vector.extract_strided_slice %86 {offsets = [0, 24], sizes = [8, 8], strides = [1, 1]} : vector<8x32xf32> to vector<8x8xf32>
    %101 = vector.shape_cast %97 : vector<8x8xf32> to vector<1x8x8xf32>
    %102 = vector.shape_cast %98 : vector<8x8xf32> to vector<1x8x8xf32>
    %103 = vector.shape_cast %99 : vector<8x8xf32> to vector<1x8x8xf32>
    %104 = vector.shape_cast %100 : vector<8x8xf32> to vector<1x8x8xf32>
    %105 = tpu.concatenate %101, %102, %103, %104 in 0 : vector<1x8x8xf32>, vector<1x8x8xf32>, vector<1x8x8xf32>, vector<1x8x8xf32> -> vector<4x8x8xf32>
    %106 = vector.extract_strided_slice %87 {offsets = [0, 0], sizes = [8, 8], strides = [1, 1]} : vector<8x32xf32> to vector<8x8xf32>
    %107 = vector.extract_strided_slice %87 {offsets = [0, 8], sizes = [8, 8], strides = [1, 1]} : vector<8x32xf32> to vector<8x8xf32>
    %108 = vector.extract_strided_slice %87 {offsets = [0, 16], sizes = [8, 8], strides = [1, 1]} : vector<8x32xf32> to vector<8x8xf32>
    %109 = vector.extract_strided_slice %87 {offsets = [0, 24], sizes = [8, 8], strides = [1, 1]} : vector<8x32xf32> to vector<8x8xf32>
    %110 = vector.shape_cast %106 : vector<8x8xf32> to vector<1x8x8xf32>
    %111 = vector.shape_cast %107 : vector<8x8xf32> to vector<1x8x8xf32>
    %112 = vector.shape_cast %108 : vector<8x8xf32> to vector<1x8x8xf32>
    %113 = vector.shape_cast %109 : vector<8x8xf32> to vector<1x8x8xf32>
    %114 = tpu.concatenate %110, %111, %112, %113 in 0 : vector<1x8x8xf32>, vector<1x8x8xf32>, vector<1x8x8xf32>, vector<1x8x8xf32> -> vector<4x8x8xf32>
    %115 = arith.truncf %96 : vector<4x8x8xf32> to vector<4x8x8xbf16>
    %116 = arith.truncf %105 : vector<4x8x8xf32> to vector<4x8x8xbf16>
    "tpu.trace_start"() <{level = 10 : i32, message = "hqd,hkd->hqk"}> : () -> ()
    %cst_152 = arith.constant dense<0.000000e+00> : vector<4x8x8xf32>
    %117 = tpu.matmul %115, %116, %cst_152 {dimension_numbers = #tpu.dot_dimension_numbers<[2], [2], [1], [1], [0, 0, 0, 1, 1, 1], [0], [0]>} : vector<4x8x8xbf16>, vector<4x8x8xbf16>, vector<4x8x8xf32> -> vector<4x8x8xf32>
    "tpu.trace_stop"() : () -> ()
    %cst_153 = arith.constant 0.353553385 : f32
    %118 = vector.broadcast %cst_153 : f32 to vector<4x8x8xf32>
    %119 = arith.mulf %117, %118 : vector<4x8x8xf32>
    %cst_154 = arith.constant dense<0xFF800000> : vector<4x8xf32>
    %120 = vector.multi_reduction <maximumf>, %119, %cst_154 [2] : vector<4x8x8xf32> to vector<4x8xf32>
    %121 = vector.shape_cast %120 : vector<4x8xf32> to vector<4x8x1xf32>
    %122 = vector.broadcast %121 : vector<4x8x1xf32> to vector<4x8x8xf32>
    %123 = arith.subf %119, %122 : vector<4x8x8xf32>
    %124 = math.exp %123 : vector<4x8x8xf32>
    %cst_155 = arith.constant dense<0.000000e+00> : vector<4x8xf32>
    %125 = vector.multi_reduction <add>, %124, %cst_155 [2] : vector<4x8x8xf32> to vector<4x8xf32>
    %126 = vector.shape_cast %125 : vector<4x8xf32> to vector<4x8x1xf32>
    %127 = tpu.reciprocal %126 {approx = true} : vector<4x8x1xf32> -> vector<4x8x1xf32>
    %128 = vector.broadcast %127 : vector<4x8x1xf32> to vector<4x8x8xf32>
    %129 = arith.mulf %124, %128 : vector<4x8x8xf32>
    %130 = arith.truncf %129 : vector<4x8x8xf32> to vector<4x8x8xbf16>
    %131 = arith.truncf %114 : vector<4x8x8xf32> to vector<4x8x8xbf16>
    "tpu.trace_start"() <{level = 10 : i32, message = "hqk,hkd->hqd"}> : () -> ()
    %cst_156 = arith.constant dense<0.000000e+00> : vector<4x8x8xf32>
    %132 = tpu.matmul %130, %131, %cst_156 {dimension_numbers = #tpu.dot_dimension_numbers<[2], [1], [1], [2], [0, 0, 0, 1, 1, 2], [0], [0]>} : vector<4x8x8xbf16>, vector<4x8x8xbf16>, vector<4x8x8xf32> -> vector<4x8x8xf32>
    "tpu.trace_stop"() : () -> ()
    %133 = vector.extract_strided_slice %132 {offsets = [0, 0, 0], sizes = [1, 8, 8], strides = [1, 1, 1]} : vector<4x8x8xf32> to vector<1x8x8xf32>
    %134 = vector.shape_cast %133 : vector<1x8x8xf32> to vector<8x8xf32>
    %135 = vector.extract_strided_slice %132 {offsets = [1, 0, 0], sizes = [1, 8, 8], strides = [1, 1, 1]} : vector<4x8x8xf32> to vector<1x8x8xf32>
    %136 = vector.shape_cast %135 : vector<1x8x8xf32> to vector<8x8xf32>
    %137 = vector.extract_strided_slice %132 {offsets = [2, 0, 0], sizes = [1, 8, 8], strides = [1, 1, 1]} : vector<4x8x8xf32> to vector<1x8x8xf32>
    %138 = vector.shape_cast %137 : vector<1x8x8xf32> to vector<8x8xf32>
    %139 = vector.extract_strided_slice %132 {offsets = [3, 0, 0], sizes = [1, 8, 8], strides = [1, 1, 1]} : vector<4x8x8xf32> to vector<1x8x8xf32>
    %140 = vector.shape_cast %139 : vector<1x8x8xf32> to vector<8x8xf32>
    %141 = tpu.concatenate %134, %136, %138, %140 in 1 : vector<8x8xf32>, vector<8x8xf32>, vector<8x8xf32>, vector<8x8xf32> -> vector<8x32xf32>
    %142 = arith.truncf %141 : vector<8x32xf32> to vector<8x32xbf16>
    %cst_157 = arith.constant dense<0.000000e+00> : vector<8x32xf32>
    %143 = tpu.matmul %142, %44, %cst_157 {dimension_numbers = #tpu.dot_dimension_numbers<[1], [0], [0], [1], [0, 0, 1, 1], [], []>} : vector<8x32xbf16>, vector<32x32xbf16>, vector<8x32xf32> -> vector<8x32xf32>
    %144 = vector.broadcast %42 : vector<1x32xf32> to vector<8x32xf32>
    %145 = arith.addf %143, %144 : vector<8x32xf32>
    %146 = arith.addf %80, %145 : vector<8x32xf32>
    %cst_158 = arith.constant dense<0.000000e+00> : vector<8xf32>
    %147 = vector.multi_reduction <add>, %146, %cst_158 [1] : vector<8x32xf32> to vector<8xf32>
    %148 = vector.shape_cast %147 : vector<8xf32> to vector<8x1xf32>
    %cst_159 = arith.constant 3.200000e+01 : f32
    %149 = vector.broadcast %cst_159 : f32 to vector<8x1xf32>
    %150 = arith.divf %148, %149 : vector<8x1xf32>
    %151 = vector.broadcast %150 : vector<8x1xf32> to vector<8x32xf32>
    %152 = arith.subf %146, %151 : vector<8x32xf32>
    %153 = arith.mulf %152, %152 : vector<8x32xf32>
    %cst_160 = arith.constant dense<0.000000e+00> : vector<8xf32>
    %154 = vector.multi_reduction <add>, %153, %cst_160 [1] : vector<8x32xf32> to vector<8xf32>
    %155 = vector.shape_cast %154 : vector<8xf32> to vector<8x1xf32>
    %cst_161 = arith.constant 3.200000e+01 : f32
    %156 = vector.broadcast %cst_161 : f32 to vector<8x1xf32>
    %157 = arith.divf %155, %156 : vector<8x1xf32>
    %cst_162 = arith.constant 9.99999974E-6 : f32
    %158 = vector.broadcast %cst_162 : f32 to vector<8x1xf32>
    %159 = arith.addf %157, %158 : vector<8x1xf32>
    %160 = math.rsqrt %159 : vector<8x1xf32>
    %161 = vector.broadcast %160 : vector<8x1xf32> to vector<8x32xf32>
    %162 = arith.mulf %152, %161 : vector<8x32xf32>
    %163 = vector.broadcast %49 : vector<1x32xf32> to vector<8x32xf32>
    %164 = arith.mulf %162, %163 : vector<8x32xf32>
    %165 = vector.broadcast %48 : vector<1x32xf32> to vector<8x32xf32>
    %166 = arith.addf %164, %165 : vector<8x32xf32>
    %167 = arith.truncf %166 : vector<8x32xf32> to vector<8x32xbf16>
    %cst_163 = arith.constant dense<0.000000e+00> : vector<8x64xf32>
    %168 = tpu.matmul %167, %52, %cst_163 {dimension_numbers = #tpu.dot_dimension_numbers<[1], [0], [0], [1], [0, 0, 1, 1], [], []>} : vector<8x32xbf16>, vector<32x64xbf16>, vector<8x64xf32> -> vector<8x64xf32>
    %169 = vector.broadcast %46 : vector<1x64xf32> to vector<8x64xf32>
    %170 = arith.addf %168, %169 : vector<8x64xf32>
    %cst_164 = arith.constant 0.000000e+00 : f32
    %171 = vector.broadcast %cst_164 : f32 to vector<8x64xf32>
    %172 = arith.maximumf %170, %171 : vector<8x64xf32>
    %173 = arith.truncf %172 : vector<8x64xf32> to vector<8x64xbf16>
    %cst_165 = arith.constant dense<0.000000e+00> : vector<8x32xf32>
    %174 = tpu.matmul %173, %53, %cst_165 {dimension_numbers = #tpu.dot_dimension_numbers<[1], [0], [0], [1], [0, 0, 1, 1], [], []>} : vector<8x64xbf16>, vector<64x32xbf16>, vector<8x32xf32> -> vector<8x32xf32>
    %175 = vector.broadcast %47 : vector<1x32xf32> to vector<8x32xf32>
    %176 = arith.addf %174, %175 : vector<8x32xf32>
    %177 = arith.addf %166, %176 : vector<8x32xf32>
    %cst_166 = arith.constant dense<0.000000e+00> : vector<8xf32>
    %178 = vector.multi_reduction <add>, %177, %cst_166 [1] : vector<8x32xf32> to vector<8xf32>
    %179 = vector.shape_cast %178 : vector<8xf32> to vector<8x1xf32>
    %cst_167 = arith.constant 3.200000e+01 : f32
    %180 = vector.broadcast %cst_167 : f32 to vector<8x1xf32>
    %181 = arith.divf %179, %180 : vector<8x1xf32>
    %182 = vector.broadcast %181 : vector<8x1xf32> to vector<8x32xf32>
    %183 = arith.subf %177, %182 : vector<8x32xf32>
    %184 = arith.mulf %183, %183 : vector<8x32xf32>
    %cst_168 = arith.constant dense<0.000000e+00> : vector<8xf32>
    %185 = vector.multi_reduction <add>, %184, %cst_168 [1] : vector<8x32xf32> to vector<8xf32>
    %186 = vector.shape_cast %185 : vector<8xf32> to vector<8x1xf32>
    %cst_169 = arith.constant 3.200000e+01 : f32
    %187 = vector.broadcast %cst_169 : f32 to vector<8x1xf32>
    %188 = arith.divf %186, %187 : vector<8x1xf32>
    %cst_170 = arith.constant 9.99999974E-6 : f32
    %189 = vector.broadcast %cst_170 : f32 to vector<8x1xf32>
    %190 = arith.addf %188, %189 : vector<8x1xf32>
    %191 = math.rsqrt %190 : vector<8x1xf32>
    %192 = vector.broadcast %191 : vector<8x1xf32> to vector<8x32xf32>
    %193 = arith.mulf %183, %192 : vector<8x32xf32>
    %194 = vector.broadcast %51 : vector<1x32xf32> to vector<8x32xf32>
    %195 = arith.mulf %193, %194 : vector<8x32xf32>
    %196 = vector.broadcast %50 : vector<1x32xf32> to vector<8x32xf32>
    %197 = arith.addf %195, %196 : vector<8x32xf32>
    %198 = arith.truncf %197 : vector<8x32xf32> to vector<8x32xbf16>
    %cst_171 = arith.constant dense<0.000000e+00> : vector<8x96xf32>
    %199 = tpu.matmul %198, %57, %cst_171 {dimension_numbers = #tpu.dot_dimension_numbers<[1], [0], [0], [1], [0, 0, 1, 1], [], []>} : vector<8x32xbf16>, vector<32x96xbf16>, vector<8x96xf32> -> vector<8x96xf32>
    %200 = vector.broadcast %55 : vector<1x96xf32> to vector<8x96xf32>
    %201 = arith.addf %199, %200 : vector<8x96xf32>
    %202 = vector.extract_strided_slice %201 {offsets = [0, 0], sizes = [8, 32], strides = [1, 1]} : vector<8x96xf32> to vector<8x32xf32>
    %203 = vector.extract_strided_slice %201 {offsets = [0, 32], sizes = [8, 32], strides = [1, 1]} : vector<8x96xf32> to vector<8x32xf32>
    %204 = vector.extract_strided_slice %201 {offsets = [0, 64], sizes = [8, 32], strides = [1, 1]} : vector<8x96xf32> to vector<8x32xf32>
    %205 = vector.extract_strided_slice %202 {offsets = [0, 0], sizes = [8, 8], strides = [1, 1]} : vector<8x32xf32> to vector<8x8xf32>
    %206 = vector.extract_strided_slice %202 {offsets = [0, 8], sizes = [8, 8], strides = [1, 1]} : vector<8x32xf32> to vector<8x8xf32>
    %207 = vector.extract_strided_slice %202 {offsets = [0, 16], sizes = [8, 8], strides = [1, 1]} : vector<8x32xf32> to vector<8x8xf32>
    %208 = vector.extract_strided_slice %202 {offsets = [0, 24], sizes = [8, 8], strides = [1, 1]} : vector<8x32xf32> to vector<8x8xf32>
    %209 = vector.shape_cast %205 : vector<8x8xf32> to vector<1x8x8xf32>
    %210 = vector.shape_cast %206 : vector<8x8xf32> to vector<1x8x8xf32>
    %211 = vector.shape_cast %207 : vector<8x8xf32> to vector<1x8x8xf32>
    %212 = vector.shape_cast %208 : vector<8x8xf32> to vector<1x8x8xf32>
    %213 = tpu.concatenate %209, %210, %211, %212 in 0 : vector<1x8x8xf32>, vector<1x8x8xf32>, vector<1x8x8xf32>, vector<1x8x8xf32> -> vector<4x8x8xf32>
    %214 = vector.extract_strided_slice %203 {offsets = [0, 0], sizes = [8, 8], strides = [1, 1]} : vector<8x32xf32> to vector<8x8xf32>
    %215 = vector.extract_strided_slice %203 {offsets = [0, 8], sizes = [8, 8], strides = [1, 1]} : vector<8x32xf32> to vector<8x8xf32>
    %216 = vector.extract_strided_slice %203 {offsets = [0, 16], sizes = [8, 8], strides = [1, 1]} : vector<8x32xf32> to vector<8x8xf32>
    %217 = vector.extract_strided_slice %203 {offsets = [0, 24], sizes = [8, 8], strides = [1, 1]} : vector<8x32xf32> to vector<8x8xf32>
    %218 = vector.shape_cast %214 : vector<8x8xf32> to vector<1x8x8xf32>
    %219 = vector.shape_cast %215 : vector<8x8xf32> to vector<1x8x8xf32>
    %220 = vector.shape_cast %216 : vector<8x8xf32> to vector<1x8x8xf32>
    %221 = vector.shape_cast %217 : vector<8x8xf32> to vector<1x8x8xf32>
    %222 = tpu.concatenate %218, %219, %220, %221 in 0 : vector<1x8x8xf32>, vector<1x8x8xf32>, vector<1x8x8xf32>, vector<1x8x8xf32> -> vector<4x8x8xf32>
    %223 = vector.extract_strided_slice %204 {offsets = [0, 0], sizes = [8, 8], strides = [1, 1]} : vector<8x32xf32> to vector<8x8xf32>
    %224 = vector.extract_strided_slice %204 {offsets = [0, 8], sizes = [8, 8], strides = [1, 1]} : vector<8x32xf32> to vector<8x8xf32>
    %225 = vector.extract_strided_slice %204 {offsets = [0, 16], sizes = [8, 8], strides = [1, 1]} : vector<8x32xf32> to vector<8x8xf32>
    %226 = vector.extract_strided_slice %204 {offsets = [0, 24], sizes = [8, 8], strides = [1, 1]} : vector<8x32xf32> to vector<8x8xf32>
    %227 = vector.shape_cast %223 : vector<8x8xf32> to vector<1x8x8xf32>
    %228 = vector.shape_cast %224 : vector<8x8xf32> to vector<1x8x8xf32>
    %229 = vector.shape_cast %225 : vector<8x8xf32> to vector<1x8x8xf32>
    %230 = vector.shape_cast %226 : vector<8x8xf32> to vector<1x8x8xf32>
    %231 = tpu.concatenate %227, %228, %229, %230 in 0 : vector<1x8x8xf32>, vector<1x8x8xf32>, vector<1x8x8xf32>, vector<1x8x8xf32> -> vector<4x8x8xf32>
    %232 = arith.truncf %213 : vector<4x8x8xf32> to vector<4x8x8xbf16>
    %233 = arith.truncf %222 : vector<4x8x8xf32> to vector<4x8x8xbf16>
    "tpu.trace_start"() <{level = 10 : i32, message = "hqd,hkd->hqk"}> : () -> ()
    %cst_172 = arith.constant dense<0.000000e+00> : vector<4x8x8xf32>
    %234 = tpu.matmul %232, %233, %cst_172 {dimension_numbers = #tpu.dot_dimension_numbers<[2], [2], [1], [1], [0, 0, 0, 1, 1, 1], [0], [0]>} : vector<4x8x8xbf16>, vector<4x8x8xbf16>, vector<4x8x8xf32> -> vector<4x8x8xf32>
    "tpu.trace_stop"() : () -> ()
    %cst_173 = arith.constant 0.353553385 : f32
    %235 = vector.broadcast %cst_173 : f32 to vector<4x8x8xf32>
    %236 = arith.mulf %234, %235 : vector<4x8x8xf32>
    %cst_174 = arith.constant dense<0xFF800000> : vector<4x8xf32>
    %237 = vector.multi_reduction <maximumf>, %236, %cst_174 [2] : vector<4x8x8xf32> to vector<4x8xf32>
    %238 = vector.shape_cast %237 : vector<4x8xf32> to vector<4x8x1xf32>
    %239 = vector.broadcast %238 : vector<4x8x1xf32> to vector<4x8x8xf32>
    %240 = arith.subf %236, %239 : vector<4x8x8xf32>
    %241 = math.exp %240 : vector<4x8x8xf32>
    %cst_175 = arith.constant dense<0.000000e+00> : vector<4x8xf32>
    %242 = vector.multi_reduction <add>, %241, %cst_175 [2] : vector<4x8x8xf32> to vector<4x8xf32>
    %243 = vector.shape_cast %242 : vector<4x8xf32> to vector<4x8x1xf32>
    %244 = tpu.reciprocal %243 {approx = true} : vector<4x8x1xf32> -> vector<4x8x1xf32>
    %245 = vector.broadcast %244 : vector<4x8x1xf32> to vector<4x8x8xf32>
    %246 = arith.mulf %241, %245 : vector<4x8x8xf32>
    %247 = arith.truncf %246 : vector<4x8x8xf32> to vector<4x8x8xbf16>
    %248 = arith.truncf %231 : vector<4x8x8xf32> to vector<4x8x8xbf16>
    "tpu.trace_start"() <{level = 10 : i32, message = "hqk,hkd->hqd"}> : () -> ()
    %cst_176 = arith.constant dense<0.000000e+00> : vector<4x8x8xf32>
    %249 = tpu.matmul %247, %248, %cst_176 {dimension_numbers = #tpu.dot_dimension_numbers<[2], [1], [1], [2], [0, 0, 0, 1, 1, 2], [0], [0]>} : vector<4x8x8xbf16>, vector<4x8x8xbf16>, vector<4x8x8xf32> -> vector<4x8x8xf32>
    "tpu.trace_stop"() : () -> ()
    %250 = vector.extract_strided_slice %249 {offsets = [0, 0, 0], sizes = [1, 8, 8], strides = [1, 1, 1]} : vector<4x8x8xf32> to vector<1x8x8xf32>
    %251 = vector.shape_cast %250 : vector<1x8x8xf32> to vector<8x8xf32>
    %252 = vector.extract_strided_slice %249 {offsets = [1, 0, 0], sizes = [1, 8, 8], strides = [1, 1, 1]} : vector<4x8x8xf32> to vector<1x8x8xf32>
    %253 = vector.shape_cast %252 : vector<1x8x8xf32> to vector<8x8xf32>
    %254 = vector.extract_strided_slice %249 {offsets = [2, 0, 0], sizes = [1, 8, 8], strides = [1, 1, 1]} : vector<4x8x8xf32> to vector<1x8x8xf32>
    %255 = vector.shape_cast %254 : vector<1x8x8xf32> to vector<8x8xf32>
    %256 = vector.extract_strided_slice %249 {offsets = [3, 0, 0], sizes = [1, 8, 8], strides = [1, 1, 1]} : vector<4x8x8xf32> to vector<1x8x8xf32>
    %257 = vector.shape_cast %256 : vector<1x8x8xf32> to vector<8x8xf32>
    %258 = tpu.concatenate %251, %253, %255, %257 in 1 : vector<8x8xf32>, vector<8x8xf32>, vector<8x8xf32>, vector<8x8xf32> -> vector<8x32xf32>
    %259 = arith.truncf %258 : vector<8x32xf32> to vector<8x32xbf16>
    %cst_177 = arith.constant dense<0.000000e+00> : vector<8x32xf32>
    %260 = tpu.matmul %259, %56, %cst_177 {dimension_numbers = #tpu.dot_dimension_numbers<[1], [0], [0], [1], [0, 0, 1, 1], [], []>} : vector<8x32xbf16>, vector<32x32xbf16>, vector<8x32xf32> -> vector<8x32xf32>
    %261 = vector.broadcast %54 : vector<1x32xf32> to vector<8x32xf32>
    %262 = arith.addf %260, %261 : vector<8x32xf32>
    %263 = arith.addf %197, %262 : vector<8x32xf32>
    %cst_178 = arith.constant dense<0.000000e+00> : vector<8xf32>
    %264 = vector.multi_reduction <add>, %263, %cst_178 [1] : vector<8x32xf32> to vector<8xf32>
    %265 = vector.shape_cast %264 : vector<8xf32> to vector<8x1xf32>
    %cst_179 = arith.constant 3.200000e+01 : f32
    %266 = vector.broadcast %cst_179 : f32 to vector<8x1xf32>
    %267 = arith.divf %265, %266 : vector<8x1xf32>
    %268 = vector.broadcast %267 : vector<8x1xf32> to vector<8x32xf32>
    %269 = arith.subf %263, %268 : vector<8x32xf32>
    %270 = arith.mulf %269, %269 : vector<8x32xf32>
    %cst_180 = arith.constant dense<0.000000e+00> : vector<8xf32>
    %271 = vector.multi_reduction <add>, %270, %cst_180 [1] : vector<8x32xf32> to vector<8xf32>
    %272 = vector.shape_cast %271 : vector<8xf32> to vector<8x1xf32>
    %cst_181 = arith.constant 3.200000e+01 : f32
    %273 = vector.broadcast %cst_181 : f32 to vector<8x1xf32>
    %274 = arith.divf %272, %273 : vector<8x1xf32>
    %cst_182 = arith.constant 9.99999974E-6 : f32
    %275 = vector.broadcast %cst_182 : f32 to vector<8x1xf32>
    %276 = arith.addf %274, %275 : vector<8x1xf32>
    %277 = math.rsqrt %276 : vector<8x1xf32>
    %278 = vector.broadcast %277 : vector<8x1xf32> to vector<8x32xf32>
    %279 = arith.mulf %269, %278 : vector<8x32xf32>
    %280 = vector.broadcast %61 : vector<1x32xf32> to vector<8x32xf32>
    %281 = arith.mulf %279, %280 : vector<8x32xf32>
    %282 = vector.broadcast %60 : vector<1x32xf32> to vector<8x32xf32>
    %283 = arith.addf %281, %282 : vector<8x32xf32>
    %284 = arith.truncf %283 : vector<8x32xf32> to vector<8x32xbf16>
    %cst_183 = arith.constant dense<0.000000e+00> : vector<8x64xf32>
    %285 = tpu.matmul %284, %64, %cst_183 {dimension_numbers = #tpu.dot_dimension_numbers<[1], [0], [0], [1], [0, 0, 1, 1], [], []>} : vector<8x32xbf16>, vector<32x64xbf16>, vector<8x64xf32> -> vector<8x64xf32>
    %286 = vector.broadcast %58 : vector<1x64xf32> to vector<8x64xf32>
    %287 = arith.addf %285, %286 : vector<8x64xf32>
    %cst_184 = arith.constant 0.000000e+00 : f32
    %288 = vector.broadcast %cst_184 : f32 to vector<8x64xf32>
    %289 = arith.maximumf %287, %288 : vector<8x64xf32>
    %290 = arith.truncf %289 : vector<8x64xf32> to vector<8x64xbf16>
    %cst_185 = arith.constant dense<0.000000e+00> : vector<8x32xf32>
    %291 = tpu.matmul %290, %65, %cst_185 {dimension_numbers = #tpu.dot_dimension_numbers<[1], [0], [0], [1], [0, 0, 1, 1], [], []>} : vector<8x64xbf16>, vector<64x32xbf16>, vector<8x32xf32> -> vector<8x32xf32>
    %292 = vector.broadcast %59 : vector<1x32xf32> to vector<8x32xf32>
    %293 = arith.addf %291, %292 : vector<8x32xf32>
    %294 = arith.addf %283, %293 : vector<8x32xf32>
    %cst_186 = arith.constant dense<0.000000e+00> : vector<8xf32>
    %295 = vector.multi_reduction <add>, %294, %cst_186 [1] : vector<8x32xf32> to vector<8xf32>
    %296 = vector.shape_cast %295 : vector<8xf32> to vector<8x1xf32>
    %cst_187 = arith.constant 3.200000e+01 : f32
    %297 = vector.broadcast %cst_187 : f32 to vector<8x1xf32>
    %298 = arith.divf %296, %297 : vector<8x1xf32>
    %299 = vector.broadcast %298 : vector<8x1xf32> to vector<8x32xf32>
    %300 = arith.subf %294, %299 : vector<8x32xf32>
    %301 = arith.mulf %300, %300 : vector<8x32xf32>
    %cst_188 = arith.constant dense<0.000000e+00> : vector<8xf32>
    %302 = vector.multi_reduction <add>, %301, %cst_188 [1] : vector<8x32xf32> to vector<8xf32>
    %303 = vector.shape_cast %302 : vector<8xf32> to vector<8x1xf32>
    %cst_189 = arith.constant 3.200000e+01 : f32
    %304 = vector.broadcast %cst_189 : f32 to vector<8x1xf32>
    %305 = arith.divf %303, %304 : vector<8x1xf32>
    %cst_190 = arith.constant 9.99999974E-6 : f32
    %306 = vector.broadcast %cst_190 : f32 to vector<8x1xf32>
    %307 = arith.addf %305, %306 : vector<8x1xf32>
    %308 = math.rsqrt %307 : vector<8x1xf32>
    %309 = vector.broadcast %308 : vector<8x1xf32> to vector<8x32xf32>
    %310 = arith.mulf %300, %309 : vector<8x32xf32>
    %311 = vector.broadcast %63 : vector<1x32xf32> to vector<8x32xf32>
    %312 = arith.mulf %310, %311 : vector<8x32xf32>
    %313 = vector.broadcast %62 : vector<1x32xf32> to vector<8x32xf32>
    %314 = arith.addf %312, %313 : vector<8x32xf32>
    %cst_191 = arith.constant dense<0.000000e+00> : vector<8xf32>
    %315 = vector.multi_reduction <add>, %314, %cst_191 [1] : vector<8x32xf32> to vector<8xf32>
    %316 = vector.shape_cast %315 : vector<8xf32> to vector<8x1xf32>
    %cst_192 = arith.constant 3.200000e+01 : f32
    %317 = vector.broadcast %cst_192 : f32 to vector<8x1xf32>
    %318 = arith.divf %316, %317 : vector<8x1xf32>
    %319 = vector.broadcast %318 : vector<8x1xf32> to vector<8x32xf32>
    %320 = arith.subf %314, %319 : vector<8x32xf32>
    %321 = arith.mulf %320, %320 : vector<8x32xf32>
    %cst_193 = arith.constant dense<0.000000e+00> : vector<8xf32>
    %322 = vector.multi_reduction <add>, %321, %cst_193 [1] : vector<8x32xf32> to vector<8xf32>
    %323 = vector.shape_cast %322 : vector<8xf32> to vector<8x1xf32>
    %cst_194 = arith.constant 3.200000e+01 : f32
    %324 = vector.broadcast %cst_194 : f32 to vector<8x1xf32>
    %325 = arith.divf %323, %324 : vector<8x1xf32>
    %cst_195 = arith.constant 9.99999974E-6 : f32
    %326 = vector.broadcast %cst_195 : f32 to vector<8x1xf32>
    %327 = arith.addf %325, %326 : vector<8x1xf32>
    %328 = math.rsqrt %327 : vector<8x1xf32>
    %329 = vector.broadcast %328 : vector<8x1xf32> to vector<8x32xf32>
    %330 = arith.mulf %320, %329 : vector<8x32xf32>
    %331 = vector.broadcast %67 : vector<1x32xf32> to vector<8x32xf32>
    %332 = arith.mulf %330, %331 : vector<8x32xf32>
    %333 = vector.broadcast %66 : vector<1x32xf32> to vector<8x32xf32>
    %334 = arith.addf %332, %333 : vector<8x32xf32>
    %335 = arith.truncf %75 : vector<8x32xf32> to vector<8x32xbf16>
    %cst_196 = arith.constant dense<0.000000e+00> : vector<8x96xf32>
    %336 = tpu.matmul %335, %17, %cst_196 {dimension_numbers = #tpu.dot_dimension_numbers<[1], [0], [0], [1], [0, 0, 1, 1], [], []>} : vector<8x32xbf16>, vector<32x96xbf16>, vector<8x96xf32> -> vector<8x96xf32>
    %337 = vector.broadcast %15 : vector<1x96xf32> to vector<8x96xf32>
    %338 = arith.addf %336, %337 : vector<8x96xf32>
    %339 = vector.extract_strided_slice %338 {offsets = [0, 0], sizes = [8, 32], strides = [1, 1]} : vector<8x96xf32> to vector<8x32xf32>
    %340 = vector.extract_strided_slice %338 {offsets = [0, 32], sizes = [8, 32], strides = [1, 1]} : vector<8x96xf32> to vector<8x32xf32>
    %341 = vector.extract_strided_slice %338 {offsets = [0, 64], sizes = [8, 32], strides = [1, 1]} : vector<8x96xf32> to vector<8x32xf32>
    %342 = vector.extract_strided_slice %339 {offsets = [0, 0], sizes = [8, 8], strides = [1, 1]} : vector<8x32xf32> to vector<8x8xf32>
    %343 = vector.extract_strided_slice %339 {offsets = [0, 8], sizes = [8, 8], strides = [1, 1]} : vector<8x32xf32> to vector<8x8xf32>
    %344 = vector.extract_strided_slice %339 {offsets = [0, 16], sizes = [8, 8], strides = [1, 1]} : vector<8x32xf32> to vector<8x8xf32>
    %345 = vector.extract_strided_slice %339 {offsets = [0, 24], sizes = [8, 8], strides = [1, 1]} : vector<8x32xf32> to vector<8x8xf32>
    %346 = vector.shape_cast %342 : vector<8x8xf32> to vector<1x8x8xf32>
    %347 = vector.shape_cast %343 : vector<8x8xf32> to vector<1x8x8xf32>
    %348 = vector.shape_cast %344 : vector<8x8xf32> to vector<1x8x8xf32>
    %349 = vector.shape_cast %345 : vector<8x8xf32> to vector<1x8x8xf32>
    %350 = tpu.concatenate %346, %347, %348, %349 in 0 : vector<1x8x8xf32>, vector<1x8x8xf32>, vector<1x8x8xf32>, vector<1x8x8xf32> -> vector<4x8x8xf32>
    %351 = vector.extract_strided_slice %340 {offsets = [0, 0], sizes = [8, 8], strides = [1, 1]} : vector<8x32xf32> to vector<8x8xf32>
    %352 = vector.extract_strided_slice %340 {offsets = [0, 8], sizes = [8, 8], strides = [1, 1]} : vector<8x32xf32> to vector<8x8xf32>
    %353 = vector.extract_strided_slice %340 {offsets = [0, 16], sizes = [8, 8], strides = [1, 1]} : vector<8x32xf32> to vector<8x8xf32>
    %354 = vector.extract_strided_slice %340 {offsets = [0, 24], sizes = [8, 8], strides = [1, 1]} : vector<8x32xf32> to vector<8x8xf32>
    %355 = vector.shape_cast %351 : vector<8x8xf32> to vector<1x8x8xf32>
    %356 = vector.shape_cast %352 : vector<8x8xf32> to vector<1x8x8xf32>
    %357 = vector.shape_cast %353 : vector<8x8xf32> to vector<1x8x8xf32>
    %358 = vector.shape_cast %354 : vector<8x8xf32> to vector<1x8x8xf32>
    %359 = tpu.concatenate %355, %356, %357, %358 in 0 : vector<1x8x8xf32>, vector<1x8x8xf32>, vector<1x8x8xf32>, vector<1x8x8xf32> -> vector<4x8x8xf32>
    %360 = vector.extract_strided_slice %341 {offsets = [0, 0], sizes = [8, 8], strides = [1, 1]} : vector<8x32xf32> to vector<8x8xf32>
    %361 = vector.extract_strided_slice %341 {offsets = [0, 8], sizes = [8, 8], strides = [1, 1]} : vector<8x32xf32> to vector<8x8xf32>
    %362 = vector.extract_strided_slice %341 {offsets = [0, 16], sizes = [8, 8], strides = [1, 1]} : vector<8x32xf32> to vector<8x8xf32>
    %363 = vector.extract_strided_slice %341 {offsets = [0, 24], sizes = [8, 8], strides = [1, 1]} : vector<8x32xf32> to vector<8x8xf32>
    %364 = vector.shape_cast %360 : vector<8x8xf32> to vector<1x8x8xf32>
    %365 = vector.shape_cast %361 : vector<8x8xf32> to vector<1x8x8xf32>
    %366 = vector.shape_cast %362 : vector<8x8xf32> to vector<1x8x8xf32>
    %367 = vector.shape_cast %363 : vector<8x8xf32> to vector<1x8x8xf32>
    %368 = tpu.concatenate %364, %365, %366, %367 in 0 : vector<1x8x8xf32>, vector<1x8x8xf32>, vector<1x8x8xf32>, vector<1x8x8xf32> -> vector<4x8x8xf32>
    %369 = arith.truncf %350 : vector<4x8x8xf32> to vector<4x8x8xbf16>
    %370 = arith.truncf %359 : vector<4x8x8xf32> to vector<4x8x8xbf16>
    "tpu.trace_start"() <{level = 10 : i32, message = "hqd,hkd->hqk"}> : () -> ()
    %cst_197 = arith.constant dense<0.000000e+00> : vector<4x8x8xf32>
    %371 = tpu.matmul %369, %370, %cst_197 {dimension_numbers = #tpu.dot_dimension_numbers<[2], [2], [1], [1], [0, 0, 0, 1, 1, 1], [0], [0]>} : vector<4x8x8xbf16>, vector<4x8x8xbf16>, vector<4x8x8xf32> -> vector<4x8x8xf32>
    "tpu.trace_stop"() : () -> ()
    %cst_198 = arith.constant 0.353553385 : f32
    %372 = vector.broadcast %cst_198 : f32 to vector<4x8x8xf32>
    %373 = arith.mulf %371, %372 : vector<4x8x8xf32>
    %374 = vector.shape_cast %76 : vector<8x8xf32> to vector<1x8x8xf32>
    %375 = vector.broadcast %374 : vector<1x8x8xf32> to vector<4x8x8xf32>
    %376 = arith.addf %373, %375 : vector<4x8x8xf32>
    %cst_199 = arith.constant dense<0xFF800000> : vector<4x8xf32>
    %377 = vector.multi_reduction <maximumf>, %376, %cst_199 [2] : vector<4x8x8xf32> to vector<4x8xf32>
    %378 = vector.shape_cast %377 : vector<4x8xf32> to vector<4x8x1xf32>
    %379 = vector.broadcast %378 : vector<4x8x1xf32> to vector<4x8x8xf32>
    %380 = arith.subf %376, %379 : vector<4x8x8xf32>
    %381 = math.exp %380 : vector<4x8x8xf32>
    %cst_200 = arith.constant dense<0.000000e+00> : vector<4x8xf32>
    %382 = vector.multi_reduction <add>, %381, %cst_200 [2] : vector<4x8x8xf32> to vector<4x8xf32>
    %383 = vector.shape_cast %382 : vector<4x8xf32> to vector<4x8x1xf32>
    %384 = tpu.reciprocal %383 {approx = true} : vector<4x8x1xf32> -> vector<4x8x1xf32>
    %385 = vector.broadcast %384 : vector<4x8x1xf32> to vector<4x8x8xf32>
    %386 = arith.mulf %381, %385 : vector<4x8x8xf32>
    %387 = arith.truncf %386 : vector<4x8x8xf32> to vector<4x8x8xbf16>
    %388 = arith.truncf %368 : vector<4x8x8xf32> to vector<4x8x8xbf16>
    "tpu.trace_start"() <{level = 10 : i32, message = "hqk,hkd->hqd"}> : () -> ()
    %cst_201 = arith.constant dense<0.000000e+00> : vector<4x8x8xf32>
    %389 = tpu.matmul %387, %388, %cst_201 {dimension_numbers = #tpu.dot_dimension_numbers<[2], [1], [1], [2], [0, 0, 0, 1, 1, 2], [0], [0]>} : vector<4x8x8xbf16>, vector<4x8x8xbf16>, vector<4x8x8xf32> -> vector<4x8x8xf32>
    "tpu.trace_stop"() : () -> ()
    %390 = vector.extract_strided_slice %389 {offsets = [0, 0, 0], sizes = [1, 8, 8], strides = [1, 1, 1]} : vector<4x8x8xf32> to vector<1x8x8xf32>
    %391 = vector.shape_cast %390 : vector<1x8x8xf32> to vector<8x8xf32>
    %392 = vector.extract_strided_slice %389 {offsets = [1, 0, 0], sizes = [1, 8, 8], strides = [1, 1, 1]} : vector<4x8x8xf32> to vector<1x8x8xf32>
    %393 = vector.shape_cast %392 : vector<1x8x8xf32> to vector<8x8xf32>
    %394 = vector.extract_strided_slice %389 {offsets = [2, 0, 0], sizes = [1, 8, 8], strides = [1, 1, 1]} : vector<4x8x8xf32> to vector<1x8x8xf32>
    %395 = vector.shape_cast %394 : vector<1x8x8xf32> to vector<8x8xf32>
    %396 = vector.extract_strided_slice %389 {offsets = [3, 0, 0], sizes = [1, 8, 8], strides = [1, 1, 1]} : vector<4x8x8xf32> to vector<1x8x8xf32>
    %397 = vector.shape_cast %396 : vector<1x8x8xf32> to vector<8x8xf32>
    %398 = tpu.concatenate %391, %393, %395, %397 in 1 : vector<8x8xf32>, vector<8x8xf32>, vector<8x8xf32>, vector<8x8xf32> -> vector<8x32xf32>
    %399 = arith.truncf %398 : vector<8x32xf32> to vector<8x32xbf16>
    %cst_202 = arith.constant dense<0.000000e+00> : vector<8x32xf32>
    %400 = tpu.matmul %399, %16, %cst_202 {dimension_numbers = #tpu.dot_dimension_numbers<[1], [0], [0], [1], [0, 0, 1, 1], [], []>} : vector<8x32xbf16>, vector<32x32xbf16>, vector<8x32xf32> -> vector<8x32xf32>
    %401 = vector.broadcast %14 : vector<1x32xf32> to vector<8x32xf32>
    %402 = arith.addf %400, %401 : vector<8x32xf32>
    %403 = arith.addf %75, %402 : vector<8x32xf32>
    %cst_203 = arith.constant dense<0.000000e+00> : vector<8xf32>
    %404 = vector.multi_reduction <add>, %403, %cst_203 [1] : vector<8x32xf32> to vector<8xf32>
    %405 = vector.shape_cast %404 : vector<8xf32> to vector<8x1xf32>
    %cst_204 = arith.constant 3.200000e+01 : f32
    %406 = vector.broadcast %cst_204 : f32 to vector<8x1xf32>
    %407 = arith.divf %405, %406 : vector<8x1xf32>
    %408 = vector.broadcast %407 : vector<8x1xf32> to vector<8x32xf32>
    %409 = arith.subf %403, %408 : vector<8x32xf32>
    %410 = arith.mulf %409, %409 : vector<8x32xf32>
    %cst_205 = arith.constant dense<0.000000e+00> : vector<8xf32>
    %411 = vector.multi_reduction <add>, %410, %cst_205 [1] : vector<8x32xf32> to vector<8xf32>
    %412 = vector.shape_cast %411 : vector<8xf32> to vector<8x1xf32>
    %cst_206 = arith.constant 3.200000e+01 : f32
    %413 = vector.broadcast %cst_206 : f32 to vector<8x1xf32>
    %414 = arith.divf %412, %413 : vector<8x1xf32>
    %cst_207 = arith.constant 9.99999974E-6 : f32
    %415 = vector.broadcast %cst_207 : f32 to vector<8x1xf32>
    %416 = arith.addf %414, %415 : vector<8x1xf32>
    %417 = math.rsqrt %416 : vector<8x1xf32>
    %418 = vector.broadcast %417 : vector<8x1xf32> to vector<8x32xf32>
    %419 = arith.mulf %409, %418 : vector<8x32xf32>
    %420 = vector.broadcast %9 : vector<1x32xf32> to vector<8x32xf32>
    %421 = arith.mulf %419, %420 : vector<8x32xf32>
    %422 = vector.broadcast %8 : vector<1x32xf32> to vector<8x32xf32>
    %423 = arith.addf %421, %422 : vector<8x32xf32>
    %424 = arith.truncf %423 : vector<8x32xf32> to vector<8x32xbf16>
    %cst_208 = arith.constant dense<0.000000e+00> : vector<8x32xf32>
    %425 = tpu.matmul %424, %7, %cst_208 {dimension_numbers = #tpu.dot_dimension_numbers<[1], [0], [0], [1], [0, 0, 1, 1], [], []>} : vector<8x32xbf16>, vector<32x32xbf16>, vector<8x32xf32> -> vector<8x32xf32>
    %426 = vector.broadcast %4 : vector<1x32xf32> to vector<8x32xf32>
    %427 = arith.addf %425, %426 : vector<8x32xf32>
    %428 = arith.truncf %334 : vector<8x32xf32> to vector<8x32xbf16>
    %cst_209 = arith.constant dense<0.000000e+00> : vector<8x64xf32>
    %429 = tpu.matmul %428, %5, %cst_209 {dimension_numbers = #tpu.dot_dimension_numbers<[1], [0], [0], [1], [0, 0, 1, 1], [], []>} : vector<8x32xbf16>, vector<32x64xbf16>, vector<8x64xf32> -> vector<8x64xf32>
    %430 = vector.broadcast %2 : vector<1x64xf32> to vector<8x64xf32>
    %431 = arith.addf %429, %430 : vector<8x64xf32>
    %432 = vector.extract_strided_slice %431 {offsets = [0, 0], sizes = [8, 32], strides = [1, 1]} : vector<8x64xf32> to vector<8x32xf32>
    %433 = vector.extract_strided_slice %431 {offsets = [0, 32], sizes = [8, 32], strides = [1, 1]} : vector<8x64xf32> to vector<8x32xf32>
    %434 = vector.extract_strided_slice %427 {offsets = [0, 0], sizes = [8, 8], strides = [1, 1]} : vector<8x32xf32> to vector<8x8xf32>
    %435 = vector.extract_strided_slice %427 {offsets = [0, 8], sizes = [8, 8], strides = [1, 1]} : vector<8x32xf32> to vector<8x8xf32>
    %436 = vector.extract_strided_slice %427 {offsets = [0, 16], sizes = [8, 8], strides = [1, 1]} : vector<8x32xf32> to vector<8x8xf32>
    %437 = vector.extract_strided_slice %427 {offsets = [0, 24], sizes = [8, 8], strides = [1, 1]} : vector<8x32xf32> to vector<8x8xf32>
    %438 = vector.shape_cast %434 : vector<8x8xf32> to vector<1x8x8xf32>
    %439 = vector.shape_cast %435 : vector<8x8xf32> to vector<1x8x8xf32>
    %440 = vector.shape_cast %436 : vector<8x8xf32> to vector<1x8x8xf32>
    %441 = vector.shape_cast %437 : vector<8x8xf32> to vector<1x8x8xf32>
    %442 = tpu.concatenate %438, %439, %440, %441 in 0 : vector<1x8x8xf32>, vector<1x8x8xf32>, vector<1x8x8xf32>, vector<1x8x8xf32> -> vector<4x8x8xf32>
    %443 = vector.extract_strided_slice %432 {offsets = [0, 0], sizes = [8, 8], strides = [1, 1]} : vector<8x32xf32> to vector<8x8xf32>
    %444 = vector.extract_strided_slice %432 {offsets = [0, 8], sizes = [8, 8], strides = [1, 1]} : vector<8x32xf32> to vector<8x8xf32>
    %445 = vector.extract_strided_slice %432 {offsets = [0, 16], sizes = [8, 8], strides = [1, 1]} : vector<8x32xf32> to vector<8x8xf32>
    %446 = vector.extract_strided_slice %432 {offsets = [0, 24], sizes = [8, 8], strides = [1, 1]} : vector<8x32xf32> to vector<8x8xf32>
    %447 = vector.shape_cast %443 : vector<8x8xf32> to vector<1x8x8xf32>
    %448 = vector.shape_cast %444 : vector<8x8xf32> to vector<1x8x8xf32>
    %449 = vector.shape_cast %445 : vector<8x8xf32> to vector<1x8x8xf32>
    %450 = vector.shape_cast %446 : vector<8x8xf32> to vector<1x8x8xf32>
    %451 = tpu.concatenate %447, %448, %449, %450 in 0 : vector<1x8x8xf32>, vector<1x8x8xf32>, vector<1x8x8xf32>, vector<1x8x8xf32> -> vector<4x8x8xf32>
    %452 = vector.extract_strided_slice %433 {offsets = [0, 0], sizes = [8, 8], strides = [1, 1]} : vector<8x32xf32> to vector<8x8xf32>
    %453 = vector.extract_strided_slice %433 {offsets = [0, 8], sizes = [8, 8], strides = [1, 1]} : vector<8x32xf32> to vector<8x8xf32>
    %454 = vector.extract_strided_slice %433 {offsets = [0, 16], sizes = [8, 8], strides = [1, 1]} : vector<8x32xf32> to vector<8x8xf32>
    %455 = vector.extract_strided_slice %433 {offsets = [0, 24], sizes = [8, 8], strides = [1, 1]} : vector<8x32xf32> to vector<8x8xf32>
    %456 = vector.shape_cast %452 : vector<8x8xf32> to vector<1x8x8xf32>
    %457 = vector.shape_cast %453 : vector<8x8xf32> to vector<1x8x8xf32>
    %458 = vector.shape_cast %454 : vector<8x8xf32> to vector<1x8x8xf32>
    %459 = vector.shape_cast %455 : vector<8x8xf32> to vector<1x8x8xf32>
    %460 = tpu.concatenate %456, %457, %458, %459 in 0 : vector<1x8x8xf32>, vector<1x8x8xf32>, vector<1x8x8xf32>, vector<1x8x8xf32> -> vector<4x8x8xf32>
    %461 = arith.truncf %442 : vector<4x8x8xf32> to vector<4x8x8xbf16>
    %462 = arith.truncf %451 : vector<4x8x8xf32> to vector<4x8x8xbf16>
    "tpu.trace_start"() <{level = 10 : i32, message = "hqd,hkd->hqk"}> : () -> ()
    %cst_210 = arith.constant dense<0.000000e+00> : vector<4x8x8xf32>
    %463 = tpu.matmul %461, %462, %cst_210 {dimension_numbers = #tpu.dot_dimension_numbers<[2], [2], [1], [1], [0, 0, 0, 1, 1, 1], [0], [0]>} : vector<4x8x8xbf16>, vector<4x8x8xbf16>, vector<4x8x8xf32> -> vector<4x8x8xf32>
    "tpu.trace_stop"() : () -> ()
    %cst_211 = arith.constant 0.353553385 : f32
    %464 = vector.broadcast %cst_211 : f32 to vector<4x8x8xf32>
    %465 = arith.mulf %463, %464 : vector<4x8x8xf32>
    %cst_212 = arith.constant dense<0xFF800000> : vector<4x8xf32>
    %466 = vector.multi_reduction <maximumf>, %465, %cst_212 [2] : vector<4x8x8xf32> to vector<4x8xf32>
    %467 = vector.shape_cast %466 : vector<4x8xf32> to vector<4x8x1xf32>
    %468 = vector.broadcast %467 : vector<4x8x1xf32> to vector<4x8x8xf32>
    %469 = arith.subf %465, %468 : vector<4x8x8xf32>
    %470 = math.exp %469 : vector<4x8x8xf32>
    %cst_213 = arith.constant dense<0.000000e+00> : vector<4x8xf32>
    %471 = vector.multi_reduction <add>, %470, %cst_213 [2] : vector<4x8x8xf32> to vector<4x8xf32>
    %472 = vector.shape_cast %471 : vector<4x8xf32> to vector<4x8x1xf32>
    %473 = tpu.reciprocal %472 {approx = true} : vector<4x8x1xf32> -> vector<4x8x1xf32>
    %474 = vector.broadcast %473 : vector<4x8x1xf32> to vector<4x8x8xf32>
    %475 = arith.mulf %470, %474 : vector<4x8x8xf32>
    %476 = arith.truncf %475 : vector<4x8x8xf32> to vector<4x8x8xbf16>
    %477 = arith.truncf %460 : vector<4x8x8xf32> to vector<4x8x8xbf16>
    "tpu.trace_start"() <{level = 10 : i32, message = "hqk,hkd->hqd"}> : () -> ()
    %cst_214 = arith.constant dense<0.000000e+00> : vector<4x8x8xf32>
    %478 = tpu.matmul %476, %477, %cst_214 {dimension_numbers = #tpu.dot_dimension_numbers<[2], [1], [1], [2], [0, 0, 0, 1, 1, 2], [0], [0]>} : vector<4x8x8xbf16>, vector<4x8x8xbf16>, vector<4x8x8xf32> -> vector<4x8x8xf32>
    "tpu.trace_stop"() : () -> ()
    %479 = vector.extract_strided_slice %478 {offsets = [0, 0, 0], sizes = [1, 8, 8], strides = [1, 1, 1]} : vector<4x8x8xf32> to vector<1x8x8xf32>
    %480 = vector.shape_cast %479 : vector<1x8x8xf32> to vector<8x8xf32>
    %481 = vector.extract_strided_slice %478 {offsets = [1, 0, 0], sizes = [1, 8, 8], strides = [1, 1, 1]} : vector<4x8x8xf32> to vector<1x8x8xf32>
    %482 = vector.shape_cast %481 : vector<1x8x8xf32> to vector<8x8xf32>
    %483 = vector.extract_strided_slice %478 {offsets = [2, 0, 0], sizes = [1, 8, 8], strides = [1, 1, 1]} : vector<4x8x8xf32> to vector<1x8x8xf32>
    %484 = vector.shape_cast %483 : vector<1x8x8xf32> to vector<8x8xf32>
    %485 = vector.extract_strided_slice %478 {offsets = [3, 0, 0], sizes = [1, 8, 8], strides = [1, 1, 1]} : vector<4x8x8xf32> to vector<1x8x8xf32>
    %486 = vector.shape_cast %485 : vector<1x8x8xf32> to vector<8x8xf32>
    %487 = tpu.concatenate %480, %482, %484, %486 in 1 : vector<8x8xf32>, vector<8x8xf32>, vector<8x8xf32>, vector<8x8xf32> -> vector<8x32xf32>
    %488 = arith.truncf %487 : vector<8x32xf32> to vector<8x32xbf16>
    %cst_215 = arith.constant dense<0.000000e+00> : vector<8x32xf32>
    %489 = tpu.matmul %488, %6, %cst_215 {dimension_numbers = #tpu.dot_dimension_numbers<[1], [0], [0], [1], [0, 0, 1, 1], [], []>} : vector<8x32xbf16>, vector<32x32xbf16>, vector<8x32xf32> -> vector<8x32xf32>
    %490 = vector.broadcast %3 : vector<1x32xf32> to vector<8x32xf32>
    %491 = arith.addf %489, %490 : vector<8x32xf32>
    %492 = arith.addf %423, %491 : vector<8x32xf32>
    %cst_216 = arith.constant dense<0.000000e+00> : vector<8xf32>
    %493 = vector.multi_reduction <add>, %492, %cst_216 [1] : vector<8x32xf32> to vector<8xf32>
    %494 = vector.shape_cast %493 : vector<8xf32> to vector<8x1xf32>
    %cst_217 = arith.constant 3.200000e+01 : f32
    %495 = vector.broadcast %cst_217 : f32 to vector<8x1xf32>
    %496 = arith.divf %494, %495 : vector<8x1xf32>
    %497 = vector.broadcast %496 : vector<8x1xf32> to vector<8x32xf32>
    %498 = arith.subf %492, %497 : vector<8x32xf32>
    %499 = arith.mulf %498, %498 : vector<8x32xf32>
    %cst_218 = arith.constant dense<0.000000e+00> : vector<8xf32>
    %500 = vector.multi_reduction <add>, %499, %cst_218 [1] : vector<8x32xf32> to vector<8xf32>
    %501 = vector.shape_cast %500 : vector<8xf32> to vector<8x1xf32>
    %cst_219 = arith.constant 3.200000e+01 : f32
    %502 = vector.broadcast %cst_219 : f32 to vector<8x1xf32>
    %503 = arith.divf %501, %502 : vector<8x1xf32>
    %cst_220 = arith.constant 9.99999974E-6 : f32
    %504 = vector.broadcast %cst_220 : f32 to vector<8x1xf32>
    %505 = arith.addf %503, %504 : vector<8x1xf32>
    %506 = math.rsqrt %505 : vector<8x1xf32>
    %507 = vector.broadcast %506 : vector<8x1xf32> to vector<8x32xf32>
    %508 = arith.mulf %498, %507 : vector<8x32xf32>
    %509 = vector.broadcast %11 : vector<1x32xf32> to vector<8x32xf32>
    %510 = arith.mulf %508, %509 : vector<8x32xf32>
    %511 = vector.broadcast %10 : vector<1x32xf32> to vector<8x32xf32>
    %512 = arith.addf %510, %511 : vector<8x32xf32>
    %513 = arith.truncf %512 : vector<8x32xf32> to vector<8x32xbf16>
    %cst_221 = arith.constant dense<0.000000e+00> : vector<8x64xf32>
    %514 = tpu.matmul %513, %18, %cst_221 {dimension_numbers = #tpu.dot_dimension_numbers<[1], [0], [0], [1], [0, 0, 1, 1], [], []>} : vector<8x32xbf16>, vector<32x64xbf16>, vector<8x64xf32> -> vector<8x64xf32>
    %515 = vector.broadcast %0 : vector<1x64xf32> to vector<8x64xf32>
    %516 = arith.addf %514, %515 : vector<8x64xf32>
    %cst_222 = arith.constant 0.000000e+00 : f32
    %517 = vector.broadcast %cst_222 : f32 to vector<8x64xf32>
    %518 = arith.maximumf %516, %517 : vector<8x64xf32>
    %519 = arith.truncf %518 : vector<8x64xf32> to vector<8x64xbf16>
    %cst_223 = arith.constant dense<0.000000e+00> : vector<8x32xf32>
    %520 = tpu.matmul %519, %19, %cst_223 {dimension_numbers = #tpu.dot_dimension_numbers<[1], [0], [0], [1], [0, 0, 1, 1], [], []>} : vector<8x64xbf16>, vector<64x32xbf16>, vector<8x32xf32> -> vector<8x32xf32>
    %521 = vector.broadcast %1 : vector<1x32xf32> to vector<8x32xf32>
    %522 = arith.addf %520, %521 : vector<8x32xf32>
    %523 = arith.addf %512, %522 : vector<8x32xf32>
    %cst_224 = arith.constant dense<0.000000e+00> : vector<8xf32>
    %524 = vector.multi_reduction <add>, %523, %cst_224 [1] : vector<8x32xf32> to vector<8xf32>
    %525 = vector.shape_cast %524 : vector<8xf32> to vector<8x1xf32>
    %cst_225 = arith.constant 3.200000e+01 : f32
    %526 = vector.broadcast %cst_225 : f32 to vector<8x1xf32>
    %527 = arith.divf %525, %526 : vector<8x1xf32>
    %528 = vector.broadcast %527 : vector<8x1xf32> to vector<8x32xf32>
    %529 = arith.subf %523, %528 : vector<8x32xf32>
    %530 = arith.mulf %529, %529 : vector<8x32xf32>
    %cst_226 = arith.constant dense<0.000000e+00> : vector<8xf32>
    %531 = vector.multi_reduction <add>, %530, %cst_226 [1] : vector<8x32xf32> to vector<8xf32>
    %532 = vector.shape_cast %531 : vector<8xf32> to vector<8x1xf32>
    %cst_227 = arith.constant 3.200000e+01 : f32
    %533 = vector.broadcast %cst_227 : f32 to vector<8x1xf32>
    %534 = arith.divf %532, %533 : vector<8x1xf32>
    %cst_228 = arith.constant 9.99999974E-6 : f32
    %535 = vector.broadcast %cst_228 : f32 to vector<8x1xf32>
    %536 = arith.addf %534, %535 : vector<8x1xf32>
    %537 = math.rsqrt %536 : vector<8x1xf32>
    %538 = vector.broadcast %537 : vector<8x1xf32> to vector<8x32xf32>
    %539 = arith.mulf %529, %538 : vector<8x32xf32>
    %540 = vector.broadcast %13 : vector<1x32xf32> to vector<8x32xf32>
    %541 = arith.mulf %539, %540 : vector<8x32xf32>
    %542 = vector.broadcast %12 : vector<1x32xf32> to vector<8x32xf32>
    %543 = arith.addf %541, %542 : vector<8x32xf32>
    %544 = arith.truncf %543 : vector<8x32xf32> to vector<8x32xbf16>
    %cst_229 = arith.constant dense<0.000000e+00> : vector<8x96xf32>
    %545 = tpu.matmul %544, %37, %cst_229 {dimension_numbers = #tpu.dot_dimension_numbers<[1], [0], [0], [1], [0, 0, 1, 1], [], []>} : vector<8x32xbf16>, vector<32x96xbf16>, vector<8x96xf32> -> vector<8x96xf32>
    %546 = vector.broadcast %35 : vector<1x96xf32> to vector<8x96xf32>
    %547 = arith.addf %545, %546 : vector<8x96xf32>
    %548 = vector.extract_strided_slice %547 {offsets = [0, 0], sizes = [8, 32], strides = [1, 1]} : vector<8x96xf32> to vector<8x32xf32>
    %549 = vector.extract_strided_slice %547 {offsets = [0, 32], sizes = [8, 32], strides = [1, 1]} : vector<8x96xf32> to vector<8x32xf32>
    %550 = vector.extract_strided_slice %547 {offsets = [0, 64], sizes = [8, 32], strides = [1, 1]} : vector<8x96xf32> to vector<8x32xf32>
    %551 = vector.extract_strided_slice %548 {offsets = [0, 0], sizes = [8, 8], strides = [1, 1]} : vector<8x32xf32> to vector<8x8xf32>
    %552 = vector.extract_strided_slice %548 {offsets = [0, 8], sizes = [8, 8], strides = [1, 1]} : vector<8x32xf32> to vector<8x8xf32>
    %553 = vector.extract_strided_slice %548 {offsets = [0, 16], sizes = [8, 8], strides = [1, 1]} : vector<8x32xf32> to vector<8x8xf32>
    %554 = vector.extract_strided_slice %548 {offsets = [0, 24], sizes = [8, 8], strides = [1, 1]} : vector<8x32xf32> to vector<8x8xf32>
    %555 = vector.shape_cast %551 : vector<8x8xf32> to vector<1x8x8xf32>
    %556 = vector.shape_cast %552 : vector<8x8xf32> to vector<1x8x8xf32>
    %557 = vector.shape_cast %553 : vector<8x8xf32> to vector<1x8x8xf32>
    %558 = vector.shape_cast %554 : vector<8x8xf32> to vector<1x8x8xf32>
    %559 = tpu.concatenate %555, %556, %557, %558 in 0 : vector<1x8x8xf32>, vector<1x8x8xf32>, vector<1x8x8xf32>, vector<1x8x8xf32> -> vector<4x8x8xf32>
    %560 = vector.extract_strided_slice %549 {offsets = [0, 0], sizes = [8, 8], strides = [1, 1]} : vector<8x32xf32> to vector<8x8xf32>
    %561 = vector.extract_strided_slice %549 {offsets = [0, 8], sizes = [8, 8], strides = [1, 1]} : vector<8x32xf32> to vector<8x8xf32>
    %562 = vector.extract_strided_slice %549 {offsets = [0, 16], sizes = [8, 8], strides = [1, 1]} : vector<8x32xf32> to vector<8x8xf32>
    %563 = vector.extract_strided_slice %549 {offsets = [0, 24], sizes = [8, 8], strides = [1, 1]} : vector<8x32xf32> to vector<8x8xf32>
    %564 = vector.shape_cast %560 : vector<8x8xf32> to vector<1x8x8xf32>
    %565 = vector.shape_cast %561 : vector<8x8xf32> to vector<1x8x8xf32>
    %566 = vector.shape_cast %562 : vector<8x8xf32> to vector<1x8x8xf32>
    %567 = vector.shape_cast %563 : vector<8x8xf32> to vector<1x8x8xf32>
    %568 = tpu.concatenate %564, %565, %566, %567 in 0 : vector<1x8x8xf32>, vector<1x8x8xf32>, vector<1x8x8xf32>, vector<1x8x8xf32> -> vector<4x8x8xf32>
    %569 = vector.extract_strided_slice %550 {offsets = [0, 0], sizes = [8, 8], strides = [1, 1]} : vector<8x32xf32> to vector<8x8xf32>
    %570 = vector.extract_strided_slice %550 {offsets = [0, 8], sizes = [8, 8], strides = [1, 1]} : vector<8x32xf32> to vector<8x8xf32>
    %571 = vector.extract_strided_slice %550 {offsets = [0, 16], sizes = [8, 8], strides = [1, 1]} : vector<8x32xf32> to vector<8x8xf32>
    %572 = vector.extract_strided_slice %550 {offsets = [0, 24], sizes = [8, 8], strides = [1, 1]} : vector<8x32xf32> to vector<8x8xf32>
    %573 = vector.shape_cast %569 : vector<8x8xf32> to vector<1x8x8xf32>
    %574 = vector.shape_cast %570 : vector<8x8xf32> to vector<1x8x8xf32>
    %575 = vector.shape_cast %571 : vector<8x8xf32> to vector<1x8x8xf32>
    %576 = vector.shape_cast %572 : vector<8x8xf32> to vector<1x8x8xf32>
    %577 = tpu.concatenate %573, %574, %575, %576 in 0 : vector<1x8x8xf32>, vector<1x8x8xf32>, vector<1x8x8xf32>, vector<1x8x8xf32> -> vector<4x8x8xf32>
    %578 = arith.truncf %559 : vector<4x8x8xf32> to vector<4x8x8xbf16>
    %579 = arith.truncf %568 : vector<4x8x8xf32> to vector<4x8x8xbf16>
    "tpu.trace_start"() <{level = 10 : i32, message = "hqd,hkd->hqk"}> : () -> ()
    %cst_230 = arith.constant dense<0.000000e+00> : vector<4x8x8xf32>
    %580 = tpu.matmul %578, %579, %cst_230 {dimension_numbers = #tpu.dot_dimension_numbers<[2], [2], [1], [1], [0, 0, 0, 1, 1, 1], [0], [0]>} : vector<4x8x8xbf16>, vector<4x8x8xbf16>, vector<4x8x8xf32> -> vector<4x8x8xf32>
    "tpu.trace_stop"() : () -> ()
    %cst_231 = arith.constant 0.353553385 : f32
    %581 = vector.broadcast %cst_231 : f32 to vector<4x8x8xf32>
    %582 = arith.mulf %580, %581 : vector<4x8x8xf32>
    %583 = vector.shape_cast %76 : vector<8x8xf32> to vector<1x8x8xf32>
    %584 = vector.broadcast %583 : vector<1x8x8xf32> to vector<4x8x8xf32>
    %585 = arith.addf %582, %584 : vector<4x8x8xf32>
    %cst_232 = arith.constant dense<0xFF800000> : vector<4x8xf32>
    %586 = vector.multi_reduction <maximumf>, %585, %cst_232 [2] : vector<4x8x8xf32> to vector<4x8xf32>
    %587 = vector.shape_cast %586 : vector<4x8xf32> to vector<4x8x1xf32>
    %588 = vector.broadcast %587 : vector<4x8x1xf32> to vector<4x8x8xf32>
    %589 = arith.subf %585, %588 : vector<4x8x8xf32>
    %590 = math.exp %589 : vector<4x8x8xf32>
    %cst_233 = arith.constant dense<0.000000e+00> : vector<4x8xf32>
    %591 = vector.multi_reduction <add>, %590, %cst_233 [2] : vector<4x8x8xf32> to vector<4x8xf32>
    %592 = vector.shape_cast %591 : vector<4x8xf32> to vector<4x8x1xf32>
    %593 = tpu.reciprocal %592 {approx = true} : vector<4x8x1xf32> -> vector<4x8x1xf32>
    %594 = vector.broadcast %593 : vector<4x8x1xf32> to vector<4x8x8xf32>
    %595 = arith.mulf %590, %594 : vector<4x8x8xf32>
    %596 = arith.truncf %595 : vector<4x8x8xf32> to vector<4x8x8xbf16>
    %597 = arith.truncf %577 : vector<4x8x8xf32> to vector<4x8x8xbf16>
    "tpu.trace_start"() <{level = 10 : i32, message = "hqk,hkd->hqd"}> : () -> ()
    %cst_234 = arith.constant dense<0.000000e+00> : vector<4x8x8xf32>
    %598 = tpu.matmul %596, %597, %cst_234 {dimension_numbers = #tpu.dot_dimension_numbers<[2], [1], [1], [2], [0, 0, 0, 1, 1, 2], [0], [0]>} : vector<4x8x8xbf16>, vector<4x8x8xbf16>, vector<4x8x8xf32> -> vector<4x8x8xf32>
    "tpu.trace_stop"() : () -> ()
    %599 = vector.extract_strided_slice %598 {offsets = [0, 0, 0], sizes = [1, 8, 8], strides = [1, 1, 1]} : vector<4x8x8xf32> to vector<1x8x8xf32>
    %600 = vector.shape_cast %599 : vector<1x8x8xf32> to vector<8x8xf32>
    %601 = vector.extract_strided_slice %598 {offsets = [1, 0, 0], sizes = [1, 8, 8], strides = [1, 1, 1]} : vector<4x8x8xf32> to vector<1x8x8xf32>
    %602 = vector.shape_cast %601 : vector<1x8x8xf32> to vector<8x8xf32>
    %603 = vector.extract_strided_slice %598 {offsets = [2, 0, 0], sizes = [1, 8, 8], strides = [1, 1, 1]} : vector<4x8x8xf32> to vector<1x8x8xf32>
    %604 = vector.shape_cast %603 : vector<1x8x8xf32> to vector<8x8xf32>
    %605 = vector.extract_strided_slice %598 {offsets = [3, 0, 0], sizes = [1, 8, 8], strides = [1, 1, 1]} : vector<4x8x8xf32> to vector<1x8x8xf32>
    %606 = vector.shape_cast %605 : vector<1x8x8xf32> to vector<8x8xf32>
    %607 = tpu.concatenate %600, %602, %604, %606 in 1 : vector<8x8xf32>, vector<8x8xf32>, vector<8x8xf32>, vector<8x8xf32> -> vector<8x32xf32>
    %608 = arith.truncf %607 : vector<8x32xf32> to vector<8x32xbf16>
    %cst_235 = arith.constant dense<0.000000e+00> : vector<8x32xf32>
    %609 = tpu.matmul %608, %36, %cst_235 {dimension_numbers = #tpu.dot_dimension_numbers<[1], [0], [0], [1], [0, 0, 1, 1], [], []>} : vector<8x32xbf16>, vector<32x32xbf16>, vector<8x32xf32> -> vector<8x32xf32>
    %610 = vector.broadcast %34 : vector<1x32xf32> to vector<8x32xf32>
    %611 = arith.addf %609, %610 : vector<8x32xf32>
    %612 = arith.addf %543, %611 : vector<8x32xf32>
    %cst_236 = arith.constant dense<0.000000e+00> : vector<8xf32>
    %613 = vector.multi_reduction <add>, %612, %cst_236 [1] : vector<8x32xf32> to vector<8xf32>
    %614 = vector.shape_cast %613 : vector<8xf32> to vector<8x1xf32>
    %cst_237 = arith.constant 3.200000e+01 : f32
    %615 = vector.broadcast %cst_237 : f32 to vector<8x1xf32>
    %616 = arith.divf %614, %615 : vector<8x1xf32>
    %617 = vector.broadcast %616 : vector<8x1xf32> to vector<8x32xf32>
    %618 = arith.subf %612, %617 : vector<8x32xf32>
    %619 = arith.mulf %618, %618 : vector<8x32xf32>
    %cst_238 = arith.constant dense<0.000000e+00> : vector<8xf32>
    %620 = vector.multi_reduction <add>, %619, %cst_238 [1] : vector<8x32xf32> to vector<8xf32>
    %621 = vector.shape_cast %620 : vector<8xf32> to vector<8x1xf32>
    %cst_239 = arith.constant 3.200000e+01 : f32
    %622 = vector.broadcast %cst_239 : f32 to vector<8x1xf32>
    %623 = arith.divf %621, %622 : vector<8x1xf32>
    %cst_240 = arith.constant 9.99999974E-6 : f32
    %624 = vector.broadcast %cst_240 : f32 to vector<8x1xf32>
    %625 = arith.addf %623, %624 : vector<8x1xf32>
    %626 = math.rsqrt %625 : vector<8x1xf32>
    %627 = vector.broadcast %626 : vector<8x1xf32> to vector<8x32xf32>
    %628 = arith.mulf %618, %627 : vector<8x32xf32>
    %629 = vector.broadcast %29 : vector<1x32xf32> to vector<8x32xf32>
    %630 = arith.mulf %628, %629 : vector<8x32xf32>
    %631 = vector.broadcast %28 : vector<1x32xf32> to vector<8x32xf32>
    %632 = arith.addf %630, %631 : vector<8x32xf32>
    %633 = arith.truncf %632 : vector<8x32xf32> to vector<8x32xbf16>
    %cst_241 = arith.constant dense<0.000000e+00> : vector<8x32xf32>
    %634 = tpu.matmul %633, %27, %cst_241 {dimension_numbers = #tpu.dot_dimension_numbers<[1], [0], [0], [1], [0, 0, 1, 1], [], []>} : vector<8x32xbf16>, vector<32x32xbf16>, vector<8x32xf32> -> vector<8x32xf32>
    %635 = vector.broadcast %24 : vector<1x32xf32> to vector<8x32xf32>
    %636 = arith.addf %634, %635 : vector<8x32xf32>
    %637 = arith.truncf %334 : vector<8x32xf32> to vector<8x32xbf16>
    %cst_242 = arith.constant dense<0.000000e+00> : vector<8x64xf32>
    %638 = tpu.matmul %637, %25, %cst_242 {dimension_numbers = #tpu.dot_dimension_numbers<[1], [0], [0], [1], [0, 0, 1, 1], [], []>} : vector<8x32xbf16>, vector<32x64xbf16>, vector<8x64xf32> -> vector<8x64xf32>
    %639 = vector.broadcast %22 : vector<1x64xf32> to vector<8x64xf32>
    %640 = arith.addf %638, %639 : vector<8x64xf32>
    %641 = vector.extract_strided_slice %640 {offsets = [0, 0], sizes = [8, 32], strides = [1, 1]} : vector<8x64xf32> to vector<8x32xf32>
    %642 = vector.extract_strided_slice %640 {offsets = [0, 32], sizes = [8, 32], strides = [1, 1]} : vector<8x64xf32> to vector<8x32xf32>
    %643 = vector.extract_strided_slice %636 {offsets = [0, 0], sizes = [8, 8], strides = [1, 1]} : vector<8x32xf32> to vector<8x8xf32>
    %644 = vector.extract_strided_slice %636 {offsets = [0, 8], sizes = [8, 8], strides = [1, 1]} : vector<8x32xf32> to vector<8x8xf32>
    %645 = vector.extract_strided_slice %636 {offsets = [0, 16], sizes = [8, 8], strides = [1, 1]} : vector<8x32xf32> to vector<8x8xf32>
    %646 = vector.extract_strided_slice %636 {offsets = [0, 24], sizes = [8, 8], strides = [1, 1]} : vector<8x32xf32> to vector<8x8xf32>
    %647 = vector.shape_cast %643 : vector<8x8xf32> to vector<1x8x8xf32>
    %648 = vector.shape_cast %644 : vector<8x8xf32> to vector<1x8x8xf32>
    %649 = vector.shape_cast %645 : vector<8x8xf32> to vector<1x8x8xf32>
    %650 = vector.shape_cast %646 : vector<8x8xf32> to vector<1x8x8xf32>
    %651 = tpu.concatenate %647, %648, %649, %650 in 0 : vector<1x8x8xf32>, vector<1x8x8xf32>, vector<1x8x8xf32>, vector<1x8x8xf32> -> vector<4x8x8xf32>
    %652 = vector.extract_strided_slice %641 {offsets = [0, 0], sizes = [8, 8], strides = [1, 1]} : vector<8x32xf32> to vector<8x8xf32>
    %653 = vector.extract_strided_slice %641 {offsets = [0, 8], sizes = [8, 8], strides = [1, 1]} : vector<8x32xf32> to vector<8x8xf32>
    %654 = vector.extract_strided_slice %641 {offsets = [0, 16], sizes = [8, 8], strides = [1, 1]} : vector<8x32xf32> to vector<8x8xf32>
    %655 = vector.extract_strided_slice %641 {offsets = [0, 24], sizes = [8, 8], strides = [1, 1]} : vector<8x32xf32> to vector<8x8xf32>
    %656 = vector.shape_cast %652 : vector<8x8xf32> to vector<1x8x8xf32>
    %657 = vector.shape_cast %653 : vector<8x8xf32> to vector<1x8x8xf32>
    %658 = vector.shape_cast %654 : vector<8x8xf32> to vector<1x8x8xf32>
    %659 = vector.shape_cast %655 : vector<8x8xf32> to vector<1x8x8xf32>
    %660 = tpu.concatenate %656, %657, %658, %659 in 0 : vector<1x8x8xf32>, vector<1x8x8xf32>, vector<1x8x8xf32>, vector<1x8x8xf32> -> vector<4x8x8xf32>
    %661 = vector.extract_strided_slice %642 {offsets = [0, 0], sizes = [8, 8], strides = [1, 1]} : vector<8x32xf32> to vector<8x8xf32>
    %662 = vector.extract_strided_slice %642 {offsets = [0, 8], sizes = [8, 8], strides = [1, 1]} : vector<8x32xf32> to vector<8x8xf32>
    %663 = vector.extract_strided_slice %642 {offsets = [0, 16], sizes = [8, 8], strides = [1, 1]} : vector<8x32xf32> to vector<8x8xf32>
    %664 = vector.extract_strided_slice %642 {offsets = [0, 24], sizes = [8, 8], strides = [1, 1]} : vector<8x32xf32> to vector<8x8xf32>
    %665 = vector.shape_cast %661 : vector<8x8xf32> to vector<1x8x8xf32>
    %666 = vector.shape_cast %662 : vector<8x8xf32> to vector<1x8x8xf32>
    %667 = vector.shape_cast %663 : vector<8x8xf32> to vector<1x8x8xf32>
    %668 = vector.shape_cast %664 : vector<8x8xf32> to vector<1x8x8xf32>
    %669 = tpu.concatenate %665, %666, %667, %668 in 0 : vector<1x8x8xf32>, vector<1x8x8xf32>, vector<1x8x8xf32>, vector<1x8x8xf32> -> vector<4x8x8xf32>
    %670 = arith.truncf %651 : vector<4x8x8xf32> to vector<4x8x8xbf16>
    %671 = arith.truncf %660 : vector<4x8x8xf32> to vector<4x8x8xbf16>
    "tpu.trace_start"() <{level = 10 : i32, message = "hqd,hkd->hqk"}> : () -> ()
    %cst_243 = arith.constant dense<0.000000e+00> : vector<4x8x8xf32>
    %672 = tpu.matmul %670, %671, %cst_243 {dimension_numbers = #tpu.dot_dimension_numbers<[2], [2], [1], [1], [0, 0, 0, 1, 1, 1], [0], [0]>} : vector<4x8x8xbf16>, vector<4x8x8xbf16>, vector<4x8x8xf32> -> vector<4x8x8xf32>
    "tpu.trace_stop"() : () -> ()
    %cst_244 = arith.constant 0.353553385 : f32
    %673 = vector.broadcast %cst_244 : f32 to vector<4x8x8xf32>
    %674 = arith.mulf %672, %673 : vector<4x8x8xf32>
    %cst_245 = arith.constant dense<0xFF800000> : vector<4x8xf32>
    %675 = vector.multi_reduction <maximumf>, %674, %cst_245 [2] : vector<4x8x8xf32> to vector<4x8xf32>
    %676 = vector.shape_cast %675 : vector<4x8xf32> to vector<4x8x1xf32>
    %677 = vector.broadcast %676 : vector<4x8x1xf32> to vector<4x8x8xf32>
    %678 = arith.subf %674, %677 : vector<4x8x8xf32>
    %679 = math.exp %678 : vector<4x8x8xf32>
    %cst_246 = arith.constant dense<0.000000e+00> : vector<4x8xf32>
    %680 = vector.multi_reduction <add>, %679, %cst_246 [2] : vector<4x8x8xf32> to vector<4x8xf32>
    %681 = vector.shape_cast %680 : vector<4x8xf32> to vector<4x8x1xf32>
    %682 = tpu.reciprocal %681 {approx = true} : vector<4x8x1xf32> -> vector<4x8x1xf32>
    %683 = vector.broadcast %682 : vector<4x8x1xf32> to vector<4x8x8xf32>
    %684 = arith.mulf %679, %683 : vector<4x8x8xf32>
    %685 = arith.truncf %684 : vector<4x8x8xf32> to vector<4x8x8xbf16>
    %686 = arith.truncf %669 : vector<4x8x8xf32> to vector<4x8x8xbf16>
    "tpu.trace_start"() <{level = 10 : i32, message = "hqk,hkd->hqd"}> : () -> ()
    %cst_247 = arith.constant dense<0.000000e+00> : vector<4x8x8xf32>
    %687 = tpu.matmul %685, %686, %cst_247 {dimension_numbers = #tpu.dot_dimension_numbers<[2], [1], [1], [2], [0, 0, 0, 1, 1, 2], [0], [0]>} : vector<4x8x8xbf16>, vector<4x8x8xbf16>, vector<4x8x8xf32> -> vector<4x8x8xf32>
    "tpu.trace_stop"() : () -> ()
    %688 = vector.extract_strided_slice %687 {offsets = [0, 0, 0], sizes = [1, 8, 8], strides = [1, 1, 1]} : vector<4x8x8xf32> to vector<1x8x8xf32>
    %689 = vector.shape_cast %688 : vector<1x8x8xf32> to vector<8x8xf32>
    %690 = vector.extract_strided_slice %687 {offsets = [1, 0, 0], sizes = [1, 8, 8], strides = [1, 1, 1]} : vector<4x8x8xf32> to vector<1x8x8xf32>
    %691 = vector.shape_cast %690 : vector<1x8x8xf32> to vector<8x8xf32>
    %692 = vector.extract_strided_slice %687 {offsets = [2, 0, 0], sizes = [1, 8, 8], strides = [1, 1, 1]} : vector<4x8x8xf32> to vector<1x8x8xf32>
    %693 = vector.shape_cast %692 : vector<1x8x8xf32> to vector<8x8xf32>
    %694 = vector.extract_strided_slice %687 {offsets = [3, 0, 0], sizes = [1, 8, 8], strides = [1, 1, 1]} : vector<4x8x8xf32> to vector<1x8x8xf32>
    %695 = vector.shape_cast %694 : vector<1x8x8xf32> to vector<8x8xf32>
    %696 = tpu.concatenate %689, %691, %693, %695 in 1 : vector<8x8xf32>, vector<8x8xf32>, vector<8x8xf32>, vector<8x8xf32> -> vector<8x32xf32>
    %697 = arith.truncf %696 : vector<8x32xf32> to vector<8x32xbf16>
    %cst_248 = arith.constant dense<0.000000e+00> : vector<8x32xf32>
    %698 = tpu.matmul %697, %26, %cst_248 {dimension_numbers = #tpu.dot_dimension_numbers<[1], [0], [0], [1], [0, 0, 1, 1], [], []>} : vector<8x32xbf16>, vector<32x32xbf16>, vector<8x32xf32> -> vector<8x32xf32>
    %699 = vector.broadcast %23 : vector<1x32xf32> to vector<8x32xf32>
    %700 = arith.addf %698, %699 : vector<8x32xf32>
    %701 = arith.addf %632, %700 : vector<8x32xf32>
    %cst_249 = arith.constant dense<0.000000e+00> : vector<8xf32>
    %702 = vector.multi_reduction <add>, %701, %cst_249 [1] : vector<8x32xf32> to vector<8xf32>
    %703 = vector.shape_cast %702 : vector<8xf32> to vector<8x1xf32>
    %cst_250 = arith.constant 3.200000e+01 : f32
    %704 = vector.broadcast %cst_250 : f32 to vector<8x1xf32>
    %705 = arith.divf %703, %704 : vector<8x1xf32>
    %706 = vector.broadcast %705 : vector<8x1xf32> to vector<8x32xf32>
    %707 = arith.subf %701, %706 : vector<8x32xf32>
    %708 = arith.mulf %707, %707 : vector<8x32xf32>
    %cst_251 = arith.constant dense<0.000000e+00> : vector<8xf32>
    %709 = vector.multi_reduction <add>, %708, %cst_251 [1] : vector<8x32xf32> to vector<8xf32>
    %710 = vector.shape_cast %709 : vector<8xf32> to vector<8x1xf32>
    %cst_252 = arith.constant 3.200000e+01 : f32
    %711 = vector.broadcast %cst_252 : f32 to vector<8x1xf32>
    %712 = arith.divf %710, %711 : vector<8x1xf32>
    %cst_253 = arith.constant 9.99999974E-6 : f32
    %713 = vector.broadcast %cst_253 : f32 to vector<8x1xf32>
    %714 = arith.addf %712, %713 : vector<8x1xf32>
    %715 = math.rsqrt %714 : vector<8x1xf32>
    %716 = vector.broadcast %715 : vector<8x1xf32> to vector<8x32xf32>
    %717 = arith.mulf %707, %716 : vector<8x32xf32>
    %718 = vector.broadcast %31 : vector<1x32xf32> to vector<8x32xf32>
    %719 = arith.mulf %717, %718 : vector<8x32xf32>
    %720 = vector.broadcast %30 : vector<1x32xf32> to vector<8x32xf32>
    %721 = arith.addf %719, %720 : vector<8x32xf32>
    %722 = arith.truncf %721 : vector<8x32xf32> to vector<8x32xbf16>
    %cst_254 = arith.constant dense<0.000000e+00> : vector<8x64xf32>
    %723 = tpu.matmul %722, %38, %cst_254 {dimension_numbers = #tpu.dot_dimension_numbers<[1], [0], [0], [1], [0, 0, 1, 1], [], []>} : vector<8x32xbf16>, vector<32x64xbf16>, vector<8x64xf32> -> vector<8x64xf32>
    %724 = vector.broadcast %20 : vector<1x64xf32> to vector<8x64xf32>
    %725 = arith.addf %723, %724 : vector<8x64xf32>
    %cst_255 = arith.constant 0.000000e+00 : f32
    %726 = vector.broadcast %cst_255 : f32 to vector<8x64xf32>
    %727 = arith.maximumf %725, %726 : vector<8x64xf32>
    %728 = arith.truncf %727 : vector<8x64xf32> to vector<8x64xbf16>
    %cst_256 = arith.constant dense<0.000000e+00> : vector<8x32xf32>
    %729 = tpu.matmul %728, %39, %cst_256 {dimension_numbers = #tpu.dot_dimension_numbers<[1], [0], [0], [1], [0, 0, 1, 1], [], []>} : vector<8x64xbf16>, vector<64x32xbf16>, vector<8x32xf32> -> vector<8x32xf32>
    %730 = vector.broadcast %21 : vector<1x32xf32> to vector<8x32xf32>
    %731 = arith.addf %729, %730 : vector<8x32xf32>
    %732 = arith.addf %721, %731 : vector<8x32xf32>
    %cst_257 = arith.constant dense<0.000000e+00> : vector<8xf32>
    %733 = vector.multi_reduction <add>, %732, %cst_257 [1] : vector<8x32xf32> to vector<8xf32>
    %734 = vector.shape_cast %733 : vector<8xf32> to vector<8x1xf32>
    %cst_258 = arith.constant 3.200000e+01 : f32
    %735 = vector.broadcast %cst_258 : f32 to vector<8x1xf32>
    %736 = arith.divf %734, %735 : vector<8x1xf32>
    %737 = vector.broadcast %736 : vector<8x1xf32> to vector<8x32xf32>
    %738 = arith.subf %732, %737 : vector<8x32xf32>
    %739 = arith.mulf %738, %738 : vector<8x32xf32>
    %cst_259 = arith.constant dense<0.000000e+00> : vector<8xf32>
    %740 = vector.multi_reduction <add>, %739, %cst_259 [1] : vector<8x32xf32> to vector<8xf32>
    %741 = vector.shape_cast %740 : vector<8xf32> to vector<8x1xf32>
    %cst_260 = arith.constant 3.200000e+01 : f32
    %742 = vector.broadcast %cst_260 : f32 to vector<8x1xf32>
    %743 = arith.divf %741, %742 : vector<8x1xf32>
    %cst_261 = arith.constant 9.99999974E-6 : f32
    %744 = vector.broadcast %cst_261 : f32 to vector<8x1xf32>
    %745 = arith.addf %743, %744 : vector<8x1xf32>
    %746 = math.rsqrt %745 : vector<8x1xf32>
    %747 = vector.broadcast %746 : vector<8x1xf32> to vector<8x32xf32>
    %748 = arith.mulf %738, %747 : vector<8x32xf32>
    %749 = vector.broadcast %33 : vector<1x32xf32> to vector<8x32xf32>
    %750 = arith.mulf %748, %749 : vector<8x32xf32>
    %751 = vector.broadcast %32 : vector<1x32xf32> to vector<8x32xf32>
    %752 = arith.addf %750, %751 : vector<8x32xf32>
    %cst_262 = arith.constant dense<0.000000e+00> : vector<8xf32>
    %753 = vector.multi_reduction <add>, %752, %cst_262 [1] : vector<8x32xf32> to vector<8xf32>
    %754 = vector.shape_cast %753 : vector<8xf32> to vector<8x1xf32>
    %cst_263 = arith.constant 3.200000e+01 : f32
    %755 = vector.broadcast %cst_263 : f32 to vector<8x1xf32>
    %756 = arith.divf %754, %755 : vector<8x1xf32>
    %757 = vector.broadcast %756 : vector<8x1xf32> to vector<8x32xf32>
    %758 = arith.subf %752, %757 : vector<8x32xf32>
    %759 = arith.mulf %758, %758 : vector<8x32xf32>
    %cst_264 = arith.constant dense<0.000000e+00> : vector<8xf32>
    %760 = vector.multi_reduction <add>, %759, %cst_264 [1] : vector<8x32xf32> to vector<8xf32>
    %761 = vector.shape_cast %760 : vector<8xf32> to vector<8x1xf32>
    %cst_265 = arith.constant 3.200000e+01 : f32
    %762 = vector.broadcast %cst_265 : f32 to vector<8x1xf32>
    %763 = arith.divf %761, %762 : vector<8x1xf32>
    %cst_266 = arith.constant 9.99999974E-6 : f32
    %764 = vector.broadcast %cst_266 : f32 to vector<8x1xf32>
    %765 = arith.addf %763, %764 : vector<8x1xf32>
    %766 = math.rsqrt %765 : vector<8x1xf32>
    %767 = vector.broadcast %766 : vector<8x1xf32> to vector<8x32xf32>
    %768 = arith.mulf %758, %767 : vector<8x32xf32>
    %769 = vector.broadcast %41 : vector<1x32xf32> to vector<8x32xf32>
    %770 = arith.mulf %768, %769 : vector<8x32xf32>
    %771 = vector.broadcast %40 : vector<1x32xf32> to vector<8x32xf32>
    %772 = arith.addf %770, %771 : vector<8x32xf32>
    %773 = arith.truncf %772 : vector<8x32xf32> to vector<8x32xbf16>
    %cst_267 = arith.constant dense<0.000000e+00> : vector<8x12xf32>
    %774 = tpu.matmul %773, %69, %cst_267 {dimension_numbers = #tpu.dot_dimension_numbers<[1], [0], [0], [1], [0, 0, 1, 1], [], []>} : vector<8x32xbf16>, vector<32x12xbf16>, vector<8x12xf32> -> vector<8x12xf32>
    %775 = vector.broadcast %68 : vector<1x12xf32> to vector<8x12xf32>
    %776 = arith.addf %774, %775 : vector<8x12xf32>
    %c0_268 = arith.constant 0 : index
    %c0_269 = arith.constant 0 : index
    %c0_270 = arith.constant 0 : index
    %777 = vector.load %arg76[%c0_268, %c0_269, %c0_270] : memref<1x8x12xf32, #tpu.memory_space<vmem>>, vector<1x8x12xf32>
    %778 = vector.shape_cast %777 : vector<1x8x12xf32> to vector<8x12xf32>
    %779 = vector.shape_cast %776 : vector<8x12xf32> to vector<1x8x12xf32>
    tpu.vector_store %arg76[%c0_268, %c0_269, %c0_270], %779 {strides = array<i32>} : memref<1x8x12xf32, #tpu.memory_space<vmem>>, vector<1x8x12xf32>,
    return
  }
  func.func @transform_0(%arg0: i32) -> (i32, i32, i32) {
    %c0_i32 = arith.constant 0 : i32
    %c0_i32_0 = arith.constant 0 : i32
    %c0_i32_1 = arith.constant 0 : i32
    return %arg0, %c0_i32, %c0_i32_0 : i32, i32, i32
  }
  func.func @transform_1(%arg0: i32) -> (i32, i32, i32) {
    %c0_i32 = arith.constant 0 : i32
    %c0_i32_0 = arith.constant 0 : i32
    %c0_i32_1 = arith.constant 0 : i32
    return %arg0, %c0_i32, %c0_i32_0 : i32, i32, i32
  }
  func.func @transform_2(%arg0: i32) -> (i32, i32) {
    %c0_i32 = arith.constant 0 : i32
    %c0_i32_0 = arith.constant 0 : i32
    %c0_i32_1 = arith.constant 0 : i32
    return %c0_i32, %c0_i32_0 : i32, i32
  }
  func.func @transform_3(%arg0: i32) -> (i32, i32) {
    %c0_i32 = arith.constant 0 : i32
    %c0_i32_0 = arith.constant 0 : i32
    %c0_i32_1 = arith.constant 0 : i32
    return %c0_i32, %c0_i32_0 : i32, i32
  }
  func.func @transform_4(%arg0: i32) -> (i32, i32) {
    %c0_i32 = arith.constant 0 : i32
    %c0_i32_0 = arith.constant 0 : i32
    %c0_i32_1 = arith.constant 0 : i32
    return %c0_i32, %c0_i32_0 : i32, i32
  }
  func.func @transform_5(%arg0: i32) -> (i32, i32) {
    %c0_i32 = arith.constant 0 : i32
    %c0_i32_0 = arith.constant 0 : i32
    %c0_i32_1 = arith.constant 0 : i32
    return %c0_i32, %c0_i32_0 : i32, i32
  }
  func.func @transform_6(%arg0: i32) -> (i32, i32) {
    %c0_i32 = arith.constant 0 : i32
    %c0_i32_0 = arith.constant 0 : i32
    %c0_i32_1 = arith.constant 0 : i32
    return %c0_i32, %c0_i32_0 : i32, i32
  }
  func.func @transform_7(%arg0: i32) -> (i32, i32) {
    %c0_i32 = arith.constant 0 : i32
    %c0_i32_0 = arith.constant 0 : i32
    %c0_i32_1 = arith.constant 0 : i32
    return %c0_i32, %c0_i32_0 : i32, i32
  }
  func.func @transform_8(%arg0: i32) -> (i32, i32) {
    %c0_i32 = arith.constant 0 : i32
    %c0_i32_0 = arith.constant 0 : i32
    %c0_i32_1 = arith.constant 0 : i32
    return %c0_i32, %c0_i32_0 : i32, i32
  }
  func.func @transform_9(%arg0: i32) -> (i32, i32) {
    %c0_i32 = arith.constant 0 : i32
    %c0_i32_0 = arith.constant 0 : i32
    %c0_i32_1 = arith.constant 0 : i32
    return %c0_i32, %c0_i32_0 : i32, i32
  }
  func.func @transform_10(%arg0: i32) -> (i32, i32) {
    %c0_i32 = arith.constant 0 : i32
    %c0_i32_0 = arith.constant 0 : i32
    %c0_i32_1 = arith.constant 0 : i32
    return %c0_i32, %c0_i32_0 : i32, i32
  }
  func.func @transform_11(%arg0: i32) -> (i32, i32) {
    %c0_i32 = arith.constant 0 : i32
    %c0_i32_0 = arith.constant 0 : i32
    %c0_i32_1 = arith.constant 0 : i32
    return %c0_i32, %c0_i32_0 : i32, i32
  }
  func.func @transform_12(%arg0: i32) -> (i32, i32) {
    %c0_i32 = arith.constant 0 : i32
    %c0_i32_0 = arith.constant 0 : i32
    %c0_i32_1 = arith.constant 0 : i32
    return %c0_i32, %c0_i32_0 : i32, i32
  }
  func.func @transform_13(%arg0: i32) -> (i32, i32) {
    %c0_i32 = arith.constant 0 : i32
    %c0_i32_0 = arith.constant 0 : i32
    %c0_i32_1 = arith.constant 0 : i32
    return %c0_i32, %c0_i32_0 : i32, i32
  }
  func.func @transform_14(%arg0: i32) -> (i32, i32) {
    %c0_i32 = arith.constant 0 : i32
    %c0_i32_0 = arith.constant 0 : i32
    %c0_i32_1 = arith.constant 0 : i32
    return %c0_i32, %c0_i32_0 : i32, i32
  }
  func.func @transform_15(%arg0: i32) -> (i32, i32) {
    %c0_i32 = arith.constant 0 : i32
    %c0_i32_0 = arith.constant 0 : i32
    %c0_i32_1 = arith.constant 0 : i32
    return %c0_i32, %c0_i32_0 : i32, i32
  }
  func.func @transform_16(%arg0: i32) -> (i32, i32) {
    %c0_i32 = arith.constant 0 : i32
    %c0_i32_0 = arith.constant 0 : i32
    %c0_i32_1 = arith.constant 0 : i32
    return %c0_i32, %c0_i32_0 : i32, i32
  }
  func.func @transform_17(%arg0: i32) -> (i32, i32) {
    %c0_i32 = arith.constant 0 : i32
    %c0_i32_0 = arith.constant 0 : i32
    %c0_i32_1 = arith.constant 0 : i32
    return %c0_i32, %c0_i32_0 : i32, i32
  }
  func.func @transform_18(%arg0: i32) -> (i32, i32) {
    %c0_i32 = arith.constant 0 : i32
    %c0_i32_0 = arith.constant 0 : i32
    %c0_i32_1 = arith.constant 0 : i32
    return %c0_i32, %c0_i32_0 : i32, i32
  }
  func.func @transform_19(%arg0: i32) -> (i32, i32) {
    %c0_i32 = arith.constant 0 : i32
    %c0_i32_0 = arith.constant 0 : i32
    %c0_i32_1 = arith.constant 0 : i32
    return %c0_i32, %c0_i32_0 : i32, i32
  }
  func.func @transform_20(%arg0: i32) -> (i32, i32) {
    %c0_i32 = arith.constant 0 : i32
    %c0_i32_0 = arith.constant 0 : i32
    %c0_i32_1 = arith.constant 0 : i32
    return %c0_i32, %c0_i32_0 : i32, i32
  }
  func.func @transform_21(%arg0: i32) -> (i32, i32) {
    %c0_i32 = arith.constant 0 : i32
    %c0_i32_0 = arith.constant 0 : i32
    %c0_i32_1 = arith.constant 0 : i32
    return %c0_i32, %c0_i32_0 : i32, i32
  }
  func.func @transform_22(%arg0: i32) -> (i32, i32) {
    %c0_i32 = arith.constant 0 : i32
    %c0_i32_0 = arith.constant 0 : i32
    %c0_i32_1 = arith.constant 0 : i32
    return %c0_i32, %c0_i32_0 : i32, i32
  }
  func.func @transform_23(%arg0: i32) -> (i32, i32) {
    %c0_i32 = arith.constant 0 : i32
    %c0_i32_0 = arith.constant 0 : i32
    %c0_i32_1 = arith.constant 0 : i32
    return %c0_i32, %c0_i32_0 : i32, i32
  }
  func.func @transform_24(%arg0: i32) -> (i32, i32) {
    %c0_i32 = arith.constant 0 : i32
    %c0_i32_0 = arith.constant 0 : i32
    %c0_i32_1 = arith.constant 0 : i32
    return %c0_i32, %c0_i32_0 : i32, i32
  }
  func.func @transform_25(%arg0: i32) -> (i32, i32) {
    %c0_i32 = arith.constant 0 : i32
    %c0_i32_0 = arith.constant 0 : i32
    %c0_i32_1 = arith.constant 0 : i32
    return %c0_i32, %c0_i32_0 : i32, i32
  }
  func.func @transform_26(%arg0: i32) -> (i32, i32) {
    %c0_i32 = arith.constant 0 : i32
    %c0_i32_0 = arith.constant 0 : i32
    %c0_i32_1 = arith.constant 0 : i32
    return %c0_i32, %c0_i32_0 : i32, i32
  }
  func.func @transform_27(%arg0: i32) -> (i32, i32) {
    %c0_i32 = arith.constant 0 : i32
    %c0_i32_0 = arith.constant 0 : i32
    %c0_i32_1 = arith.constant 0 : i32
    return %c0_i32, %c0_i32_0 : i32, i32
  }
  func.func @transform_28(%arg0: i32) -> (i32, i32) {
    %c0_i32 = arith.constant 0 : i32
    %c0_i32_0 = arith.constant 0 : i32
    %c0_i32_1 = arith.constant 0 : i32
    return %c0_i32, %c0_i32_0 : i32, i32
  }
  func.func @transform_29(%arg0: i32) -> (i32, i32) {
    %c0_i32 = arith.constant 0 : i32
    %c0_i32_0 = arith.constant 0 : i32
    %c0_i32_1 = arith.constant 0 : i32
    return %c0_i32, %c0_i32_0 : i32, i32
  }
  func.func @transform_30(%arg0: i32) -> (i32, i32) {
    %c0_i32 = arith.constant 0 : i32
    %c0_i32_0 = arith.constant 0 : i32
    %c0_i32_1 = arith.constant 0 : i32
    return %c0_i32, %c0_i32_0 : i32, i32
  }
  func.func @transform_31(%arg0: i32) -> (i32, i32) {
    %c0_i32 = arith.constant 0 : i32
    %c0_i32_0 = arith.constant 0 : i32
    %c0_i32_1 = arith.constant 0 : i32
    return %c0_i32, %c0_i32_0 : i32, i32
  }
  func.func @transform_32(%arg0: i32) -> (i32, i32) {
    %c0_i32 = arith.constant 0 : i32
    %c0_i32_0 = arith.constant 0 : i32
    %c0_i32_1 = arith.constant 0 : i32
    return %c0_i32, %c0_i32_0 : i32, i32
  }
  func.func @transform_33(%arg0: i32) -> (i32, i32) {
    %c0_i32 = arith.constant 0 : i32
    %c0_i32_0 = arith.constant 0 : i32
    %c0_i32_1 = arith.constant 0 : i32
    return %c0_i32, %c0_i32_0 : i32, i32
  }
  func.func @transform_34(%arg0: i32) -> (i32, i32) {
    %c0_i32 = arith.constant 0 : i32
    %c0_i32_0 = arith.constant 0 : i32
    %c0_i32_1 = arith.constant 0 : i32
    return %c0_i32, %c0_i32_0 : i32, i32
  }
  func.func @transform_35(%arg0: i32) -> (i32, i32) {
    %c0_i32 = arith.constant 0 : i32
    %c0_i32_0 = arith.constant 0 : i32
    %c0_i32_1 = arith.constant 0 : i32
    return %c0_i32, %c0_i32_0 : i32, i32
  }
  func.func @transform_36(%arg0: i32) -> (i32, i32) {
    %c0_i32 = arith.constant 0 : i32
    %c0_i32_0 = arith.constant 0 : i32
    %c0_i32_1 = arith.constant 0 : i32
    return %c0_i32, %c0_i32_0 : i32, i32
  }
  func.func @transform_37(%arg0: i32) -> (i32, i32) {
    %c0_i32 = arith.constant 0 : i32
    %c0_i32_0 = arith.constant 0 : i32
    %c0_i32_1 = arith.constant 0 : i32
    return %c0_i32, %c0_i32_0 : i32, i32
  }
  func.func @transform_38(%arg0: i32) -> (i32, i32) {
    %c0_i32 = arith.constant 0 : i32
    %c0_i32_0 = arith.constant 0 : i32
    %c0_i32_1 = arith.constant 0 : i32
    return %c0_i32, %c0_i32_0 : i32, i32
  }
  func.func @transform_39(%arg0: i32) -> (i32, i32) {
    %c0_i32 = arith.constant 0 : i32
    %c0_i32_0 = arith.constant 0 : i32
    %c0_i32_1 = arith.constant 0 : i32
    return %c0_i32, %c0_i32_0 : i32, i32
  }
  func.func @transform_40(%arg0: i32) -> (i32, i32) {
    %c0_i32 = arith.constant 0 : i32
    %c0_i32_0 = arith.constant 0 : i32
    %c0_i32_1 = arith.constant 0 : i32
    return %c0_i32, %c0_i32_0 : i32, i32
  }
  func.func @transform_41(%arg0: i32) -> (i32, i32) {
    %c0_i32 = arith.constant 0 : i32
    %c0_i32_0 = arith.constant 0 : i32
    %c0_i32_1 = arith.constant 0 : i32
    return %c0_i32, %c0_i32_0 : i32, i32
  }
  func.func @transform_42(%arg0: i32) -> (i32, i32) {
    %c0_i32 = arith.constant 0 : i32
    %c0_i32_0 = arith.constant 0 : i32
    %c0_i32_1 = arith.constant 0 : i32
    return %c0_i32, %c0_i32_0 : i32, i32
  }
  func.func @transform_43(%arg0: i32) -> (i32, i32) {
    %c0_i32 = arith.constant 0 : i32
    %c0_i32_0 = arith.constant 0 : i32
    %c0_i32_1 = arith.constant 0 : i32
    return %c0_i32, %c0_i32_0 : i32, i32
  }
  func.func @transform_44(%arg0: i32) -> (i32, i32) {
    %c0_i32 = arith.constant 0 : i32
    %c0_i32_0 = arith.constant 0 : i32
    %c0_i32_1 = arith.constant 0 : i32
    return %c0_i32, %c0_i32_0 : i32, i32
  }
  func.func @transform_45(%arg0: i32) -> (i32, i32) {
    %c0_i32 = arith.constant 0 : i32
    %c0_i32_0 = arith.constant 0 : i32
    %c0_i32_1 = arith.constant 0 : i32
    return %c0_i32, %c0_i32_0 : i32, i32
  }
  func.func @transform_46(%arg0: i32) -> (i32, i32) {
    %c0_i32 = arith.constant 0 : i32
    %c0_i32_0 = arith.constant 0 : i32
    %c0_i32_1 = arith.constant 0 : i32
    return %c0_i32, %c0_i32_0 : i32, i32
  }
  func.func @transform_47(%arg0: i32) -> (i32, i32) {
    %c0_i32 = arith.constant 0 : i32
    %c0_i32_0 = arith.constant 0 : i32
    %c0_i32_1 = arith.constant 0 : i32
    return %c0_i32, %c0_i32_0 : i32, i32
  }
  func.func @transform_48(%arg0: i32) -> (i32, i32) {
    %c0_i32 = arith.constant 0 : i32
    %c0_i32_0 = arith.constant 0 : i32
    %c0_i32_1 = arith.constant 0 : i32
    return %c0_i32, %c0_i32_0 : i32, i32
  }
  func.func @transform_49(%arg0: i32) -> (i32, i32) {
    %c0_i32 = arith.constant 0 : i32
    %c0_i32_0 = arith.constant 0 : i32
    %c0_i32_1 = arith.constant 0 : i32
    return %c0_i32, %c0_i32_0 : i32, i32
  }
  func.func @transform_50(%arg0: i32) -> (i32, i32) {
    %c0_i32 = arith.constant 0 : i32
    %c0_i32_0 = arith.constant 0 : i32
    %c0_i32_1 = arith.constant 0 : i32
    return %c0_i32, %c0_i32_0 : i32, i32
  }
  func.func @transform_51(%arg0: i32) -> (i32, i32) {
    %c0_i32 = arith.constant 0 : i32
    %c0_i32_0 = arith.constant 0 : i32
    %c0_i32_1 = arith.constant 0 : i32
    return %c0_i32, %c0_i32_0 : i32, i32
  }
  func.func @transform_52(%arg0: i32) -> (i32, i32) {
    %c0_i32 = arith.constant 0 : i32
    %c0_i32_0 = arith.constant 0 : i32
    %c0_i32_1 = arith.constant 0 : i32
    return %c0_i32, %c0_i32_0 : i32, i32
  }
  func.func @transform_53(%arg0: i32) -> (i32, i32) {
    %c0_i32 = arith.constant 0 : i32
    %c0_i32_0 = arith.constant 0 : i32
    %c0_i32_1 = arith.constant 0 : i32
    return %c0_i32, %c0_i32_0 : i32, i32
  }
  func.func @transform_54(%arg0: i32) -> (i32, i32) {
    %c0_i32 = arith.constant 0 : i32
    %c0_i32_0 = arith.constant 0 : i32
    %c0_i32_1 = arith.constant 0 : i32
    return %c0_i32, %c0_i32_0 : i32, i32
  }
  func.func @transform_55(%arg0: i32) -> (i32, i32) {
    %c0_i32 = arith.constant 0 : i32
    %c0_i32_0 = arith.constant 0 : i32
    %c0_i32_1 = arith.constant 0 : i32
    return %c0_i32, %c0_i32_0 : i32, i32
  }
  func.func @transform_56(%arg0: i32) -> (i32, i32) {
    %c0_i32 = arith.constant 0 : i32
    %c0_i32_0 = arith.constant 0 : i32
    %c0_i32_1 = arith.constant 0 : i32
    return %c0_i32, %c0_i32_0 : i32, i32
  }
  func.func @transform_57(%arg0: i32) -> (i32, i32) {
    %c0_i32 = arith.constant 0 : i32
    %c0_i32_0 = arith.constant 0 : i32
    %c0_i32_1 = arith.constant 0 : i32
    return %c0_i32, %c0_i32_0 : i32, i32
  }
  func.func @transform_58(%arg0: i32) -> (i32, i32) {
    %c0_i32 = arith.constant 0 : i32
    %c0_i32_0 = arith.constant 0 : i32
    %c0_i32_1 = arith.constant 0 : i32
    return %c0_i32, %c0_i32_0 : i32, i32
  }
  func.func @transform_59(%arg0: i32) -> (i32, i32) {
    %c0_i32 = arith.constant 0 : i32
    %c0_i32_0 = arith.constant 0 : i32
    %c0_i32_1 = arith.constant 0 : i32
    return %c0_i32, %c0_i32_0 : i32, i32
  }
  func.func @transform_60(%arg0: i32) -> (i32, i32) {
    %c0_i32 = arith.constant 0 : i32
    %c0_i32_0 = arith.constant 0 : i32
    %c0_i32_1 = arith.constant 0 : i32
    return %c0_i32, %c0_i32_0 : i32, i32
  }
  func.func @transform_61(%arg0: i32) -> (i32, i32) {
    %c0_i32 = arith.constant 0 : i32
    %c0_i32_0 = arith.constant 0 : i32
    %c0_i32_1 = arith.constant 0 : i32
    return %c0_i32, %c0_i32_0 : i32, i32
  }
  func.func @transform_62(%arg0: i32) -> (i32, i32) {
    %c0_i32 = arith.constant 0 : i32
    %c0_i32_0 = arith.constant 0 : i32
    %c0_i32_1 = arith.constant 0 : i32
    return %c0_i32, %c0_i32_0 : i32, i32
  }
  func.func @transform_63(%arg0: i32) -> (i32, i32) {
    %c0_i32 = arith.constant 0 : i32
    %c0_i32_0 = arith.constant 0 : i32
    %c0_i32_1 = arith.constant 0 : i32
    return %c0_i32, %c0_i32_0 : i32, i32
  }
  func.func @transform_64(%arg0: i32) -> (i32, i32) {
    %c0_i32 = arith.constant 0 : i32
    %c0_i32_0 = arith.constant 0 : i32
    %c0_i32_1 = arith.constant 0 : i32
    return %c0_i32, %c0_i32_0 : i32, i32
  }
  func.func @transform_65(%arg0: i32) -> (i32, i32) {
    %c0_i32 = arith.constant 0 : i32
    %c0_i32_0 = arith.constant 0 : i32
    %c0_i32_1 = arith.constant 0 : i32
    return %c0_i32, %c0_i32_0 : i32, i32
  }
  func.func @transform_66(%arg0: i32) -> (i32, i32) {
    %c0_i32 = arith.constant 0 : i32
    %c0_i32_0 = arith.constant 0 : i32
    %c0_i32_1 = arith.constant 0 : i32
    return %c0_i32, %c0_i32_0 : i32, i32
  }
  func.func @transform_67(%arg0: i32) -> (i32, i32) {
    %c0_i32 = arith.constant 0 : i32
    %c0_i32_0 = arith.constant 0 : i32
    %c0_i32_1 = arith.constant 0 : i32
    return %c0_i32, %c0_i32_0 : i32, i32
  }
  func.func @transform_68(%arg0: i32) -> (i32, i32) {
    %c0_i32 = arith.constant 0 : i32
    %c0_i32_0 = arith.constant 0 : i32
    %c0_i32_1 = arith.constant 0 : i32
    return %c0_i32, %c0_i32_0 : i32, i32
  }
  func.func @transform_69(%arg0: i32) -> (i32, i32) {
    %c0_i32 = arith.constant 0 : i32
    %c0_i32_0 = arith.constant 0 : i32
    %c0_i32_1 = arith.constant 0 : i32
    return %c0_i32, %c0_i32_0 : i32, i32
  }
  func.func @transform_70(%arg0: i32) -> (i32, i32) {
    %c0_i32 = arith.constant 0 : i32
    %c0_i32_0 = arith.constant 0 : i32
    %c0_i32_1 = arith.constant 0 : i32
    return %c0_i32, %c0_i32_0 : i32, i32
  }
  func.func @transform_71(%arg0: i32) -> (i32, i32) {
    %c0_i32 = arith.constant 0 : i32
    %c0_i32_0 = arith.constant 0 : i32
    %c0_i32_1 = arith.constant 0 : i32
    return %c0_i32, %c0_i32_0 : i32, i32
  }
  func.func @transform_72(%arg0: i32) -> (i32, i32) {
    %c0_i32 = arith.constant 0 : i32
    %c0_i32_0 = arith.constant 0 : i32
    %c0_i32_1 = arith.constant 0 : i32
    return %c0_i32, %c0_i32_0 : i32, i32
  }
  func.func @transform_73(%arg0: i32) -> (i32, i32) {
    %c0_i32 = arith.constant 0 : i32
    %c0_i32_0 = arith.constant 0 : i32
    %c0_i32_1 = arith.constant 0 : i32
    return %c0_i32, %c0_i32_0 : i32, i32
  }
  func.func @transform_74(%arg0: i32) -> (i32, i32) {
    %c0_i32 = arith.constant 0 : i32
    %c0_i32_0 = arith.constant 0 : i32
    %c0_i32_1 = arith.constant 0 : i32
    return %c0_i32, %c0_i32_0 : i32, i32
  }
  func.func @transform_75(%arg0: i32) -> (i32, i32, i32) {
    %c0_i32 = arith.constant 0 : i32
    %c0_i32_0 = arith.constant 0 : i32
    %c0_i32_1 = arith.constant 0 : i32
    return %arg0, %c0_i32, %c0_i32_0 : i32, i32, i32
  }
}

</mosaic_0001>

<llo_original>
// kernel: cont_disc_transformer_forward.1
$region0: #{cont_disc_transformer_forward.1}
  #allocation0 [shape = 'u32[]', space=smem, size = 0x4, offset = 0x4, fixed_abs, tag = 'smem constant byte address 0x4 - core index']
  #allocation1 [shape = 'u32[144,128]{1,0:T(1,128)}', space=vmem, size = 0x12000, scoped, tag = 'internal scratch']
  %s0 = inlined_call_operand.smem [shape: u32[76], index: -1, kind: input, shape index: {}]
  %s1 = sld [smem:[%s0]]
  %s2 = scalar_lea.smem %s0, 1
  %s3 = sld [smem:[%s2]]
  %s4 = scalar_lea.smem %s0, 2
  %s5 = sld [smem:[%s4]]
  %s6 = scalar_lea.smem %s0, 3
  %s7 = sld [smem:[%s6]]
  %s8 = scalar_lea.smem %s0, 4
  %s9 = sld [smem:[%s8]]
  %s10 = scalar_lea.smem %s0, 5
  %s11 = sld [smem:[%s10]]
  %s12 = scalar_lea.smem %s0, 6
  %s13 = sld [smem:[%s12]]
  %s14 = scalar_lea.smem %s0, 7
  %s15 = sld [smem:[%s14]]
  %s16 = scalar_lea.smem %s0, 8
  %s17 = sld [smem:[%s16]]
  %s18 = scalar_lea.smem %s0, 9
  %s19 = sld [smem:[%s18]]
  %s20 = scalar_lea.smem %s0, 10
  %s21 = sld [smem:[%s20]]
  %s22 = scalar_lea.smem %s0, 11
  %s23 = sld [smem:[%s22]]
  %s24 = scalar_lea.smem %s0, 12
  %s25 = sld [smem:[%s24]]
  %s26 = scalar_lea.smem %s0, 13
  %s27 = sld [smem:[%s26]]
  %s28 = scalar_lea.smem %s0, 14
  %s29 = sld [smem:[%s28]]
  %s30 = scalar_lea.smem %s0, 15
  %s31 = sld [smem:[%s30]]
  %s32 = scalar_lea.smem %s0, 16
  %s33 = sld [smem:[%s32]]
  %s34 = scalar_lea.smem %s0, 17
  %s35 = sld [smem:[%s34]]
  %s36 = scalar_lea.smem %s0, 18
  %s37 = sld [smem:[%s36]]
  %s38 = scalar_lea.smem %s0, 19
  %s39 = sld [smem:[%s38]]
  %s40 = scalar_lea.smem %s0, 20
  %s41 = sld [smem:[%s40]]
  %s42 = scalar_lea.smem %s0, 21
  %s43 = sld [smem:[%s42]]
  %s44 = scalar_lea.smem %s0, 22
  %s45 = sld [smem:[%s44]]
  %s46 = scalar_lea.smem %s0, 23
  %s47 = sld [smem:[%s46]]
  %s48 = scalar_lea.smem %s0, 24
  %s49 = sld [smem:[%s48]]
  %s50 = scalar_lea.smem %s0, 25
  %s51 = sld [smem:[%s50]]
  %s52 = scalar_lea.smem %s0, 26
  %s53 = sld [smem:[%s52]]
  %s54 = scalar_lea.smem %s0, 27
  %s55 = sld [smem:[%s54]]
  %s56 = scalar_lea.smem %s0, 28
  %s57 = sld [smem:[%s56]]
  %s58 = scalar_lea.smem %s0, 29
  %s59 = sld [smem:[%s58]]
  %s60 = scalar_lea.smem %s0, 30
  %s61 = sld [smem:[%s60]]
  %s62 = scalar_lea.smem %s0, 31
  %s63 = sld [smem:[%s62]]
  %s64 = scalar_lea.smem %s0, 32
  %s65 = sld [smem:[%s64]]
  %s66 = scalar_lea.smem %s0, 33
  %s67 = sld [smem:[%s66]]
  %s68 = scalar_lea.smem %s0, 34
  %s69 = sld [smem:[%s68]]
  %s70 = scalar_lea.smem %s0, 35
  %s71 = sld [smem:[%s70]]
  %s72 = scalar_lea.smem %s0, 36
  %s73 = sld [smem:[%s72]]
  %s74 = scalar_lea.smem %s0, 37
  %s75 = sld [smem:[%s74]]
  %s76 = scalar_lea.smem %s0, 38
  %s77 = sld [smem:[%s76]]
  %s78 = scalar_lea.smem %s0, 39
  %s79 = sld [smem:[%s78]]
  %s80 = scalar_lea.smem %s0, 40
  %s81 = sld [smem:[%s80]]
  %s82 = scalar_lea.smem %s0, 41
  %s83 = sld [smem:[%s82]]
  %s84 = scalar_lea.smem %s0, 42
  %s85 = sld [smem:[%s84]]
  %s86 = scalar_lea.smem %s0, 43
  %s87 = sld [smem:[%s86]]
  %s88 = scalar_lea.smem %s0, 44
  %s89 = sld [smem:[%s88]]
  %s90 = scalar_lea.smem %s0, 45
  %s91 = sld [smem:[%s90]]
  %s92 = scalar_lea.smem %s0, 46
  %s93 = sld [smem:[%s92]]
  %s94 = scalar_lea.smem %s0, 47
  %s95 = sld [smem:[%s94]]
  %s96 = scalar_lea.smem %s0, 48
  %s97 = sld [smem:[%s96]]
  %s98 = scalar_lea.smem %s0, 49
  %s99 = sld [smem:[%s98]]
  %s100 = scalar_lea.smem %s0, 50
  %s101 = sld [smem:[%s100]]
  %s102 = scalar_lea.smem %s0, 51
  %s103 = sld [smem:[%s102]]
  %s104 = scalar_lea.smem %s0, 52
  %s105 = sld [smem:[%s104]]
  %s106 = scalar_lea.smem %s0, 53
  %s107 = sld [smem:[%s106]]
  %s108 = scalar_lea.smem %s0, 54
  %s109 = sld [smem:[%s108]]
  %s110 = scalar_lea.smem %s0, 55
  %s111 = sld [smem:[%s110]]
  %s112 = scalar_lea.smem %s0, 56
  %s113 = sld [smem:[%s112]]
  %s114 = scalar_lea.smem %s0, 57
  %s115 = sld [smem:[%s114]]
  %s116 = scalar_lea.smem %s0, 58
  %s117 = sld [smem:[%s116]]
  %s118 = scalar_lea.smem %s0, 59
  %s119 = sld [smem:[%s118]]
  %s120 = scalar_lea.smem %s0, 60
  %s121 = sld [smem:[%s120]]
  %s122 = scalar_lea.smem %s0, 61
  %s123 = sld [smem:[%s122]]
  %s124 = scalar_lea.smem %s0, 62
  %s125 = sld [smem:[%s124]]
  %s126 = scalar_lea.smem %s0, 63
  %s127 = sld [smem:[%s126]]
  %s128 = scalar_lea.smem %s0, 64
  %s129 = sld [smem:[%s128]]
  %s130 = scalar_lea.smem %s0, 65
  %s131 = sld [smem:[%s130]]
  %s132 = scalar_lea.smem %s0, 66
  %s133 = sld [smem:[%s132]]
  %s134 = scalar_lea.smem %s0, 67
  %s135 = sld [smem:[%s134]]
  %s136 = scalar_lea.smem %s0, 68
  %s137 = sld [smem:[%s136]]
  %s138 = scalar_lea.smem %s0, 69
  %s139 = sld [smem:[%s138]]
  %s140 = scalar_lea.smem %s0, 70
  %s141 = sld [smem:[%s140]]
  %s142 = scalar_lea.smem %s0, 71
  %s143 = sld [smem:[%s142]]
  %s144 = scalar_lea.smem %s0, 72
  %s145 = sld [smem:[%s144]]
  %s146 = scalar_lea.smem %s0, 73
  %s147 = sld [smem:[%s146]]
  %s148 = scalar_lea.smem %s0, 74
  %s149 = sld [smem:[%s148]]
  %s150 = scalar_lea.smem %s0, 75
  %s151 = sld [smem:[%s150]]
  %s152 = sld [smem:[#allocation0]]
  $region341: #{cont_disc_transformer_forward.1} parent=0
    _
  %s154 = ssub.s32 1, %s152
  %s155 = scalar_select 0, %s154, %s152
  $region1: #{cont_disc_transformer_forward.1} parent=0
    #allocation2 [shape = 'u8[512]{0}', space=vmem, size = 0x400, scoped, tag = 'input window, operand 71, single buffered']
    #allocation3 [shape = 's32[2]{0}', space=sflag, size = 0x8, scoped, tag = 'scoped memory for cont_disc_transformer_forward.1']
    #allocation4 [shape = 'u8[512]{0}', space=vmem, size = 0x400, scoped, tag = 'input window, operand 73, single buffered']
    #allocation5 [shape = 's32[1]{0}', space=sflag, size = 0x4, scoped, tag = 'scoped memory for cont_disc_transformer_forward.1']
    %156 = vsyncpa [#allocation3], 0
    %157 = vsyncpa [#allocation5], 0
    loop: start=0, step=1, limit=4
    $region2: #{cont_disc_transformer_forward.1} parent=1 // loop_pre_header
      _
    $region3: #{cont_disc_transformer_forward.1} parent=1 // loop_header
      %s159 = sphi 0, %s163
      %p160 = scmp.ge.s32.totalorder %s159, 4
      %s169 = sphi 0, %s171
      %s172 = sphi 0, %s169
      %s173 = sphi 0, %s172
      %s189 = sphi 0, %s173
      %s195 = sphi 0, %s197
      %s198 = sphi 0, %s195
      %s199 = sphi 0, %s198
      %s215 = sphi 0, %s199
      %s219 = sphi 0, %s219
      %s221 = sphi 0, %s219
      %s222 = sphi 0, %s221
      %s236 = sphi 0, %s222
      %s240 = sphi 0, %s240
      %s242 = sphi 0, %s240
      %s243 = sphi 0, %s242
      %s257 = sphi 0, %s243
      %s261 = sphi 0, %s261
      %s263 = sphi 0, %s261
      %s264 = sphi 0, %s263
      %s278 = sphi 0, %s264
      %s282 = sphi 0, %s282
      %s284 = sphi 0, %s282
      %s285 = sphi 0, %s284
      %s299 = sphi 0, %s285
      %s303 = sphi 0, %s303
      %s305 = sphi 0, %s303
      %s306 = sphi 0, %s305
      %s320 = sphi 0, %s306
      %s324 = sphi 0, %s324
      %s326 = sphi 0, %s324
      %s327 = sphi 0, %s326
      %s341 = sphi 0, %s327
      %s345 = sphi 0, %s345
      %s347 = sphi 0, %s345
      %s348 = sphi 0, %s347
      %s362 = sphi 0, %s348
      %s366 = sphi 0, %s366
      %s368 = sphi 0, %s366
      %s369 = sphi 0, %s368
      %s383 = sphi 0, %s369
      %s387 = sphi 0, %s387
      %s389 = sphi 0, %s387
      %s390 = sphi 0, %s389
      %s404 = sphi 0, %s390
      %s408 = sphi 0, %s408
      %s410 = sphi 0, %s408
      %s411 = sphi 0, %s410
      %s425 = sphi 0, %s411
      %s429 = sphi 0, %s429
      %s431 = sphi 0, %s429
      %s432 = sphi 0, %s431
      %s446 = sphi 0, %s432
      %s450 = sphi 0, %s450
      %s452 = sphi 0, %s450
      %s453 = sphi 0, %s452
      %s467 = sphi 0, %s453
      %s471 = sphi 0, %s471
      %s473 = sphi 0, %s471
      %s474 = sphi 0, %s473
      %s488 = sphi 0, %s474
      %s492 = sphi 0, %s492
      %s494 = sphi 0, %s492
      %s495 = sphi 0, %s494
      %s509 = sphi 0, %s495
      %s513 = sphi 0, %s513
      %s515 = sphi 0, %s513
      %s516 = sphi 0, %s515
      %s530 = sphi 0, %s516
      %s534 = sphi 0, %s534
      %s536 = sphi 0, %s534
      %s537 = sphi 0, %s536
      %s551 = sphi 0, %s537
      %s555 = sphi 0, %s555
      %s557 = sphi 0, %s555
      %s558 = sphi 0, %s557
      %s572 = sphi 0, %s558
      %s576 = sphi 0, %s576
      %s578 = sphi 0, %s576
      %s579 = sphi 0, %s578
      %s593 = sphi 0, %s579
      %s597 = sphi 0, %s597
      %s599 = sphi 0, %s597
      %s600 = sphi 0, %s599
      %s614 = sphi 0, %s600
      %s618 = sphi 0, %s618
      %s620 = sphi 0, %s618
      %s621 = sphi 0, %s620
      %s635 = sphi 0, %s621
      %s639 = sphi 0, %s639
      %s641 = sphi 0, %s639
      %s642 = sphi 0, %s641
      %s656 = sphi 0, %s642
      %s660 = sphi 0, %s660
      %s662 = sphi 0, %s660
      %s663 = sphi 0, %s662
      %s677 = sphi 0, %s663
      %s681 = sphi 0, %s681
      %s683 = sphi 0, %s681
      %s684 = sphi 0, %s683
      %s698 = sphi 0, %s684
      %s702 = sphi 0, %s702
      %s704 = sphi 0, %s702
      %s705 = sphi 0, %s704
      %s719 = sphi 0, %s705
      %s723 = sphi 0, %s723
      %s725 = sphi 0, %s723
      %s726 = sphi 0, %s725
      %s740 = sphi 0, %s726
      %s744 = sphi 0, %s744
      %s746 = sphi 0, %s744
      %s747 = sphi 0, %s746
      %s761 = sphi 0, %s747
      %s765 = sphi 0, %s765
      %s767 = sphi 0, %s765
      %s768 = sphi 0, %s767
      %s782 = sphi 0, %s768
      %s786 = sphi 0, %s786
      %s788 = sphi 0, %s786
      %s789 = sphi 0, %s788
      %s803 = sphi 0, %s789
      %s807 = sphi 0, %s807
      %s809 = sphi 0, %s807
      %s810 = sphi 0, %s809
      %s824 = sphi 0, %s810
      %s828 = sphi 0, %s828
      %s830 = sphi 0, %s828
      %s831 = sphi 0, %s830
      %s845 = sphi 0, %s831
      %s849 = sphi 0, %s849
      %s851 = sphi 0, %s849
      %s852 = sphi 0, %s851
      %s866 = sphi 0, %s852
      %s870 = sphi 0, %s870
      %s872 = sphi 0, %s870
      %s873 = sphi 0, %s872
      %s887 = sphi 0, %s873
      %s891 = sphi 0, %s891
      %s893 = sphi 0, %s891
      %s894 = sphi 0, %s893
      %s908 = sphi 0, %s894
      %s912 = sphi 0, %s912
      %s914 = sphi 0, %s912
      %s915 = sphi 0, %s914
      %s929 = sphi 0, %s915
      %s933 = sphi 0, %s933
      %s935 = sphi 0, %s933
      %s936 = sphi 0, %s935
      %s950 = sphi 0, %s936
      %s954 = sphi 0, %s954
      %s956 = sphi 0, %s954
      %s957 = sphi 0, %s956
      %s971 = sphi 0, %s957
      %s975 = sphi 0, %s975
      %s977 = sphi 0, %s975
      %s978 = sphi 0, %s977
      %s992 = sphi 0, %s978
      %s996 = sphi 0, %s996
      %s998 = sphi 0, %s996
      %s999 = sphi 0, %s998
      %s1013 = sphi 0, %s999
      %s1017 = sphi 0, %s1017
      %s1019 = sphi 0, %s1017
      %s1020 = sphi 0, %s1019
      %s1034 = sphi 0, %s1020
      %s1038 = sphi 0, %s1038
      %s1040 = sphi 0, %s1038
      %s1041 = sphi 0, %s1040
      %s1055 = sphi 0, %s1041
      %s1059 = sphi 0, %s1059
      %s1061 = sphi 0, %s1059
      %s1062 = sphi 0, %s1061
      %s1076 = sphi 0, %s1062
      %s1080 = sphi 0, %s1080
      %s1082 = sphi 0, %s1080
      %s1083 = sphi 0, %s1082
      %s1097 = sphi 0, %s1083
      %s1101 = sphi 0, %s1101
      %s1103 = sphi 0, %s1101
      %s1104 = sphi 0, %s1103
      %s1118 = sphi 0, %s1104
      %s1122 = sphi 0, %s1122
      %s1124 = sphi 0, %s1122
      %s1125 = sphi 0, %s1124
      %s1139 = sphi 0, %s1125
      %s1143 = sphi 0, %s1143
      %s1145 = sphi 0, %s1143
      %s1146 = sphi 0, %s1145
      %s1160 = sphi 0, %s1146
      %s1164 = sphi 0, %s1164
      %s1166 = sphi 0, %s1164
      %s1167 = sphi 0, %s1166
      %s1181 = sphi 0, %s1167
      %s1185 = sphi 0, %s1185
      %s1187 = sphi 0, %s1185
      %s1188 = sphi 0, %s1187
      %s1202 = sphi 0, %s1188
      %s1206 = sphi 0, %s1206
      %s1208 = sphi 0, %s1206
      %s1209 = sphi 0, %s1208
      %s1223 = sphi 0, %s1209
      %s1227 = sphi 0, %s1227
      %s1229 = sphi 0, %s1227
      %s1230 = sphi 0, %s1229
      %s1244 = sphi 0, %s1230
      %s1248 = sphi 0, %s1248
      %s1250 = sphi 0, %s1248
      %s1251 = sphi 0, %s1250
      %s1265 = sphi 0, %s1251
      %s1269 = sphi 0, %s1269
      %s1271 = sphi 0, %s1269
      %s1272 = sphi 0, %s1271
      %s1286 = sphi 0, %s1272
      %s1290 = sphi 0, %s1290
      %s1292 = sphi 0, %s1290
      %s1293 = sphi 0, %s1292
      %s1307 = sphi 0, %s1293
      %s1311 = sphi 0, %s1311
      %s1313 = sphi 0, %s1311
      %s1314 = sphi 0, %s1313
      %s1328 = sphi 0, %s1314
      %s1332 = sphi 0, %s1332
      %s1334 = sphi 0, %s1332
      %s1335 = sphi 0, %s1334
      %s1349 = sphi 0, %s1335
      %s1353 = sphi 0, %s1353
      %s1355 = sphi 0, %s1353
      %s1356 = sphi 0, %s1355
      %s1370 = sphi 0, %s1356
      %s1374 = sphi 0, %s1374
      %s1376 = sphi 0, %s1374
      %s1377 = sphi 0, %s1376
      %s1391 = sphi 0, %s1377
      %s1395 = sphi 0, %s1395
      %s1397 = sphi 0, %s1395
      %s1398 = sphi 0, %s1397
      %s1412 = sphi 0, %s1398
      %s1416 = sphi 0, %s1416
      %s1418 = sphi 0, %s1416
      %s1419 = sphi 0, %s1418
      %s1433 = sphi 0, %s1419
      %s1437 = sphi 0, %s1437
      %s1439 = sphi 0, %s1437
      %s1440 = sphi 0, %s1439
      %s1454 = sphi 0, %s1440
      %s1458 = sphi 0, %s1458
      %s1460 = sphi 0, %s1458
      %s1461 = sphi 0, %s1460
      %s1475 = sphi 0, %s1461
      %s1479 = sphi 0, %s1479
      %s1481 = sphi 0, %s1479
      %s1482 = sphi 0, %s1481
      %s1496 = sphi 0, %s1482
      %s1500 = sphi 0, %s1500
      %s1502 = sphi 0, %s1500
      %s1503 = sphi 0, %s1502
      %s1517 = sphi 0, %s1503
      %s1521 = sphi 0, %s1521
      %s1523 = sphi 0, %s1521
      %s1524 = sphi 0, %s1523
      %s1538 = sphi 0, %s1524
      %s1542 = sphi 0, %s1542
      %s1544 = sphi 0, %s1542
      %s1545 = sphi 0, %s1544
      %s1559 = sphi 0, %s1545
      %s1563 = sphi 0, %s1563
      %s1565 = sphi 0, %s1563
      %s1566 = sphi 0, %s1565
      %s1580 = sphi 0, %s1566
      %s1584 = sphi 0, %s1584
      %s1586 = sphi 0, %s1584
      %s1587 = sphi 0, %s1586
      %s1601 = sphi 0, %s1587
      %s1605 = sphi 0, %s1605
      %s1607 = sphi 0, %s1605
      %s1608 = sphi 0, %s1607
      %s1622 = sphi 0, %s1608
      %s1626 = sphi 0, %s1626
      %s1628 = sphi 0, %s1626
      %s1629 = sphi 0, %s1628
      %s1643 = sphi 0, %s1629
      %s1647 = sphi 0, %s1647
      %s1649 = sphi 0, %s1647
      %s1650 = sphi 0, %s1649
      %s1664 = sphi 0, %s1650
      %s1668 = sphi 0, %s1668
      %s1670 = sphi 0, %s1668
      %s1671 = sphi 0, %s1670
      %s1685 = sphi 0, %s1671
      %s1689 = sphi 0, %s1689
      %s1691 = sphi 0, %s1689
      %s1692 = sphi 0, %s1691
      %s1706 = sphi 0, %s1692
      %s1710 = sphi 0, %s1710
      %s1712 = sphi 0, %s1710
      %s1713 = sphi 0, %s1712
      %s1727 = sphi 0, %s1713
      %s1731 = sphi 0, %s1731
      %s1733 = sphi 0, %s1731
      %s1734 = sphi 0, %s1733
      %s1748 = sphi 0, %s1734
      %s1754 = sphi 0, %s1756
      %s1757 = sphi 0, %s1754
      %s1758 = sphi 0, %s1757
      %s1774 = sphi 0, %s1758
    $region4: #{cont_disc_transformer_forward.1} parent=1 // loop_header_branch
      %162 = sbr.rel (%p160) target = $region8
    $region5: #{cont_disc_transformer_forward.1} parent=1 // loop_body
      %s164 = ssub.s32 %s159, 1
      %s165 = ssub.s32 %s159, 2
      %s166 = sadd.s32 %s159, 1
      %s167 = ssub.s32 %s159, %s166
      %p168 = scmp.eq.s32.totalorder %s167, 0
      %s170 = sadd.s32 %s169, 1
      %s171 = scalar_select %p168, %s169, %s170
      %p174 = pneg %p168
      %p175 = scmp.eq.s32.totalorder %s159, 1
      %p176 = por %p174, %p175
      %p177 = scmp.ne.s32.totalorder %s169, %s172
      %p178 = scmp.eq.s32.totalorder %s159, 0
      %p179 = por %p177, %p178
      %p180 = scmp.ne.s32.totalorder %s169, %s172
      %p181 = scmp.eq.s32.totalorder %s164, 1
      %p182 = por %p180, %p181
      %p183 = scmp.ne.s32.totalorder %s172, %s173
      %p184 = scmp.eq.s32.totalorder %s164, 0
      %p185 = por %p183, %p184
      %p186 = scmp.ne.s32.totalorder %s172, %s173
      %p187 = scmp.eq.s32.totalorder %s165, 1
      %p188 = por %p186, %p187
      %p190 = scmp.ne.s32.totalorder %s173, %s189
      %p191 = scmp.eq.s32.totalorder %s165, 0
      %p192 = por %p190, %p191
      %s193 = ssub.s32 %s159, %s166
      %p194 = scmp.eq.s32.totalorder %s193, 0
      %s196 = sadd.s32 %s195, 1
      %s197 = scalar_select %p194, %s195, %s196
      %p200 = pneg %p194
      %p201 = scmp.eq.s32.totalorder %s159, 1
      %p202 = por %p200, %p201
      %p203 = scmp.ne.s32.totalorder %s195, %s198
      %p204 = scmp.eq.s32.totalorder %s159, 0
      %p205 = por %p203, %p204
      %p206 = scmp.ne.s32.totalorder %s195, %s198
      %p207 = scmp.eq.s32.totalorder %s164, 1
      %p208 = por %p206, %p207
      %p209 = scmp.ne.s32.totalorder %s198, %s199
      %p210 = scmp.eq.s32.totalorder %s164, 0
      %p211 = por %p209, %p210
      %p212 = scmp.ne.s32.totalorder %s198, %s199
      %p213 = scmp.eq.s32.totalorder %s165, 1
      %p214 = por %p212, %p213
      %p216 = scmp.ne.s32.totalorder %s199, %s215
      %p217 = scmp.eq.s32.totalorder %s165, 0
      %p218 = por %p216, %p217
      %s220 = sadd.s32 %s219, 1
      %p223 = scmp.eq.s32.totalorder %s159, 1
      %p224 = scmp.ne.s32.totalorder %s219, %s221
      %p225 = scmp.eq.s32.totalorder %s159, 0
      %p226 = por %p224, %p225
      %p227 = scmp.ne.s32.totalorder %s219, %s221
      %p228 = scmp.eq.s32.totalorder %s164, 1
      %p229 = por %p227, %p228
      %p230 = scmp.ne.s32.totalorder %s221, %s222
      %p231 = scmp.eq.s32.totalorder %s164, 0
      %p232 = por %p230, %p231
      %p233 = scmp.ne.s32.totalorder %s221, %s222
      %p234 = scmp.eq.s32.totalorder %s165, 1
      %p235 = por %p233, %p234
      %p237 = scmp.ne.s32.totalorder %s222, %s236
      %p238 = scmp.eq.s32.totalorder %s165, 0
      %p239 = por %p237, %p238
      %s241 = sadd.s32 %s240, 1
      %p244 = scmp.eq.s32.totalorder %s159, 1
      %p245 = scmp.ne.s32.totalorder %s240, %s242
      %p246 = scmp.eq.s32.totalorder %s159, 0
      %p247 = por %p245, %p246
      %p248 = scmp.ne.s32.totalorder %s240, %s242
      %p249 = scmp.eq.s32.totalorder %s164, 1
      %p250 = por %p248, %p249
      %p251 = scmp.ne.s32.totalorder %s242, %s243
      %p252 = scmp.eq.s32.totalorder %s164, 0
      %p253 = por %p251, %p252
      %p254 = scmp.ne.s32.totalorder %s242, %s243
      %p255 = scmp.eq.s32.totalorder %s165, 1
      %p256 = por %p254, %p255
      %p258 = scmp.ne.s32.totalorder %s243, %s257
      %p259 = scmp.eq.s32.totalorder %s165, 0
      %p260 = por %p258, %p259
      %s262 = sadd.s32 %s261, 1
      %p265 = scmp.eq.s32.totalorder %s159, 1
      %p266 = scmp.ne.s32.totalorder %s261, %s263
      %p267 = scmp.eq.s32.totalorder %s159, 0
      %p268 = por %p266, %p267
      %p269 = scmp.ne.s32.totalorder %s261, %s263
      %p270 = scmp.eq.s32.totalorder %s164, 1
      %p271 = por %p269, %p270
      %p272 = scmp.ne.s32.totalorder %s263, %s264
      %p273 = scmp.eq.s32.totalorder %s164, 0
      %p274 = por %p272, %p273
      %p275 = scmp.ne.s32.totalorder %s263, %s264
      %p276 = scmp.eq.s32.totalorder %s165, 1
      %p277 = por %p275, %p276
      %p279 = scmp.ne.s32.totalorder %s264, %s278
      %p280 = scmp.eq.s32.totalorder %s165, 0
      %p281 = por %p279, %p280
      %s283 = sadd.s32 %s282, 1
      %p286 = scmp.eq.s32.totalorder %s159, 1
      %p287 = scmp.ne.s32.totalorder %s282, %s284
      %p288 = scmp.eq.s32.totalorder %s159, 0
      %p289 = por %p287, %p288
      %p290 = scmp.ne.s32.totalorder %s282, %s284
      %p291 = scmp.eq.s32.totalorder %s164, 1
      %p292 = por %p290, %p291
      %p293 = scmp.ne.s32.totalorder %s284, %s285
      %p294 = scmp.eq.s32.totalorder %s164, 0
      %p295 = por %p293, %p294
      %p296 = scmp.ne.s32.totalorder %s284, %s285
      %p297 = scmp.eq.s32.totalorder %s165, 1
      %p298 = por %p296, %p297
      %p300 = scmp.ne.s32.totalorder %s285, %s299
      %p301 = scmp.eq.s32.totalorder %s165, 0
      %p302 = por %p300, %p301
      %s304 = sadd.s32 %s303, 1
      %p307 = scmp.eq.s32.totalorder %s159, 1
      %p308 = scmp.ne.s32.totalorder %s303, %s305
      %p309 = scmp.eq.s32.totalorder %s159, 0
      %p310 = por %p308, %p309
      %p311 = scmp.ne.s32.totalorder %s303, %s305
      %p312 = scmp.eq.s32.totalorder %s164, 1
      %p313 = por %p311, %p312
      %p314 = scmp.ne.s32.totalorder %s305, %s306
      %p315 = scmp.eq.s32.totalorder %s164, 0
      %p316 = por %p314, %p315
      %p317 = scmp.ne.s32.totalorder %s305, %s306
      %p318 = scmp.eq.s32.totalorder %s165, 1
      %p319 = por %p317, %p318
      %p321 = scmp.ne.s32.totalorder %s306, %s320
      %p322 = scmp.eq.s32.totalorder %s165, 0
      %p323 = por %p321, %p322
      %s325 = sadd.s32 %s324, 1
      %p328 = scmp.eq.s32.totalorder %s159, 1
      %p329 = scmp.ne.s32.totalorder %s324, %s326
      %p330 = scmp.eq.s32.totalorder %s159, 0
      %p331 = por %p329, %p330
      %p332 = scmp.ne.s32.totalorder %s324, %s326
      %p333 = scmp.eq.s32.totalorder %s164, 1
      %p334 = por %p332, %p333
      %p335 = scmp.ne.s32.totalorder %s326, %s327
      %p336 = scmp.eq.s32.totalorder %s164, 0
      %p337 = por %p335, %p336
      %p338 = scmp.ne.s32.totalorder %s326, %s327
      %p339 = scmp.eq.s32.totalorder %s165, 1
      %p340 = por %p338, %p339
      %p342 = scmp.ne.s32.totalorder %s327, %s341
      %p343 = scmp.eq.s32.totalorder %s165, 0
      %p344 = por %p342, %p343
      %s346 = sadd.s32 %s345, 1
      %p349 = scmp.eq.s32.totalorder %s159, 1
      %p350 = scmp.ne.s32.totalorder %s345, %s347
      %p351 = scmp.eq.s32.totalorder %s159, 0
      %p352 = por %p350, %p351
      %p353 = scmp.ne.s32.totalorder %s345, %s347
      %p354 = scmp.eq.s32.totalorder %s164, 1
      %p355 = por %p353, %p354
      %p356 = scmp.ne.s32.totalorder %s347, %s348
      %p357 = scmp.eq.s32.totalorder %s164, 0
      %p358 = por %p356, %p357
      %p359 = scmp.ne.s32.totalorder %s347, %s348
      %p360 = scmp.eq.s32.totalorder %s165, 1
      %p361 = por %p359, %p360
      %p363 = scmp.ne.s32.totalorder %s348, %s362
      %p364 = scmp.eq.s32.totalorder %s165, 0
      %p365 = por %p363, %p364
      %s367 = sadd.s32 %s366, 1
      %p370 = scmp.eq.s32.totalorder %s159, 1
      %p371 = scmp.ne.s32.totalorder %s366, %s368
      %p372 = scmp.eq.s32.totalorder %s159, 0
      %p373 = por %p371, %p372
      %p374 = scmp.ne.s32.totalorder %s366, %s368
      %p375 = scmp.eq.s32.totalorder %s164, 1
      %p376 = por %p374, %p375
      %p377 = scmp.ne.s32.totalorder %s368, %s369
      %p378 = scmp.eq.s32.totalorder %s164, 0
      %p379 = por %p377, %p378
      %p380 = scmp.ne.s32.totalorder %s368, %s369
      %p381 = scmp.eq.s32.totalorder %s165, 1
      %p382 = por %p380, %p381
      %p384 = scmp.ne.s32.totalorder %s369, %s383
      %p385 = scmp.eq.s32.totalorder %s165, 0
      %p386 = por %p384, %p385
      %s388 = sadd.s32 %s387, 1
      %p391 = scmp.eq.s32.totalorder %s159, 1
      %p392 = scmp.ne.s32.totalorder %s387, %s389
      %p393 = scmp.eq.s32.totalorder %s159, 0
      %p394 = por %p392, %p393
      %p395 = scmp.ne.s32.totalorder %s387, %s389
      %p396 = scmp.eq.s32.totalorder %s164, 1
      %p397 = por %p395, %p396
      %p398 = scmp.ne.s32.totalorder %s389, %s390
      %p399 = scmp.eq.s32.totalorder %s164, 0
      %p400 = por %p398, %p399
      %p401 = scmp.ne.s32.totalorder %s389, %s390
      %p402 = scmp.eq.s32.totalorder %s165, 1
      %p403 = por %p401, %p402
      %p405 = scmp.ne.s32.totalorder %s390, %s404
      %p406 = scmp.eq.s32.totalorder %s165, 0
      %p407 = por %p405, %p406
      %s409 = sadd.s32 %s408, 1
      %p412 = scmp.eq.s32.totalorder %s159, 1
      %p413 = scmp.ne.s32.totalorder %s408, %s410
      %p414 = scmp.eq.s32.totalorder %s159, 0
      %p415 = por %p413, %p414
      %p416 = scmp.ne.s32.totalorder %s408, %s410
      %p417 = scmp.eq.s32.totalorder %s164, 1
      %p418 = por %p416, %p417
      %p419 = scmp.ne.s32.totalorder %s410, %s411
      %p420 = scmp.eq.s32.totalorder %s164, 0
      %p421 = por %p419, %p420
      %p422 = scmp.ne.s32.totalorder %s410, %s411
      %p423 = scmp.eq.s32.totalorder %s165, 1
      %p424 = por %p422, %p423
      %p426 = scmp.ne.s32.totalorder %s411, %s425
      %p427 = scmp.eq.s32.totalorder %s165, 0
      %p428 = por %p426, %p427
      %s430 = sadd.s32 %s429, 1
      %p433 = scmp.eq.s32.totalorder %s159, 1
      %p434 = scmp.ne.s32.totalorder %s429, %s431
      %p435 = scmp.eq.s32.totalorder %s159, 0
      %p436 = por %p434, %p435
      %p437 = scmp.ne.s32.totalorder %s429, %s431
      %p438 = scmp.eq.s32.totalorder %s164, 1
      %p439 = por %p437, %p438
      %p440 = scmp.ne.s32.totalorder %s431, %s432
      %p441 = scmp.eq.s32.totalorder %s164, 0
      %p442 = por %p440, %p441
      %p443 = scmp.ne.s32.totalorder %s431, %s432
      %p444 = scmp.eq.s32.totalorder %s165, 1
      %p445 = por %p443, %p444
      %p447 = scmp.ne.s32.totalorder %s432, %s446
      %p448 = scmp.eq.s32.totalorder %s165, 0
      %p449 = por %p447, %p448
      %s451 = sadd.s32 %s450, 1
      %p454 = scmp.eq.s32.totalorder %s159, 1
      %p455 = scmp.ne.s32.totalorder %s450, %s452
      %p456 = scmp.eq.s32.totalorder %s159, 0
      %p457 = por %p455, %p456
      %p458 = scmp.ne.s32.totalorder %s450, %s452
      %p459 = scmp.eq.s32.totalorder %s164, 1
      %p460 = por %p458, %p459
      %p461 = scmp.ne.s32.totalorder %s452, %s453
      %p462 = scmp.eq.s32.totalorder %s164, 0
      %p463 = por %p461, %p462
      %p464 = scmp.ne.s32.totalorder %s452, %s453
      %p465 = scmp.eq.s32.totalorder %s165, 1
      %p466 = por %p464, %p465
      %p468 = scmp.ne.s32.totalorder %s453, %s467
      %p469 = scmp.eq.s32.totalorder %s165, 0
      %p470 = por %p468, %p469
      %s472 = sadd.s32 %s471, 1
      %p475 = scmp.eq.s32.totalorder %s159, 1
      %p476 = scmp.ne.s32.totalorder %s471, %s473
      %p477 = scmp.eq.s32.totalorder %s159, 0
      %p478 = por %p476, %p477
      %p479 = scmp.ne.s32.totalorder %s471, %s473
      %p480 = scmp.eq.s32.totalorder %s164, 1
      %p481 = por %p479, %p480
      %p482 = scmp.ne.s32.totalorder %s473, %s474
      %p483 = scmp.eq.s32.totalorder %s164, 0
      %p484 = por %p482, %p483
      %p485 = scmp.ne.s32.totalorder %s473, %s474
      %p486 = scmp.eq.s32.totalorder %s165, 1
      %p487 = por %p485, %p486
      %p489 = scmp.ne.s32.totalorder %s474, %s488
      %p490 = scmp.eq.s32.totalorder %s165, 0
      %p491 = por %p489, %p490
      %s493 = sadd.s32 %s492, 1
      %p496 = scmp.eq.s32.totalorder %s159, 1
      %p497 = scmp.ne.s32.totalorder %s492, %s494
      %p498 = scmp.eq.s32.totalorder %s159, 0
      %p499 = por %p497, %p498
      %p500 = scmp.ne.s32.totalorder %s492, %s494
      %p501 = scmp.eq.s32.totalorder %s164, 1
      %p502 = por %p500, %p501
      %p503 = scmp.ne.s32.totalorder %s494, %s495
      %p504 = scmp.eq.s32.totalorder %s164, 0
      %p505 = por %p503, %p504
      %p506 = scmp.ne.s32.totalorder %s494, %s495
      %p507 = scmp.eq.s32.totalorder %s165, 1
      %p508 = por %p506, %p507
      %p510 = scmp.ne.s32.totalorder %s495, %s509
      %p511 = scmp.eq.s32.totalorder %s165, 0
      %p512 = por %p510, %p511
      %s514 = sadd.s32 %s513, 1
      %p517 = scmp.eq.s32.totalorder %s159, 1
      %p518 = scmp.ne.s32.totalorder %s513, %s515
      %p519 = scmp.eq.s32.totalorder %s159, 0
      %p520 = por %p518, %p519
      %p521 = scmp.ne.s32.totalorder %s513, %s515
      %p522 = scmp.eq.s32.totalorder %s164, 1
      %p523 = por %p521, %p522
      %p524 = scmp.ne.s32.totalorder %s515, %s516
      %p525 = scmp.eq.s32.totalorder %s164, 0
      %p526 = por %p524, %p525
      %p527 = scmp.ne.s32.totalorder %s515, %s516
      %p528 = scmp.eq.s32.totalorder %s165, 1
      %p529 = por %p527, %p528
      %p531 = scmp.ne.s32.totalorder %s516, %s530
      %p532 = scmp.eq.s32.totalorder %s165, 0
      %p533 = por %p531, %p532
      %s535 = sadd.s32 %s534, 1
      %p538 = scmp.eq.s32.totalorder %s159, 1
      %p539 = scmp.ne.s32.totalorder %s534, %s536
      %p540 = scmp.eq.s32.totalorder %s159, 0
      %p541 = por %p539, %p540
      %p542 = scmp.ne.s32.totalorder %s534, %s536
      %p543 = scmp.eq.s32.totalorder %s164, 1
      %p544 = por %p542, %p543
      %p545 = scmp.ne.s32.totalorder %s536, %s537
      %p546 = scmp.eq.s32.totalorder %s164, 0
      %p547 = por %p545, %p546
      %p548 = scmp.ne.s32.totalorder %s536, %s537
      %p549 = scmp.eq.s32.totalorder %s165, 1
      %p550 = por %p548, %p549
      %p552 = scmp.ne.s32.totalorder %s537, %s551
      %p553 = scmp.eq.s32.totalorder %s165, 0
      %p554 = por %p552, %p553
      %s556 = sadd.s32 %s555, 1
      %p559 = scmp.eq.s32.totalorder %s159, 1
      %p560 = scmp.ne.s32.totalorder %s555, %s557
      %p561 = scmp.eq.s32.totalorder %s159, 0
      %p562 = por %p560, %p561
      %p563 = scmp.ne.s32.totalorder %s555, %s557
      %p564 = scmp.eq.s32.totalorder %s164, 1
      %p565 = por %p563, %p564
      %p566 = scmp.ne.s32.totalorder %s557, %s558
      %p567 = scmp.eq.s32.totalorder %s164, 0
      %p568 = por %p566, %p567
      %p569 = scmp.ne.s32.totalorder %s557, %s558
      %p570 = scmp.eq.s32.totalorder %s165, 1
      %p571 = por %p569, %p570
      %p573 = scmp.ne.s32.totalorder %s558, %s572
      %p574 = scmp.eq.s32.totalorder %s165, 0
      %p575 = por %p573, %p574
      %s577 = sadd.s32 %s576, 1
      %p580 = scmp.eq.s32.totalorder %s159, 1
      %p581 = scmp.ne.s32.totalorder %s576, %s578
      %p582 = scmp.eq.s32.totalorder %s159, 0
      %p583 = por %p581, %p582
      %p584 = scmp.ne.s32.totalorder %s576, %s578
      %p585 = scmp.eq.s32.totalorder %s164, 1
      %p586 = por %p584, %p585
      %p587 = scmp.ne.s32.totalorder %s578, %s579
      %p588 = scmp.eq.s32.totalorder %s164, 0
      %p589 = por %p587, %p588
      %p590 = scmp.ne.s32.totalorder %s578, %s579
      %p591 = scmp.eq.s32.totalorder %s165, 1
      %p592 = por %p590, %p591
      %p594 = scmp.ne.s32.totalorder %s579, %s593
      %p595 = scmp.eq.s32.totalorder %s165, 0
      %p596 = por %p594, %p595
      %s598 = sadd.s32 %s597, 1
      %p601 = scmp.eq.s32.totalorder %s159, 1
      %p602 = scmp.ne.s32.totalorder %s597, %s599
      %p603 = scmp.eq.s32.totalorder %s159, 0
      %p604 = por %p602, %p603
      %p605 = scmp.ne.s32.totalorder %s597, %s599
      %p606 = scmp.eq.s32.totalorder %s164, 1
      %p607 = por %p605, %p606
      %p608 = scmp.ne.s32.totalorder %s599, %s600
      %p609 = scmp.eq.s32.totalorder %s164, 0
      %p610 = por %p608, %p609
      %p611 = scmp.ne.s32.totalorder %s599, %s600
      %p612 = scmp.eq.s32.totalorder %s165, 1
      %p613 = por %p611, %p612
      %p615 = scmp.ne.s32.totalorder %s600, %s614
      %p616 = scmp.eq.s32.totalorder %s165, 0
      %p617 = por %p615, %p616
      %s619 = sadd.s32 %s618, 1
      %p622 = scmp.eq.s32.totalorder %s159, 1
      %p623 = scmp.ne.s32.totalorder %s618, %s620
      %p624 = scmp.eq.s32.totalorder %s159, 0
      %p625 = por %p623, %p624
      %p626 = scmp.ne.s32.totalorder %s618, %s620
      %p627 = scmp.eq.s32.totalorder %s164, 1
      %p628 = por %p626, %p627
      %p629 = scmp.ne.s32.totalorder %s620, %s621
      %p630 = scmp.eq.s32.totalorder %s164, 0
      %p631 = por %p629, %p630
      %p632 = scmp.ne.s32.totalorder %s620, %s621
      %p633 = scmp.eq.s32.totalorder %s165, 1
      %p634 = por %p632, %p633
      %p636 = scmp.ne.s32.totalorder %s621, %s635
      %p637 = scmp.eq.s32.totalorder %s165, 0
      %p638 = por %p636, %p637
      %s640 = sadd.s32 %s639, 1
      %p643 = scmp.eq.s32.totalorder %s159, 1
      %p644 = scmp.ne.s32.totalorder %s639, %s641
      %p645 = scmp.eq.s32.totalorder %s159, 0
      %p646 = por %p644, %p645
      %p647 = scmp.ne.s32.totalorder %s639, %s641
      %p648 = scmp.eq.s32.totalorder %s164, 1
      %p649 = por %p647, %p648
      %p650 = scmp.ne.s32.totalorder %s641, %s642
      %p651 = scmp.eq.s32.totalorder %s164, 0
      %p652 = por %p650, %p651
      %p653 = scmp.ne.s32.totalorder %s641, %s642
      %p654 = scmp.eq.s32.totalorder %s165, 1
      %p655 = por %p653, %p654
      %p657 = scmp.ne.s32.totalorder %s642, %s656
      %p658 = scmp.eq.s32.totalorder %s165, 0
      %p659 = por %p657, %p658
      %s661 = sadd.s32 %s660, 1
      %p664 = scmp.eq.s32.totalorder %s159, 1
      %p665 = scmp.ne.s32.totalorder %s660, %s662
      %p666 = scmp.eq.s32.totalorder %s159, 0
      %p667 = por %p665, %p666
      %p668 = scmp.ne.s32.totalorder %s660, %s662
      %p669 = scmp.eq.s32.totalorder %s164, 1
      %p670 = por %p668, %p669
      %p671 = scmp.ne.s32.totalorder %s662, %s663
      %p672 = scmp.eq.s32.totalorder %s164, 0
      %p673 = por %p671, %p672
      %p674 = scmp.ne.s32.totalorder %s662, %s663
      %p675 = scmp.eq.s32.totalorder %s165, 1
      %p676 = por %p674, %p675
      %p678 = scmp.ne.s32.totalorder %s663, %s677
      %p679 = scmp.eq.s32.totalorder %s165, 0
      %p680 = por %p678, %p679
      %s682 = sadd.s32 %s681, 1
      %p685 = scmp.eq.s32.totalorder %s159, 1
      %p686 = scmp.ne.s32.totalorder %s681, %s683
      %p687 = scmp.eq.s32.totalorder %s159, 0
      %p688 = por %p686, %p687
      %p689 = scmp.ne.s32.totalorder %s681, %s683
      %p690 = scmp.eq.s32.totalorder %s164, 1
      %p691 = por %p689, %p690
      %p692 = scmp.ne.s32.totalorder %s683, %s684
      %p693 = scmp.eq.s32.totalorder %s164, 0
      %p694 = por %p692, %p693
      %p695 = scmp.ne.s32.totalorder %s683, %s684
      %p696 = scmp.eq.s32.totalorder %s165, 1
      %p697 = por %p695, %p696
      %p699 = scmp.ne.s32.totalorder %s684, %s698
      %p700 = scmp.eq.s32.totalorder %s165, 0
      %p701 = por %p699, %p700
      %s703 = sadd.s32 %s702, 1
      %p706 = scmp.eq.s32.totalorder %s159, 1
      %p707 = scmp.ne.s32.totalorder %s702, %s704
      %p708 = scmp.eq.s32.totalorder %s159, 0
      %p709 = por %p707, %p708
      %p710 = scmp.ne.s32.totalorder %s702, %s704
      %p711 = scmp.eq.s32.totalorder %s164, 1
      %p712 = por %p710, %p711
      %p713 = scmp.ne.s32.totalorder %s704, %s705
      %p714 = scmp.eq.s32.totalorder %s164, 0
      %p715 = por %p713, %p714
      %p716 = scmp.ne.s32.totalorder %s704, %s705
      %p717 = scmp.eq.s32.totalorder %s165, 1
      %p718 = por %p716, %p717
      %p720 = scmp.ne.s32.totalorder %s705, %s719
      %p721 = scmp.eq.s32.totalorder %s165, 0
      %p722 = por %p720, %p721
      %s724 = sadd.s32 %s723, 1
      %p727 = scmp.eq.s32.totalorder %s159, 1
      %p728 = scmp.ne.s32.totalorder %s723, %s725
      %p729 = scmp.eq.s32.totalorder %s159, 0
      %p730 = por %p728, %p729
      %p731 = scmp.ne.s32.totalorder %s723, %s725
      %p732 = scmp.eq.s32.totalorder %s164, 1
      %p733 = por %p731, %p732
      %p734 = scmp.ne.s32.totalorder %s725, %s726
      %p735 = scmp.eq.s32.totalorder %s164, 0
      %p736 = por %p734, %p735
      %p737 = scmp.ne.s32.totalorder %s725, %s726
      %p738 = scmp.eq.s32.totalorder %s165, 1
      %p739 = por %p737, %p738
      %p741 = scmp.ne.s32.totalorder %s726, %s740
      %p742 = scmp.eq.s32.totalorder %s165, 0
      %p743 = por %p741, %p742
      %s745 = sadd.s32 %s744, 1
      %p748 = scmp.eq.s32.totalorder %s159, 1
      %p749 = scmp.ne.s32.totalorder %s744, %s746
      %p750 = scmp.eq.s32.totalorder %s159, 0
      %p751 = por %p749, %p750
      %p752 = scmp.ne.s32.totalorder %s744, %s746
      %p753 = scmp.eq.s32.totalorder %s164, 1
      %p754 = por %p752, %p753
      %p755 = scmp.ne.s32.totalorder %s746, %s747
      %p756 = scmp.eq.s32.totalorder %s164, 0
      %p757 = por %p755, %p756
      %p758 = scmp.ne.s32.totalorder %s746, %s747
      %p759 = scmp.eq.s32.totalorder %s165, 1
      %p760 = por %p758, %p759
      %p762 = scmp.ne.s32.totalorder %s747, %s761
      %p763 = scmp.eq.s32.totalorder %s165, 0
      %p764 = por %p762, %p763
      %s766 = sadd.s32 %s765, 1
      %p769 = scmp.eq.s32.totalorder %s159, 1
      %p770 = scmp.ne.s32.totalorder %s765, %s767
      %p771 = scmp.eq.s32.totalorder %s159, 0
      %p772 = por %p770, %p771
      %p773 = scmp.ne.s32.totalorder %s765, %s767
      %p774 = scmp.eq.s32.totalorder %s164, 1
      %p775 = por %p773, %p774
      %p776 = scmp.ne.s32.totalorder %s767, %s768
      %p777 = scmp.eq.s32.totalorder %s164, 0
      %p778 = por %p776, %p777
      %p779 = scmp.ne.s32.totalorder %s767, %s768
      %p780 = scmp.eq.s32.totalorder %s165, 1
      %p781 = por %p779, %p780
      %p783 = scmp.ne.s32.totalorder %s768, %s782
      %p784 = scmp.eq.s32.totalorder %s165, 0
      %p785 = por %p783, %p784
      %s787 = sadd.s32 %s786, 1
      %p790 = scmp.eq.s32.totalorder %s159, 1
      %p791 = scmp.ne.s32.totalorder %s786, %s788
      %p792 = scmp.eq.s32.totalorder %s159, 0
      %p793 = por %p791, %p792
      %p794 = scmp.ne.s32.totalorder %s786, %s788
      %p795 = scmp.eq.s32.totalorder %s164, 1
      %p796 = por %p794, %p795
      %p797 = scmp.ne.s32.totalorder %s788, %s789
      %p798 = scmp.eq.s32.totalorder %s164, 0
      %p799 = por %p797, %p798
      %p800 = scmp.ne.s32.totalorder %s788, %s789
      %p801 = scmp.eq.s32.totalorder %s165, 1
      %p802 = por %p800, %p801
      %p804 = scmp.ne.s32.totalorder %s789, %s803
      %p805 = scmp.eq.s32.totalorder %s165, 0
      %p806 = por %p804, %p805
      %s808 = sadd.s32 %s807, 1
      %p811 = scmp.eq.s32.totalorder %s159, 1
      %p812 = scmp.ne.s32.totalorder %s807, %s809
      %p813 = scmp.eq.s32.totalorder %s159, 0
      %p814 = por %p812, %p813
      %p815 = scmp.ne.s32.totalorder %s807, %s809
      %p816 = scmp.eq.s32.totalorder %s164, 1
      %p817 = por %p815, %p816
      %p818 = scmp.ne.s32.totalorder %s809, %s810
      %p819 = scmp.eq.s32.totalorder %s164, 0
      %p820 = por %p818, %p819
      %p821 = scmp.ne.s32.totalorder %s809, %s810
      %p822 = scmp.eq.s32.totalorder %s165, 1
      %p823 = por %p821, %p822
      %p825 = scmp.ne.s32.totalorder %s810, %s824
      %p826 = scmp.eq.s32.totalorder %s165, 0
      %p827 = por %p825, %p826
      %s829 = sadd.s32 %s828, 1
      %p832 = scmp.eq.s32.totalorder %s159, 1
      %p833 = scmp.ne.s32.totalorder %s828, %s830
      %p834 = scmp.eq.s32.totalorder %s159, 0
      %p835 = por %p833, %p834
      %p836 = scmp.ne.s32.totalorder %s828, %s830
      %p837 = scmp.eq.s32.totalorder %s164, 1
      %p838 = por %p836, %p837
      %p839 = scmp.ne.s32.totalorder %s830, %s831
      %p840 = scmp.eq.s32.totalorder %s164, 0
      %p841 = por %p839, %p840
      %p842 = scmp.ne.s32.totalorder %s830, %s831
      %p843 = scmp.eq.s32.totalorder %s165, 1
      %p844 = por %p842, %p843
      %p846 = scmp.ne.s32.totalorder %s831, %s845
      %p847 = scmp.eq.s32.totalorder %s165, 0
      %p848 = por %p846, %p847
      %s850 = sadd.s32 %s849, 1
      %p853 = scmp.eq.s32.totalorder %s159, 1
      %p854 = scmp.ne.s32.totalorder %s849, %s851
      %p855 = scmp.eq.s32.totalorder %s159, 0
      %p856 = por %p854, %p855
      %p857 = scmp.ne.s32.totalorder %s849, %s851
      %p858 = scmp.eq.s32.totalorder %s164, 1
      %p859 = por %p857, %p858
      %p860 = scmp.ne.s32.totalorder %s851, %s852
      %p861 = scmp.eq.s32.totalorder %s164, 0
      %p862 = por %p860, %p861
      %p863 = scmp.ne.s32.totalorder %s851, %s852
      %p864 = scmp.eq.s32.totalorder %s165, 1
      %p865 = por %p863, %p864
      %p867 = scmp.ne.s32.totalorder %s852, %s866
      %p868 = scmp.eq.s32.totalorder %s165, 0
      %p869 = por %p867, %p868
      %s871 = sadd.s32 %s870, 1
      %p874 = scmp.eq.s32.totalorder %s159, 1
      %p875 = scmp.ne.s32.totalorder %s870, %s872
      %p876 = scmp.eq.s32.totalorder %s159, 0
      %p877 = por %p875, %p876
      %p878 = scmp.ne.s32.totalorder %s870, %s872
      %p879 = scmp.eq.s32.totalorder %s164, 1
      %p880 = por %p878, %p879
      %p881 = scmp.ne.s32.totalorder %s872, %s873
      %p882 = scmp.eq.s32.totalorder %s164, 0
      %p883 = por %p881, %p882
      %p884 = scmp.ne.s32.totalorder %s872, %s873
      %p885 = scmp.eq.s32.totalorder %s165, 1
      %p886 = por %p884, %p885
      %p888 = scmp.ne.s32.totalorder %s873, %s887
      %p889 = scmp.eq.s32.totalorder %s165, 0
      %p890 = por %p888, %p889
      %s892 = sadd.s32 %s891, 1
      %p895 = scmp.eq.s32.totalorder %s159, 1
      %p896 = scmp.ne.s32.totalorder %s891, %s893
      %p897 = scmp.eq.s32.totalorder %s159, 0
      %p898 = por %p896, %p897
      %p899 = scmp.ne.s32.totalorder %s891, %s893
      %p900 = scmp.eq.s32.totalorder %s164, 1
      %p901 = por %p899, %p900
      %p902 = scmp.ne.s32.totalorder %s893, %s894
      %p903 = scmp.eq.s32.totalorder %s164, 0
      %p904 = por %p902, %p903
      %p905 = scmp.ne.s32.totalorder %s893, %s894
      %p906 = scmp.eq.s32.totalorder %s165, 1
      %p907 = por %p905, %p906
      %p909 = scmp.ne.s32.totalorder %s894, %s908
      %p910 = scmp.eq.s32.totalorder %s165, 0
      %p911 = por %p909, %p910
      %s913 = sadd.s32 %s912, 1
      %p916 = scmp.eq.s32.totalorder %s159, 1
      %p917 = scmp.ne.s32.totalorder %s912, %s914
      %p918 = scmp.eq.s32.totalorder %s159, 0
      %p919 = por %p917, %p918
      %p920 = scmp.ne.s32.totalorder %s912, %s914
      %p921 = scmp.eq.s32.totalorder %s164, 1
      %p922 = por %p920, %p921
      %p923 = scmp.ne.s32.totalorder %s914, %s915
      %p924 = scmp.eq.s32.totalorder %s164, 0
      %p925 = por %p923, %p924
      %p926 = scmp.ne.s32.totalorder %s914, %s915
      %p927 = scmp.eq.s32.totalorder %s165, 1
      %p928 = por %p926, %p927
      %p930 = scmp.ne.s32.totalorder %s915, %s929
      %p931 = scmp.eq.s32.totalorder %s165, 0
      %p932 = por %p930, %p931
      %s934 = sadd.s32 %s933, 1
      %p937 = scmp.eq.s32.totalorder %s159, 1
      %p938 = scmp.ne.s32.totalorder %s933, %s935
      %p939 = scmp.eq.s32.totalorder %s159, 0
      %p940 = por %p938, %p939
      %p941 = scmp.ne.s32.totalorder %s933, %s935
      %p942 = scmp.eq.s32.totalorder %s164, 1
      %p943 = por %p941, %p942
      %p944 = scmp.ne.s32.totalorder %s935, %s936
      %p945 = scmp.eq.s32.totalorder %s164, 0
      %p946 = por %p944, %p945
      %p947 = scmp.ne.s32.totalorder %s935, %s936
      %p948 = scmp.eq.s32.totalorder %s165, 1
      %p949 = por %p947, %p948
      %p951 = scmp.ne.s32.totalorder %s936, %s950
      %p952 = scmp.eq.s32.totalorder %s165, 0
      %p953 = por %p951, %p952
      %s955 = sadd.s32 %s954, 1
      %p958 = scmp.eq.s32.totalorder %s159, 1
      %p959 = scmp.ne.s32.totalorder %s954, %s956
      %p960 = scmp.eq.s32.totalorder %s159, 0
      %p961 = por %p959, %p960
      %p962 = scmp.ne.s32.totalorder %s954, %s956
      %p963 = scmp.eq.s32.totalorder %s164, 1
      %p964 = por %p962, %p963
      %p965 = scmp.ne.s32.totalorder %s956, %s957
      %p966 = scmp.eq.s32.totalorder %s164, 0
      %p967 = por %p965, %p966
      %p968 = scmp.ne.s32.totalorder %s956, %s957
      %p969 = scmp.eq.s32.totalorder %s165, 1
      %p970 = por %p968, %p969
      %p972 = scmp.ne.s32.totalorder %s957, %s971
      %p973 = scmp.eq.s32.totalorder %s165, 0
      %p974 = por %p972, %p973
      %s976 = sadd.s32 %s975, 1
      %p979 = scmp.eq.s32.totalorder %s159, 1
      %p980 = scmp.ne.s32.totalorder %s975, %s977
      %p981 = scmp.eq.s32.totalorder %s159, 0
      %p982 = por %p980, %p981
      %p983 = scmp.ne.s32.totalorder %s975, %s977
      %p984 = scmp.eq.s32.totalorder %s164, 1
      %p985 = por %p983, %p984
      %p986 = scmp.ne.s32.totalorder %s977, %s978
      %p987 = scmp.eq.s32.totalorder %s164, 0
      %p988 = por %p986, %p987
      %p989 = scmp.ne.s32.totalorder %s977, %s978
      %p990 = scmp.eq.s32.totalorder %s165, 1
      %p991 = por %p989, %p990
      %p993 = scmp.ne.s32.totalorder %s978, %s992
      %p994 = scmp.eq.s32.totalorder %s165, 0
      %p995 = por %p993, %p994
      %s997 = sadd.s32 %s996, 1
      %p1000 = scmp.eq.s32.totalorder %s159, 1
      %p1001 = scmp.ne.s32.totalorder %s996, %s998
      %p1002 = scmp.eq.s32.totalorder %s159, 0
      %p1003 = por %p1001, %p1002
      %p1004 = scmp.ne.s32.totalorder %s996, %s998
      %p1005 = scmp.eq.s32.totalorder %s164, 1
      %p1006 = por %p1004, %p1005
      %p1007 = scmp.ne.s32.totalorder %s998, %s999
      %p1008 = scmp.eq.s32.totalorder %s164, 0
      %p1009 = por %p1007, %p1008
      %p1010 = scmp.ne.s32.totalorder %s998, %s999
      %p1011 = scmp.eq.s32.totalorder %s165, 1
      %p1012 = por %p1010, %p1011
      %p1014 = scmp.ne.s32.totalorder %s999, %s1013
      %p1015 = scmp.eq.s32.totalorder %s165, 0
      %p1016 = por %p1014, %p1015
      %s1018 = sadd.s32 %s1017, 1
      %p1021 = scmp.eq.s32.totalorder %s159, 1
      %p1022 = scmp.ne.s32.totalorder %s1017, %s1019
      %p1023 = scmp.eq.s32.totalorder %s159, 0
      %p1024 = por %p1022, %p1023
      %p1025 = scmp.ne.s32.totalorder %s1017, %s1019
      %p1026 = scmp.eq.s32.totalorder %s164, 1
      %p1027 = por %p1025, %p1026
      %p1028 = scmp.ne.s32.totalorder %s1019, %s1020
      %p1029 = scmp.eq.s32.totalorder %s164, 0
      %p1030 = por %p1028, %p1029
      %p1031 = scmp.ne.s32.totalorder %s1019, %s1020
      %p1032 = scmp.eq.s32.totalorder %s165, 1
      %p1033 = por %p1031, %p1032
      %p1035 = scmp.ne.s32.totalorder %s1020, %s1034
      %p1036 = scmp.eq.s32.totalorder %s165, 0
      %p1037 = por %p1035, %p1036
      %s1039 = sadd.s32 %s1038, 1
      %p1042 = scmp.eq.s32.totalorder %s159, 1
      %p1043 = scmp.ne.s32.totalorder %s1038, %s1040
      %p1044 = scmp.eq.s32.totalorder %s159, 0
      %p1045 = por %p1043, %p1044
      %p1046 = scmp.ne.s32.totalorder %s1038, %s1040
      %p1047 = scmp.eq.s32.totalorder %s164, 1
      %p1048 = por %p1046, %p1047
      %p1049 = scmp.ne.s32.totalorder %s1040, %s1041
      %p1050 = scmp.eq.s32.totalorder %s164, 0
      %p1051 = por %p1049, %p1050
      %p1052 = scmp.ne.s32.totalorder %s1040, %s1041
      %p1053 = scmp.eq.s32.totalorder %s165, 1
      %p1054 = por %p1052, %p1053
      %p1056 = scmp.ne.s32.totalorder %s1041, %s1055
      %p1057 = scmp.eq.s32.totalorder %s165, 0
      %p1058 = por %p1056, %p1057
      %s1060 = sadd.s32 %s1059, 1
      %p1063 = scmp.eq.s32.totalorder %s159, 1
      %p1064 = scmp.ne.s32.totalorder %s1059, %s1061
      %p1065 = scmp.eq.s32.totalorder %s159, 0
      %p1066 = por %p1064, %p1065
      %p1067 = scmp.ne.s32.totalorder %s1059, %s1061
      %p1068 = scmp.eq.s32.totalorder %s164, 1
      %p1069 = por %p1067, %p1068
      %p1070 = scmp.ne.s32.totalorder %s1061, %s1062
      %p1071 = scmp.eq.s32.totalorder %s164, 0
      %p1072 = por %p1070, %p1071
      %p1073 = scmp.ne.s32.totalorder %s1061, %s1062
      %p1074 = scmp.eq.s32.totalorder %s165, 1
      %p1075 = por %p1073, %p1074
      %p1077 = scmp.ne.s32.totalorder %s1062, %s1076
      %p1078 = scmp.eq.s32.totalorder %s165, 0
      %p1079 = por %p1077, %p1078
      %s1081 = sadd.s32 %s1080, 1
      %p1084 = scmp.eq.s32.totalorder %s159, 1
      %p1085 = scmp.ne.s32.totalorder %s1080, %s1082
      %p1086 = scmp.eq.s32.totalorder %s159, 0
      %p1087 = por %p1085, %p1086
      %p1088 = scmp.ne.s32.totalorder %s1080, %s1082
      %p1089 = scmp.eq.s32.totalorder %s164, 1
      %p1090 = por %p1088, %p1089
      %p1091 = scmp.ne.s32.totalorder %s1082, %s1083
      %p1092 = scmp.eq.s32.totalorder %s164, 0
      %p1093 = por %p1091, %p1092
      %p1094 = scmp.ne.s32.totalorder %s1082, %s1083
      %p1095 = scmp.eq.s32.totalorder %s165, 1
      %p1096 = por %p1094, %p1095
      %p1098 = scmp.ne.s32.totalorder %s1083, %s1097
      %p1099 = scmp.eq.s32.totalorder %s165, 0
      %p1100 = por %p1098, %p1099
      %s1102 = sadd.s32 %s1101, 1
      %p1105 = scmp.eq.s32.totalorder %s159, 1
      %p1106 = scmp.ne.s32.totalorder %s1101, %s1103
      %p1107 = scmp.eq.s32.totalorder %s159, 0
      %p1108 = por %p1106, %p1107
      %p1109 = scmp.ne.s32.totalorder %s1101, %s1103
      %p1110 = scmp.eq.s32.totalorder %s164, 1
      %p1111 = por %p1109, %p1110
      %p1112 = scmp.ne.s32.totalorder %s1103, %s1104
      %p1113 = scmp.eq.s32.totalorder %s164, 0
      %p1114 = por %p1112, %p1113
      %p1115 = scmp.ne.s32.totalorder %s1103, %s1104
      %p1116 = scmp.eq.s32.totalorder %s165, 1
      %p1117 = por %p1115, %p1116
      %p1119 = scmp.ne.s32.totalorder %s1104, %s1118
      %p1120 = scmp.eq.s32.totalorder %s165, 0
      %p1121 = por %p1119, %p1120
      %s1123 = sadd.s32 %s1122, 1
      %p1126 = scmp.eq.s32.totalorder %s159, 1
      %p1127 = scmp.ne.s32.totalorder %s1122, %s1124
      %p1128 = scmp.eq.s32.totalorder %s159, 0
      %p1129 = por %p1127, %p1128
      %p1130 = scmp.ne.s32.totalorder %s1122, %s1124
      %p1131 = scmp.eq.s32.totalorder %s164, 1
      %p1132 = por %p1130, %p1131
      %p1133 = scmp.ne.s32.totalorder %s1124, %s1125
      %p1134 = scmp.eq.s32.totalorder %s164, 0
      %p1135 = por %p1133, %p1134
      %p1136 = scmp.ne.s32.totalorder %s1124, %s1125
      %p1137 = scmp.eq.s32.totalorder %s165, 1
      %p1138 = por %p1136, %p1137
      %p1140 = scmp.ne.s32.totalorder %s1125, %s1139
      %p1141 = scmp.eq.s32.totalorder %s165, 0
      %p1142 = por %p1140, %p1141
      %s1144 = sadd.s32 %s1143, 1
      %p1147 = scmp.eq.s32.totalorder %s159, 1
      %p1148 = scmp.ne.s32.totalorder %s1143, %s1145
      %p1149 = scmp.eq.s32.totalorder %s159, 0
      %p1150 = por %p1148, %p1149
      %p1151 = scmp.ne.s32.totalorder %s1143, %s1145
      %p1152 = scmp.eq.s32.totalorder %s164, 1
      %p1153 = por %p1151, %p1152
      %p1154 = scmp.ne.s32.totalorder %s1145, %s1146
      %p1155 = scmp.eq.s32.totalorder %s164, 0
      %p1156 = por %p1154, %p1155
      %p1157 = scmp.ne.s32.totalorder %s1145, %s1146
      %p1158 = scmp.eq.s32.totalorder %s165, 1
      %p1159 = por %p1157, %p1158
      %p1161 = scmp.ne.s32.totalorder %s1146, %s1160
      %p1162 = scmp.eq.s32.totalorder %s165, 0
      %p1163 = por %p1161, %p1162
      %s1165 = sadd.s32 %s1164, 1
      %p1168 = scmp.eq.s32.totalorder %s159, 1
      %p1169 = scmp.ne.s32.totalorder %s1164, %s1166
      %p1170 = scmp.eq.s32.totalorder %s159, 0
      %p1171 = por %p1169, %p1170
      %p1172 = scmp.ne.s32.totalorder %s1164, %s1166
      %p1173 = scmp.eq.s32.totalorder %s164, 1
      %p1174 = por %p1172, %p1173
      %p1175 = scmp.ne.s32.totalorder %s1166, %s1167
      %p1176 = scmp.eq.s32.totalorder %s164, 0
      %p1177 = por %p1175, %p1176
      %p1178 = scmp.ne.s32.totalorder %s1166, %s1167
      %p1179 = scmp.eq.s32.totalorder %s165, 1
      %p1180 = por %p1178, %p1179
      %p1182 = scmp.ne.s32.totalorder %s1167, %s1181
      %p1183 = scmp.eq.s32.totalorder %s165, 0
      %p1184 = por %p1182, %p1183
      %s1186 = sadd.s32 %s1185, 1
      %p1189 = scmp.eq.s32.totalorder %s159, 1
      %p1190 = scmp.ne.s32.totalorder %s1185, %s1187
      %p1191 = scmp.eq.s32.totalorder %s159, 0
      %p1192 = por %p1190, %p1191
      %p1193 = scmp.ne.s32.totalorder %s1185, %s1187
      %p1194 = scmp.eq.s32.totalorder %s164, 1
      %p1195 = por %p1193, %p1194
      %p1196 = scmp.ne.s32.totalorder %s1187, %s1188
      %p1197 = scmp.eq.s32.totalorder %s164, 0
      %p1198 = por %p1196, %p1197
      %p1199 = scmp.ne.s32.totalorder %s1187, %s1188
      %p1200 = scmp.eq.s32.totalorder %s165, 1
      %p1201 = por %p1199, %p1200
      %p1203 = scmp.ne.s32.totalorder %s1188, %s1202
      %p1204 = scmp.eq.s32.totalorder %s165, 0
      %p1205 = por %p1203, %p1204
      %s1207 = sadd.s32 %s1206, 1
      %p1210 = scmp.eq.s32.totalorder %s159, 1
      %p1211 = scmp.ne.s32.totalorder %s1206, %s1208
      %p1212 = scmp.eq.s32.totalorder %s159, 0
      %p1213 = por %p1211, %p1212
      %p1214 = scmp.ne.s32.totalorder %s1206, %s1208
      %p1215 = scmp.eq.s32.totalorder %s164, 1
      %p1216 = por %p1214, %p1215
      %p1217 = scmp.ne.s32.totalorder %s1208, %s1209
      %p1218 = scmp.eq.s32.totalorder %s164, 0
      %p1219 = por %p1217, %p1218
      %p1220 = scmp.ne.s32.totalorder %s1208, %s1209
      %p1221 = scmp.eq.s32.totalorder %s165, 1
      %p1222 = por %p1220, %p1221
      %p1224 = scmp.ne.s32.totalorder %s1209, %s1223
      %p1225 = scmp.eq.s32.totalorder %s165, 0
      %p1226 = por %p1224, %p1225
      %s1228 = sadd.s32 %s1227, 1
      %p1231 = scmp.eq.s32.totalorder %s159, 1
      %p1232 = scmp.ne.s32.totalorder %s1227, %s1229
      %p1233 = scmp.eq.s32.totalorder %s159, 0
      %p1234 = por %p1232, %p1233
      %p1235 = scmp.ne.s32.totalorder %s1227, %s1229
      %p1236 = scmp.eq.s32.totalorder %s164, 1
      %p1237 = por %p1235, %p1236
      %p1238 = scmp.ne.s32.totalorder %s1229, %s1230
      %p1239 = scmp.eq.s32.totalorder %s164, 0
      %p1240 = por %p1238, %p1239
      %p1241 = scmp.ne.s32.totalorder %s1229, %s1230
      %p1242 = scmp.eq.s32.totalorder %s165, 1
      %p1243 = por %p1241, %p1242
      %p1245 = scmp.ne.s32.totalorder %s1230, %s1244
      %p1246 = scmp.eq.s32.totalorder %s165, 0
      %p1247 = por %p1245, %p1246
      %s1249 = sadd.s32 %s1248, 1
      %p1252 = scmp.eq.s32.totalorder %s159, 1
      %p1253 = scmp.ne.s32.totalorder %s1248, %s1250
      %p1254 = scmp.eq.s32.totalorder %s159, 0
      %p1255 = por %p1253, %p1254
      %p1256 = scmp.ne.s32.totalorder %s1248, %s1250
      %p1257 = scmp.eq.s32.totalorder %s164, 1
      %p1258 = por %p1256, %p1257
      %p1259 = scmp.ne.s32.totalorder %s1250, %s1251
      %p1260 = scmp.eq.s32.totalorder %s164, 0
      %p1261 = por %p1259, %p1260
      %p1262 = scmp.ne.s32.totalorder %s1250, %s1251
      %p1263 = scmp.eq.s32.totalorder %s165, 1
      %p1264 = por %p1262, %p1263
      %p1266 = scmp.ne.s32.totalorder %s1251, %s1265
      %p1267 = scmp.eq.s32.totalorder %s165, 0
      %p1268 = por %p1266, %p1267
      %s1270 = sadd.s32 %s1269, 1
      %p1273 = scmp.eq.s32.totalorder %s159, 1
      %p1274 = scmp.ne.s32.totalorder %s1269, %s1271
      %p1275 = scmp.eq.s32.totalorder %s159, 0
      %p1276 = por %p1274, %p1275
      %p1277 = scmp.ne.s32.totalorder %s1269, %s1271
      %p1278 = scmp.eq.s32.totalorder %s164, 1
      %p1279 = por %p1277, %p1278
      %p1280 = scmp.ne.s32.totalorder %s1271, %s1272
      %p1281 = scmp.eq.s32.totalorder %s164, 0
      %p1282 = por %p1280, %p1281
      %p1283 = scmp.ne.s32.totalorder %s1271, %s1272
      %p1284 = scmp.eq.s32.totalorder %s165, 1
      %p1285 = por %p1283, %p1284
      %p1287 = scmp.ne.s32.totalorder %s1272, %s1286
      %p1288 = scmp.eq.s32.totalorder %s165, 0
      %p1289 = por %p1287, %p1288
      %s1291 = sadd.s32 %s1290, 1
      %p1294 = scmp.eq.s32.totalorder %s159, 1
      %p1295 = scmp.ne.s32.totalorder %s1290, %s1292
      %p1296 = scmp.eq.s32.totalorder %s159, 0
      %p1297 = por %p1295, %p1296
      %p1298 = scmp.ne.s32.totalorder %s1290, %s1292
      %p1299 = scmp.eq.s32.totalorder %s164, 1
      %p1300 = por %p1298, %p1299
      %p1301 = scmp.ne.s32.totalorder %s1292, %s1293
      %p1302 = scmp.eq.s32.totalorder %s164, 0
      %p1303 = por %p1301, %p1302
      %p1304 = scmp.ne.s32.totalorder %s1292, %s1293
      %p1305 = scmp.eq.s32.totalorder %s165, 1
      %p1306 = por %p1304, %p1305
      %p1308 = scmp.ne.s32.totalorder %s1293, %s1307
      %p1309 = scmp.eq.s32.totalorder %s165, 0
      %p1310 = por %p1308, %p1309
      %s1312 = sadd.s32 %s1311, 1
      %p1315 = scmp.eq.s32.totalorder %s159, 1
      %p1316 = scmp.ne.s32.totalorder %s1311, %s1313
      %p1317 = scmp.eq.s32.totalorder %s159, 0
      %p1318 = por %p1316, %p1317
      %p1319 = scmp.ne.s32.totalorder %s1311, %s1313
      %p1320 = scmp.eq.s32.totalorder %s164, 1
      %p1321 = por %p1319, %p1320
      %p1322 = scmp.ne.s32.totalorder %s1313, %s1314
      %p1323 = scmp.eq.s32.totalorder %s164, 0
      %p1324 = por %p1322, %p1323
      %p1325 = scmp.ne.s32.totalorder %s1313, %s1314
      %p1326 = scmp.eq.s32.totalorder %s165, 1
      %p1327 = por %p1325, %p1326
      %p1329 = scmp.ne.s32.totalorder %s1314, %s1328
      %p1330 = scmp.eq.s32.totalorder %s165, 0
      %p1331 = por %p1329, %p1330
      %s1333 = sadd.s32 %s1332, 1
      %p1336 = scmp.eq.s32.totalorder %s159, 1
      %p1337 = scmp.ne.s32.totalorder %s1332, %s1334
      %p1338 = scmp.eq.s32.totalorder %s159, 0
      %p1339 = por %p1337, %p1338
      %p1340 = scmp.ne.s32.totalorder %s1332, %s1334
      %p1341 = scmp.eq.s32.totalorder %s164, 1
      %p1342 = por %p1340, %p1341
      %p1343 = scmp.ne.s32.totalorder %s1334, %s1335
      %p1344 = scmp.eq.s32.totalorder %s164, 0
      %p1345 = por %p1343, %p1344
      %p1346 = scmp.ne.s32.totalorder %s1334, %s1335
      %p1347 = scmp.eq.s32.totalorder %s165, 1
      %p1348 = por %p1346, %p1347
      %p1350 = scmp.ne.s32.totalorder %s1335, %s1349
      %p1351 = scmp.eq.s32.totalorder %s165, 0
      %p1352 = por %p1350, %p1351
      %s1354 = sadd.s32 %s1353, 1
      %p1357 = scmp.eq.s32.totalorder %s159, 1
      %p1358 = scmp.ne.s32.totalorder %s1353, %s1355
      %p1359 = scmp.eq.s32.totalorder %s159, 0
      %p1360 = por %p1358, %p1359
      %p1361 = scmp.ne.s32.totalorder %s1353, %s1355
      %p1362 = scmp.eq.s32.totalorder %s164, 1
      %p1363 = por %p1361, %p1362
      %p1364 = scmp.ne.s32.totalorder %s1355, %s1356
      %p1365 = scmp.eq.s32.totalorder %s164, 0
      %p1366 = por %p1364, %p1365
      %p1367 = scmp.ne.s32.totalorder %s1355, %s1356
      %p1368 = scmp.eq.s32.totalorder %s165, 1
      %p1369 = por %p1367, %p1368
      %p1371 = scmp.ne.s32.totalorder %s1356, %s1370
      %p1372 = scmp.eq.s32.totalorder %s165, 0
      %p1373 = por %p1371, %p1372
      %s1375 = sadd.s32 %s1374, 1
      %p1378 = scmp.eq.s32.totalorder %s159, 1
      %p1379 = scmp.ne.s32.totalorder %s1374, %s1376
      %p1380 = scmp.eq.s32.totalorder %s159, 0
      %p1381 = por %p1379, %p1380
      %p1382 = scmp.ne.s32.totalorder %s1374, %s1376
      %p1383 = scmp.eq.s32.totalorder %s164, 1
      %p1384 = por %p1382, %p1383
      %p1385 = scmp.ne.s32.totalorder %s1376, %s1377
      %p1386 = scmp.eq.s32.totalorder %s164, 0
      %p1387 = por %p1385, %p1386
      %p1388 = scmp.ne.s32.totalorder %s1376, %s1377
      %p1389 = scmp.eq.s32.totalorder %s165, 1
      %p1390 = por %p1388, %p1389
      %p1392 = scmp.ne.s32.totalorder %s1377, %s1391
      %p1393 = scmp.eq.s32.totalorder %s165, 0
      %p1394 = por %p1392, %p1393
      %s1396 = sadd.s32 %s1395, 1
      %p1399 = scmp.eq.s32.totalorder %s159, 1
      %p1400 = scmp.ne.s32.totalorder %s1395, %s1397
      %p1401 = scmp.eq.s32.totalorder %s159, 0
      %p1402 = por %p1400, %p1401
      %p1403 = scmp.ne.s32.totalorder %s1395, %s1397
      %p1404 = scmp.eq.s32.totalorder %s164, 1
      %p1405 = por %p1403, %p1404
      %p1406 = scmp.ne.s32.totalorder %s1397, %s1398
      %p1407 = scmp.eq.s32.totalorder %s164, 0
      %p1408 = por %p1406, %p1407
      %p1409 = scmp.ne.s32.totalorder %s1397, %s1398
      %p1410 = scmp.eq.s32.totalorder %s165, 1
      %p1411 = por %p1409, %p1410
      %p1413 = scmp.ne.s32.totalorder %s1398, %s1412
      %p1414 = scmp.eq.s32.totalorder %s165, 0
      %p1415 = por %p1413, %p1414
      %s1417 = sadd.s32 %s1416, 1
      %p1420 = scmp.eq.s32.totalorder %s159, 1
      %p1421 = scmp.ne.s32.totalorder %s1416, %s1418
      %p1422 = scmp.eq.s32.totalorder %s159, 0
      %p1423 = por %p1421, %p1422
      %p1424 = scmp.ne.s32.totalorder %s1416, %s1418
      %p1425 = scmp.eq.s32.totalorder %s164, 1
      %p1426 = por %p1424, %p1425
      %p1427 = scmp.ne.s32.totalorder %s1418, %s1419
      %p1428 = scmp.eq.s32.totalorder %s164, 0
      %p1429 = por %p1427, %p1428
      %p1430 = scmp.ne.s32.totalorder %s1418, %s1419
      %p1431 = scmp.eq.s32.totalorder %s165, 1
      %p1432 = por %p1430, %p1431
      %p1434 = scmp.ne.s32.totalorder %s1419, %s1433
      %p1435 = scmp.eq.s32.totalorder %s165, 0
      %p1436 = por %p1434, %p1435
      %s1438 = sadd.s32 %s1437, 1
      %p1441 = scmp.eq.s32.totalorder %s159, 1
      %p1442 = scmp.ne.s32.totalorder %s1437, %s1439
      %p1443 = scmp.eq.s32.totalorder %s159, 0
      %p1444 = por %p1442, %p1443
      %p1445 = scmp.ne.s32.totalorder %s1437, %s1439
      %p1446 = scmp.eq.s32.totalorder %s164, 1
      %p1447 = por %p1445, %p1446
      %p1448 = scmp.ne.s32.totalorder %s1439, %s1440
      %p1449 = scmp.eq.s32.totalorder %s164, 0
      %p1450 = por %p1448, %p1449
      %p1451 = scmp.ne.s32.totalorder %s1439, %s1440
      %p1452 = scmp.eq.s32.totalorder %s165, 1
      %p1453 = por %p1451, %p1452
      %p1455 = scmp.ne.s32.totalorder %s1440, %s1454
      %p1456 = scmp.eq.s32.totalorder %s165, 0
      %p1457 = por %p1455, %p1456
      %s1459 = sadd.s32 %s1458, 1
      %p1462 = scmp.eq.s32.totalorder %s159, 1
      %p1463 = scmp.ne.s32.totalorder %s1458, %s1460
      %p1464 = scmp.eq.s32.totalorder %s159, 0
      %p1465 = por %p1463, %p1464
      %p1466 = scmp.ne.s32.totalorder %s1458, %s1460
      %p1467 = scmp.eq.s32.totalorder %s164, 1
      %p1468 = por %p1466, %p1467
      %p1469 = scmp.ne.s32.totalorder %s1460, %s1461
      %p1470 = scmp.eq.s32.totalorder %s164, 0
      %p1471 = por %p1469, %p1470
      %p1472 = scmp.ne.s32.totalorder %s1460, %s1461
      %p1473 = scmp.eq.s32.totalorder %s165, 1
      %p1474 = por %p1472, %p1473
      %p1476 = scmp.ne.s32.totalorder %s1461, %s1475
      %p1477 = scmp.eq.s32.totalorder %s165, 0
      %p1478 = por %p1476, %p1477
      %s1480 = sadd.s32 %s1479, 1
      %p1483 = scmp.eq.s32.totalorder %s159, 1
      %p1484 = scmp.ne.s32.totalorder %s1479, %s1481
      %p1485 = scmp.eq.s32.totalorder %s159, 0
      %p1486 = por %p1484, %p1485
      %p1487 = scmp.ne.s32.totalorder %s1479, %s1481
      %p1488 = scmp.eq.s32.totalorder %s164, 1
      %p1489 = por %p1487, %p1488
      %p1490 = scmp.ne.s32.totalorder %s1481, %s1482
      %p1491 = scmp.eq.s32.totalorder %s164, 0
      %p1492 = por %p1490, %p1491
      %p1493 = scmp.ne.s32.totalorder %s1481, %s1482
      %p1494 = scmp.eq.s32.totalorder %s165, 1
      %p1495 = por %p1493, %p1494
      %p1497 = scmp.ne.s32.totalorder %s1482, %s1496
      %p1498 = scmp.eq.s32.totalorder %s165, 0
      %p1499 = por %p1497, %p1498
      %s1501 = sadd.s32 %s1500, 1
      %p1504 = scmp.eq.s32.totalorder %s159, 1
      %p1505 = scmp.ne.s32.totalorder %s1500, %s1502
      %p1506 = scmp.eq.s32.totalorder %s159, 0
      %p1507 = por %p1505, %p1506
      %p1508 = scmp.ne.s32.totalorder %s1500, %s1502
      %p1509 = scmp.eq.s32.totalorder %s164, 1
      %p1510 = por %p1508, %p1509
      %p1511 = scmp.ne.s32.totalorder %s1502, %s1503
      %p1512 = scmp.eq.s32.totalorder %s164, 0
      %p1513 = por %p1511, %p1512
      %p1514 = scmp.ne.s32.totalorder %s1502, %s1503
      %p1515 = scmp.eq.s32.totalorder %s165, 1
      %p1516 = por %p1514, %p1515
      %p1518 = scmp.ne.s32.totalorder %s1503, %s1517
      %p1519 = scmp.eq.s32.totalorder %s165, 0
      %p1520 = por %p1518, %p1519
      %s1522 = sadd.s32 %s1521, 1
      %p1525 = scmp.eq.s32.totalorder %s159, 1
      %p1526 = scmp.ne.s32.totalorder %s1521, %s1523
      %p1527 = scmp.eq.s32.totalorder %s159, 0
      %p1528 = por %p1526, %p1527
      %p1529 = scmp.ne.s32.totalorder %s1521, %s1523
      %p1530 = scmp.eq.s32.totalorder %s164, 1
      %p1531 = por %p1529, %p1530
      %p1532 = scmp.ne.s32.totalorder %s1523, %s1524
      %p1533 = scmp.eq.s32.totalorder %s164, 0
      %p1534 = por %p1532, %p1533
      %p1535 = scmp.ne.s32.totalorder %s1523, %s1524
      %p1536 = scmp.eq.s32.totalorder %s165, 1
      %p1537 = por %p1535, %p1536
      %p1539 = scmp.ne.s32.totalorder %s1524, %s1538
      %p1540 = scmp.eq.s32.totalorder %s165, 0
      %p1541 = por %p1539, %p1540
      %s1543 = sadd.s32 %s1542, 1
      %p1546 = scmp.eq.s32.totalorder %s159, 1
      %p1547 = scmp.ne.s32.totalorder %s1542, %s1544
      %p1548 = scmp.eq.s32.totalorder %s159, 0
      %p1549 = por %p1547, %p1548
      %p1550 = scmp.ne.s32.totalorder %s1542, %s1544
      %p1551 = scmp.eq.s32.totalorder %s164, 1
      %p1552 = por %p1550, %p1551
      %p1553 = scmp.ne.s32.totalorder %s1544, %s1545
      %p1554 = scmp.eq.s32.totalorder %s164, 0
      %p1555 = por %p1553, %p1554
      %p1556 = scmp.ne.s32.totalorder %s1544, %s1545
      %p1557 = scmp.eq.s32.totalorder %s165, 1
      %p1558 = por %p1556, %p1557
      %p1560 = scmp.ne.s32.totalorder %s1545, %s1559
      %p1561 = scmp.eq.s32.totalorder %s165, 0
      %p1562 = por %p1560, %p1561
      %s1564 = sadd.s32 %s1563, 1
      %p1567 = scmp.eq.s32.totalorder %s159, 1
      %p1568 = scmp.ne.s32.totalorder %s1563, %s1565
      %p1569 = scmp.eq.s32.totalorder %s159, 0
      %p1570 = por %p1568, %p1569
      %p1571 = scmp.ne.s32.totalorder %s1563, %s1565
      %p1572 = scmp.eq.s32.totalorder %s164, 1
      %p1573 = por %p1571, %p1572
      %p1574 = scmp.ne.s32.totalorder %s1565, %s1566
      %p1575 = scmp.eq.s32.totalorder %s164, 0
      %p1576 = por %p1574, %p1575
      %p1577 = scmp.ne.s32.totalorder %s1565, %s1566
      %p1578 = scmp.eq.s32.totalorder %s165, 1
      %p1579 = por %p1577, %p1578
      %p1581 = scmp.ne.s32.totalorder %s1566, %s1580
      %p1582 = scmp.eq.s32.totalorder %s165, 0
      %p1583 = por %p1581, %p1582
      %s1585 = sadd.s32 %s1584, 1
      %p1588 = scmp.eq.s32.totalorder %s159, 1
      %p1589 = scmp.ne.s32.totalorder %s1584, %s1586
      %p1590 = scmp.eq.s32.totalorder %s159, 0
      %p1591 = por %p1589, %p1590
      %p1592 = scmp.ne.s32.totalorder %s1584, %s1586
      %p1593 = scmp.eq.s32.totalorder %s164, 1
      %p1594 = por %p1592, %p1593
      %p1595 = scmp.ne.s32.totalorder %s1586, %s1587
      %p1596 = scmp.eq.s32.totalorder %s164, 0
      %p1597 = por %p1595, %p1596
      %p1598 = scmp.ne.s32.totalorder %s1586, %s1587
      %p1599 = scmp.eq.s32.totalorder %s165, 1
      %p1600 = por %p1598, %p1599
      %p1602 = scmp.ne.s32.totalorder %s1587, %s1601
      %p1603 = scmp.eq.s32.totalorder %s165, 0
      %p1604 = por %p1602, %p1603
      %s1606 = sadd.s32 %s1605, 1
      %p1609 = scmp.eq.s32.totalorder %s159, 1
      %p1610 = scmp.ne.s32.totalorder %s1605, %s1607
      %p1611 = scmp.eq.s32.totalorder %s159, 0
      %p1612 = por %p1610, %p1611
      %p1613 = scmp.ne.s32.totalorder %s1605, %s1607
      %p1614 = scmp.eq.s32.totalorder %s164, 1
      %p1615 = por %p1613, %p1614
      %p1616 = scmp.ne.s32.totalorder %s1607, %s1608
      %p1617 = scmp.eq.s32.totalorder %s164, 0
      %p1618 = por %p1616, %p1617
      %p1619 = scmp.ne.s32.totalorder %s1607, %s1608
      %p1620 = scmp.eq.s32.totalorder %s165, 1
      %p1621 = por %p1619, %p1620
      %p1623 = scmp.ne.s32.totalorder %s1608, %s1622
      %p1624 = scmp.eq.s32.totalorder %s165, 0
      %p1625 = por %p1623, %p1624
      %s1627 = sadd.s32 %s1626, 1
      %p1630 = scmp.eq.s32.totalorder %s159, 1
      %p1631 = scmp.ne.s32.totalorder %s1626, %s1628
      %p1632 = scmp.eq.s32.totalorder %s159, 0
      %p1633 = por %p1631, %p1632
      %p1634 = scmp.ne.s32.totalorder %s1626, %s1628
      %p1635 = scmp.eq.s32.totalorder %s164, 1
      %p1636 = por %p1634, %p1635
      %p1637 = scmp.ne.s32.totalorder %s1628, %s1629
      %p1638 = scmp.eq.s32.totalorder %s164, 0
      %p1639 = por %p1637, %p1638
      %p1640 = scmp.ne.s32.totalorder %s1628, %s1629
      %p1641 = scmp.eq.s32.totalorder %s165, 1
      %p1642 = por %p1640, %p1641
      %p1644 = scmp.ne.s32.totalorder %s1629, %s1643
      %p1645 = scmp.eq.s32.totalorder %s165, 0
      %p1646 = por %p1644, %p1645
      %s1648 = sadd.s32 %s1647, 1
      %p1651 = scmp.eq.s32.totalorder %s159, 1
      %p1652 = scmp.ne.s32.totalorder %s1647, %s1649
      %p1653 = scmp.eq.s32.totalorder %s159, 0
      %p1654 = por %p1652, %p1653
      %p1655 = scmp.ne.s32.totalorder %s1647, %s1649
      %p1656 = scmp.eq.s32.totalorder %s164, 1
      %p1657 = por %p1655, %p1656
      %p1658 = scmp.ne.s32.totalorder %s1649, %s1650
      %p1659 = scmp.eq.s32.totalorder %s164, 0
      %p1660 = por %p1658, %p1659
      %p1661 = scmp.ne.s32.totalorder %s1649, %s1650
      %p1662 = scmp.eq.s32.totalorder %s165, 1
      %p1663 = por %p1661, %p1662
      %p1665 = scmp.ne.s32.totalorder %s1650, %s1664
      %p1666 = scmp.eq.s32.totalorder %s165, 0
      %p1667 = por %p1665, %p1666
      %s1669 = sadd.s32 %s1668, 1
      %p1672 = scmp.eq.s32.totalorder %s159, 1
      %p1673 = scmp.ne.s32.totalorder %s1668, %s1670
      %p1674 = scmp.eq.s32.totalorder %s159, 0
      %p1675 = por %p1673, %p1674
      %p1676 = scmp.ne.s32.totalorder %s1668, %s1670
      %p1677 = scmp.eq.s32.totalorder %s164, 1
      %p1678 = por %p1676, %p1677
      %p1679 = scmp.ne.s32.totalorder %s1670, %s1671
      %p1680 = scmp.eq.s32.totalorder %s164, 0
      %p1681 = por %p1679, %p1680
      %p1682 = scmp.ne.s32.totalorder %s1670, %s1671
      %p1683 = scmp.eq.s32.totalorder %s165, 1
      %p1684 = por %p1682, %p1683
      %p1686 = scmp.ne.s32.totalorder %s1671, %s1685
      %p1687 = scmp.eq.s32.totalorder %s165, 0
      %p1688 = por %p1686, %p1687
      %s1690 = sadd.s32 %s1689, 1
      %p1693 = scmp.eq.s32.totalorder %s159, 1
      %p1694 = scmp.ne.s32.totalorder %s1689, %s1691
      %p1695 = scmp.eq.s32.totalorder %s159, 0
      %p1696 = por %p1694, %p1695
      %p1697 = scmp.ne.s32.totalorder %s1689, %s1691
      %p1698 = scmp.eq.s32.totalorder %s164, 1
      %p1699 = por %p1697, %p1698
      %p1700 = scmp.ne.s32.totalorder %s1691, %s1692
      %p1701 = scmp.eq.s32.totalorder %s164, 0
      %p1702 = por %p1700, %p1701
      %p1703 = scmp.ne.s32.totalorder %s1691, %s1692
      %p1704 = scmp.eq.s32.totalorder %s165, 1
      %p1705 = por %p1703, %p1704
      %p1707 = scmp.ne.s32.totalorder %s1692, %s1706
      %p1708 = scmp.eq.s32.totalorder %s165, 0
      %p1709 = por %p1707, %p1708
      %s1711 = sadd.s32 %s1710, 1
      %p1714 = scmp.eq.s32.totalorder %s159, 1
      %p1715 = scmp.ne.s32.totalorder %s1710, %s1712
      %p1716 = scmp.eq.s32.totalorder %s159, 0
      %p1717 = por %p1715, %p1716
      %p1718 = scmp.ne.s32.totalorder %s1710, %s1712
      %p1719 = scmp.eq.s32.totalorder %s164, 1
      %p1720 = por %p1718, %p1719
      %p1721 = scmp.ne.s32.totalorder %s1712, %s1713
      %p1722 = scmp.eq.s32.totalorder %s164, 0
      %p1723 = por %p1721, %p1722
      %p1724 = scmp.ne.s32.totalorder %s1712, %s1713
      %p1725 = scmp.eq.s32.totalorder %s165, 1
      %p1726 = por %p1724, %p1725
      %p1728 = scmp.ne.s32.totalorder %s1713, %s1727
      %p1729 = scmp.eq.s32.totalorder %s165, 0
      %p1730 = por %p1728, %p1729
      %s1732 = sadd.s32 %s1731, 1
      %p1735 = scmp.eq.s32.totalorder %s159, 1
      %p1736 = scmp.ne.s32.totalorder %s1731, %s1733
      %p1737 = scmp.eq.s32.totalorder %s159, 0
      %p1738 = por %p1736, %p1737
      %p1739 = scmp.ne.s32.totalorder %s1731, %s1733
      %p1740 = scmp.eq.s32.totalorder %s164, 1
      %p1741 = por %p1739, %p1740
      %p1742 = scmp.ne.s32.totalorder %s1733, %s1734
      %p1743 = scmp.eq.s32.totalorder %s164, 0
      %p1744 = por %p1742, %p1743
      %p1745 = scmp.ne.s32.totalorder %s1733, %s1734
      %p1746 = scmp.eq.s32.totalorder %s165, 1
      %p1747 = por %p1745, %p1746
      %p1749 = scmp.ne.s32.totalorder %s1734, %s1748
      %p1750 = scmp.eq.s32.totalorder %s165, 0
      %p1751 = por %p1749, %p1750
      %s1752 = ssub.s32 %s159, %s166
      %p1753 = scmp.eq.s32.totalorder %s1752, 0
      %s1755 = sadd.s32 %s1754, 1
      %s1756 = scalar_select %p1753, %s1754, %s1755
      %p1759 = pneg %p1753
      %p1760 = scmp.eq.s32.totalorder %s159, 1
      %p1761 = por %p1759, %p1760
      %p1762 = scmp.ne.s32.totalorder %s1754, %s1757
      %p1763 = scmp.eq.s32.totalorder %s159, 0
      %p1764 = por %p1762, %p1763
      %p1765 = scmp.ne.s32.totalorder %s1754, %s1757
      %p1766 = scmp.eq.s32.totalorder %s164, 1
      %p1767 = por %p1765, %p1766
      %p1768 = scmp.ne.s32.totalorder %s1757, %s1758
      %p1769 = scmp.eq.s32.totalorder %s164, 0
      %p1770 = por %p1768, %p1769
      %p1771 = scmp.ne.s32.totalorder %s1757, %s1758
      %p1772 = scmp.eq.s32.totalorder %s165, 1
      %p1773 = por %p1771, %p1772
      %p1775 = scmp.ne.s32.totalorder %s1758, %s1774
      %p1776 = scmp.eq.s32.totalorder %s165, 0
      %p1777 = por %p1775, %p1776
      %p1778 = scmp.le.s32.totalorder 1, %s159
      %p1779 = scmp.lt.s32.totalorder %s159, 3
      %p1780 = pnand %p1778, %p1779
      %p1781 = pneg %p1780
      // Predicated region
      $region9: #{cont_disc_transformer_forward.1} parent=5 // pred_check
        _
      $region10: #{cont_disc_transformer_forward.1} parent=5 // pred_check_branch
        %1783 = sbr.rel (%p1780) target = $region12
      $region11: #{cont_disc_transformer_forward.1} parent=5 // pred_region
        %s1784 = ssub.s32 %s159, 1
        // Predicated region
        $region13: #{cont_disc_transformer_forward.1} parent=11 // pred_check
          %p1785 = pneg %p232
        $region14: #{cont_disc_transformer_forward.1} parent=11 // pred_check_branch
          %1787 = sbr.rel (%p1785) target = $region16
        $region15: #{cont_disc_transformer_forward.1} parent=11 // pred_region
          _
        $region16: #{cont_disc_transformer_forward.1} parent=11 // pred_fallthru
          _
        // Predicated region
        $region17: #{cont_disc_transformer_forward.1} parent=11 // pred_check
          %p1788 = pneg %p253
        $region18: #{cont_disc_transformer_forward.1} parent=11 // pred_check_branch
          %1790 = sbr.rel (%p1788) target = $region20
        $region19: #{cont_disc_transformer_forward.1} parent=11 // pred_region
          _
        $region20: #{cont_disc_transformer_forward.1} parent=11 // pred_fallthru
          _
        // Predicated region
        $region21: #{cont_disc_transformer_forward.1} parent=11 // pred_check
          %p1791 = pneg %p274
        $region22: #{cont_disc_transformer_forward.1} parent=11 // pred_check_branch
          %1793 = sbr.rel (%p1791) target = $region24
        $region23: #{cont_disc_transformer_forward.1} parent=11 // pred_region
          _
        $region24: #{cont_disc_transformer_forward.1} parent=11 // pred_fallthru
          _
        // Predicated region
        $region25: #{cont_disc_transformer_forward.1} parent=11 // pred_check
          %p1794 = pneg %p295
        $region26: #{cont_disc_transformer_forward.1} parent=11 // pred_check_branch
          %1796 = sbr.rel (%p1794) target = $region28
        $region27: #{cont_disc_transformer_forward.1} parent=11 // pred_region
          _
        $region28: #{cont_disc_transformer_forward.1} parent=11 // pred_fallthru
          _
        // Predicated region
        $region29: #{cont_disc_transformer_forward.1} parent=11 // pred_check
          %p1797 = pneg %p316
        $region30: #{cont_disc_transformer_forward.1} parent=11 // pred_check_branch
          %1799 = sbr.rel (%p1797) target = $region32
        $region31: #{cont_disc_transformer_forward.1} parent=11 // pred_region
          _
        $region32: #{cont_disc_transformer_forward.1} parent=11 // pred_fallthru
          _
        // Predicated region
        $region33: #{cont_disc_transformer_forward.1} parent=11 // pred_check
          %p1800 = pneg %p337
        $region34: #{cont_disc_transformer_forward.1} parent=11 // pred_check_branch
          %1802 = sbr.rel (%p1800) target = $region36
        $region35: #{cont_disc_transformer_forward.1} parent=11 // pred_region
          _
        $region36: #{cont_disc_transformer_forward.1} parent=11 // pred_fallthru
          _
        // Predicated region
        $region37: #{cont_disc_transformer_forward.1} parent=11 // pred_check
          %p1803 = pneg %p358
        $region38: #{cont_disc_transformer_forward.1} parent=11 // pred_check_branch
          %1805 = sbr.rel (%p1803) target = $region40
        $region39: #{cont_disc_transformer_forward.1} parent=11 // pred_region
          _
        $region40: #{cont_disc_transformer_forward.1} parent=11 // pred_fallthru
          _
        // Predicated region
        $region41: #{cont_disc_transformer_forward.1} parent=11 // pred_check
          %p1806 = pneg %p379
        $region42: #{cont_disc_transformer_forward.1} parent=11 // pred_check_branch
          %1808 = sbr.rel (%p1806) target = $region44
        $region43: #{cont_disc_transformer_forward.1} parent=11 // pred_region
          _
        $region44: #{cont_disc_transformer_forward.1} parent=11 // pred_fallthru
          _
        // Predicated region
        $region45: #{cont_disc_transformer_forward.1} parent=11 // pred_check
          %p1809 = pneg %p400
        $region46: #{cont_disc_transformer_forward.1} parent=11 // pred_check_branch
          %1811 = sbr.rel (%p1809) target = $region48
        $region47: #{cont_disc_transformer_forward.1} parent=11 // pred_region
          _
        $region48: #{cont_disc_transformer_forward.1} parent=11 // pred_fallthru
          _
        // Predicated region
        $region49: #{cont_disc_transformer_forward.1} parent=11 // pred_check
          %p1812 = pneg %p421
        $region50: #{cont_disc_transformer_forward.1} parent=11 // pred_check_branch
          %1814 = sbr.rel (%p1812) target = $region52
        $region51: #{cont_disc_transformer_forward.1} parent=11 // pred_region
          _
        $region52: #{cont_disc_transformer_forward.1} parent=11 // pred_fallthru
          _
        // Predicated region
        $region53: #{cont_disc_transformer_forward.1} parent=11 // pred_check
          %p1815 = pneg %p442
        $region54: #{cont_disc_transformer_forward.1} parent=11 // pred_check_branch
          %1817 = sbr.rel (%p1815) target = $region56
        $region55: #{cont_disc_transformer_forward.1} parent=11 // pred_region
          _
        $region56: #{cont_disc_transformer_forward.1} parent=11 // pred_fallthru
          _
        // Predicated region
        $region57: #{cont_disc_transformer_forward.1} parent=11 // pred_check
          %p1818 = pneg %p463
        $region58: #{cont_disc_transformer_forward.1} parent=11 // pred_check_branch
          %1820 = sbr.rel (%p1818) target = $region60
        $region59: #{cont_disc_transformer_forward.1} parent=11 // pred_region
          _
        $region60: #{cont_disc_transformer_forward.1} parent=11 // pred_fallthru
          _
        // Predicated region
        $region61: #{cont_disc_transformer_forward.1} parent=11 // pred_check
          %p1821 = pneg %p484
        $region62: #{cont_disc_transformer_forward.1} parent=11 // pred_check_branch
          %1823 = sbr.rel (%p1821) target = $region64
        $region63: #{cont_disc_transformer_forward.1} parent=11 // pred_region
          _
        $region64: #{cont_disc_transformer_forward.1} parent=11 // pred_fallthru
          _
        // Predicated region
        $region65: #{cont_disc_transformer_forward.1} parent=11 // pred_check
          %p1824 = pneg %p505
        $region66: #{cont_disc_transformer_forward.1} parent=11 // pred_check_branch
          %1826 = sbr.rel (%p1824) target = $region68
        $region67: #{cont_disc_transformer_forward.1} parent=11 // pred_region
          _
        $region68: #{cont_disc_transformer_forward.1} parent=11 // pred_fallthru
          _
        // Predicated region
        $region69: #{cont_disc_transformer_forward.1} parent=11 // pred_check
          %p1827 = pneg %p526
        $region70: #{cont_disc_transformer_forward.1} parent=11 // pred_check_branch
          %1829 = sbr.rel (%p1827) target = $region72
        $region71: #{cont_disc_transformer_forward.1} parent=11 // pred_region
          _
        $region72: #{cont_disc_transformer_forward.1} parent=11 // pred_fallthru
          _
        // Predicated region
        $region73: #{cont_disc_transformer_forward.1} parent=11 // pred_check
          %p1830 = pneg %p547
        $region74: #{cont_disc_transformer_forward.1} parent=11 // pred_check_branch
          %1832 = sbr.rel (%p1830) target = $region76
        $region75: #{cont_disc_transformer_forward.1} parent=11 // pred_region
          _
        $region76: #{cont_disc_transformer_forward.1} parent=11 // pred_fallthru
          _
        // Predicated region
        $region77: #{cont_disc_transformer_forward.1} parent=11 // pred_check
          %p1833 = pneg %p568
        $region78: #{cont_disc_transformer_forward.1} parent=11 // pred_check_branch
          %1835 = sbr.rel (%p1833) target = $region80
        $region79: #{cont_disc_transformer_forward.1} parent=11 // pred_region
          _
        $region80: #{cont_disc_transformer_forward.1} parent=11 // pred_fallthru
          _
        // Predicated region
        $region81: #{cont_disc_transformer_forward.1} parent=11 // pred_check
          %p1836 = pneg %p589
        $region82: #{cont_disc_transformer_forward.1} parent=11 // pred_check_branch
          %1838 = sbr.rel (%p1836) target = $region84
        $region83: #{cont_disc_transformer_forward.1} parent=11 // pred_region
          _
        $region84: #{cont_disc_transformer_forward.1} parent=11 // pred_fallthru
          _
        // Predicated region
        $region85: #{cont_disc_transformer_forward.1} parent=11 // pred_check
          %p1839 = pneg %p610
        $region86: #{cont_disc_transformer_forward.1} parent=11 // pred_check_branch
          %1841 = sbr.rel (%p1839) target = $region88
        $region87: #{cont_disc_transformer_forward.1} parent=11 // pred_region
          _
        $region88: #{cont_disc_transformer_forward.1} parent=11 // pred_fallthru
          _
        // Predicated region
        $region89: #{cont_disc_transformer_forward.1} parent=11 // pred_check
          %p1842 = pneg %p631
        $region90: #{cont_disc_transformer_forward.1} parent=11 // pred_check_branch
          %1844 = sbr.rel (%p1842) target = $region92
        $region91: #{cont_disc_transformer_forward.1} parent=11 // pred_region
          _
        $region92: #{cont_disc_transformer_forward.1} parent=11 // pred_fallthru
          _
        // Predicated region
        $region93: #{cont_disc_transformer_forward.1} parent=11 // pred_check
          %p1845 = pneg %p652
        $region94: #{cont_disc_transformer_forward.1} parent=11 // pred_check_branch
          %1847 = sbr.rel (%p1845) target = $region96
        $region95: #{cont_disc_transformer_forward.1} parent=11 // pred_region
          _
        $region96: #{cont_disc_transformer_forward.1} parent=11 // pred_fallthru
          _
        // Predicated region
        $region97: #{cont_disc_transformer_forward.1} parent=11 // pred_check
          %p1848 = pneg %p673
        $region98: #{cont_disc_transformer_forward.1} parent=11 // pred_check_branch
          %1850 = sbr.rel (%p1848) target = $region100
        $region99: #{cont_disc_transformer_forward.1} parent=11 // pred_region
          _
        $region100: #{cont_disc_transformer_forward.1} parent=11 // pred_fallthru
          _
        // Predicated region
        $region101: #{cont_disc_transformer_forward.1} parent=11 // pred_check
          %p1851 = pneg %p694
        $region102: #{cont_disc_transformer_forward.1} parent=11 // pred_check_branch
          %1853 = sbr.rel (%p1851) target = $region104
        $region103: #{cont_disc_transformer_forward.1} parent=11 // pred_region
          _
        $region104: #{cont_disc_transformer_forward.1} parent=11 // pred_fallthru
          _
        // Predicated region
        $region105: #{cont_disc_transformer_forward.1} parent=11 // pred_check
          %p1854 = pneg %p715
        $region106: #{cont_disc_transformer_forward.1} parent=11 // pred_check_branch
          %1856 = sbr.rel (%p1854) target = $region108
        $region107: #{cont_disc_transformer_forward.1} parent=11 // pred_region
          _
        $region108: #{cont_disc_transformer_forward.1} parent=11 // pred_fallthru
          _
        // Predicated region
        $region109: #{cont_disc_transformer_forward.1} parent=11 // pred_check
          %p1857 = pneg %p736
        $region110: #{cont_disc_transformer_forward.1} parent=11 // pred_check_branch
          %1859 = sbr.rel (%p1857) target = $region112
        $region111: #{cont_disc_transformer_forward.1} parent=11 // pred_region
          _
        $region112: #{cont_disc_transformer_forward.1} parent=11 // pred_fallthru
          _
        // Predicated region
        $region113: #{cont_disc_transformer_forward.1} parent=11 // pred_check
          %p1860 = pneg %p757
        $region114: #{cont_disc_transformer_forward.1} parent=11 // pred_check_branch
          %1862 = sbr.rel (%p1860) target = $region116
        $region115: #{cont_disc_transformer_forward.1} parent=11 // pred_region
          _
        $region116: #{cont_disc_transformer_forward.1} parent=11 // pred_fallthru
          _
        // Predicated region
        $region117: #{cont_disc_transformer_forward.1} parent=11 // pred_check
          %p1863 = pneg %p778
        $region118: #{cont_disc_transformer_forward.1} parent=11 // pred_check_branch
          %1865 = sbr.rel (%p1863) target = $region120
        $region119: #{cont_disc_transformer_forward.1} parent=11 // pred_region
          _
        $region120: #{cont_disc_transformer_forward.1} parent=11 // pred_fallthru
          _
        // Predicated region
        $region121: #{cont_disc_transformer_forward.1} parent=11 // pred_check
          %p1866 = pneg %p799
        $region122: #{cont_disc_transformer_forward.1} parent=11 // pred_check_branch
          %1868 = sbr.rel (%p1866) target = $region124
        $region123: #{cont_disc_transformer_forward.1} parent=11 // pred_region
          _
        $region124: #{cont_disc_transformer_forward.1} parent=11 // pred_fallthru
          _
        // Predicated region
        $region125: #{cont_disc_transformer_forward.1} parent=11 // pred_check
          %p1869 = pneg %p820
        $region126: #{cont_disc_transformer_forward.1} parent=11 // pred_check_branch
          %1871 = sbr.rel (%p1869) target = $region128
        $region127: #{cont_disc_transformer_forward.1} parent=11 // pred_region
          _
        $region128: #{cont_disc_transformer_forward.1} parent=11 // pred_fallthru
          _
        // Predicated region
        $region129: #{cont_disc_transformer_forward.1} parent=11 // pred_check
          %p1872 = pneg %p841
        $region130: #{cont_disc_transformer_forward.1} parent=11 // pred_check_branch
          %1874 = sbr.rel (%p1872) target = $region132
        $region131: #{cont_disc_transformer_forward.1} parent=11 // pred_region
          _
        $region132: #{cont_disc_transformer_forward.1} parent=11 // pred_fallthru
          _
        // Predicated region
        $region133: #{cont_disc_transformer_forward.1} parent=11 // pred_check
          %p1875 = pneg %p862
        $region134: #{cont_disc_transformer_forward.1} parent=11 // pred_check_branch
          %1877 = sbr.rel (%p1875) target = $region136
        $region135: #{cont_disc_transformer_forward.1} parent=11 // pred_region
          _
        $region136: #{cont_disc_transformer_forward.1} parent=11 // pred_fallthru
          _
        // Predicated region
        $region137: #{cont_disc_transformer_forward.1} parent=11 // pred_check
          %p1878 = pneg %p883
        $region138: #{cont_disc_transformer_forward.1} parent=11 // pred_check_branch
          %1880 = sbr.rel (%p1878) target = $region140
        $region139: #{cont_disc_transformer_forward.1} parent=11 // pred_region
          _
        $region140: #{cont_disc_transformer_forward.1} parent=11 // pred_fallthru
          _
        // Predicated region
        $region141: #{cont_disc_transformer_forward.1} parent=11 // pred_check
          %p1881 = pneg %p904
        $region142: #{cont_disc_transformer_forward.1} parent=11 // pred_check_branch
          %1883 = sbr.rel (%p1881) target = $region144
        $region143: #{cont_disc_transformer_forward.1} parent=11 // pred_region
          _
        $region144: #{cont_disc_transformer_forward.1} parent=11 // pred_fallthru
          _
        // Predicated region
        $region145: #{cont_disc_transformer_forward.1} parent=11 // pred_check
          %p1884 = pneg %p925
        $region146: #{cont_disc_transformer_forward.1} parent=11 // pred_check_branch
          %1886 = sbr.rel (%p1884) target = $region148
        $region147: #{cont_disc_transformer_forward.1} parent=11 // pred_region
          _
        $region148: #{cont_disc_transformer_forward.1} parent=11 // pred_fallthru
          _
        // Predicated region
        $region149: #{cont_disc_transformer_forward.1} parent=11 // pred_check
          %p1887 = pneg %p946
        $region150: #{cont_disc_transformer_forward.1} parent=11 // pred_check_branch
          %1889 = sbr.rel (%p1887) target = $region152
        $region151: #{cont_disc_transformer_forward.1} parent=11 // pred_region
          _
        $region152: #{cont_disc_transformer_forward.1} parent=11 // pred_fallthru
          _
        // Predicated region
        $region153: #{cont_disc_transformer_forward.1} parent=11 // pred_check
          %p1890 = pneg %p967
        $region154: #{cont_disc_transformer_forward.1} parent=11 // pred_check_branch
          %1892 = sbr.rel (%p1890) target = $region156
        $region155: #{cont_disc_transformer_forward.1} parent=11 // pred_region
          _
        $region156: #{cont_disc_transformer_forward.1} parent=11 // pred_fallthru
          _
        // Predicated region
        $region157: #{cont_disc_transformer_forward.1} parent=11 // pred_check
          %p1893 = pneg %p988
        $region158: #{cont_disc_transformer_forward.1} parent=11 // pred_check_branch
          %1895 = sbr.rel (%p1893) target = $region160
        $region159: #{cont_disc_transformer_forward.1} parent=11 // pred_region
          _
        $region160: #{cont_disc_transformer_forward.1} parent=11 // pred_fallthru
          _
        // Predicated region
        $region161: #{cont_disc_transformer_forward.1} parent=11 // pred_check
          %p1896 = pneg %p1009
        $region162: #{cont_disc_transformer_forward.1} parent=11 // pred_check_branch
          %1898 = sbr.rel (%p1896) target = $region164
        $region163: #{cont_disc_transformer_forward.1} parent=11 // pred_region
          _
        $region164: #{cont_disc_transformer_forward.1} parent=11 // pred_fallthru
          _
        // Predicated region
        $region165: #{cont_disc_transformer_forward.1} parent=11 // pred_check
          %p1899 = pneg %p1030
        $region166: #{cont_disc_transformer_forward.1} parent=11 // pred_check_branch
          %1901 = sbr.rel (%p1899) target = $region168
        $region167: #{cont_disc_transformer_forward.1} parent=11 // pred_region
          _
        $region168: #{cont_disc_transformer_forward.1} parent=11 // pred_fallthru
          _
        // Predicated region
        $region169: #{cont_disc_transformer_forward.1} parent=11 // pred_check
          %p1902 = pneg %p1051
        $region170: #{cont_disc_transformer_forward.1} parent=11 // pred_check_branch
          %1904 = sbr.rel (%p1902) target = $region172
        $region171: #{cont_disc_transformer_forward.1} parent=11 // pred_region
          _
        $region172: #{cont_disc_transformer_forward.1} parent=11 // pred_fallthru
          _
        // Predicated region
        $region173: #{cont_disc_transformer_forward.1} parent=11 // pred_check
          %p1905 = pneg %p1072
        $region174: #{cont_disc_transformer_forward.1} parent=11 // pred_check_branch
          %1907 = sbr.rel (%p1905) target = $region176
        $region175: #{cont_disc_transformer_forward.1} parent=11 // pred_region
          _
        $region176: #{cont_disc_transformer_forward.1} parent=11 // pred_fallthru
          _
        // Predicated region
        $region177: #{cont_disc_transformer_forward.1} parent=11 // pred_check
          %p1908 = pneg %p1093
        $region178: #{cont_disc_transformer_forward.1} parent=11 // pred_check_branch
          %1910 = sbr.rel (%p1908) target = $region180
        $region179: #{cont_disc_transformer_forward.1} parent=11 // pred_region
          _
        $region180: #{cont_disc_transformer_forward.1} parent=11 // pred_fallthru
          _
        // Predicated region
        $region181: #{cont_disc_transformer_forward.1} parent=11 // pred_check
          %p1911 = pneg %p1114
        $region182: #{cont_disc_transformer_forward.1} parent=11 // pred_check_branch
          %1913 = sbr.rel (%p1911) target = $region184
        $region183: #{cont_disc_transformer_forward.1} parent=11 // pred_region
          _
        $region184: #{cont_disc_transformer_forward.1} parent=11 // pred_fallthru
          _
        // Predicated region
        $region185: #{cont_disc_transformer_forward.1} parent=11 // pred_check
          %p1914 = pneg %p1135
        $region186: #{cont_disc_transformer_forward.1} parent=11 // pred_check_branch
          %1916 = sbr.rel (%p1914) target = $region188
        $region187: #{cont_disc_transformer_forward.1} parent=11 // pred_region
          _
        $region188: #{cont_disc_transformer_forward.1} parent=11 // pred_fallthru
          _
        // Predicated region
        $region189: #{cont_disc_transformer_forward.1} parent=11 // pred_check
          %p1917 = pneg %p1156
        $region190: #{cont_disc_transformer_forward.1} parent=11 // pred_check_branch
          %1919 = sbr.rel (%p1917) target = $region192
        $region191: #{cont_disc_transformer_forward.1} parent=11 // pred_region
          _
        $region192: #{cont_disc_transformer_forward.1} parent=11 // pred_fallthru
          _
        // Predicated region
        $region193: #{cont_disc_transformer_forward.1} parent=11 // pred_check
          %p1920 = pneg %p1177
        $region194: #{cont_disc_transformer_forward.1} parent=11 // pred_check_branch
          %1922 = sbr.rel (%p1920) target = $region196
        $region195: #{cont_disc_transformer_forward.1} parent=11 // pred_region
          _
        $region196: #{cont_disc_transformer_forward.1} parent=11 // pred_fallthru
          _
        // Predicated region
        $region197: #{cont_disc_transformer_forward.1} parent=11 // pred_check
          %p1923 = pneg %p1198
        $region198: #{cont_disc_transformer_forward.1} parent=11 // pred_check_branch
          %1925 = sbr.rel (%p1923) target = $region200
        $region199: #{cont_disc_transformer_forward.1} parent=11 // pred_region
          _
        $region200: #{cont_disc_transformer_forward.1} parent=11 // pred_fallthru
          _
        // Predicated region
        $region201: #{cont_disc_transformer_forward.1} parent=11 // pred_check
          %p1926 = pneg %p1219
        $region202: #{cont_disc_transformer_forward.1} parent=11 // pred_check_branch
          %1928 = sbr.rel (%p1926) target = $region204
        $region203: #{cont_disc_transformer_forward.1} parent=11 // pred_region
          _
        $region204: #{cont_disc_transformer_forward.1} parent=11 // pred_fallthru
          _
        // Predicated region
        $region205: #{cont_disc_transformer_forward.1} parent=11 // pred_check
          %p1929 = pneg %p1240
        $region206: #{cont_disc_transformer_forward.1} parent=11 // pred_check_branch
          %1931 = sbr.rel (%p1929) target = $region208
        $region207: #{cont_disc_transformer_forward.1} parent=11 // pred_region
          _
        $region208: #{cont_disc_transformer_forward.1} parent=11 // pred_fallthru
          _
        // Predicated region
        $region209: #{cont_disc_transformer_forward.1} parent=11 // pred_check
          %p1932 = pneg %p1261
        $region210: #{cont_disc_transformer_forward.1} parent=11 // pred_check_branch
          %1934 = sbr.rel (%p1932) target = $region212
        $region211: #{cont_disc_transformer_forward.1} parent=11 // pred_region
          _
        $region212: #{cont_disc_transformer_forward.1} parent=11 // pred_fallthru
          _
        // Predicated region
        $region213: #{cont_disc_transformer_forward.1} parent=11 // pred_check
          %p1935 = pneg %p1282
        $region214: #{cont_disc_transformer_forward.1} parent=11 // pred_check_branch
          %1937 = sbr.rel (%p1935) target = $region216
        $region215: #{cont_disc_transformer_forward.1} parent=11 // pred_region
          _
        $region216: #{cont_disc_transformer_forward.1} parent=11 // pred_fallthru
          _
        // Predicated region
        $region217: #{cont_disc_transformer_forward.1} parent=11 // pred_check
          %p1938 = pneg %p1303
        $region218: #{cont_disc_transformer_forward.1} parent=11 // pred_check_branch
          %1940 = sbr.rel (%p1938) target = $region220
        $region219: #{cont_disc_transformer_forward.1} parent=11 // pred_region
          _
        $region220: #{cont_disc_transformer_forward.1} parent=11 // pred_fallthru
          _
        // Predicated region
        $region221: #{cont_disc_transformer_forward.1} parent=11 // pred_check
          %p1941 = pneg %p1324
        $region222: #{cont_disc_transformer_forward.1} parent=11 // pred_check_branch
          %1943 = sbr.rel (%p1941) target = $region224
        $region223: #{cont_disc_transformer_forward.1} parent=11 // pred_region
          _
        $region224: #{cont_disc_transformer_forward.1} parent=11 // pred_fallthru
          _
        // Predicated region
        $region225: #{cont_disc_transformer_forward.1} parent=11 // pred_check
          %p1944 = pneg %p1345
        $region226: #{cont_disc_transformer_forward.1} parent=11 // pred_check_branch
          %1946 = sbr.rel (%p1944) target = $region228
        $region227: #{cont_disc_transformer_forward.1} parent=11 // pred_region
          _
        $region228: #{cont_disc_transformer_forward.1} parent=11 // pred_fallthru
          _
        // Predicated region
        $region229: #{cont_disc_transformer_forward.1} parent=11 // pred_check
          %p1947 = pneg %p1366
        $region230: #{cont_disc_transformer_forward.1} parent=11 // pred_check_branch
          %1949 = sbr.rel (%p1947) target = $region232
        $region231: #{cont_disc_transformer_forward.1} parent=11 // pred_region
          _
        $region232: #{cont_disc_transformer_forward.1} parent=11 // pred_fallthru
          _
        // Predicated region
        $region233: #{cont_disc_transformer_forward.1} parent=11 // pred_check
          %p1950 = pneg %p1387
        $region234: #{cont_disc_transformer_forward.1} parent=11 // pred_check_branch
          %1952 = sbr.rel (%p1950) target = $region236
        $region235: #{cont_disc_transformer_forward.1} parent=11 // pred_region
          _
        $region236: #{cont_disc_transformer_forward.1} parent=11 // pred_fallthru
          _
        // Predicated region
        $region237: #{cont_disc_transformer_forward.1} parent=11 // pred_check
          %p1953 = pneg %p1408
        $region238: #{cont_disc_transformer_forward.1} parent=11 // pred_check_branch
          %1955 = sbr.rel (%p1953) target = $region240
        $region239: #{cont_disc_transformer_forward.1} parent=11 // pred_region
          _
        $region240: #{cont_disc_transformer_forward.1} parent=11 // pred_fallthru
          _
        // Predicated region
        $region241: #{cont_disc_transformer_forward.1} parent=11 // pred_check
          %p1956 = pneg %p1429
        $region242: #{cont_disc_transformer_forward.1} parent=11 // pred_check_branch
          %1958 = sbr.rel (%p1956) target = $region244
        $region243: #{cont_disc_transformer_forward.1} parent=11 // pred_region
          _
        $region244: #{cont_disc_transformer_forward.1} parent=11 // pred_fallthru
          _
        // Predicated region
        $region245: #{cont_disc_transformer_forward.1} parent=11 // pred_check
          %p1959 = pneg %p1450
        $region246: #{cont_disc_transformer_forward.1} parent=11 // pred_check_branch
          %1961 = sbr.rel (%p1959) target = $region248
        $region247: #{cont_disc_transformer_forward.1} parent=11 // pred_region
          _
        $region248: #{cont_disc_transformer_forward.1} parent=11 // pred_fallthru
          _
        // Predicated region
        $region249: #{cont_disc_transformer_forward.1} parent=11 // pred_check
          %p1962 = pneg %p1471
        $region250: #{cont_disc_transformer_forward.1} parent=11 // pred_check_branch
          %1964 = sbr.rel (%p1962) target = $region252
        $region251: #{cont_disc_transformer_forward.1} parent=11 // pred_region
          _
        $region252: #{cont_disc_transformer_forward.1} parent=11 // pred_fallthru
          _
        // Predicated region
        $region253: #{cont_disc_transformer_forward.1} parent=11 // pred_check
          %p1965 = pneg %p1492
        $region254: #{cont_disc_transformer_forward.1} parent=11 // pred_check_branch
          %1967 = sbr.rel (%p1965) target = $region256
        $region255: #{cont_disc_transformer_forward.1} parent=11 // pred_region
          _
        $region256: #{cont_disc_transformer_forward.1} parent=11 // pred_fallthru
          _
        // Predicated region
        $region257: #{cont_disc_transformer_forward.1} parent=11 // pred_check
          %p1968 = pneg %p1513
        $region258: #{cont_disc_transformer_forward.1} parent=11 // pred_check_branch
          %1970 = sbr.rel (%p1968) target = $region260
        $region259: #{cont_disc_transformer_forward.1} parent=11 // pred_region
          _
        $region260: #{cont_disc_transformer_forward.1} parent=11 // pred_fallthru
          _
        // Predicated region
        $region261: #{cont_disc_transformer_forward.1} parent=11 // pred_check
          %p1971 = pneg %p1534
        $region262: #{cont_disc_transformer_forward.1} parent=11 // pred_check_branch
          %1973 = sbr.rel (%p1971) target = $region264
        $region263: #{cont_disc_transformer_forward.1} parent=11 // pred_region
          _
        $region264: #{cont_disc_transformer_forward.1} parent=11 // pred_fallthru
          _
        // Predicated region
        $region265: #{cont_disc_transformer_forward.1} parent=11 // pred_check
          %p1974 = pneg %p1555
        $region266: #{cont_disc_transformer_forward.1} parent=11 // pred_check_branch
          %1976 = sbr.rel (%p1974) target = $region268
        $region267: #{cont_disc_transformer_forward.1} parent=11 // pred_region
          _
        $region268: #{cont_disc_transformer_forward.1} parent=11 // pred_fallthru
          _
        // Predicated region
        $region269: #{cont_disc_transformer_forward.1} parent=11 // pred_check
          %p1977 = pneg %p1576
        $region270: #{cont_disc_transformer_forward.1} parent=11 // pred_check_branch
          %1979 = sbr.rel (%p1977) target = $region272
        $region271: #{cont_disc_transformer_forward.1} parent=11 // pred_region
          _
        $region272: #{cont_disc_transformer_forward.1} parent=11 // pred_fallthru
          _
        // Predicated region
        $region273: #{cont_disc_transformer_forward.1} parent=11 // pred_check
          %p1980 = pneg %p1597
        $region274: #{cont_disc_transformer_forward.1} parent=11 // pred_check_branch
          %1982 = sbr.rel (%p1980) target = $region276
        $region275: #{cont_disc_transformer_forward.1} parent=11 // pred_region
          _
        $region276: #{cont_disc_transformer_forward.1} parent=11 // pred_fallthru
          _
        // Predicated region
        $region277: #{cont_disc_transformer_forward.1} parent=11 // pred_check
          %p1983 = pneg %p1618
        $region278: #{cont_disc_transformer_forward.1} parent=11 // pred_check_branch
          %1985 = sbr.rel (%p1983) target = $region280
        $region279: #{cont_disc_transformer_forward.1} parent=11 // pred_region
          _
        $region280: #{cont_disc_transformer_forward.1} parent=11 // pred_fallthru
          _
        // Predicated region
        $region281: #{cont_disc_transformer_forward.1} parent=11 // pred_check
          %p1986 = pneg %p1639
        $region282: #{cont_disc_transformer_forward.1} parent=11 // pred_check_branch
          %1988 = sbr.rel (%p1986) target = $region284
        $region283: #{cont_disc_transformer_forward.1} parent=11 // pred_region
          _
        $region284: #{cont_disc_transformer_forward.1} parent=11 // pred_fallthru
          _
        // Predicated region
        $region285: #{cont_disc_transformer_forward.1} parent=11 // pred_check
          %p1989 = pneg %p1660
        $region286: #{cont_disc_transformer_forward.1} parent=11 // pred_check_branch
          %1991 = sbr.rel (%p1989) target = $region288
        $region287: #{cont_disc_transformer_forward.1} parent=11 // pred_region
          _
        $region288: #{cont_disc_transformer_forward.1} parent=11 // pred_fallthru
          _
        // Predicated region
        $region289: #{cont_disc_transformer_forward.1} parent=11 // pred_check
          %p1992 = pneg %p1681
        $region290: #{cont_disc_transformer_forward.1} parent=11 // pred_check_branch
          %1994 = sbr.rel (%p1992) target = $region292
        $region291: #{cont_disc_transformer_forward.1} parent=11 // pred_region
          %s1996 = ssub.s32 16, 16
          %1997 = vsyncadd [#allocation3], %s1996
          %s1999 = sshll.u32 [#allocation2], 4
          %s2000 = int_to_ptr.vmem [resolvable:$true] %s1999
          %2002 = dma.hbm_to_vmem [thread:$0]  %s143, 16, %s2000, [#allocation3]
        $region292: #{cont_disc_transformer_forward.1} parent=11 // pred_fallthru
          _
        // Predicated region
        $region293: #{cont_disc_transformer_forward.1} parent=11 // pred_check
          %p2003 = pneg %p1702
        $region294: #{cont_disc_transformer_forward.1} parent=11 // pred_check_branch
          %2005 = sbr.rel (%p2003) target = $region296
        $region295: #{cont_disc_transformer_forward.1} parent=11 // pred_region
          _
        $region296: #{cont_disc_transformer_forward.1} parent=11 // pred_fallthru
          _
        // Predicated region
        $region297: #{cont_disc_transformer_forward.1} parent=11 // pred_check
          %p2006 = pneg %p1723
        $region298: #{cont_disc_transformer_forward.1} parent=11 // pred_check_branch
          %2008 = sbr.rel (%p2006) target = $region300
        $region299: #{cont_disc_transformer_forward.1} parent=11 // pred_region
          %s2010 = ssub.s32 16, 16
          %2011 = vsyncadd [#allocation5], %s2010
          %s2013 = sshll.u32 [#allocation4], 4
          %s2014 = int_to_ptr.vmem [resolvable:$true] %s2013
          %2016 = dma.hbm_to_vmem [thread:$0]  %s147, 16, %s2014, [#allocation5]
        $region300: #{cont_disc_transformer_forward.1} parent=11 // pred_fallthru
          _
        // Predicated region
        $region301: #{cont_disc_transformer_forward.1} parent=11 // pred_check
          %p2017 = pneg %p1744
        $region302: #{cont_disc_transformer_forward.1} parent=11 // pred_check_branch
          %2019 = sbr.rel (%p2017) target = $region304
        $region303: #{cont_disc_transformer_forward.1} parent=11 // pred_region
          _
        $region304: #{cont_disc_transformer_forward.1} parent=11 // pred_fallthru
          _
      $region12: #{cont_disc_transformer_forward.1} parent=5 // pred_fallthru
        _
      %p2020 = scmp.lt.s32.totalorder %s159, 2
      // Predicated region
      $region305: #{cont_disc_transformer_forward.1} parent=5 // pred_check
        %p2021 = pneg %p2020
      $region306: #{cont_disc_transformer_forward.1} parent=5 // pred_check_branch
        %2023 = sbr.rel (%p2021) target = $region308
      $region307: #{cont_disc_transformer_forward.1} parent=5 // pred_region
        // Predicated region
        $region309: #{cont_disc_transformer_forward.1} parent=307 // pred_check
          %p2024 = pneg %p179
        $region310: #{cont_disc_transformer_forward.1} parent=307 // pred_check_branch
          %2026 = sbr.rel (%p2024) target = $region312
        $region311: #{cont_disc_transformer_forward.1} parent=307 // pred_region
          %p2027 = scmp.lt.s32.totalorder %s159, 1
          %s2028 = scalar_select %p2027, %s159, 1
          %s2029 = smul.addr %s2028, 8
          %s2030 = scalar_lea.vmem %s1, %s2029
        $region312: #{cont_disc_transformer_forward.1} parent=307 // pred_fallthru
          _
        // Predicated region
        $region313: #{cont_disc_transformer_forward.1} parent=307 // pred_check
          %p2031 = pneg %p205
        $region314: #{cont_disc_transformer_forward.1} parent=307 // pred_check_branch
          %2033 = sbr.rel (%p2031) target = $region316
        $region315: #{cont_disc_transformer_forward.1} parent=307 // pred_region
          %p2034 = scmp.lt.s32.totalorder %s159, 1
          %s2035 = scalar_select %p2034, %s159, 1
          %s2036 = smul.addr %s2035, 8
          %s2037 = scalar_lea.vmem %s3, %s2036
        $region316: #{cont_disc_transformer_forward.1} parent=307 // pred_fallthru
          _
      $region308: #{cont_disc_transformer_forward.1} parent=5 // pred_fallthru
        _
      %p2038 = scmp.le.s32.totalorder 1, %s159
      %p2039 = scmp.lt.s32.totalorder %s159, 3
      %p2040 = pnand %p2038, %p2039
      %p2041 = pneg %p2040
      // Predicated region
      $region317: #{cont_disc_transformer_forward.1} parent=5 // pred_check
        _
      $region318: #{cont_disc_transformer_forward.1} parent=5 // pred_check_branch
        %2043 = sbr.rel (%p2040) target = $region320
      $region319: #{cont_disc_transformer_forward.1} parent=5 // pred_region
        %s2044 = ssub.s32 %s159, 1
        // Predicated region
        $region321: #{cont_disc_transformer_forward.1} parent=319 // pred_check
          %p2045 = pneg %p1681
        $region322: #{cont_disc_transformer_forward.1} parent=319 // pred_check_branch
          %2047 = sbr.rel (%p2045) target = $region324
        $region323: #{cont_disc_transformer_forward.1} parent=319 // pred_region
          %2048 = dma.done [#allocation3], 16
        $region324: #{cont_disc_transformer_forward.1} parent=319 // pred_fallthru
          _
        // Predicated region
        $region325: #{cont_disc_transformer_forward.1} parent=319 // pred_check
          %p2049 = pneg %p1723
        $region326: #{cont_disc_transformer_forward.1} parent=319 // pred_check_branch
          %2051 = sbr.rel (%p2049) target = $region328
        $region327: #{cont_disc_transformer_forward.1} parent=319 // pred_region
          %2052 = dma.done [#allocation5], 16
        $region328: #{cont_disc_transformer_forward.1} parent=319 // pred_fallthru
          _
        %p2053 = scmp.lt.s32.totalorder %s164, 1
        %s2054 = scalar_select %p2053, %s164, 1
        %s2055 = smul.addr %s2054, 8
        %s2056 = scalar_lea.vmem %s1, %s2055
        %p2057 = pneg %p185
        %p2058 = pneg %p182
        %p2059 = scmp.lt.s32.totalorder %s164, 1
        %s2060 = scalar_select %p2059, %s164, 1
        %s2061 = smul.addr %s2060, 8
        %s2062 = scalar_lea.vmem %s3, %s2061
        %p2063 = pneg %p211
        %p2064 = pneg %p208
        %p2065 = pneg %p232
        %p2066 = pneg %p229
        %p2067 = pneg %p253
        %p2068 = pneg %p250
        %p2069 = pneg %p274
        %p2070 = pneg %p271
        %p2071 = pneg %p295
        %p2072 = pneg %p292
        %p2073 = pneg %p316
        %p2074 = pneg %p313
        %p2075 = pneg %p337
        %p2076 = pneg %p334
        %p2077 = pneg %p358
        %p2078 = pneg %p355
        %p2079 = pneg %p379
        %p2080 = pneg %p376
        %p2081 = pneg %p400
        %p2082 = pneg %p397
        %p2083 = pneg %p421
        %p2084 = pneg %p418
        %p2085 = pneg %p442
        %p2086 = pneg %p439
        %p2087 = pneg %p463
        %p2088 = pneg %p460
        %p2089 = pneg %p484
        %p2090 = pneg %p481
        %p2091 = pneg %p505
        %p2092 = pneg %p502
        %p2093 = pneg %p526
        %p2094 = pneg %p523
        %p2095 = pneg %p547
        %p2096 = pneg %p544
        %p2097 = pneg %p568
        %p2098 = pneg %p565
        %p2099 = pneg %p589
        %p2100 = pneg %p586
        %p2101 = pneg %p610
        %p2102 = pneg %p607
        %p2103 = pneg %p631
        %p2104 = pneg %p628
        %p2105 = pneg %p652
        %p2106 = pneg %p649
        %p2107 = pneg %p673
        %p2108 = pneg %p670
        %p2109 = pneg %p694
        %p2110 = pneg %p691
        %p2111 = pneg %p715
        %p2112 = pneg %p712
        %p2113 = pneg %p736
        %p2114 = pneg %p733
        %p2115 = pneg %p757
        %p2116 = pneg %p754
        %p2117 = pneg %p778
        %p2118 = pneg %p775
        %p2119 = pneg %p799
        %p2120 = pneg %p796
        %p2121 = pneg %p820
        %p2122 = pneg %p817
        %p2123 = pneg %p841
        %p2124 = pneg %p838
        %p2125 = pneg %p862
        %p2126 = pneg %p859
        %p2127 = pneg %p883
        %p2128 = pneg %p880
        %p2129 = pneg %p904
        %p2130 = pneg %p901
        %p2131 = pneg %p925
        %p2132 = pneg %p922
        %p2133 = pneg %p946
        %p2134 = pneg %p943
        %p2135 = pneg %p967
        %p2136 = pneg %p964
        %p2137 = pneg %p988
        %p2138 = pneg %p985
        %p2139 = pneg %p1009
        %p2140 = pneg %p1006
        %p2141 = pneg %p1030
        %p2142 = pneg %p1027
        %p2143 = pneg %p1051
        %p2144 = pneg %p1048
        %p2145 = pneg %p1072
        %p2146 = pneg %p1069
        %p2147 = pneg %p1093
        %p2148 = pneg %p1090
        %p2149 = pneg %p1114
        %p2150 = pneg %p1111
        %p2151 = pneg %p1135
        %p2152 = pneg %p1132
        %p2153 = pneg %p1156
        %p2154 = pneg %p1153
        %p2155 = pneg %p1177
        %p2156 = pneg %p1174
        %p2157 = pneg %p1198
        %p2158 = pneg %p1195
        %p2159 = pneg %p1219
        %p2160 = pneg %p1216
        %p2161 = pneg %p1240
        %p2162 = pneg %p1237
        %p2163 = pneg %p1261
        %p2164 = pneg %p1258
        %p2165 = pneg %p1282
        %p2166 = pneg %p1279
        %p2167 = pneg %p1303
        %p2168 = pneg %p1300
        %p2169 = pneg %p1324
        %p2170 = pneg %p1321
        %p2171 = pneg %p1345
        %p2172 = pneg %p1342
        %p2173 = pneg %p1366
        %p2174 = pneg %p1363
        %p2175 = pneg %p1387
        %p2176 = pneg %p1384
        %p2177 = pneg %p1408
        %p2178 = pneg %p1405
        %p2179 = pneg %p1429
        %p2180 = pneg %p1426
        %p2181 = pneg %p1450
        %p2182 = pneg %p1447
        %p2183 = pneg %p1471
        %p2184 = pneg %p1468
        %p2185 = pneg %p1492
        %p2186 = pneg %p1489
        %p2187 = pneg %p1513
        %p2188 = pneg %p1510
        %p2189 = pneg %p1534
        %p2190 = pneg %p1531
        %p2191 = pneg %p1555
        %p2192 = pneg %p1552
        %p2193 = pneg %p1576
        %p2194 = pneg %p1573
        %p2195 = pneg %p1597
        %p2196 = pneg %p1594
        %p2197 = pneg %p1618
        %p2198 = pneg %p1615
        %p2199 = pneg %p1639
        %p2200 = pneg %p1636
        %p2201 = pneg %p1660
        %p2202 = pneg %p1657
        %p2203 = pneg %p1681
        %p2204 = pneg %p1678
        %p2205 = pneg %p1702
        %p2206 = pneg %p1699
        %p2207 = pneg %p1723
        %p2208 = pneg %p1720
        %p2209 = pneg %p1744
        %p2210 = pneg %p1741
        %p2211 = pneg %p1770
        %p2212 = pneg %p1767
        %p2213 = scmp.lt.s32.totalorder %s164, 1
        %s2214 = scalar_select %p2213, %s164, 1
        %s2215 = smul.addr %s2214, 8
        %s2216 = scalar_lea.vmem %s151, %s2215
        %p2217 = scmp.lt.s32.totalorder %s164, 1
        %s2218 = scalar_select %p2217, %s164, 1
        %s2219 = smul.addr %s2218, 8
        %s2220 = scalar_lea.vmem %s1, %s2219
        %p2221 = scmp.lt.s32.totalorder %s164, 1
        %s2222 = scalar_select %p2221, %s164, 1
        %s2223 = smul.addr %s2222, 8
        %s2224 = scalar_lea.vmem %s3, %s2223
        %p2225 = scmp.lt.s32.totalorder %s164, 1
        %s2226 = scalar_select %p2225, %s164, 1
        %s2227 = smul.addr %s2226, 8
        %s2228 = scalar_lea.vmem %s151, %s2227
        %v2230 = vld [vmem:[%s7] sm:$0x1]
        %v2231 = vld [vmem:[%s9] sm:$0x1]
        %v2232 = vld [vmem:[%s11] sm:$0x1]
        %v2233 = vld [vmem:[%s13] sm:$0x1]
        %v2234 = vld [vmem:[%s15] sm:$0x1]
        %v2235 = vld [vmem:[%s17] sm:$0xf]
        %v2236 = vld [vmem:[%s17 + $0x4] sm:$0xf]
        %v2237 = vld [vmem:[%s17 + $0x8] sm:$0xf]
        %v2238 = vld [vmem:[%s17 + $0xc] sm:$0xf]
        %v2239 = vld [vmem:[%s19] sm:$0xf]
        %v2240 = vld [vmem:[%s19 + $0x4] sm:$0xf]
        %v2241 = vld [vmem:[%s19 + $0x8] sm:$0xf]
        %v2242 = vld [vmem:[%s19 + $0xc] sm:$0xf]
        %v2243 = vld [vmem:[%s21] sm:$0xf]
        %v2244 = vld [vmem:[%s21 + $0x4] sm:$0xf]
        %v2245 = vld [vmem:[%s21 + $0x8] sm:$0xf]
        %v2246 = vld [vmem:[%s21 + $0xc] sm:$0xf]
        %v2247 = vld [vmem:[%s23] sm:$0x1]
        %v2248 = vld [vmem:[%s25] sm:$0x1]
        %v2249 = vld [vmem:[%s27] sm:$0x1]
        %v2250 = vld [vmem:[%s29] sm:$0x1]
        %v2251 = vld [vmem:[%s31] sm:$0x1]
        %v2252 = vld [vmem:[%s33] sm:$0x1]
        %v2253 = vld [vmem:[%s35] sm:$0x1]
        %v2254 = vld [vmem:[%s37] sm:$0x1]
        %v2255 = vld [vmem:[%s39] sm:$0xf]
        %v2256 = vld [vmem:[%s39 + $0x4] sm:$0xf]
        %v2257 = vld [vmem:[%s39 + $0x8] sm:$0xf]
        %v2258 = vld [vmem:[%s39 + $0xc] sm:$0xf]
        %v2259 = vld [vmem:[%s41] sm:$0xf]
        %v2260 = vld [vmem:[%s41 + $0x4] sm:$0xf]
        %v2261 = vld [vmem:[%s41 + $0x8] sm:$0xf]
        %v2262 = vld [vmem:[%s41 + $0xc] sm:$0xf]
        %v2263 = vld [vmem:[%s43] sm:$0xf]
        %v2264 = vld [vmem:[%s43 + $0x4] sm:$0xf]
        %v2265 = vld [vmem:[%s43 + $0x8] sm:$0xf]
        %v2266 = vld [vmem:[%s43 + $0xc] sm:$0xf]
        %v2267 = vld [vmem:[%s45] sm:$0xf]
        %v2268 = vld [vmem:[%s45 + $0x4] sm:$0xf]
        %v2269 = vld [vmem:[%s45 + $0x8] sm:$0xf]
        %v2270 = vld [vmem:[%s45 + $0xc] sm:$0xf]
        %v2271 = vld [vmem:[%s45 + $0x10] sm:$0xf]
        %v2272 = vld [vmem:[%s45 + $0x14] sm:$0xf]
        %v2273 = vld [vmem:[%s45 + $0x18] sm:$0xf]
        %v2274 = vld [vmem:[%s45 + $0x1c] sm:$0xf]
        %v2275 = vld [vmem:[%s47] sm:$0x1]
        %v2276 = vld [vmem:[%s49] sm:$0x1]
        %v2277 = vld [vmem:[%s51] sm:$0x1]
        %v2278 = vld [vmem:[%s53] sm:$0x1]
        %v2279 = vld [vmem:[%s55] sm:$0x1]
        %v2280 = vld [vmem:[%s57] sm:$0xf]
        %v2281 = vld [vmem:[%s57 + $0x4] sm:$0xf]
        %v2282 = vld [vmem:[%s57 + $0x8] sm:$0xf]
        %v2283 = vld [vmem:[%s57 + $0xc] sm:$0xf]
        %v2284 = vld [vmem:[%s59] sm:$0xf]
        %v2285 = vld [vmem:[%s59 + $0x4] sm:$0xf]
        %v2286 = vld [vmem:[%s59 + $0x8] sm:$0xf]
        %v2287 = vld [vmem:[%s59 + $0xc] sm:$0xf]
        %v2288 = vld [vmem:[%s61] sm:$0xf]
        %v2289 = vld [vmem:[%s61 + $0x4] sm:$0xf]
        %v2290 = vld [vmem:[%s61 + $0x8] sm:$0xf]
        %v2291 = vld [vmem:[%s61 + $0xc] sm:$0xf]
        %v2292 = vld [vmem:[%s63] sm:$0x1]
        %v2293 = vld [vmem:[%s65] sm:$0x1]
        %v2294 = vld [vmem:[%s67] sm:$0x1]
        %v2295 = vld [vmem:[%s69] sm:$0x1]
        %v2296 = vld [vmem:[%s71] sm:$0x1]
        %v2297 = vld [vmem:[%s73] sm:$0x1]
        %v2298 = vld [vmem:[%s75] sm:$0x1]
        %v2299 = vld [vmem:[%s77] sm:$0x1]
        %v2300 = vld [vmem:[%s79] sm:$0xf]
        %v2301 = vld [vmem:[%s79 + $0x4] sm:$0xf]
        %v2302 = vld [vmem:[%s79 + $0x8] sm:$0xf]
        %v2303 = vld [vmem:[%s79 + $0xc] sm:$0xf]
        %v2304 = vld [vmem:[%s81] sm:$0xf]
        %v2305 = vld [vmem:[%s81 + $0x4] sm:$0xf]
        %v2306 = vld [vmem:[%s81 + $0x8] sm:$0xf]
        %v2307 = vld [vmem:[%s81 + $0xc] sm:$0xf]
        %v2308 = vld [vmem:[%s83] sm:$0xf]
        %v2309 = vld [vmem:[%s83 + $0x4] sm:$0xf]
        %v2310 = vld [vmem:[%s83 + $0x8] sm:$0xf]
        %v2311 = vld [vmem:[%s83 + $0xc] sm:$0xf]
        %v2312 = vld [vmem:[%s85] sm:$0xf]
        %v2313 = vld [vmem:[%s85 + $0x4] sm:$0xf]
        %v2314 = vld [vmem:[%s85 + $0x8] sm:$0xf]
        %v2315 = vld [vmem:[%s85 + $0xc] sm:$0xf]
        %v2316 = vld [vmem:[%s85 + $0x10] sm:$0xf]
        %v2317 = vld [vmem:[%s85 + $0x14] sm:$0xf]
        %v2318 = vld [vmem:[%s85 + $0x18] sm:$0xf]
        %v2319 = vld [vmem:[%s85 + $0x1c] sm:$0xf]
        %v2320 = vld [vmem:[%s87] sm:$0x1]
        %v2321 = vld [vmem:[%s89] sm:$0x1]
        %v2322 = vld [vmem:[%s91] sm:$0x1]
        %v2323 = vld [vmem:[%s93] sm:$0x1]
        %v2324 = vld [vmem:[%s95] sm:$0xf]
        %v2325 = vld [vmem:[%s95 + $0x4] sm:$0xf]
        %v2326 = vld [vmem:[%s95 + $0x8] sm:$0xf]
        %v2327 = vld [vmem:[%s95 + $0xc] sm:$0xf]
        %v2328 = vld [vmem:[%s97] sm:$0xf]
        %v2329 = vld [vmem:[%s97 + $0x4] sm:$0xf]
        %v2330 = vld [vmem:[%s97 + $0x8] sm:$0xf]
        %v2331 = vld [vmem:[%s97 + $0xc] sm:$0xf]
        %v2332 = vld [vmem:[%s99] sm:$0x1]
        %v2333 = vld [vmem:[%s101] sm:$0x1]
        %v2334 = vld [vmem:[%s103] sm:$0x1]
        %v2335 = vld [vmem:[%s105] sm:$0x1]
        %v2336 = vld [vmem:[%s107] sm:$0x1]
        %v2337 = vld [vmem:[%s109] sm:$0x1]
        %v2338 = vld [vmem:[%s111] sm:$0xf]
        %v2339 = vld [vmem:[%s111 + $0x4] sm:$0xf]
        %v2340 = vld [vmem:[%s111 + $0x8] sm:$0xf]
        %v2341 = vld [vmem:[%s111 + $0xc] sm:$0xf]
        %v2342 = vld [vmem:[%s113] sm:$0xf]
        %v2343 = vld [vmem:[%s113 + $0x4] sm:$0xf]
        %v2344 = vld [vmem:[%s113 + $0x8] sm:$0xf]
        %v2345 = vld [vmem:[%s113 + $0xc] sm:$0xf]
        %v2346 = vld [vmem:[%s113 + $0x10] sm:$0xf]
        %v2347 = vld [vmem:[%s113 + $0x14] sm:$0xf]
        %v2348 = vld [vmem:[%s113 + $0x18] sm:$0xf]
        %v2349 = vld [vmem:[%s113 + $0x1c] sm:$0xf]
        %v2350 = vld [vmem:[%s115] sm:$0x1]
        %v2351 = vld [vmem:[%s117] sm:$0x1]
        %v2352 = vld [vmem:[%s119] sm:$0xf]
        %v2353 = vld [vmem:[%s119 + $0x4] sm:$0xf]
        %v2354 = vld [vmem:[%s119 + $0x8] sm:$0xf]
        %v2355 = vld [vmem:[%s119 + $0xc] sm:$0xf]
        %v2356 = vld [vmem:[%s121] sm:$0xf]
        %v2357 = vld [vmem:[%s121 + $0x4] sm:$0xf]
        %v2358 = vld [vmem:[%s121 + $0x8] sm:$0xf]
        %v2359 = vld [vmem:[%s121 + $0xc] sm:$0xf]
        %v2360 = vld [vmem:[%s123] sm:$0x1]
        %v2361 = vld [vmem:[%s125] sm:$0x1]
        %v2362 = vld [vmem:[%s127] sm:$0x1]
        %v2363 = vld [vmem:[%s129] sm:$0x1]
        %v2364 = vld [vmem:[%s131] sm:$0x1]
        %v2365 = vld [vmem:[%s133] sm:$0x1]
        %v2366 = vld [vmem:[%s135] sm:$0xf]
        %v2367 = vld [vmem:[%s135 + $0x4] sm:$0xf]
        %v2368 = vld [vmem:[%s135 + $0x8] sm:$0xf]
        %v2369 = vld [vmem:[%s135 + $0xc] sm:$0xf]
        %v2370 = vld [vmem:[%s137] sm:$0xf]
        %v2371 = vld [vmem:[%s137 + $0x4] sm:$0xf]
        %v2372 = vld [vmem:[%s137 + $0x8] sm:$0xf]
        %v2373 = vld [vmem:[%s137 + $0xc] sm:$0xf]
        %v2374 = vld [vmem:[%s137 + $0x10] sm:$0xf]
        %v2375 = vld [vmem:[%s137 + $0x14] sm:$0xf]
        %v2376 = vld [vmem:[%s137 + $0x18] sm:$0xf]
        %v2377 = vld [vmem:[%s137 + $0x1c] sm:$0xf]
        %v2378 = vld [vmem:[%s139] sm:$0x1]
        %v2379 = vld [vmem:[%s141] sm:$0x1]
        %v2380 = vld [vmem:[#allocation2] sm:$0x1]
        %v2381 = vld [vmem:[%s145] sm:$0xf]
        %v2382 = vld [vmem:[%s145 + $0x4] sm:$0xf]
        %v2383 = vld [vmem:[%s145 + $0x8] sm:$0xf]
        %v2384 = vld [vmem:[%s145 + $0xc] sm:$0xf]
        %v2385 = vld [vmem:[#allocation4] sm:$0x1]
        %v2386 = vld [vmem:[%s149] sm:$0xf]
        %v2387 = vld [vmem:[%s149 + $0x4] sm:$0xf]
        %v2388 = vld [vmem:[%s2220] sm:$0xff]
        %v2389 = vld [vmem:[%s2224] sm:$0xff]
        %v2390 = vld [vmem:[%s5] sm:$0xff]
        %v2391 = vpack.c.bf16 %v2388, %v2388
        %v2393 = vlaneseq
        %v2394 = vshrl.u32 %v2393, 7
        %v2395 = vsub.s32 0, %v2394
        %v2396 = vrot.slane %v2385, %v2395
        %v2400 = vunpack.c.l.b16 %v2386
        %v2401 = vunpack.c.l.b16 %v2387
        %v2402 = vpack.c.b16 %v2401, %v2400
        %vm2404 = vcmask 130048
        %v2406 = vsel %vm2404, %v2391, 0
        %2408 = vmatprep.subr.bf16.mxu0 0
        %2409 = vmatpush1.bf16.msra.mxu0 %v2402
        %2410 = vmatprep.subr.bf16.mxu0 0
        %2411 = vmatpush1.bf16.msra.mxu0 0
        %2412 = vmatprep.subr.bf16.mxu0 0
        %2413 = vmatpush1.bf16.msra.mxu0 0
        %2414 = vmatprep.subr.bf16.mxu0 0
        %2415 = vmatpush1.bf16.msra.mxu0 0
        %2416 = vmatprep.subr.bf16.mxu0 0
        %2417 = vmatpush1.bf16.msra.mxu0 0
        %2418 = vmatprep.subr.bf16.mxu0 0
        %2419 = vmatpush1.bf16.msra.mxu0 0
        %2420 = vmatprep.subr.bf16.mxu0 0
        %2421 = vmatpush1.bf16.msra.mxu0 0
        %2422 = vmatprep.subr.bf16.mxu0 0
        %2423 = vmatpush1.bf16.msra.mxu0 0
        %2424 = vmatprep.subr.bf16.mxu0 0
        %2425 = vmatpush1.bf16.msra.mxu0 0
        %2426 = vmatprep.subr.bf16.mxu0 0
        %2427 = vmatpush1.bf16.msra.mxu0 0
        %2428 = vmatprep.subr.bf16.mxu0 0
        %2429 = vmatpush1.bf16.msra.mxu0 0
        %2430 = vmatprep.subr.bf16.mxu0 0
        %2431 = vmatpush1.bf16.msra.mxu0 0
        %2432 = vmatprep.subr.bf16.mxu0 0
        %2433 = vmatpush1.bf16.msra.mxu0 0
        %2434 = vmatprep.subr.bf16.mxu0 0
        %2435 = vmatpush1.bf16.msra.mxu0 0
        %2436 = vmatprep.subr.bf16.mxu0 0
        %2437 = vmatpush1.bf16.msra.mxu0 0
        %2438 = vmatprep.subr.bf16.mxu0 0
        %2439 = vmatpush1.bf16.msra.mxu0 0
        %2440 = vmatprep.mubr.bf16.mxu0 0
        %2441 = vmatmul.mubr.bf16.gmra.mrb[0].mxu0 %v2406
        %v2442 = vpop.f32.mrb[0].mxu0
        %v2443 = vadd.f32 %v2396, %v2442
        %v2444 = vpop.f32.mrb[0].mxu0
        %v2445 = vpop.f32.mrb[0].mxu0
        %v2446 = vpop.f32.mrb[0].mxu0
        %2447 = vdwg.mxu0
        %v2448 = vpack.c.bf16 %v2443, %v2443
        %v2450 = vlaneseq
        %v2451 = vshrl.u32 %v2450, 7
        %v2452 = vsub.s32 0, %v2451
        %v2453 = vrot.slane %v2323, %v2452
        %v2459 = vunpack.c.l.b16 %v2328
        %v2460 = vunpack.c.l.b16 %v2329
        %v2461 = vunpack.c.l.b16 %v2330
        %v2462 = vunpack.c.l.b16 %v2331
        %v2463 = vpack.c.b16 %v2460, %v2459
        %v2464 = vpack.c.b16 %v2462, %v2461
        %vm2467 = vcmask 261120
        %v2469 = vsel %vm2467, %v2448, 0
        %2471 = vmatprep.subr.bf16.mxu0 0
        %2472 = vmatpush1.bf16.msra.mxu0 %v2463
        %2473 = vmatprep.subr.bf16.mxu0 0
        %2474 = vmatpush1.bf16.msra.mxu0 %v2464
        %2475 = vmatprep.subr.bf16.mxu0 0
        %2476 = vmatpush1.bf16.msra.mxu0 0
        %2477 = vmatprep.subr.bf16.mxu0 0
        %2478 = vmatpush1.bf16.msra.mxu0 0
        %2479 = vmatprep.subr.bf16.mxu0 0
        %2480 = vmatpush1.bf16.msra.mxu0 0
        %2481 = vmatprep.subr.bf16.mxu0 0
        %2482 = vmatpush1.bf16.msra.mxu0 0
        %2483 = vmatprep.subr.bf16.mxu0 0
        %2484 = vmatpush1.bf16.msra.mxu0 0
        %2485 = vmatprep.subr.bf16.mxu0 0
        %2486 = vmatpush1.bf16.msra.mxu0 0
        %2487 = vmatprep.subr.bf16.mxu0 0
        %2488 = vmatpush1.bf16.msra.mxu0 0
        %2489 = vmatprep.subr.bf16.mxu0 0
        %2490 = vmatpush1.bf16.msra.mxu0 0
        %2491 = vmatprep.subr.bf16.mxu0 0
        %2492 = vmatpush1.bf16.msra.mxu0 0
        %2493 = vmatprep.subr.bf16.mxu0 0
        %2494 = vmatpush1.bf16.msra.mxu0 0
        %2495 = vmatprep.subr.bf16.mxu0 0
        %2496 = vmatpush1.bf16.msra.mxu0 0
        %2497 = vmatprep.subr.bf16.mxu0 0
        %2498 = vmatpush1.bf16.msra.mxu0 0
        %2499 = vmatprep.subr.bf16.mxu0 0
        %2500 = vmatpush1.bf16.msra.mxu0 0
        %2501 = vmatprep.subr.bf16.mxu0 0
        %2502 = vmatpush1.bf16.msra.mxu0 0
        %2503 = vmatprep.mubr.bf16.mxu0 0
        %2504 = vmatmul.mubr.bf16.gmra.mrb[0].mxu0 %v2469
        %v2505 = vpop.f32.mrb[0].mxu0
        %v2506 = vadd.f32 %v2453, %v2505
        %v2507 = vpop.f32.mrb[0].mxu0
        %v2508 = vpop.f32.mrb[0].mxu0
        %v2509 = vpop.f32.mrb[0].mxu0
        %2510 = vdwg.mxu0
        %2512 = vrot.lane.b32.xlu0 %v2506, 120
        %v2513 = vpop.permute.xlu0 %2512
        %2515 = vrot.lane.b32.xlu0 %v2506, 112
        %v2516 = vpop.permute.xlu0 %2515
        %2518 = vrot.lane.b32.xlu0 %v2506, 104
        %v2519 = vpop.permute.xlu0 %2518
        %v2521 = vpack.c.bf16 %v2506, %v2506
        %v2522 = vpack.c.bf16 %v2513, %v2513
        %v2523 = vpack.c.bf16 %v2516, %v2516
        %v2524 = vpack.c.bf16 %v2519, %v2519
        %2526 = vrot.lane.b32.xlu0 %v2521, 96
        %v2527 = vpop.permute.xlu0 %2526
        %vm2528 = vcmask 64512
        %v2530 = vsel %vm2528, %v2521, 0
        %v2533 = vsel %vm2528, %v2527, 0
        %2535 = vmatprep.subr.bf16.mxu0 0
        %2536 = vmatpush1.bf16.xpose.msra.mxu0 %v2533
        %2537 = vmatprep.subr.bf16.mxu0 0
        %2538 = vmatpush1.bf16.xpose.msra.mxu0 0
        %2539 = vmatprep.subr.bf16.mxu0 0
        %2540 = vmatpush1.bf16.xpose.msra.mxu0 0
        %2541 = vmatprep.subr.bf16.mxu0 0
        %2542 = vmatpush1.bf16.xpose.msra.mxu0 0
        %2543 = vmatprep.subr.bf16.mxu0 0
        %2544 = vmatpush1.bf16.xpose.msra.mxu0 0
        %2545 = vmatprep.subr.bf16.mxu0 0
        %2546 = vmatpush1.bf16.xpose.msra.mxu0 0
        %2547 = vmatprep.subr.bf16.mxu0 0
        %2548 = vmatpush1.bf16.xpose.msra.mxu0 0
        %2549 = vmatprep.subr.bf16.mxu0 0
        %2550 = vmatpush1.bf16.xpose.msra.mxu0 0
        %2551 = vmatprep.subr.bf16.mxu0 0
        %2552 = vmatpush1.bf16.xpose.msra.mxu0 0
        %2553 = vmatprep.subr.bf16.mxu0 0
        %2554 = vmatpush1.bf16.xpose.msra.mxu0 0
        %2555 = vmatprep.subr.bf16.mxu0 0
        %2556 = vmatpush1.bf16.xpose.msra.mxu0 0
        %2557 = vmatprep.subr.bf16.mxu0 0
        %2558 = vmatpush1.bf16.xpose.msra.mxu0 0
        %2559 = vmatprep.subr.bf16.mxu0 0
        %2560 = vmatpush1.bf16.xpose.msra.mxu0 0
        %2561 = vmatprep.subr.bf16.mxu0 0
        %2562 = vmatpush1.bf16.xpose.msra.mxu0 0
        %2563 = vmatprep.subr.bf16.mxu0 0
        %2564 = vmatpush1.bf16.xpose.msra.mxu0 0
        %2565 = vmatprep.subr.bf16.mxu0 0
        %2566 = vmatpush1.bf16.xpose.msra.mxu0 0
        %2567 = vmatprep.mubr.bf16.mxu0 0
        %2568 = vmatmul.mubr.bf16.gmra.mrb[0].mxu0 %v2530
        %v2569 = vpop.f32.mrb[0].mxu0
        %v2570 = vadd.f32 0.0, %v2569
        %v2571 = vpop.f32.mrb[0].mxu0
        %v2572 = vpop.f32.mrb[0].mxu0
        %v2573 = vpop.f32.mrb[0].mxu0
        %2574 = vdwg.mxu0
        %2576 = vrot.lane.b32.xlu0 %v2522, 96
        %v2577 = vpop.permute.xlu0 %2576
        %v2579 = vsel %vm2528, %v2522, 0
        %v2582 = vsel %vm2528, %v2577, 0
        %2584 = vmatprep.subr.bf16.mxu0 0
        %2585 = vmatpush1.bf16.xpose.msra.mxu0 %v2582
        %2586 = vmatprep.subr.bf16.mxu0 0
        %2587 = vmatpush1.bf16.xpose.msra.mxu0 0
        %2588 = vmatprep.subr.bf16.mxu0 0
        %2589 = vmatpush1.bf16.xpose.msra.mxu0 0
        %2590 = vmatprep.subr.bf16.mxu0 0
        %2591 = vmatpush1.bf16.xpose.msra.mxu0 0
        %2592 = vmatprep.subr.bf16.mxu0 0
        %2593 = vmatpush1.bf16.xpose.msra.mxu0 0
        %2594 = vmatprep.subr.bf16.mxu0 0
        %2595 = vmatpush1.bf16.xpose.msra.mxu0 0
        %2596 = vmatprep.subr.bf16.mxu0 0
        %2597 = vmatpush1.bf16.xpose.msra.mxu0 0
        %2598 = vmatprep.subr.bf16.mxu0 0
        %2599 = vmatpush1.bf16.xpose.msra.mxu0 0
        %2600 = vmatprep.subr.bf16.mxu0 0
        %2601 = vmatpush1.bf16.xpose.msra.mxu0 0
        %2602 = vmatprep.subr.bf16.mxu0 0
        %2603 = vmatpush1.bf16.xpose.msra.mxu0 0
        %2604 = vmatprep.subr.bf16.mxu0 0
        %2605 = vmatpush1.bf16.xpose.msra.mxu0 0
        %2606 = vmatprep.subr.bf16.mxu0 0
        %2607 = vmatpush1.bf16.xpose.msra.mxu0 0
        %2608 = vmatprep.subr.bf16.mxu0 0
        %2609 = vmatpush1.bf16.xpose.msra.mxu0 0
        %2610 = vmatprep.subr.bf16.mxu0 0
        %2611 = vmatpush1.bf16.xpose.msra.mxu0 0
        %2612 = vmatprep.subr.bf16.mxu0 0
        %2613 = vmatpush1.bf16.xpose.msra.mxu0 0
        %2614 = vmatprep.subr.bf16.mxu0 0
        %2615 = vmatpush1.bf16.xpose.msra.mxu0 0
        %2616 = vmatprep.mubr.bf16.mxu0 0
        %2617 = vmatmul.mubr.bf16.gmra.mrb[0].mxu0 %v2579
        %v2618 = vpop.f32.mrb[0].mxu0
        %v2619 = vadd.f32 0.0, %v2618
        %v2620 = vpop.f32.mrb[0].mxu0
        %v2621 = vpop.f32.mrb[0].mxu0
        %v2622 = vpop.f32.mrb[0].mxu0
        %2623 = vdwg.mxu0
        %2625 = vrot.lane.b32.xlu0 %v2523, 96
        %v2626 = vpop.permute.xlu0 %2625
        %v2628 = vsel %vm2528, %v2523, 0
        %v2631 = vsel %vm2528, %v2626, 0
        %2633 = vmatprep.subr.bf16.mxu0 0
        %2634 = vmatpush1.bf16.xpose.msra.mxu0 %v2631
        %2635 = vmatprep.subr.bf16.mxu0 0
        %2636 = vmatpush1.bf16.xpose.msra.mxu0 0
        %2637 = vmatprep.subr.bf16.mxu0 0
        %2638 = vmatpush1.bf16.xpose.msra.mxu0 0
        %2639 = vmatprep.subr.bf16.mxu0 0
        %2640 = vmatpush1.bf16.xpose.msra.mxu0 0
        %2641 = vmatprep.subr.bf16.mxu0 0
        %2642 = vmatpush1.bf16.xpose.msra.mxu0 0
        %2643 = vmatprep.subr.bf16.mxu0 0
        %2644 = vmatpush1.bf16.xpose.msra.mxu0 0
        %2645 = vmatprep.subr.bf16.mxu0 0
        %2646 = vmatpush1.bf16.xpose.msra.mxu0 0
        %2647 = vmatprep.subr.bf16.mxu0 0
        %2648 = vmatpush1.bf16.xpose.msra.mxu0 0
        %2649 = vmatprep.subr.bf16.mxu0 0
        %2650 = vmatpush1.bf16.xpose.msra.mxu0 0
        %2651 = vmatprep.subr.bf16.mxu0 0
        %2652 = vmatpush1.bf16.xpose.msra.mxu0 0
        %2653 = vmatprep.subr.bf16.mxu0 0
        %2654 = vmatpush1.bf16.xpose.msra.mxu0 0
        %2655 = vmatprep.subr.bf16.mxu0 0
        %2656 = vmatpush1.bf16.xpose.msra.mxu0 0
        %2657 = vmatprep.subr.bf16.mxu0 0
        %2658 = vmatpush1.bf16.xpose.msra.mxu0 0
        %2659 = vmatprep.subr.bf16.mxu0 0
        %2660 = vmatpush1.bf16.xpose.msra.mxu0 0
        %2661 = vmatprep.subr.bf16.mxu0 0
        %2662 = vmatpush1.bf16.xpose.msra.mxu0 0
        %2663 = vmatprep.subr.bf16.mxu0 0
        %2664 = vmatpush1.bf16.xpose.msra.mxu0 0
        %2665 = vmatprep.mubr.bf16.mxu0 0
        %2666 = vmatmul.mubr.bf16.gmra.mrb[0].mxu0 %v2628
        %v2667 = vpop.f32.mrb[0].mxu0
        %v2668 = vadd.f32 0.0, %v2667
        %v2669 = vpop.f32.mrb[0].mxu0
        %v2670 = vpop.f32.mrb[0].mxu0
        %v2671 = vpop.f32.mrb[0].mxu0
        %2672 = vdwg.mxu0
        %2674 = vrot.lane.b32.xlu0 %v2524, 96
        %v2675 = vpop.permute.xlu0 %2674
        %v2677 = vsel %vm2528, %v2524, 0
        %v2680 = vsel %vm2528, %v2675, 0
        %2682 = vmatprep.subr.bf16.mxu0 0
        %2683 = vmatpush1.bf16.xpose.msra.mxu0 %v2680
        %2684 = vmatprep.subr.bf16.mxu0 0
        %2685 = vmatpush1.bf16.xpose.msra.mxu0 0
        %2686 = vmatprep.subr.bf16.mxu0 0
        %2687 = vmatpush1.bf16.xpose.msra.mxu0 0
        %2688 = vmatprep.subr.bf16.mxu0 0
        %2689 = vmatpush1.bf16.xpose.msra.mxu0 0
        %2690 = vmatprep.subr.bf16.mxu0 0
        %2691 = vmatpush1.bf16.xpose.msra.mxu0 0
        %2692 = vmatprep.subr.bf16.mxu0 0
        %2693 = vmatpush1.bf16.xpose.msra.mxu0 0
        %2694 = vmatprep.subr.bf16.mxu0 0
        %2695 = vmatpush1.bf16.xpose.msra.mxu0 0
        %2696 = vmatprep.subr.bf16.mxu0 0
        %2697 = vmatpush1.bf16.xpose.msra.mxu0 0
        %2698 = vmatprep.subr.bf16.mxu0 0
        %2699 = vmatpush1.bf16.xpose.msra.mxu0 0
        %2700 = vmatprep.subr.bf16.mxu0 0
        %2701 = vmatpush1.bf16.xpose.msra.mxu0 0
        %2702 = vmatprep.subr.bf16.mxu0 0
        %2703 = vmatpush1.bf16.xpose.msra.mxu0 0
        %2704 = vmatprep.subr.bf16.mxu0 0
        %2705 = vmatpush1.bf16.xpose.msra.mxu0 0
        %2706 = vmatprep.subr.bf16.mxu0 0
        %2707 = vmatpush1.bf16.xpose.msra.mxu0 0
        %2708 = vmatprep.subr.bf16.mxu0 0
        %2709 = vmatpush1.bf16.xpose.msra.mxu0 0
        %2710 = vmatprep.subr.bf16.mxu0 0
        %2711 = vmatpush1.bf16.xpose.msra.mxu0 0
        %2712 = vmatprep.subr.bf16.mxu0 0
        %2713 = vmatpush1.bf16.xpose.msra.mxu0 0
        %2714 = vmatprep.mubr.bf16.mxu0 0
        %2715 = vmatmul.mubr.bf16.gmra.mrb[0].mxu0 %v2677
        %v2716 = vpop.f32.mrb[0].mxu0
        %v2717 = vadd.f32 0.0, %v2716
        %v2718 = vpop.f32.mrb[0].mxu0
        %v2719 = vpop.f32.mrb[0].mxu0
        %v2720 = vpop.f32.mrb[0].mxu0
        %2721 = vdwg.mxu0
        %v2722 = vmul.f32 %v2570, 0.35355338
        %v2723 = vmul.f32 %v2619, 0.35355338
        %v2724 = vmul.f32 %v2668, 0.35355338
        %v2725 = vmul.f32 %v2717, 0.35355338
        %v2726 = vsel %vm2528, %v2722, -inf
        %2727 = vmax.xlane.f32.xlu0 %v2726
        %v2728 = vpop.xlane.xlu0 %2727
        %v2729 = vsel %vm2528, %v2723, -inf
        %2730 = vmax.xlane.f32.xlu0 %v2729
        %v2731 = vpop.xlane.xlu0 %2730
        %v2732 = vsel %vm2528, %v2724, -inf
        %2733 = vmax.xlane.f32.xlu0 %v2732
        %v2734 = vpop.xlane.xlu0 %2733
        %v2735 = vsel %vm2528, %v2725, -inf
        %2736 = vmax.xlane.f32.xlu0 %v2735
        %v2737 = vpop.xlane.xlu0 %2736
        %v2738 = vsub.f32 %v2722, %v2728
        %v2739 = vsub.f32 %v2723, %v2731
        %v2740 = vsub.f32 %v2724, %v2734
        %v2741 = vsub.f32 %v2725, %v2737
        %v2742 = vmul.f32 %v2738, 1.442695
        %v2743 = vpow.pop %v2742
        %v2744 = vmul.f32 %v2739, 1.442695
        %v2745 = vpow.pop %v2744
        %v2746 = vmul.f32 %v2740, 1.442695
        %v2747 = vpow.pop %v2746
        %v2748 = vmul.f32 %v2741, 1.442695
        %v2749 = vpow.pop %v2748
        %v2750 = vsel %vm2528, %v2743, 0.0
        %2751 = vadd.xlane.f32.xlu0 %v2750
        %v2752 = vpop.xlane.xlu0 %2751
        %v2753 = vsel %vm2528, %v2745, 0.0
        %2754 = vadd.xlane.f32.xlu0 %v2753
        %v2755 = vpop.xlane.xlu0 %2754
        %v2756 = vsel %vm2528, %v2747, 0.0
        %2757 = vadd.xlane.f32.xlu0 %v2756
        %v2758 = vpop.xlane.xlu0 %2757
        %v2759 = vsel %vm2528, %v2749, 0.0
        %2760 = vadd.xlane.f32.xlu0 %v2759
        %v2761 = vpop.xlane.xlu0 %2760
        %v2762 = vrcp.pop %v2752
        %v2763 = vrcp.pop %v2755
        %v2764 = vrcp.pop %v2758
        %v2765 = vrcp.pop %v2761
        %v2766 = vmul.f32 %v2743, %v2762
        %v2767 = vmul.f32 %v2745, %v2763
        %v2768 = vmul.f32 %v2747, %v2764
        %v2769 = vmul.f32 %v2749, %v2765
        %v2770 = vpack.c.bf16 %v2766, %v2766
        %v2771 = vpack.c.bf16 %v2767, %v2767
        %v2772 = vpack.c.bf16 %v2768, %v2768
        %v2773 = vpack.c.bf16 %v2769, %v2769
        %2774 = vrot.lane.b32.xlu0 %v2521, 64
        %v2775 = vpop.permute.xlu0 %2774
        %v2777 = vsel %vm2528, %v2770, 0
        %vm2779 = vcmask 1043456
        %v2781 = vsel %vm2779, %v2775, 0
        %2783 = vmatprep.subr.bf16.mxu0 0
        %2784 = vmatpush1.bf16.msra.mxu0 %v2781
        %2785 = vmatprep.subr.bf16.mxu0 0
        %2786 = vmatpush1.bf16.msra.mxu0 0
        %2787 = vmatprep.subr.bf16.mxu0 0
        %2788 = vmatpush1.bf16.msra.mxu0 0
        %2789 = vmatprep.subr.bf16.mxu0 0
        %2790 = vmatpush1.bf16.msra.mxu0 0
        %2791 = vmatprep.subr.bf16.mxu0 0
        %2792 = vmatpush1.bf16.msra.mxu0 0
        %2793 = vmatprep.subr.bf16.mxu0 0
        %2794 = vmatpush1.bf16.msra.mxu0 0
        %2795 = vmatprep.subr.bf16.mxu0 0
        %2796 = vmatpush1.bf16.msra.mxu0 0
        %2797 = vmatprep.subr.bf16.mxu0 0
        %2798 = vmatpush1.bf16.msra.mxu0 0
        %2799 = vmatprep.subr.bf16.mxu0 0
        %2800 = vmatpush1.bf16.msra.mxu0 0
        %2801 = vmatprep.subr.bf16.mxu0 0
        %2802 = vmatpush1.bf16.msra.mxu0 0
        %2803 = vmatprep.subr.bf16.mxu0 0
        %2804 = vmatpush1.bf16.msra.mxu0 0
        %2805 = vmatprep.subr.bf16.mxu0 0
        %2806 = vmatpush1.bf16.msra.mxu0 0
        %2807 = vmatprep.subr.bf16.mxu0 0
        %2808 = vmatpush1.bf16.msra.mxu0 0
        %2809 = vmatprep.subr.bf16.mxu0 0
        %2810 = vmatpush1.bf16.msra.mxu0 0
        %2811 = vmatprep.subr.bf16.mxu0 0
        %2812 = vmatpush1.bf16.msra.mxu0 0
        %2813 = vmatprep.subr.bf16.mxu0 0
        %2814 = vmatpush1.bf16.msra.mxu0 0
        %2815 = vmatprep.mubr.bf16.mxu0 0
        %2816 = vmatmul.mubr.bf16.gmra.mrb[0].mxu0 %v2777
        %v2817 = vpop.f32.mrb[0].mxu0
        %v2818 = vadd.f32 0.0, %v2817
        %v2819 = vpop.f32.mrb[0].mxu0
        %v2820 = vpop.f32.mrb[0].mxu0
        %v2821 = vpop.f32.mrb[0].mxu0
        %2822 = vdwg.mxu0
        %2823 = vrot.lane.b32.xlu0 %v2522, 64
        %v2824 = vpop.permute.xlu0 %2823
        %v2826 = vsel %vm2528, %v2771, 0
        %v2829 = vsel %vm2779, %v2824, 0
        %2831 = vmatprep.subr.bf16.mxu0 0
        %2832 = vmatpush1.bf16.msra.mxu0 %v2829
        %2833 = vmatprep.subr.bf16.mxu0 0
        %2834 = vmatpush1.bf16.msra.mxu0 0
        %2835 = vmatprep.subr.bf16.mxu0 0
        %2836 = vmatpush1.bf16.msra.mxu0 0
        %2837 = vmatprep.subr.bf16.mxu0 0
        %2838 = vmatpush1.bf16.msra.mxu0 0
        %2839 = vmatprep.subr.bf16.mxu0 0
        %2840 = vmatpush1.bf16.msra.mxu0 0
        %2841 = vmatprep.subr.bf16.mxu0 0
        %2842 = vmatpush1.bf16.msra.mxu0 0
        %2843 = vmatprep.subr.bf16.mxu0 0
        %2844 = vmatpush1.bf16.msra.mxu0 0
        %2845 = vmatprep.subr.bf16.mxu0 0
        %2846 = vmatpush1.bf16.msra.mxu0 0
        %2847 = vmatprep.subr.bf16.mxu0 0
        %2848 = vmatpush1.bf16.msra.mxu0 0
        %2849 = vmatprep.subr.bf16.mxu0 0
        %2850 = vmatpush1.bf16.msra.mxu0 0
        %2851 = vmatprep.subr.bf16.mxu0 0
        %2852 = vmatpush1.bf16.msra.mxu0 0
        %2853 = vmatprep.subr.bf16.mxu0 0
        %2854 = vmatpush1.bf16.msra.mxu0 0
        %2855 = vmatprep.subr.bf16.mxu0 0
        %2856 = vmatpush1.bf16.msra.mxu0 0
        %2857 = vmatprep.subr.bf16.mxu0 0
        %2858 = vmatpush1.bf16.msra.mxu0 0
        %2859 = vmatprep.subr.bf16.mxu0 0
        %2860 = vmatpush1.bf16.msra.mxu0 0
        %2861 = vmatprep.subr.bf16.mxu0 0
        %2862 = vmatpush1.bf16.msra.mxu0 0
        %2863 = vmatprep.mubr.bf16.mxu0 0
        %2864 = vmatmul.mubr.bf16.gmra.mrb[0].mxu0 %v2826
        %v2865 = vpop.f32.mrb[0].mxu0
        %v2866 = vadd.f32 0.0, %v2865
        %v2867 = vpop.f32.mrb[0].mxu0
        %v2868 = vpop.f32.mrb[0].mxu0
        %v2869 = vpop.f32.mrb[0].mxu0
        %2870 = vdwg.mxu0
        %2871 = vrot.lane.b32.xlu0 %v2523, 64
        %v2872 = vpop.permute.xlu0 %2871
        %v2874 = vsel %vm2528, %v2772, 0
        %v2877 = vsel %vm2779, %v2872, 0
        %2879 = vmatprep.subr.bf16.mxu0 0
        %2880 = vmatpush1.bf16.msra.mxu0 %v2877
        %2881 = vmatprep.subr.bf16.mxu0 0
        %2882 = vmatpush1.bf16.msra.mxu0 0
        %2883 = vmatprep.subr.bf16.mxu0 0
        %2884 = vmatpush1.bf16.msra.mxu0 0
        %2885 = vmatprep.subr.bf16.mxu0 0
        %2886 = vmatpush1.bf16.msra.mxu0 0
        %2887 = vmatprep.subr.bf16.mxu0 0
        %2888 = vmatpush1.bf16.msra.mxu0 0
        %2889 = vmatprep.subr.bf16.mxu0 0
        %2890 = vmatpush1.bf16.msra.mxu0 0
        %2891 = vmatprep.subr.bf16.mxu0 0
        %2892 = vmatpush1.bf16.msra.mxu0 0
        %2893 = vmatprep.subr.bf16.mxu0 0
        %2894 = vmatpush1.bf16.msra.mxu0 0
        %2895 = vmatprep.subr.bf16.mxu0 0
        %2896 = vmatpush1.bf16.msra.mxu0 0
        %2897 = vmatprep.subr.bf16.mxu0 0
        %2898 = vmatpush1.bf16.msra.mxu0 0
        %2899 = vmatprep.subr.bf16.mxu0 0
        %2900 = vmatpush1.bf16.msra.mxu0 0
        %2901 = vmatprep.subr.bf16.mxu0 0
        %2902 = vmatpush1.bf16.msra.mxu0 0
        %2903 = vmatprep.subr.bf16.mxu0 0
        %2904 = vmatpush1.bf16.msra.mxu0 0
        %2905 = vmatprep.subr.bf16.mxu0 0
        %2906 = vmatpush1.bf16.msra.mxu0 0
        %2907 = vmatprep.subr.bf16.mxu0 0
        %2908 = vmatpush1.bf16.msra.mxu0 0
        %2909 = vmatprep.subr.bf16.mxu0 0
        %2910 = vmatpush1.bf16.msra.mxu0 0
        %2911 = vmatprep.mubr.bf16.mxu0 0
        %2912 = vmatmul.mubr.bf16.gmra.mrb[0].mxu0 %v2874
        %v2913 = vpop.f32.mrb[0].mxu0
        %v2914 = vadd.f32 0.0, %v2913
        %v2915 = vpop.f32.mrb[0].mxu0
        %v2916 = vpop.f32.mrb[0].mxu0
        %v2917 = vpop.f32.mrb[0].mxu0
        %2918 = vdwg.mxu0
        %2919 = vrot.lane.b32.xlu0 %v2524, 64
        %v2920 = vpop.permute.xlu0 %2919
        %v2922 = vsel %vm2528, %v2773, 0
        %v2925 = vsel %vm2779, %v2920, 0
        %2927 = vmatprep.subr.bf16.mxu0 0
        %2928 = vmatpush1.bf16.msra.mxu0 %v2925
        %2929 = vmatprep.subr.bf16.mxu0 0
        %2930 = vmatpush1.bf16.msra.mxu0 0
        %2931 = vmatprep.subr.bf16.mxu0 0
        %2932 = vmatpush1.bf16.msra.mxu0 0
        %2933 = vmatprep.subr.bf16.mxu0 0
        %2934 = vmatpush1.bf16.msra.mxu0 0
        %2935 = vmatprep.subr.bf16.mxu0 0
        %2936 = vmatpush1.bf16.msra.mxu0 0
        %2937 = vmatprep.subr.bf16.mxu0 0
        %2938 = vmatpush1.bf16.msra.mxu0 0
        %2939 = vmatprep.subr.bf16.mxu0 0
        %2940 = vmatpush1.bf16.msra.mxu0 0
        %2941 = vmatprep.subr.bf16.mxu0 0
        %2942 = vmatpush1.bf16.msra.mxu0 0
        %2943 = vmatprep.subr.bf16.mxu0 0
        %2944 = vmatpush1.bf16.msra.mxu0 0
        %2945 = vmatprep.subr.bf16.mxu0 0
        %2946 = vmatpush1.bf16.msra.mxu0 0
        %2947 = vmatprep.subr.bf16.mxu0 0
        %2948 = vmatpush1.bf16.msra.mxu0 0
        %2949 = vmatprep.subr.bf16.mxu0 0
        %2950 = vmatpush1.bf16.msra.mxu0 0
        %2951 = vmatprep.subr.bf16.mxu0 0
        %2952 = vmatpush1.bf16.msra.mxu0 0
        %2953 = vmatprep.subr.bf16.mxu0 0
        %2954 = vmatpush1.bf16.msra.mxu0 0
        %2955 = vmatprep.subr.bf16.mxu0 0
        %2956 = vmatpush1.bf16.msra.mxu0 0
        %2957 = vmatprep.subr.bf16.mxu0 0
        %2958 = vmatpush1.bf16.msra.mxu0 0
        %2959 = vmatprep.mubr.bf16.mxu0 0
        %2960 = vmatmul.mubr.bf16.gmra.mrb[0].mxu0 %v2922
        %v2961 = vpop.f32.mrb[0].mxu0
        %v2962 = vadd.f32 0.0, %v2961
        %v2963 = vpop.f32.mrb[0].mxu0
        %v2964 = vpop.f32.mrb[0].mxu0
        %v2965 = vpop.f32.mrb[0].mxu0
        %2966 = vdwg.mxu0
        %2968 = vrot.lane.b32.xlu0 %v2866, 8
        %v2969 = vpop.permute.xlu0 %2968
        %2972 = vrot.lane.b32.xlu0 %v2914, 16
        %v2973 = vpop.permute.xlu0 %2972
        %2976 = vrot.lane.b32.xlu0 %v2962, 24
        %v2977 = vpop.permute.xlu0 %2976
        %v2979 = vsel %vm2528, %v2818, %v2969
        %v2980 = vsel %vm2404, %v2979, %v2973
        %vm2981 = vcmask 195584
        %v2982 = vsel %vm2981, %v2980, %v2977
        %v2983 = vpack.c.bf16 %v2982, %v2982
        %v2985 = vlaneseq
        %v2986 = vshrl.u32 %v2985, 7
        %v2987 = vsub.s32 0, %v2986
        %v2988 = vrot.slane %v2322, %v2987
        %v2994 = vunpack.c.l.b16 %v2324
        %v2995 = vunpack.c.l.b16 %v2325
        %v2996 = vunpack.c.l.b16 %v2326
        %v2997 = vunpack.c.l.b16 %v2327
        %v2998 = vpack.c.b16 %v2995, %v2994
        %v2999 = vpack.c.b16 %v2997, %v2996
        %v3003 = vsel %vm2467, %v2983, 0
        %3005 = vmatprep.subr.bf16.mxu0 0
        %3006 = vmatpush1.bf16.msra.mxu0 %v2998
        %3007 = vmatprep.subr.bf16.mxu0 0
        %3008 = vmatpush1.bf16.msra.mxu0 %v2999
        %3009 = vmatprep.subr.bf16.mxu0 0
        %3010 = vmatpush1.bf16.msra.mxu0 0
        %3011 = vmatprep.subr.bf16.mxu0 0
        %3012 = vmatpush1.bf16.msra.mxu0 0
        %3013 = vmatprep.subr.bf16.mxu0 0
        %3014 = vmatpush1.bf16.msra.mxu0 0
        %3015 = vmatprep.subr.bf16.mxu0 0
        %3016 = vmatpush1.bf16.msra.mxu0 0
        %3017 = vmatprep.subr.bf16.mxu0 0
        %3018 = vmatpush1.bf16.msra.mxu0 0
        %3019 = vmatprep.subr.bf16.mxu0 0
        %3020 = vmatpush1.bf16.msra.mxu0 0
        %3021 = vmatprep.subr.bf16.mxu0 0
        %3022 = vmatpush1.bf16.msra.mxu0 0
        %3023 = vmatprep.subr.bf16.mxu0 0
        %3024 = vmatpush1.bf16.msra.mxu0 0
        %3025 = vmatprep.subr.bf16.mxu0 0
        %3026 = vmatpush1.bf16.msra.mxu0 0
        %3027 = vmatprep.subr.bf16.mxu0 0
        %3028 = vmatpush1.bf16.msra.mxu0 0
        %3029 = vmatprep.subr.bf16.mxu0 0
        %3030 = vmatpush1.bf16.msra.mxu0 0
        %3031 = vmatprep.subr.bf16.mxu0 0
        %3032 = vmatpush1.bf16.msra.mxu0 0
        %3033 = vmatprep.subr.bf16.mxu0 0
        %3034 = vmatpush1.bf16.msra.mxu0 0
        %3035 = vmatprep.subr.bf16.mxu0 0
        %3036 = vmatpush1.bf16.msra.mxu0 0
        %3037 = vmatprep.mubr.bf16.mxu0 0
        %3038 = vmatmul.mubr.bf16.gmra.mrb[0].mxu0 %v3003
        %v3039 = vpop.f32.mrb[0].mxu0
        %v3040 = vadd.f32 %v2988, %v3039
        %v3041 = vpop.f32.mrb[0].mxu0
        %v3042 = vpop.f32.mrb[0].mxu0
        %v3043 = vpop.f32.mrb[0].mxu0
        %3044 = vdwg.mxu0
        %v3045 = vadd.f32 %v2443, %v3040
        %v3046 = vsel %vm2467, %v3045, 0.0
        %3047 = vadd.xlane.f32.xlu0 %v3046
        %v3048 = vpop.xlane.xlu0 %3047
        %v3049 = vrcp.pop 32.0
        %v3050 = vmul.f32 %v3048, %v3049
        %v3051 = vsub.f32 %v3045, %v3050
        %v3052 = vmul.f32 %v3051, %v3051
        %v3053 = vsel %vm2467, %v3052, 0.0
        %3054 = vadd.xlane.f32.xlu0 %v3053
        %v3055 = vpop.xlane.xlu0 %3054
        %v3056 = vmul.f32 %v3055, %v3049
        %v3057 = vadd.f32 %v3056, 1e-05
        %v3058 = vrsqrt.pop %v3057
        %v3059 = vmul.f32 %v3051, %v3058
        %v3061 = vlaneseq
        %v3062 = vshrl.u32 %v3061, 7
        %v3063 = vsub.s32 0, %v3062
        %v3064 = vrot.slane %v2335, %v3063
        %v3066 = vmul.f32 %v3059, %v3064
        %v3068 = vlaneseq
        %v3069 = vshrl.u32 %v3068, 7
        %v3070 = vsub.s32 0, %v3069
        %v3071 = vrot.slane %v2334, %v3070
        %v3073 = vadd.f32 %v3066, %v3071
        %v3074 = vpack.c.bf16 %v3073, %v3073
        %v3076 = vlaneseq
        %v3077 = vshrl.u32 %v3076, 7
        %v3078 = vsub.s32 0, %v3077
        %v3079 = vrot.slane %v2332, %v3078
        %v3085 = vunpack.c.l.b16 %v2338
        %v3086 = vunpack.c.l.b16 %v2339
        %v3087 = vunpack.c.l.b16 %v2340
        %v3088 = vunpack.c.l.b16 %v2341
        %v3089 = vpack.c.b16 %v3086, %v3085
        %v3090 = vpack.c.b16 %v3088, %v3087
        %v3094 = vsel %vm2467, %v3074, 0
        %3096 = vmatprep.subr.bf16.mxu0 0
        %3097 = vmatpush1.bf16.msra.mxu0 %v3089
        %3098 = vmatprep.subr.bf16.mxu0 0
        %3099 = vmatpush1.bf16.msra.mxu0 %v3090
        %3100 = vmatprep.subr.bf16.mxu0 0
        %3101 = vmatpush1.bf16.msra.mxu0 0
        %3102 = vmatprep.subr.bf16.mxu0 0
        %3103 = vmatpush1.bf16.msra.mxu0 0
        %3104 = vmatprep.subr.bf16.mxu0 0
        %3105 = vmatpush1.bf16.msra.mxu0 0
        %3106 = vmatprep.subr.bf16.mxu0 0
        %3107 = vmatpush1.bf16.msra.mxu0 0
        %3108 = vmatprep.subr.bf16.mxu0 0
        %3109 = vmatpush1.bf16.msra.mxu0 0
        %3110 = vmatprep.subr.bf16.mxu0 0
        %3111 = vmatpush1.bf16.msra.mxu0 0
        %3112 = vmatprep.subr.bf16.mxu0 0
        %3113 = vmatpush1.bf16.msra.mxu0 0
        %3114 = vmatprep.subr.bf16.mxu0 0
        %3115 = vmatpush1.bf16.msra.mxu0 0
        %3116 = vmatprep.subr.bf16.mxu0 0
        %3117 = vmatpush1.bf16.msra.mxu0 0
        %3118 = vmatprep.subr.bf16.mxu0 0
        %3119 = vmatpush1.bf16.msra.mxu0 0
        %3120 = vmatprep.subr.bf16.mxu0 0
        %3121 = vmatpush1.bf16.msra.mxu0 0
        %3122 = vmatprep.subr.bf16.mxu0 0
        %3123 = vmatpush1.bf16.msra.mxu0 0
        %3124 = vmatprep.subr.bf16.mxu0 0
        %3125 = vmatpush1.bf16.msra.mxu0 0
        %3126 = vmatprep.subr.bf16.mxu0 0
        %3127 = vmatpush1.bf16.msra.mxu0 0
        %3128 = vmatprep.mubr.bf16.mxu0 0
        %3129 = vmatmul.mubr.bf16.gmra.mrb[0].mxu0 %v3094
        %v3130 = vpop.f32.mrb[0].mxu0
        %v3131 = vadd.f32 %v3079, %v3130
        %v3132 = vpop.f32.mrb[0].mxu0
        %v3133 = vpop.f32.mrb[0].mxu0
        %v3134 = vpop.f32.mrb[0].mxu0
        %3135 = vdwg.mxu0
        %v3136 = vmax.f32 %v3131, 0.0
        %v3137 = vpack.c.bf16 %v3136, %v3136
        %v3139 = vlaneseq
        %v3140 = vshrl.u32 %v3139, 7
        %v3141 = vsub.s32 0, %v3140
        %v3142 = vrot.slane %v2333, %v3141
        %v3152 = vunpack.c.l.b16 %v2342
        %v3153 = vunpack.c.l.b16 %v2343
        %v3154 = vunpack.c.l.b16 %v2344
        %v3155 = vunpack.c.l.b16 %v2345
        %v3156 = vunpack.c.l.b16 %v2346
        %v3157 = vunpack.c.l.b16 %v2347
        %v3158 = vunpack.c.l.b16 %v2348
        %v3159 = vunpack.c.l.b16 %v2349
        %v3160 = vpack.c.b16 %v3153, %v3152
        %v3161 = vpack.c.b16 %v3155, %v3154
        %v3162 = vpack.c.b16 %v3157, %v3156
        %v3163 = vpack.c.b16 %v3159, %v3158
        %vm3168 = vcmask 523264
        %v3170 = vsel %vm3168, %v3137, 0
        %3172 = vmatprep.subr.bf16.mxu0 0
        %3173 = vmatpush1.bf16.msra.mxu0 %v3160
        %3174 = vmatprep.subr.bf16.mxu0 0
        %3175 = vmatpush1.bf16.msra.mxu0 %v3161
        %3176 = vmatprep.subr.bf16.mxu0 0
        %3177 = vmatpush1.bf16.msra.mxu0 %v3162
        %3178 = vmatprep.subr.bf16.mxu0 0
        %3179 = vmatpush1.bf16.msra.mxu0 %v3163
        %3180 = vmatprep.subr.bf16.mxu0 0
        %3181 = vmatpush1.bf16.msra.mxu0 0
        %3182 = vmatprep.subr.bf16.mxu0 0
        %3183 = vmatpush1.bf16.msra.mxu0 0
        %3184 = vmatprep.subr.bf16.mxu0 0
        %3185 = vmatpush1.bf16.msra.mxu0 0
        %3186 = vmatprep.subr.bf16.mxu0 0
        %3187 = vmatpush1.bf16.msra.mxu0 0
        %3188 = vmatprep.subr.bf16.mxu0 0
        %3189 = vmatpush1.bf16.msra.mxu0 0
        %3190 = vmatprep.subr.bf16.mxu0 0
        %3191 = vmatpush1.bf16.msra.mxu0 0
        %3192 = vmatprep.subr.bf16.mxu0 0
        %3193 = vmatpush1.bf16.msra.mxu0 0
        %3194 = vmatprep.subr.bf16.mxu0 0
        %3195 = vmatpush1.bf16.msra.mxu0 0
        %3196 = vmatprep.subr.bf16.mxu0 0
        %3197 = vmatpush1.bf16.msra.mxu0 0
        %3198 = vmatprep.subr.bf16.mxu0 0
        %3199 = vmatpush1.bf16.msra.mxu0 0
        %3200 = vmatprep.subr.bf16.mxu0 0
        %3201 = vmatpush1.bf16.msra.mxu0 0
        %3202 = vmatprep.subr.bf16.mxu0 0
        %3203 = vmatpush1.bf16.msra.mxu0 0
        %3204 = vmatprep.mubr.bf16.mxu0 0
        %3205 = vmatmul.mubr.bf16.gmra.mrb[0].mxu0 %v3170
        %v3206 = vpop.f32.mrb[0].mxu0
        %v3207 = vadd.f32 %v3142, %v3206
        %v3208 = vpop.f32.mrb[0].mxu0
        %v3209 = vpop.f32.mrb[0].mxu0
        %v3210 = vpop.f32.mrb[0].mxu0
        %3211 = vdwg.mxu0
        %v3212 = vadd.f32 %v3073, %v3207
        %v3213 = vsel %vm2467, %v3212, 0.0
        %3214 = vadd.xlane.f32.xlu0 %v3213
        %v3215 = vpop.xlane.xlu0 %3214
        %v3216 = vmul.f32 %v3215, %v3049
        %v3217 = vsub.f32 %v3212, %v3216
        %v3218 = vmul.f32 %v3217, %v3217
        %v3219 = vsel %vm2467, %v3218, 0.0
        %3220 = vadd.xlane.f32.xlu0 %v3219
        %v3221 = vpop.xlane.xlu0 %3220
        %v3222 = vmul.f32 %v3221, %v3049
        %v3223 = vadd.f32 %v3222, 1e-05
        %v3224 = vrsqrt.pop %v3223
        %v3225 = vmul.f32 %v3217, %v3224
        %v3227 = vlaneseq
        %v3228 = vshrl.u32 %v3227, 7
        %v3229 = vsub.s32 0, %v3228
        %v3230 = vrot.slane %v2337, %v3229
        %v3232 = vmul.f32 %v3225, %v3230
        %v3234 = vlaneseq
        %v3235 = vshrl.u32 %v3234, 7
        %v3236 = vsub.s32 0, %v3235
        %v3237 = vrot.slane %v2336, %v3236
        %v3239 = vadd.f32 %v3232, %v3237
        %v3240 = vpack.c.bf16 %v3239, %v3239
        %v3242 = vlaneseq
        %v3243 = vshrl.u32 %v3242, 7
        %v3244 = vsub.s32 0, %v3243
        %v3245 = vrot.slane %v2351, %v3244
        %v3251 = vunpack.c.l.b16 %v2356
        %v3252 = vunpack.c.l.b16 %v2357
        %v3253 = vunpack.c.l.b16 %v2358
        %v3254 = vunpack.c.l.b16 %v2359
        %v3255 = vpack.c.b16 %v3252, %v3251
        %v3256 = vpack.c.b16 %v3254, %v3253
        %v3260 = vsel %vm2467, %v3240, 0
        %3262 = vmatprep.subr.bf16.mxu0 0
        %3263 = vmatpush1.bf16.msra.mxu0 %v3255
        %3264 = vmatprep.subr.bf16.mxu0 0
        %3265 = vmatpush1.bf16.msra.mxu0 %v3256
        %3266 = vmatprep.subr.bf16.mxu0 0
        %3267 = vmatpush1.bf16.msra.mxu0 0
        %3268 = vmatprep.subr.bf16.mxu0 0
        %3269 = vmatpush1.bf16.msra.mxu0 0
        %3270 = vmatprep.subr.bf16.mxu0 0
        %3271 = vmatpush1.bf16.msra.mxu0 0
        %3272 = vmatprep.subr.bf16.mxu0 0
        %3273 = vmatpush1.bf16.msra.mxu0 0
        %3274 = vmatprep.subr.bf16.mxu0 0
        %3275 = vmatpush1.bf16.msra.mxu0 0
        %3276 = vmatprep.subr.bf16.mxu0 0
        %3277 = vmatpush1.bf16.msra.mxu0 0
        %3278 = vmatprep.subr.bf16.mxu0 0
        %3279 = vmatpush1.bf16.msra.mxu0 0
        %3280 = vmatprep.subr.bf16.mxu0 0
        %3281 = vmatpush1.bf16.msra.mxu0 0
        %3282 = vmatprep.subr.bf16.mxu0 0
        %3283 = vmatpush1.bf16.msra.mxu0 0
        %3284 = vmatprep.subr.bf16.mxu0 0
        %3285 = vmatpush1.bf16.msra.mxu0 0
        %3286 = vmatprep.subr.bf16.mxu0 0
        %3287 = vmatpush1.bf16.msra.mxu0 0
        %3288 = vmatprep.subr.bf16.mxu0 0
        %3289 = vmatpush1.bf16.msra.mxu0 0
        %3290 = vmatprep.subr.bf16.mxu0 0
        %3291 = vmatpush1.bf16.msra.mxu0 0
        %3292 = vmatprep.subr.bf16.mxu0 0
        %3293 = vmatpush1.bf16.msra.mxu0 0
        %3294 = vmatprep.mubr.bf16.mxu0 0
        %3295 = vmatmul.mubr.bf16.gmra.mrb[0].mxu0 %v3260
        %v3296 = vpop.f32.mrb[0].mxu0
        %v3297 = vadd.f32 %v3245, %v3296
        %v3298 = vpop.f32.mrb[0].mxu0
        %v3299 = vpop.f32.mrb[0].mxu0
        %v3300 = vpop.f32.mrb[0].mxu0
        %3301 = vdwg.mxu0
        %3303 = vrot.lane.b32.xlu0 %v3297, 120
        %v3304 = vpop.permute.xlu0 %3303
        %3306 = vrot.lane.b32.xlu0 %v3297, 112
        %v3307 = vpop.permute.xlu0 %3306
        %3309 = vrot.lane.b32.xlu0 %v3297, 104
        %v3310 = vpop.permute.xlu0 %3309
        %v3312 = vpack.c.bf16 %v3297, %v3297
        %v3313 = vpack.c.bf16 %v3304, %v3304
        %v3314 = vpack.c.bf16 %v3307, %v3307
        %v3315 = vpack.c.bf16 %v3310, %v3310
        %3317 = vrot.lane.b32.xlu0 %v3312, 96
        %v3318 = vpop.permute.xlu0 %3317
        %v3320 = vsel %vm2528, %v3312, 0
        %v3323 = vsel %vm2528, %v3318, 0
        %3325 = vmatprep.subr.bf16.mxu0 0
        %3326 = vmatpush1.bf16.xpose.msra.mxu0 %v3323
        %3327 = vmatprep.subr.bf16.mxu0 0
        %3328 = vmatpush1.bf16.xpose.msra.mxu0 0
        %3329 = vmatprep.subr.bf16.mxu0 0
        %3330 = vmatpush1.bf16.xpose.msra.mxu0 0
        %3331 = vmatprep.subr.bf16.mxu0 0
        %3332 = vmatpush1.bf16.xpose.msra.mxu0 0
        %3333 = vmatprep.subr.bf16.mxu0 0
        %3334 = vmatpush1.bf16.xpose.msra.mxu0 0
        %3335 = vmatprep.subr.bf16.mxu0 0
        %3336 = vmatpush1.bf16.xpose.msra.mxu0 0
        %3337 = vmatprep.subr.bf16.mxu0 0
        %3338 = vmatpush1.bf16.xpose.msra.mxu0 0
        %3339 = vmatprep.subr.bf16.mxu0 0
        %3340 = vmatpush1.bf16.xpose.msra.mxu0 0
        %3341 = vmatprep.subr.bf16.mxu0 0
        %3342 = vmatpush1.bf16.xpose.msra.mxu0 0
        %3343 = vmatprep.subr.bf16.mxu0 0
        %3344 = vmatpush1.bf16.xpose.msra.mxu0 0
        %3345 = vmatprep.subr.bf16.mxu0 0
        %3346 = vmatpush1.bf16.xpose.msra.mxu0 0
        %3347 = vmatprep.subr.bf16.mxu0 0
        %3348 = vmatpush1.bf16.xpose.msra.mxu0 0
        %3349 = vmatprep.subr.bf16.mxu0 0
        %3350 = vmatpush1.bf16.xpose.msra.mxu0 0
        %3351 = vmatprep.subr.bf16.mxu0 0
        %3352 = vmatpush1.bf16.xpose.msra.mxu0 0
        %3353 = vmatprep.subr.bf16.mxu0 0
        %3354 = vmatpush1.bf16.xpose.msra.mxu0 0
        %3355 = vmatprep.subr.bf16.mxu0 0
        %3356 = vmatpush1.bf16.xpose.msra.mxu0 0
        %3357 = vmatprep.mubr.bf16.mxu0 0
        %3358 = vmatmul.mubr.bf16.gmra.mrb[0].mxu0 %v3320
        %v3359 = vpop.f32.mrb[0].mxu0
        %v3360 = vadd.f32 0.0, %v3359
        %v3361 = vpop.f32.mrb[0].mxu0
        %v3362 = vpop.f32.mrb[0].mxu0
        %v3363 = vpop.f32.mrb[0].mxu0
        %3364 = vdwg.mxu0
        %3366 = vrot.lane.b32.xlu0 %v3313, 96
        %v3367 = vpop.permute.xlu0 %3366
        %v3369 = vsel %vm2528, %v3313, 0
        %v3372 = vsel %vm2528, %v3367, 0
        %3374 = vmatprep.subr.bf16.mxu0 0
        %3375 = vmatpush1.bf16.xpose.msra.mxu0 %v3372
        %3376 = vmatprep.subr.bf16.mxu0 0
        %3377 = vmatpush1.bf16.xpose.msra.mxu0 0
        %3378 = vmatprep.subr.bf16.mxu0 0
        %3379 = vmatpush1.bf16.xpose.msra.mxu0 0
        %3380 = vmatprep.subr.bf16.mxu0 0
        %3381 = vmatpush1.bf16.xpose.msra.mxu0 0
        %3382 = vmatprep.subr.bf16.mxu0 0
        %3383 = vmatpush1.bf16.xpose.msra.mxu0 0
        %3384 = vmatprep.subr.bf16.mxu0 0
        %3385 = vmatpush1.bf16.xpose.msra.mxu0 0
        %3386 = vmatprep.subr.bf16.mxu0 0
        %3387 = vmatpush1.bf16.xpose.msra.mxu0 0
        %3388 = vmatprep.subr.bf16.mxu0 0
        %3389 = vmatpush1.bf16.xpose.msra.mxu0 0
        %3390 = vmatprep.subr.bf16.mxu0 0
        %3391 = vmatpush1.bf16.xpose.msra.mxu0 0
        %3392 = vmatprep.subr.bf16.mxu0 0
        %3393 = vmatpush1.bf16.xpose.msra.mxu0 0
        %3394 = vmatprep.subr.bf16.mxu0 0
        %3395 = vmatpush1.bf16.xpose.msra.mxu0 0
        %3396 = vmatprep.subr.bf16.mxu0 0
        %3397 = vmatpush1.bf16.xpose.msra.mxu0 0
        %3398 = vmatprep.subr.bf16.mxu0 0
        %3399 = vmatpush1.bf16.xpose.msra.mxu0 0
        %3400 = vmatprep.subr.bf16.mxu0 0
        %3401 = vmatpush1.bf16.xpose.msra.mxu0 0
        %3402 = vmatprep.subr.bf16.mxu0 0
        %3403 = vmatpush1.bf16.xpose.msra.mxu0 0
        %3404 = vmatprep.subr.bf16.mxu0 0
        %3405 = vmatpush1.bf16.xpose.msra.mxu0 0
        %3406 = vmatprep.mubr.bf16.mxu0 0
        %3407 = vmatmul.mubr.bf16.gmra.mrb[0].mxu0 %v3369
        %v3408 = vpop.f32.mrb[0].mxu0
        %v3409 = vadd.f32 0.0, %v3408
        %v3410 = vpop.f32.mrb[0].mxu0
        %v3411 = vpop.f32.mrb[0].mxu0
        %v3412 = vpop.f32.mrb[0].mxu0
        %3413 = vdwg.mxu0
        %3415 = vrot.lane.b32.xlu0 %v3314, 96
        %v3416 = vpop.permute.xlu0 %3415
        %v3418 = vsel %vm2528, %v3314, 0
        %v3421 = vsel %vm2528, %v3416, 0
        %3423 = vmatprep.subr.bf16.mxu0 0
        %3424 = vmatpush1.bf16.xpose.msra.mxu0 %v3421
        %3425 = vmatprep.subr.bf16.mxu0 0
        %3426 = vmatpush1.bf16.xpose.msra.mxu0 0
        %3427 = vmatprep.subr.bf16.mxu0 0
        %3428 = vmatpush1.bf16.xpose.msra.mxu0 0
        %3429 = vmatprep.subr.bf16.mxu0 0
        %3430 = vmatpush1.bf16.xpose.msra.mxu0 0
        %3431 = vmatprep.subr.bf16.mxu0 0
        %3432 = vmatpush1.bf16.xpose.msra.mxu0 0
        %3433 = vmatprep.subr.bf16.mxu0 0
        %3434 = vmatpush1.bf16.xpose.msra.mxu0 0
        %3435 = vmatprep.subr.bf16.mxu0 0
        %3436 = vmatpush1.bf16.xpose.msra.mxu0 0
        %3437 = vmatprep.subr.bf16.mxu0 0
        %3438 = vmatpush1.bf16.xpose.msra.mxu0 0
        %3439 = vmatprep.subr.bf16.mxu0 0
        %3440 = vmatpush1.bf16.xpose.msra.mxu0 0
        %3441 = vmatprep.subr.bf16.mxu0 0
        %3442 = vmatpush1.bf16.xpose.msra.mxu0 0
        %3443 = vmatprep.subr.bf16.mxu0 0
        %3444 = vmatpush1.bf16.xpose.msra.mxu0 0
        %3445 = vmatprep.subr.bf16.mxu0 0
        %3446 = vmatpush1.bf16.xpose.msra.mxu0 0
        %3447 = vmatprep.subr.bf16.mxu0 0
        %3448 = vmatpush1.bf16.xpose.msra.mxu0 0
        %3449 = vmatprep.subr.bf16.mxu0 0
        %3450 = vmatpush1.bf16.xpose.msra.mxu0 0
        %3451 = vmatprep.subr.bf16.mxu0 0
        %3452 = vmatpush1.bf16.xpose.msra.mxu0 0
        %3453 = vmatprep.subr.bf16.mxu0 0
        %3454 = vmatpush1.bf16.xpose.msra.mxu0 0
        %3455 = vmatprep.mubr.bf16.mxu0 0
        %3456 = vmatmul.mubr.bf16.gmra.mrb[0].mxu0 %v3418
        %v3457 = vpop.f32.mrb[0].mxu0
        %v3458 = vadd.f32 0.0, %v3457
        %v3459 = vpop.f32.mrb[0].mxu0
        %v3460 = vpop.f32.mrb[0].mxu0
        %v3461 = vpop.f32.mrb[0].mxu0
        %3462 = vdwg.mxu0
        %3464 = vrot.lane.b32.xlu0 %v3315, 96
        %v3465 = vpop.permute.xlu0 %3464
        %v3467 = vsel %vm2528, %v3315, 0
        %v3470 = vsel %vm2528, %v3465, 0
        %3472 = vmatprep.subr.bf16.mxu0 0
        %3473 = vmatpush1.bf16.xpose.msra.mxu0 %v3470
        %3474 = vmatprep.subr.bf16.mxu0 0
        %3475 = vmatpush1.bf16.xpose.msra.mxu0 0
        %3476 = vmatprep.subr.bf16.mxu0 0
        %3477 = vmatpush1.bf16.xpose.msra.mxu0 0
        %3478 = vmatprep.subr.bf16.mxu0 0
        %3479 = vmatpush1.bf16.xpose.msra.mxu0 0
        %3480 = vmatprep.subr.bf16.mxu0 0
        %3481 = vmatpush1.bf16.xpose.msra.mxu0 0
        %3482 = vmatprep.subr.bf16.mxu0 0
        %3483 = vmatpush1.bf16.xpose.msra.mxu0 0
        %3484 = vmatprep.subr.bf16.mxu0 0
        %3485 = vmatpush1.bf16.xpose.msra.mxu0 0
        %3486 = vmatprep.subr.bf16.mxu0 0
        %3487 = vmatpush1.bf16.xpose.msra.mxu0 0
        %3488 = vmatprep.subr.bf16.mxu0 0
        %3489 = vmatpush1.bf16.xpose.msra.mxu0 0
        %3490 = vmatprep.subr.bf16.mxu0 0
        %3491 = vmatpush1.bf16.xpose.msra.mxu0 0
        %3492 = vmatprep.subr.bf16.mxu0 0
        %3493 = vmatpush1.bf16.xpose.msra.mxu0 0
        %3494 = vmatprep.subr.bf16.mxu0 0
        %3495 = vmatpush1.bf16.xpose.msra.mxu0 0
        %3496 = vmatprep.subr.bf16.mxu0 0
        %3497 = vmatpush1.bf16.xpose.msra.mxu0 0
        %3498 = vmatprep.subr.bf16.mxu0 0
        %3499 = vmatpush1.bf16.xpose.msra.mxu0 0
        %3500 = vmatprep.subr.bf16.mxu0 0
        %3501 = vmatpush1.bf16.xpose.msra.mxu0 0
        %3502 = vmatprep.subr.bf16.mxu0 0
        %3503 = vmatpush1.bf16.xpose.msra.mxu0 0
        %3504 = vmatprep.mubr.bf16.mxu0 0
        %3505 = vmatmul.mubr.bf16.gmra.mrb[0].mxu0 %v3467
        %v3506 = vpop.f32.mrb[0].mxu0
        %v3507 = vadd.f32 0.0, %v3506
        %v3508 = vpop.f32.mrb[0].mxu0
        %v3509 = vpop.f32.mrb[0].mxu0
        %v3510 = vpop.f32.mrb[0].mxu0
        %3511 = vdwg.mxu0
        %v3512 = vmul.f32 %v3360, 0.35355338
        %v3513 = vmul.f32 %v3409, 0.35355338
        %v3514 = vmul.f32 %v3458, 0.35355338
        %v3515 = vmul.f32 %v3507, 0.35355338
        %v3516 = vsel %vm2528, %v3512, -inf
        %3517 = vmax.xlane.f32.xlu0 %v3516
        %v3518 = vpop.xlane.xlu0 %3517
        %v3519 = vsel %vm2528, %v3513, -inf
        %3520 = vmax.xlane.f32.xlu0 %v3519
        %v3521 = vpop.xlane.xlu0 %3520
        %v3522 = vsel %vm2528, %v3514, -inf
        %3523 = vmax.xlane.f32.xlu0 %v3522
        %v3524 = vpop.xlane.xlu0 %3523
        %v3525 = vsel %vm2528, %v3515, -inf
        %3526 = vmax.xlane.f32.xlu0 %v3525
        %v3527 = vpop.xlane.xlu0 %3526
        %v3528 = vsub.f32 %v3512, %v3518
        %v3529 = vsub.f32 %v3513, %v3521
        %v3530 = vsub.f32 %v3514, %v3524
        %v3531 = vsub.f32 %v3515, %v3527
        %v3532 = vmul.f32 %v3528, 1.442695
        %v3533 = vpow.pop %v3532
        %v3534 = vmul.f32 %v3529, 1.442695
        %v3535 = vpow.pop %v3534
        %v3536 = vmul.f32 %v3530, 1.442695
        %v3537 = vpow.pop %v3536
        %v3538 = vmul.f32 %v3531, 1.442695
        %v3539 = vpow.pop %v3538
        %v3540 = vsel %vm2528, %v3533, 0.0
        %3541 = vadd.xlane.f32.xlu0 %v3540
        %v3542 = vpop.xlane.xlu0 %3541
        %v3543 = vsel %vm2528, %v3535, 0.0
        %3544 = vadd.xlane.f32.xlu0 %v3543
        %v3545 = vpop.xlane.xlu0 %3544
        %v3546 = vsel %vm2528, %v3537, 0.0
        %3547 = vadd.xlane.f32.xlu0 %v3546
        %v3548 = vpop.xlane.xlu0 %3547
        %v3549 = vsel %vm2528, %v3539, 0.0
        %3550 = vadd.xlane.f32.xlu0 %v3549
        %v3551 = vpop.xlane.xlu0 %3550
        %v3552 = vrcp.pop %v3542
        %v3553 = vrcp.pop %v3545
        %v3554 = vrcp.pop %v3548
        %v3555 = vrcp.pop %v3551
        %v3556 = vmul.f32 %v3533, %v3552
        %v3557 = vmul.f32 %v3535, %v3553
        %v3558 = vmul.f32 %v3537, %v3554
        %v3559 = vmul.f32 %v3539, %v3555
        %v3560 = vpack.c.bf16 %v3556, %v3556
        %v3561 = vpack.c.bf16 %v3557, %v3557
        %v3562 = vpack.c.bf16 %v3558, %v3558
        %v3563 = vpack.c.bf16 %v3559, %v3559
        %3564 = vrot.lane.b32.xlu0 %v3312, 64
        %v3565 = vpop.permute.xlu0 %3564
        %v3567 = vsel %vm2528, %v3560, 0
        %v3570 = vsel %vm2779, %v3565, 0
        %3572 = vmatprep.subr.bf16.mxu0 0
        %3573 = vmatpush1.bf16.msra.mxu0 %v3570
        %3574 = vmatprep.subr.bf16.mxu0 0
        %3575 = vmatpush1.bf16.msra.mxu0 0
        %3576 = vmatprep.subr.bf16.mxu0 0
        %3577 = vmatpush1.bf16.msra.mxu0 0
        %3578 = vmatprep.subr.bf16.mxu0 0
        %3579 = vmatpush1.bf16.msra.mxu0 0
        %3580 = vmatprep.subr.bf16.mxu0 0
        %3581 = vmatpush1.bf16.msra.mxu0 0
        %3582 = vmatprep.subr.bf16.mxu0 0
        %3583 = vmatpush1.bf16.msra.mxu0 0
        %3584 = vmatprep.subr.bf16.mxu0 0
        %3585 = vmatpush1.bf16.msra.mxu0 0
        %3586 = vmatprep.subr.bf16.mxu0 0
        %3587 = vmatpush1.bf16.msra.mxu0 0
        %3588 = vmatprep.subr.bf16.mxu0 0
        %3589 = vmatpush1.bf16.msra.mxu0 0
        %3590 = vmatprep.subr.bf16.mxu0 0
        %3591 = vmatpush1.bf16.msra.mxu0 0
        %3592 = vmatprep.subr.bf16.mxu0 0
        %3593 = vmatpush1.bf16.msra.mxu0 0
        %3594 = vmatprep.subr.bf16.mxu0 0
        %3595 = vmatpush1.bf16.msra.mxu0 0
        %3596 = vmatprep.subr.bf16.mxu0 0
        %3597 = vmatpush1.bf16.msra.mxu0 0
        %3598 = vmatprep.subr.bf16.mxu0 0
        %3599 = vmatpush1.bf16.msra.mxu0 0
        %3600 = vmatprep.subr.bf16.mxu0 0
        %3601 = vmatpush1.bf16.msra.mxu0 0
        %3602 = vmatprep.subr.bf16.mxu0 0
        %3603 = vmatpush1.bf16.msra.mxu0 0
        %3604 = vmatprep.mubr.bf16.mxu0 0
        %3605 = vmatmul.mubr.bf16.gmra.mrb[0].mxu0 %v3567
        %v3606 = vpop.f32.mrb[0].mxu0
        %v3607 = vadd.f32 0.0, %v3606
        %v3608 = vpop.f32.mrb[0].mxu0
        %v3609 = vpop.f32.mrb[0].mxu0
        %v3610 = vpop.f32.mrb[0].mxu0
        %3611 = vdwg.mxu0
        %3612 = vrot.lane.b32.xlu0 %v3313, 64
        %v3613 = vpop.permute.xlu0 %3612
        %v3615 = vsel %vm2528, %v3561, 0
        %v3618 = vsel %vm2779, %v3613, 0
        %3620 = vmatprep.subr.bf16.mxu0 0
        %3621 = vmatpush1.bf16.msra.mxu0 %v3618
        %3622 = vmatprep.subr.bf16.mxu0 0
        %3623 = vmatpush1.bf16.msra.mxu0 0
        %3624 = vmatprep.subr.bf16.mxu0 0
        %3625 = vmatpush1.bf16.msra.mxu0 0
        %3626 = vmatprep.subr.bf16.mxu0 0
        %3627 = vmatpush1.bf16.msra.mxu0 0
        %3628 = vmatprep.subr.bf16.mxu0 0
        %3629 = vmatpush1.bf16.msra.mxu0 0
        %3630 = vmatprep.subr.bf16.mxu0 0
        %3631 = vmatpush1.bf16.msra.mxu0 0
        %3632 = vmatprep.subr.bf16.mxu0 0
        %3633 = vmatpush1.bf16.msra.mxu0 0
        %3634 = vmatprep.subr.bf16.mxu0 0
        %3635 = vmatpush1.bf16.msra.mxu0 0
        %3636 = vmatprep.subr.bf16.mxu0 0
        %3637 = vmatpush1.bf16.msra.mxu0 0
        %3638 = vmatprep.subr.bf16.mxu0 0
        %3639 = vmatpush1.bf16.msra.mxu0 0
        %3640 = vmatprep.subr.bf16.mxu0 0
        %3641 = vmatpush1.bf16.msra.mxu0 0
        %3642 = vmatprep.subr.bf16.mxu0 0
        %3643 = vmatpush1.bf16.msra.mxu0 0
        %3644 = vmatprep.subr.bf16.mxu0 0
        %3645 = vmatpush1.bf16.msra.mxu0 0
        %3646 = vmatprep.subr.bf16.mxu0 0
        %3647 = vmatpush1.bf16.msra.mxu0 0
        %3648 = vmatprep.subr.bf16.mxu0 0
        %3649 = vmatpush1.bf16.msra.mxu0 0
        %3650 = vmatprep.subr.bf16.mxu0 0
        %3651 = vmatpush1.bf16.msra.mxu0 0
        %3652 = vmatprep.mubr.bf16.mxu0 0
        %3653 = vmatmul.mubr.bf16.gmra.mrb[0].mxu0 %v3615
        %v3654 = vpop.f32.mrb[0].mxu0
        %v3655 = vadd.f32 0.0, %v3654
        %v3656 = vpop.f32.mrb[0].mxu0
        %v3657 = vpop.f32.mrb[0].mxu0
        %v3658 = vpop.f32.mrb[0].mxu0
        %3659 = vdwg.mxu0
        %3660 = vrot.lane.b32.xlu0 %v3314, 64
        %v3661 = vpop.permute.xlu0 %3660
        %v3663 = vsel %vm2528, %v3562, 0
        %v3666 = vsel %vm2779, %v3661, 0
        %3668 = vmatprep.subr.bf16.mxu0 0
        %3669 = vmatpush1.bf16.msra.mxu0 %v3666
        %3670 = vmatprep.subr.bf16.mxu0 0
        %3671 = vmatpush1.bf16.msra.mxu0 0
        %3672 = vmatprep.subr.bf16.mxu0 0
        %3673 = vmatpush1.bf16.msra.mxu0 0
        %3674 = vmatprep.subr.bf16.mxu0 0
        %3675 = vmatpush1.bf16.msra.mxu0 0
        %3676 = vmatprep.subr.bf16.mxu0 0
        %3677 = vmatpush1.bf16.msra.mxu0 0
        %3678 = vmatprep.subr.bf16.mxu0 0
        %3679 = vmatpush1.bf16.msra.mxu0 0
        %3680 = vmatprep.subr.bf16.mxu0 0
        %3681 = vmatpush1.bf16.msra.mxu0 0
        %3682 = vmatprep.subr.bf16.mxu0 0
        %3683 = vmatpush1.bf16.msra.mxu0 0
        %3684 = vmatprep.subr.bf16.mxu0 0
        %3685 = vmatpush1.bf16.msra.mxu0 0
        %3686 = vmatprep.subr.bf16.mxu0 0
        %3687 = vmatpush1.bf16.msra.mxu0 0
        %3688 = vmatprep.subr.bf16.mxu0 0
        %3689 = vmatpush1.bf16.msra.mxu0 0
        %3690 = vmatprep.subr.bf16.mxu0 0
        %3691 = vmatpush1.bf16.msra.mxu0 0
        %3692 = vmatprep.subr.bf16.mxu0 0
        %3693 = vmatpush1.bf16.msra.mxu0 0
        %3694 = vmatprep.subr.bf16.mxu0 0
        %3695 = vmatpush1.bf16.msra.mxu0 0
        %3696 = vmatprep.subr.bf16.mxu0 0
        %3697 = vmatpush1.bf16.msra.mxu0 0
        %3698 = vmatprep.subr.bf16.mxu0 0
        %3699 = vmatpush1.bf16.msra.mxu0 0
        %3700 = vmatprep.mubr.bf16.mxu0 0
        %3701 = vmatmul.mubr.bf16.gmra.mrb[0].mxu0 %v3663
        %v3702 = vpop.f32.mrb[0].mxu0
        %v3703 = vadd.f32 0.0, %v3702
        %v3704 = vpop.f32.mrb[0].mxu0
        %v3705 = vpop.f32.mrb[0].mxu0
        %v3706 = vpop.f32.mrb[0].mxu0
        %3707 = vdwg.mxu0
        %3708 = vrot.lane.b32.xlu0 %v3315, 64
        %v3709 = vpop.permute.xlu0 %3708
        %v3711 = vsel %vm2528, %v3563, 0
        %v3714 = vsel %vm2779, %v3709, 0
        %3716 = vmatprep.subr.bf16.mxu0 0
        %3717 = vmatpush1.bf16.msra.mxu0 %v3714
        %3718 = vmatprep.subr.bf16.mxu0 0
        %3719 = vmatpush1.bf16.msra.mxu0 0
        %3720 = vmatprep.subr.bf16.mxu0 0
        %3721 = vmatpush1.bf16.msra.mxu0 0
        %3722 = vmatprep.subr.bf16.mxu0 0
        %3723 = vmatpush1.bf16.msra.mxu0 0
        %3724 = vmatprep.subr.bf16.mxu0 0
        %3725 = vmatpush1.bf16.msra.mxu0 0
        %3726 = vmatprep.subr.bf16.mxu0 0
        %3727 = vmatpush1.bf16.msra.mxu0 0
        %3728 = vmatprep.subr.bf16.mxu0 0
        %3729 = vmatpush1.bf16.msra.mxu0 0
        %3730 = vmatprep.subr.bf16.mxu0 0
        %3731 = vmatpush1.bf16.msra.mxu0 0
        %3732 = vmatprep.subr.bf16.mxu0 0
        %3733 = vmatpush1.bf16.msra.mxu0 0
        %3734 = vmatprep.subr.bf16.mxu0 0
        %3735 = vmatpush1.bf16.msra.mxu0 0
        %3736 = vmatprep.subr.bf16.mxu0 0
        %3737 = vmatpush1.bf16.msra.mxu0 0
        %3738 = vmatprep.subr.bf16.mxu0 0
        %3739 = vmatpush1.bf16.msra.mxu0 0
        %3740 = vmatprep.subr.bf16.mxu0 0
        %3741 = vmatpush1.bf16.msra.mxu0 0
        %3742 = vmatprep.subr.bf16.mxu0 0
        %3743 = vmatpush1.bf16.msra.mxu0 0
        %3744 = vmatprep.subr.bf16.mxu0 0
        %3745 = vmatpush1.bf16.msra.mxu0 0
        %3746 = vmatprep.subr.bf16.mxu0 0
        %3747 = vmatpush1.bf16.msra.mxu0 0
        %3748 = vmatprep.mubr.bf16.mxu0 0
        %3749 = vmatmul.mubr.bf16.gmra.mrb[0].mxu0 %v3711
        %v3750 = vpop.f32.mrb[0].mxu0
        %v3751 = vadd.f32 0.0, %v3750
        %v3752 = vpop.f32.mrb[0].mxu0
        %v3753 = vpop.f32.mrb[0].mxu0
        %v3754 = vpop.f32.mrb[0].mxu0
        %3755 = vdwg.mxu0
        %3757 = vrot.lane.b32.xlu0 %v3655, 8
        %v3758 = vpop.permute.xlu0 %3757
        %3761 = vrot.lane.b32.xlu0 %v3703, 16
        %v3762 = vpop.permute.xlu0 %3761
        %3765 = vrot.lane.b32.xlu0 %v3751, 24
        %v3766 = vpop.permute.xlu0 %3765
        %v3768 = vsel %vm2528, %v3607, %v3758
        %v3769 = vsel %vm2404, %v3768, %v3762
        %v3770 = vsel %vm2981, %v3769, %v3766
        %v3771 = vpack.c.bf16 %v3770, %v3770
        %v3773 = vlaneseq
        %v3774 = vshrl.u32 %v3773, 7
        %v3775 = vsub.s32 0, %v3774
        %v3776 = vrot.slane %v2350, %v3775
        %v3782 = vunpack.c.l.b16 %v2352
        %v3783 = vunpack.c.l.b16 %v2353
        %v3784 = vunpack.c.l.b16 %v2354
        %v3785 = vunpack.c.l.b16 %v2355
        %v3786 = vpack.c.b16 %v3783, %v3782
        %v3787 = vpack.c.b16 %v3785, %v3784
        %v3791 = vsel %vm2467, %v3771, 0
        %3793 = vmatprep.subr.bf16.mxu0 0
        %3794 = vmatpush1.bf16.msra.mxu0 %v3786
        %3795 = vmatprep.subr.bf16.mxu0 0
        %3796 = vmatpush1.bf16.msra.mxu0 %v3787
        %3797 = vmatprep.subr.bf16.mxu0 0
        %3798 = vmatpush1.bf16.msra.mxu0 0
        %3799 = vmatprep.subr.bf16.mxu0 0
        %3800 = vmatpush1.bf16.msra.mxu0 0
        %3801 = vmatprep.subr.bf16.mxu0 0
        %3802 = vmatpush1.bf16.msra.mxu0 0
        %3803 = vmatprep.subr.bf16.mxu0 0
        %3804 = vmatpush1.bf16.msra.mxu0 0
        %3805 = vmatprep.subr.bf16.mxu0 0
        %3806 = vmatpush1.bf16.msra.mxu0 0
        %3807 = vmatprep.subr.bf16.mxu0 0
        %3808 = vmatpush1.bf16.msra.mxu0 0
        %3809 = vmatprep.subr.bf16.mxu0 0
        %3810 = vmatpush1.bf16.msra.mxu0 0
        %3811 = vmatprep.subr.bf16.mxu0 0
        %3812 = vmatpush1.bf16.msra.mxu0 0
        %3813 = vmatprep.subr.bf16.mxu0 0
        %3814 = vmatpush1.bf16.msra.mxu0 0
        %3815 = vmatprep.subr.bf16.mxu0 0
        %3816 = vmatpush1.bf16.msra.mxu0 0
        %3817 = vmatprep.subr.bf16.mxu0 0
        %3818 = vmatpush1.bf16.msra.mxu0 0
        %3819 = vmatprep.subr.bf16.mxu0 0
        %3820 = vmatpush1.bf16.msra.mxu0 0
        %3821 = vmatprep.subr.bf16.mxu0 0
        %3822 = vmatpush1.bf16.msra.mxu0 0
        %3823 = vmatprep.subr.bf16.mxu0 0
        %3824 = vmatpush1.bf16.msra.mxu0 0
        %3825 = vmatprep.mubr.bf16.mxu0 0
        %3826 = vmatmul.mubr.bf16.gmra.mrb[0].mxu0 %v3791
        %v3827 = vpop.f32.mrb[0].mxu0
        %v3828 = vadd.f32 %v3776, %v3827
        %v3829 = vpop.f32.mrb[0].mxu0
        %v3830 = vpop.f32.mrb[0].mxu0
        %v3831 = vpop.f32.mrb[0].mxu0
        %3832 = vdwg.mxu0
        %v3833 = vadd.f32 %v3239, %v3828
        %v3834 = vsel %vm2467, %v3833, 0.0
        %3835 = vadd.xlane.f32.xlu0 %v3834
        %v3836 = vpop.xlane.xlu0 %3835
        %v3837 = vmul.f32 %v3836, %v3049
        %v3838 = vsub.f32 %v3833, %v3837
        %v3839 = vmul.f32 %v3838, %v3838
        %v3840 = vsel %vm2467, %v3839, 0.0
        %3841 = vadd.xlane.f32.xlu0 %v3840
        %v3842 = vpop.xlane.xlu0 %3841
        %v3843 = vmul.f32 %v3842, %v3049
        %v3844 = vadd.f32 %v3843, 1e-05
        %v3845 = vrsqrt.pop %v3844
        %v3846 = vmul.f32 %v3838, %v3845
        %v3848 = vlaneseq
        %v3849 = vshrl.u32 %v3848, 7
        %v3850 = vsub.s32 0, %v3849
        %v3851 = vrot.slane %v2363, %v3850
        %v3853 = vmul.f32 %v3846, %v3851
        %v3855 = vlaneseq
        %v3856 = vshrl.u32 %v3855, 7
        %v3857 = vsub.s32 0, %v3856
        %v3858 = vrot.slane %v2362, %v3857
        %v3860 = vadd.f32 %v3853, %v3858
        %v3861 = vpack.c.bf16 %v3860, %v3860
        %v3863 = vlaneseq
        %v3864 = vshrl.u32 %v3863, 7
        %v3865 = vsub.s32 0, %v3864
        %v3866 = vrot.slane %v2360, %v3865
        %v3872 = vunpack.c.l.b16 %v2366
        %v3873 = vunpack.c.l.b16 %v2367
        %v3874 = vunpack.c.l.b16 %v2368
        %v3875 = vunpack.c.l.b16 %v2369
        %v3876 = vpack.c.b16 %v3873, %v3872
        %v3877 = vpack.c.b16 %v3875, %v3874
        %v3881 = vsel %vm2467, %v3861, 0
        %3883 = vmatprep.subr.bf16.mxu0 0
        %3884 = vmatpush1.bf16.msra.mxu0 %v3876
        %3885 = vmatprep.subr.bf16.mxu0 0
        %3886 = vmatpush1.bf16.msra.mxu0 %v3877
        %3887 = vmatprep.subr.bf16.mxu0 0
        %3888 = vmatpush1.bf16.msra.mxu0 0
        %3889 = vmatprep.subr.bf16.mxu0 0
        %3890 = vmatpush1.bf16.msra.mxu0 0
        %3891 = vmatprep.subr.bf16.mxu0 0
        %3892 = vmatpush1.bf16.msra.mxu0 0
        %3893 = vmatprep.subr.bf16.mxu0 0
        %3894 = vmatpush1.bf16.msra.mxu0 0
        %3895 = vmatprep.subr.bf16.mxu0 0
        %3896 = vmatpush1.bf16.msra.mxu0 0
        %3897 = vmatprep.subr.bf16.mxu0 0
        %3898 = vmatpush1.bf16.msra.mxu0 0
        %3899 = vmatprep.subr.bf16.mxu0 0
        %3900 = vmatpush1.bf16.msra.mxu0 0
        %3901 = vmatprep.subr.bf16.mxu0 0
        %3902 = vmatpush1.bf16.msra.mxu0 0
        %3903 = vmatprep.subr.bf16.mxu0 0
        %3904 = vmatpush1.bf16.msra.mxu0 0
        %3905 = vmatprep.subr.bf16.mxu0 0
        %3906 = vmatpush1.bf16.msra.mxu0 0
        %3907 = vmatprep.subr.bf16.mxu0 0
        %3908 = vmatpush1.bf16.msra.mxu0 0
        %3909 = vmatprep.subr.bf16.mxu0 0
        %3910 = vmatpush1.bf16.msra.mxu0 0
        %3911 = vmatprep.subr.bf16.mxu0 0
        %3912 = vmatpush1.bf16.msra.mxu0 0
        %3913 = vmatprep.subr.bf16.mxu0 0
        %3914 = vmatpush1.bf16.msra.mxu0 0
        %3915 = vmatprep.mubr.bf16.mxu0 0
        %3916 = vmatmul.mubr.bf16.gmra.mrb[0].mxu0 %v3881
        %v3917 = vpop.f32.mrb[0].mxu0
        %v3918 = vadd.f32 %v3866, %v3917
        %v3919 = vpop.f32.mrb[0].mxu0
        %v3920 = vpop.f32.mrb[0].mxu0
        %v3921 = vpop.f32.mrb[0].mxu0
        %3922 = vdwg.mxu0
        %v3923 = vmax.f32 %v3918, 0.0
        %v3924 = vpack.c.bf16 %v3923, %v3923
        %v3926 = vlaneseq
        %v3927 = vshrl.u32 %v3926, 7
        %v3928 = vsub.s32 0, %v3927
        %v3929 = vrot.slane %v2361, %v3928
        %v3939 = vunpack.c.l.b16 %v2370
        %v3940 = vunpack.c.l.b16 %v2371
        %v3941 = vunpack.c.l.b16 %v2372
        %v3942 = vunpack.c.l.b16 %v2373
        %v3943 = vunpack.c.l.b16 %v2374
        %v3944 = vunpack.c.l.b16 %v2375
        %v3945 = vunpack.c.l.b16 %v2376
        %v3946 = vunpack.c.l.b16 %v2377
        %v3947 = vpack.c.b16 %v3940, %v3939
        %v3948 = vpack.c.b16 %v3942, %v3941
        %v3949 = vpack.c.b16 %v3944, %v3943
        %v3950 = vpack.c.b16 %v3946, %v3945
        %v3956 = vsel %vm3168, %v3924, 0
        %3958 = vmatprep.subr.bf16.mxu0 0
        %3959 = vmatpush1.bf16.msra.mxu0 %v3947
        %3960 = vmatprep.subr.bf16.mxu0 0
        %3961 = vmatpush1.bf16.msra.mxu0 %v3948
        %3962 = vmatprep.subr.bf16.mxu0 0
        %3963 = vmatpush1.bf16.msra.mxu0 %v3949
        %3964 = vmatprep.subr.bf16.mxu0 0
        %3965 = vmatpush1.bf16.msra.mxu0 %v3950
        %3966 = vmatprep.subr.bf16.mxu0 0
        %3967 = vmatpush1.bf16.msra.mxu0 0
        %3968 = vmatprep.subr.bf16.mxu0 0
        %3969 = vmatpush1.bf16.msra.mxu0 0
        %3970 = vmatprep.subr.bf16.mxu0 0
        %3971 = vmatpush1.bf16.msra.mxu0 0
        %3972 = vmatprep.subr.bf16.mxu0 0
        %3973 = vmatpush1.bf16.msra.mxu0 0
        %3974 = vmatprep.subr.bf16.mxu0 0
        %3975 = vmatpush1.bf16.msra.mxu0 0
        %3976 = vmatprep.subr.bf16.mxu0 0
        %3977 = vmatpush1.bf16.msra.mxu0 0
        %3978 = vmatprep.subr.bf16.mxu0 0
        %3979 = vmatpush1.bf16.msra.mxu0 0
        %3980 = vmatprep.subr.bf16.mxu0 0
        %3981 = vmatpush1.bf16.msra.mxu0 0
        %3982 = vmatprep.subr.bf16.mxu0 0
        %3983 = vmatpush1.bf16.msra.mxu0 0
        %3984 = vmatprep.subr.bf16.mxu0 0
        %3985 = vmatpush1.bf16.msra.mxu0 0
        %3986 = vmatprep.subr.bf16.mxu0 0
        %3987 = vmatpush1.bf16.msra.mxu0 0
        %3988 = vmatprep.subr.bf16.mxu0 0
        %3989 = vmatpush1.bf16.msra.mxu0 0
        %3990 = vmatprep.mubr.bf16.mxu0 0
        %3991 = vmatmul.mubr.bf16.gmra.mrb[0].mxu0 %v3956
        %v3992 = vpop.f32.mrb[0].mxu0
        %v3993 = vadd.f32 %v3929, %v3992
        %v3994 = vpop.f32.mrb[0].mxu0
        %v3995 = vpop.f32.mrb[0].mxu0
        %v3996 = vpop.f32.mrb[0].mxu0
        %3997 = vdwg.mxu0
        %v3998 = vadd.f32 %v3860, %v3993
        %v3999 = vsel %vm2467, %v3998, 0.0
        %4000 = vadd.xlane.f32.xlu0 %v3999
        %v4001 = vpop.xlane.xlu0 %4000
        %v4002 = vmul.f32 %v4001, %v3049
        %v4003 = vsub.f32 %v3998, %v4002
        %v4004 = vmul.f32 %v4003, %v4003
        %v4005 = vsel %vm2467, %v4004, 0.0
        %4006 = vadd.xlane.f32.xlu0 %v4005
        %v4007 = vpop.xlane.xlu0 %4006
        %v4008 = vmul.f32 %v4007, %v3049
        %v4009 = vadd.f32 %v4008, 1e-05
        %v4010 = vrsqrt.pop %v4009
        %v4011 = vmul.f32 %v4003, %v4010
        %v4013 = vlaneseq
        %v4014 = vshrl.u32 %v4013, 7
        %v4015 = vsub.s32 0, %v4014
        %v4016 = vrot.slane %v2365, %v4015
        %v4018 = vmul.f32 %v4011, %v4016
        %v4020 = vlaneseq
        %v4021 = vshrl.u32 %v4020, 7
        %v4022 = vsub.s32 0, %v4021
        %v4023 = vrot.slane %v2364, %v4022
        %v4025 = vadd.f32 %v4018, %v4023
        %v4026 = vsel %vm2467, %v4025, 0.0
        %4027 = vadd.xlane.f32.xlu0 %v4026
        %v4028 = vpop.xlane.xlu0 %4027
        %v4029 = vmul.f32 %v4028, %v3049
        %v4030 = vsub.f32 %v4025, %v4029
        %v4031 = vmul.f32 %v4030, %v4030
        %v4032 = vsel %vm2467, %v4031, 0.0
        %4033 = vadd.xlane.f32.xlu0 %v4032
        %v4034 = vpop.xlane.xlu0 %4033
        %v4035 = vmul.f32 %v4034, %v3049
        %v4036 = vadd.f32 %v4035, 1e-05
        %v4037 = vrsqrt.pop %v4036
        %v4038 = vmul.f32 %v4030, %v4037
        %v4040 = vlaneseq
        %v4041 = vshrl.u32 %v4040, 7
        %v4042 = vsub.s32 0, %v4041
        %v4043 = vrot.slane %v2379, %v4042
        %v4045 = vmul.f32 %v4038, %v4043
        %v4047 = vlaneseq
        %v4048 = vshrl.u32 %v4047, 7
        %v4049 = vsub.s32 0, %v4048
        %v4050 = vrot.slane %v2378, %v4049
        %v4052 = vadd.f32 %v4045, %v4050
        %v4053 = vpack.c.bf16 %v2389, %v2389
        %v4055 = vlaneseq
        %v4056 = vshrl.u32 %v4055, 7
        %v4057 = vsub.s32 0, %v4056
        %v4058 = vrot.slane %v2254, %v4057
        %v4064 = vunpack.c.l.b16 %v2259
        %v4065 = vunpack.c.l.b16 %v2260
        %v4066 = vunpack.c.l.b16 %v2261
        %v4067 = vunpack.c.l.b16 %v2262
        %v4068 = vpack.c.b16 %v4065, %v4064
        %v4069 = vpack.c.b16 %v4067, %v4066
        %v4073 = vsel %vm2467, %v4053, 0
        %4075 = vmatprep.subr.bf16.mxu0 0
        %4076 = vmatpush1.bf16.msra.mxu0 %v4068
        %4077 = vmatprep.subr.bf16.mxu0 0
        %4078 = vmatpush1.bf16.msra.mxu0 %v4069
        %4079 = vmatprep.subr.bf16.mxu0 0
        %4080 = vmatpush1.bf16.msra.mxu0 0
        %4081 = vmatprep.subr.bf16.mxu0 0
        %4082 = vmatpush1.bf16.msra.mxu0 0
        %4083 = vmatprep.subr.bf16.mxu0 0
        %4084 = vmatpush1.bf16.msra.mxu0 0
        %4085 = vmatprep.subr.bf16.mxu0 0
        %4086 = vmatpush1.bf16.msra.mxu0 0
        %4087 = vmatprep.subr.bf16.mxu0 0
        %4088 = vmatpush1.bf16.msra.mxu0 0
        %4089 = vmatprep.subr.bf16.mxu0 0
        %4090 = vmatpush1.bf16.msra.mxu0 0
        %4091 = vmatprep.subr.bf16.mxu0 0
        %4092 = vmatpush1.bf16.msra.mxu0 0
        %4093 = vmatprep.subr.bf16.mxu0 0
        %4094 = vmatpush1.bf16.msra.mxu0 0
        %4095 = vmatprep.subr.bf16.mxu0 0
        %4096 = vmatpush1.bf16.msra.mxu0 0
        %4097 = vmatprep.subr.bf16.mxu0 0
        %4098 = vmatpush1.bf16.msra.mxu0 0
        %4099 = vmatprep.subr.bf16.mxu0 0
        %4100 = vmatpush1.bf16.msra.mxu0 0
        %4101 = vmatprep.subr.bf16.mxu0 0
        %4102 = vmatpush1.bf16.msra.mxu0 0
        %4103 = vmatprep.subr.bf16.mxu0 0
        %4104 = vmatpush1.bf16.msra.mxu0 0
        %4105 = vmatprep.subr.bf16.mxu0 0
        %4106 = vmatpush1.bf16.msra.mxu0 0
        %4107 = vmatprep.mubr.bf16.mxu0 0
        %4108 = vmatmul.mubr.bf16.gmra.mrb[0].mxu0 %v4073
        %v4109 = vpop.f32.mrb[0].mxu0
        %v4110 = vadd.f32 %v4058, %v4109
        %v4111 = vpop.f32.mrb[0].mxu0
        %v4112 = vpop.f32.mrb[0].mxu0
        %v4113 = vpop.f32.mrb[0].mxu0
        %4114 = vdwg.mxu0
        %4116 = vrot.lane.b32.xlu0 %v4110, 120
        %v4117 = vpop.permute.xlu0 %4116
        %4119 = vrot.lane.b32.xlu0 %v4110, 112
        %v4120 = vpop.permute.xlu0 %4119
        %4122 = vrot.lane.b32.xlu0 %v4110, 104
        %v4123 = vpop.permute.xlu0 %4122
        %v4125 = vpack.c.bf16 %v4110, %v4110
        %v4126 = vpack.c.bf16 %v4117, %v4117
        %v4127 = vpack.c.bf16 %v4120, %v4120
        %v4128 = vpack.c.bf16 %v4123, %v4123
        %4130 = vrot.lane.b32.xlu0 %v4125, 96
        %v4131 = vpop.permute.xlu0 %4130
        %v4133 = vsel %vm2528, %v4125, 0
        %v4136 = vsel %vm2528, %v4131, 0
        %4138 = vmatprep.subr.bf16.mxu0 0
        %4139 = vmatpush1.bf16.xpose.msra.mxu0 %v4136
        %4140 = vmatprep.subr.bf16.mxu0 0
        %4141 = vmatpush1.bf16.xpose.msra.mxu0 0
        %4142 = vmatprep.subr.bf16.mxu0 0
        %4143 = vmatpush1.bf16.xpose.msra.mxu0 0
        %4144 = vmatprep.subr.bf16.mxu0 0
        %4145 = vmatpush1.bf16.xpose.msra.mxu0 0
        %4146 = vmatprep.subr.bf16.mxu0 0
        %4147 = vmatpush1.bf16.xpose.msra.mxu0 0
        %4148 = vmatprep.subr.bf16.mxu0 0
        %4149 = vmatpush1.bf16.xpose.msra.mxu0 0
        %4150 = vmatprep.subr.bf16.mxu0 0
        %4151 = vmatpush1.bf16.xpose.msra.mxu0 0
        %4152 = vmatprep.subr.bf16.mxu0 0
        %4153 = vmatpush1.bf16.xpose.msra.mxu0 0
        %4154 = vmatprep.subr.bf16.mxu0 0
        %4155 = vmatpush1.bf16.xpose.msra.mxu0 0
        %4156 = vmatprep.subr.bf16.mxu0 0
        %4157 = vmatpush1.bf16.xpose.msra.mxu0 0
        %4158 = vmatprep.subr.bf16.mxu0 0
        %4159 = vmatpush1.bf16.xpose.msra.mxu0 0
        %4160 = vmatprep.subr.bf16.mxu0 0
        %4161 = vmatpush1.bf16.xpose.msra.mxu0 0
        %4162 = vmatprep.subr.bf16.mxu0 0
        %4163 = vmatpush1.bf16.xpose.msra.mxu0 0
        %4164 = vmatprep.subr.bf16.mxu0 0
        %4165 = vmatpush1.bf16.xpose.msra.mxu0 0
        %4166 = vmatprep.subr.bf16.mxu0 0
        %4167 = vmatpush1.bf16.xpose.msra.mxu0 0
        %4168 = vmatprep.subr.bf16.mxu0 0
        %4169 = vmatpush1.bf16.xpose.msra.mxu0 0
        %4170 = vmatprep.mubr.bf16.mxu0 0
        %4171 = vmatmul.mubr.bf16.gmra.mrb[0].mxu0 %v4133
        %v4172 = vpop.f32.mrb[0].mxu0
        %v4173 = vadd.f32 0.0, %v4172
        %v4174 = vpop.f32.mrb[0].mxu0
        %v4175 = vpop.f32.mrb[0].mxu0
        %v4176 = vpop.f32.mrb[0].mxu0
        %4177 = vdwg.mxu0
        %4179 = vrot.lane.b32.xlu0 %v4126, 96
        %v4180 = vpop.permute.xlu0 %4179
        %v4182 = vsel %vm2528, %v4126, 0
        %v4185 = vsel %vm2528, %v4180, 0
        %4187 = vmatprep.subr.bf16.mxu0 0
        %4188 = vmatpush1.bf16.xpose.msra.mxu0 %v4185
        %4189 = vmatprep.subr.bf16.mxu0 0
        %4190 = vmatpush1.bf16.xpose.msra.mxu0 0
        %4191 = vmatprep.subr.bf16.mxu0 0
        %4192 = vmatpush1.bf16.xpose.msra.mxu0 0
        %4193 = vmatprep.subr.bf16.mxu0 0
        %4194 = vmatpush1.bf16.xpose.msra.mxu0 0
        %4195 = vmatprep.subr.bf16.mxu0 0
        %4196 = vmatpush1.bf16.xpose.msra.mxu0 0
        %4197 = vmatprep.subr.bf16.mxu0 0
        %4198 = vmatpush1.bf16.xpose.msra.mxu0 0
        %4199 = vmatprep.subr.bf16.mxu0 0
        %4200 = vmatpush1.bf16.xpose.msra.mxu0 0
        %4201 = vmatprep.subr.bf16.mxu0 0
        %4202 = vmatpush1.bf16.xpose.msra.mxu0 0
        %4203 = vmatprep.subr.bf16.mxu0 0
        %4204 = vmatpush1.bf16.xpose.msra.mxu0 0
        %4205 = vmatprep.subr.bf16.mxu0 0
        %4206 = vmatpush1.bf16.xpose.msra.mxu0 0
        %4207 = vmatprep.subr.bf16.mxu0 0
        %4208 = vmatpush1.bf16.xpose.msra.mxu0 0
        %4209 = vmatprep.subr.bf16.mxu0 0
        %4210 = vmatpush1.bf16.xpose.msra.mxu0 0
        %4211 = vmatprep.subr.bf16.mxu0 0
        %4212 = vmatpush1.bf16.xpose.msra.mxu0 0
        %4213 = vmatprep.subr.bf16.mxu0 0
        %4214 = vmatpush1.bf16.xpose.msra.mxu0 0
        %4215 = vmatprep.subr.bf16.mxu0 0
        %4216 = vmatpush1.bf16.xpose.msra.mxu0 0
        %4217 = vmatprep.subr.bf16.mxu0 0
        %4218 = vmatpush1.bf16.xpose.msra.mxu0 0
        %4219 = vmatprep.mubr.bf16.mxu0 0
        %4220 = vmatmul.mubr.bf16.gmra.mrb[0].mxu0 %v4182
        %v4221 = vpop.f32.mrb[0].mxu0
        %v4222 = vadd.f32 0.0, %v4221
        %v4223 = vpop.f32.mrb[0].mxu0
        %v4224 = vpop.f32.mrb[0].mxu0
        %v4225 = vpop.f32.mrb[0].mxu0
        %4226 = vdwg.mxu0
        %4228 = vrot.lane.b32.xlu0 %v4127, 96
        %v4229 = vpop.permute.xlu0 %4228
        %v4231 = vsel %vm2528, %v4127, 0
        %v4234 = vsel %vm2528, %v4229, 0
        %4236 = vmatprep.subr.bf16.mxu0 0
        %4237 = vmatpush1.bf16.xpose.msra.mxu0 %v4234
        %4238 = vmatprep.subr.bf16.mxu0 0
        %4239 = vmatpush1.bf16.xpose.msra.mxu0 0
        %4240 = vmatprep.subr.bf16.mxu0 0
        %4241 = vmatpush1.bf16.xpose.msra.mxu0 0
        %4242 = vmatprep.subr.bf16.mxu0 0
        %4243 = vmatpush1.bf16.xpose.msra.mxu0 0
        %4244 = vmatprep.subr.bf16.mxu0 0
        %4245 = vmatpush1.bf16.xpose.msra.mxu0 0
        %4246 = vmatprep.subr.bf16.mxu0 0
        %4247 = vmatpush1.bf16.xpose.msra.mxu0 0
        %4248 = vmatprep.subr.bf16.mxu0 0
        %4249 = vmatpush1.bf16.xpose.msra.mxu0 0
        %4250 = vmatprep.subr.bf16.mxu0 0
        %4251 = vmatpush1.bf16.xpose.msra.mxu0 0
        %4252 = vmatprep.subr.bf16.mxu0 0
        %4253 = vmatpush1.bf16.xpose.msra.mxu0 0
        %4254 = vmatprep.subr.bf16.mxu0 0
        %4255 = vmatpush1.bf16.xpose.msra.mxu0 0
        %4256 = vmatprep.subr.bf16.mxu0 0
        %4257 = vmatpush1.bf16.xpose.msra.mxu0 0
        %4258 = vmatprep.subr.bf16.mxu0 0
        %4259 = vmatpush1.bf16.xpose.msra.mxu0 0
        %4260 = vmatprep.subr.bf16.mxu0 0
        %4261 = vmatpush1.bf16.xpose.msra.mxu0 0
        %4262 = vmatprep.subr.bf16.mxu0 0
        %4263 = vmatpush1.bf16.xpose.msra.mxu0 0
        %4264 = vmatprep.subr.bf16.mxu0 0
        %4265 = vmatpush1.bf16.xpose.msra.mxu0 0
        %4266 = vmatprep.subr.bf16.mxu0 0
        %4267 = vmatpush1.bf16.xpose.msra.mxu0 0
        %4268 = vmatprep.mubr.bf16.mxu0 0
        %4269 = vmatmul.mubr.bf16.gmra.mrb[0].mxu0 %v4231
        %v4270 = vpop.f32.mrb[0].mxu0
        %v4271 = vadd.f32 0.0, %v4270
        %v4272 = vpop.f32.mrb[0].mxu0
        %v4273 = vpop.f32.mrb[0].mxu0
        %v4274 = vpop.f32.mrb[0].mxu0
        %4275 = vdwg.mxu0
        %4277 = vrot.lane.b32.xlu0 %v4128, 96
        %v4278 = vpop.permute.xlu0 %4277
        %v4280 = vsel %vm2528, %v4128, 0
        %v4283 = vsel %vm2528, %v4278, 0
        %4285 = vmatprep.subr.bf16.mxu0 0
        %4286 = vmatpush1.bf16.xpose.msra.mxu0 %v4283
        %4287 = vmatprep.subr.bf16.mxu0 0
        %4288 = vmatpush1.bf16.xpose.msra.mxu0 0
        %4289 = vmatprep.subr.bf16.mxu0 0
        %4290 = vmatpush1.bf16.xpose.msra.mxu0 0
        %4291 = vmatprep.subr.bf16.mxu0 0
        %4292 = vmatpush1.bf16.xpose.msra.mxu0 0
        %4293 = vmatprep.subr.bf16.mxu0 0
        %4294 = vmatpush1.bf16.xpose.msra.mxu0 0
        %4295 = vmatprep.subr.bf16.mxu0 0
        %4296 = vmatpush1.bf16.xpose.msra.mxu0 0
        %4297 = vmatprep.subr.bf16.mxu0 0
        %4298 = vmatpush1.bf16.xpose.msra.mxu0 0
        %4299 = vmatprep.subr.bf16.mxu0 0
        %4300 = vmatpush1.bf16.xpose.msra.mxu0 0
        %4301 = vmatprep.subr.bf16.mxu0 0
        %4302 = vmatpush1.bf16.xpose.msra.mxu0 0
        %4303 = vmatprep.subr.bf16.mxu0 0
        %4304 = vmatpush1.bf16.xpose.msra.mxu0 0
        %4305 = vmatprep.subr.bf16.mxu0 0
        %4306 = vmatpush1.bf16.xpose.msra.mxu0 0
        %4307 = vmatprep.subr.bf16.mxu0 0
        %4308 = vmatpush1.bf16.xpose.msra.mxu0 0
        %4309 = vmatprep.subr.bf16.mxu0 0
        %4310 = vmatpush1.bf16.xpose.msra.mxu0 0
        %4311 = vmatprep.subr.bf16.mxu0 0
        %4312 = vmatpush1.bf16.xpose.msra.mxu0 0
        %4313 = vmatprep.subr.bf16.mxu0 0
        %4314 = vmatpush1.bf16.xpose.msra.mxu0 0
        %4315 = vmatprep.subr.bf16.mxu0 0
        %4316 = vmatpush1.bf16.xpose.msra.mxu0 0
        %4317 = vmatprep.mubr.bf16.mxu0 0
        %4318 = vmatmul.mubr.bf16.gmra.mrb[0].mxu0 %v4280
        %v4319 = vpop.f32.mrb[0].mxu0
        %v4320 = vadd.f32 0.0, %v4319
        %v4321 = vpop.f32.mrb[0].mxu0
        %v4322 = vpop.f32.mrb[0].mxu0
        %v4323 = vpop.f32.mrb[0].mxu0
        %4324 = vdwg.mxu0
        %v4325 = vmul.f32 %v4173, 0.35355338
        %v4326 = vmul.f32 %v4222, 0.35355338
        %v4327 = vmul.f32 %v4271, 0.35355338
        %v4328 = vmul.f32 %v4320, 0.35355338
        %v4329 = vadd.f32 %v4325, %v2390
        %v4330 = vadd.f32 %v4326, %v2390
        %v4331 = vadd.f32 %v4327, %v2390
        %v4332 = vadd.f32 %v4328, %v2390
        %v4333 = vsel %vm2528, %v4329, -inf
        %4334 = vmax.xlane.f32.xlu0 %v4333
        %v4335 = vpop.xlane.xlu0 %4334
        %v4336 = vsel %vm2528, %v4330, -inf
        %4337 = vmax.xlane.f32.xlu0 %v4336
        %v4338 = vpop.xlane.xlu0 %4337
        %v4339 = vsel %vm2528, %v4331, -inf
        %4340 = vmax.xlane.f32.xlu0 %v4339
        %v4341 = vpop.xlane.xlu0 %4340
        %v4342 = vsel %vm2528, %v4332, -inf
        %4343 = vmax.xlane.f32.xlu0 %v4342
        %v4344 = vpop.xlane.xlu0 %4343
        %v4345 = vsub.f32 %v4329, %v4335
        %v4346 = vsub.f32 %v4330, %v4338
        %v4347 = vsub.f32 %v4331, %v4341
        %v4348 = vsub.f32 %v4332, %v4344
        %v4349 = vmul.f32 %v4345, 1.442695
        %v4350 = vpow.pop %v4349
        %v4351 = vmul.f32 %v4346, 1.442695
        %v4352 = vpow.pop %v4351
        %v4353 = vmul.f32 %v4347, 1.442695
        %v4354 = vpow.pop %v4353
        %v4355 = vmul.f32 %v4348, 1.442695
        %v4356 = vpow.pop %v4355
        %v4357 = vsel %vm2528, %v4350, 0.0
        %4358 = vadd.xlane.f32.xlu0 %v4357
        %v4359 = vpop.xlane.xlu0 %4358
        %v4360 = vsel %vm2528, %v4352, 0.0
        %4361 = vadd.xlane.f32.xlu0 %v4360
        %v4362 = vpop.xlane.xlu0 %4361
        %v4363 = vsel %vm2528, %v4354, 0.0
        %4364 = vadd.xlane.f32.xlu0 %v4363
        %v4365 = vpop.xlane.xlu0 %4364
        %v4366 = vsel %vm2528, %v4356, 0.0
        %4367 = vadd.xlane.f32.xlu0 %v4366
        %v4368 = vpop.xlane.xlu0 %4367
        %v4369 = vrcp.pop %v4359
        %v4370 = vrcp.pop %v4362
        %v4371 = vrcp.pop %v4365
        %v4372 = vrcp.pop %v4368
        %v4373 = vmul.f32 %v4350, %v4369
        %v4374 = vmul.f32 %v4352, %v4370
        %v4375 = vmul.f32 %v4354, %v4371
        %v4376 = vmul.f32 %v4356, %v4372
        %v4377 = vpack.c.bf16 %v4373, %v4373
        %v4378 = vpack.c.bf16 %v4374, %v4374
        %v4379 = vpack.c.bf16 %v4375, %v4375
        %v4380 = vpack.c.bf16 %v4376, %v4376
        %4381 = vrot.lane.b32.xlu0 %v4125, 64
        %v4382 = vpop.permute.xlu0 %4381
        %v4384 = vsel %vm2528, %v4377, 0
        %v4387 = vsel %vm2779, %v4382, 0
        %4389 = vmatprep.subr.bf16.mxu0 0
        %4390 = vmatpush1.bf16.msra.mxu0 %v4387
        %4391 = vmatprep.subr.bf16.mxu0 0
        %4392 = vmatpush1.bf16.msra.mxu0 0
        %4393 = vmatprep.subr.bf16.mxu0 0
        %4394 = vmatpush1.bf16.msra.mxu0 0
        %4395 = vmatprep.subr.bf16.mxu0 0
        %4396 = vmatpush1.bf16.msra.mxu0 0
        %4397 = vmatprep.subr.bf16.mxu0 0
        %4398 = vmatpush1.bf16.msra.mxu0 0
        %4399 = vmatprep.subr.bf16.mxu0 0
        %4400 = vmatpush1.bf16.msra.mxu0 0
        %4401 = vmatprep.subr.bf16.mxu0 0
        %4402 = vmatpush1.bf16.msra.mxu0 0
        %4403 = vmatprep.subr.bf16.mxu0 0
        %4404 = vmatpush1.bf16.msra.mxu0 0
        %4405 = vmatprep.subr.bf16.mxu0 0
        %4406 = vmatpush1.bf16.msra.mxu0 0
        %4407 = vmatprep.subr.bf16.mxu0 0
        %4408 = vmatpush1.bf16.msra.mxu0 0
        %4409 = vmatprep.subr.bf16.mxu0 0
        %4410 = vmatpush1.bf16.msra.mxu0 0
        %4411 = vmatprep.subr.bf16.mxu0 0
        %4412 = vmatpush1.bf16.msra.mxu0 0
        %4413 = vmatprep.subr.bf16.mxu0 0
        %4414 = vmatpush1.bf16.msra.mxu0 0
        %4415 = vmatprep.subr.bf16.mxu0 0
        %4416 = vmatpush1.bf16.msra.mxu0 0
        %4417 = vmatprep.subr.bf16.mxu0 0
        %4418 = vmatpush1.bf16.msra.mxu0 0
        %4419 = vmatprep.subr.bf16.mxu0 0
        %4420 = vmatpush1.bf16.msra.mxu0 0
        %4421 = vmatprep.mubr.bf16.mxu0 0
        %4422 = vmatmul.mubr.bf16.gmra.mrb[0].mxu0 %v4384
        %v4423 = vpop.f32.mrb[0].mxu0
        %v4424 = vadd.f32 0.0, %v4423
        %v4425 = vpop.f32.mrb[0].mxu0
        %v4426 = vpop.f32.mrb[0].mxu0
        %v4427 = vpop.f32.mrb[0].mxu0
        %4428 = vdwg.mxu0
        %4429 = vrot.lane.b32.xlu0 %v4126, 64
        %v4430 = vpop.permute.xlu0 %4429
        %v4432 = vsel %vm2528, %v4378, 0
        %v4435 = vsel %vm2779, %v4430, 0
        %4437 = vmatprep.subr.bf16.mxu0 0
        %4438 = vmatpush1.bf16.msra.mxu0 %v4435
        %4439 = vmatprep.subr.bf16.mxu0 0
        %4440 = vmatpush1.bf16.msra.mxu0 0
        %4441 = vmatprep.subr.bf16.mxu0 0
        %4442 = vmatpush1.bf16.msra.mxu0 0
        %4443 = vmatprep.subr.bf16.mxu0 0
        %4444 = vmatpush1.bf16.msra.mxu0 0
        %4445 = vmatprep.subr.bf16.mxu0 0
        %4446 = vmatpush1.bf16.msra.mxu0 0
        %4447 = vmatprep.subr.bf16.mxu0 0
        %4448 = vmatpush1.bf16.msra.mxu0 0
        %4449 = vmatprep.subr.bf16.mxu0 0
        %4450 = vmatpush1.bf16.msra.mxu0 0
        %4451 = vmatprep.subr.bf16.mxu0 0
        %4452 = vmatpush1.bf16.msra.mxu0 0
        %4453 = vmatprep.subr.bf16.mxu0 0
        %4454 = vmatpush1.bf16.msra.mxu0 0
        %4455 = vmatprep.subr.bf16.mxu0 0
        %4456 = vmatpush1.bf16.msra.mxu0 0
        %4457 = vmatprep.subr.bf16.mxu0 0
        %4458 = vmatpush1.bf16.msra.mxu0 0
        %4459 = vmatprep.subr.bf16.mxu0 0
        %4460 = vmatpush1.bf16.msra.mxu0 0
        %4461 = vmatprep.subr.bf16.mxu0 0
        %4462 = vmatpush1.bf16.msra.mxu0 0
        %4463 = vmatprep.subr.bf16.mxu0 0
        %4464 = vmatpush1.bf16.msra.mxu0 0
        %4465 = vmatprep.subr.bf16.mxu0 0
        %4466 = vmatpush1.bf16.msra.mxu0 0
        %4467 = vmatprep.subr.bf16.mxu0 0
        %4468 = vmatpush1.bf16.msra.mxu0 0
        %4469 = vmatprep.mubr.bf16.mxu0 0
        %4470 = vmatmul.mubr.bf16.gmra.mrb[0].mxu0 %v4432
        %v4471 = vpop.f32.mrb[0].mxu0
        %v4472 = vadd.f32 0.0, %v4471
        %v4473 = vpop.f32.mrb[0].mxu0
        %v4474 = vpop.f32.mrb[0].mxu0
        %v4475 = vpop.f32.mrb[0].mxu0
        %4476 = vdwg.mxu0
        %4477 = vrot.lane.b32.xlu0 %v4127, 64
        %v4478 = vpop.permute.xlu0 %4477
        %v4480 = vsel %vm2528, %v4379, 0
        %v4483 = vsel %vm2779, %v4478, 0
        %4485 = vmatprep.subr.bf16.mxu0 0
        %4486 = vmatpush1.bf16.msra.mxu0 %v4483
        %4487 = vmatprep.subr.bf16.mxu0 0
        %4488 = vmatpush1.bf16.msra.mxu0 0
        %4489 = vmatprep.subr.bf16.mxu0 0
        %4490 = vmatpush1.bf16.msra.mxu0 0
        %4491 = vmatprep.subr.bf16.mxu0 0
        %4492 = vmatpush1.bf16.msra.mxu0 0
        %4493 = vmatprep.subr.bf16.mxu0 0
        %4494 = vmatpush1.bf16.msra.mxu0 0
        %4495 = vmatprep.subr.bf16.mxu0 0
        %4496 = vmatpush1.bf16.msra.mxu0 0
        %4497 = vmatprep.subr.bf16.mxu0 0
        %4498 = vmatpush1.bf16.msra.mxu0 0
        %4499 = vmatprep.subr.bf16.mxu0 0
        %4500 = vmatpush1.bf16.msra.mxu0 0
        %4501 = vmatprep.subr.bf16.mxu0 0
        %4502 = vmatpush1.bf16.msra.mxu0 0
        %4503 = vmatprep.subr.bf16.mxu0 0
        %4504 = vmatpush1.bf16.msra.mxu0 0
        %4505 = vmatprep.subr.bf16.mxu0 0
        %4506 = vmatpush1.bf16.msra.mxu0 0
        %4507 = vmatprep.subr.bf16.mxu0 0
        %4508 = vmatpush1.bf16.msra.mxu0 0
        %4509 = vmatprep.subr.bf16.mxu0 0
        %4510 = vmatpush1.bf16.msra.mxu0 0
        %4511 = vmatprep.subr.bf16.mxu0 0
        %4512 = vmatpush1.bf16.msra.mxu0 0
        %4513 = vmatprep.subr.bf16.mxu0 0
        %4514 = vmatpush1.bf16.msra.mxu0 0
        %4515 = vmatprep.subr.bf16.mxu0 0
        %4516 = vmatpush1.bf16.msra.mxu0 0
        %4517 = vmatprep.mubr.bf16.mxu0 0
        %4518 = vmatmul.mubr.bf16.gmra.mrb[0].mxu0 %v4480
        %v4519 = vpop.f32.mrb[0].mxu0
        %v4520 = vadd.f32 0.0, %v4519
        %v4521 = vpop.f32.mrb[0].mxu0
        %v4522 = vpop.f32.mrb[0].mxu0
        %v4523 = vpop.f32.mrb[0].mxu0
        %4524 = vdwg.mxu0
        %4525 = vrot.lane.b32.xlu0 %v4128, 64
        %v4526 = vpop.permute.xlu0 %4525
        %v4528 = vsel %vm2528, %v4380, 0
        %v4531 = vsel %vm2779, %v4526, 0
        %4533 = vmatprep.subr.bf16.mxu0 0
        %4534 = vmatpush1.bf16.msra.mxu0 %v4531
        %4535 = vmatprep.subr.bf16.mxu0 0
        %4536 = vmatpush1.bf16.msra.mxu0 0
        %4537 = vmatprep.subr.bf16.mxu0 0
        %4538 = vmatpush1.bf16.msra.mxu0 0
        %4539 = vmatprep.subr.bf16.mxu0 0
        %4540 = vmatpush1.bf16.msra.mxu0 0
        %4541 = vmatprep.subr.bf16.mxu0 0
        %4542 = vmatpush1.bf16.msra.mxu0 0
        %4543 = vmatprep.subr.bf16.mxu0 0
        %4544 = vmatpush1.bf16.msra.mxu0 0
        %4545 = vmatprep.subr.bf16.mxu0 0
        %4546 = vmatpush1.bf16.msra.mxu0 0
        %4547 = vmatprep.subr.bf16.mxu0 0
        %4548 = vmatpush1.bf16.msra.mxu0 0
        %4549 = vmatprep.subr.bf16.mxu0 0
        %4550 = vmatpush1.bf16.msra.mxu0 0
        %4551 = vmatprep.subr.bf16.mxu0 0
        %4552 = vmatpush1.bf16.msra.mxu0 0
        %4553 = vmatprep.subr.bf16.mxu0 0
        %4554 = vmatpush1.bf16.msra.mxu0 0
        %4555 = vmatprep.subr.bf16.mxu0 0
        %4556 = vmatpush1.bf16.msra.mxu0 0
        %4557 = vmatprep.subr.bf16.mxu0 0
        %4558 = vmatpush1.bf16.msra.mxu0 0
        %4559 = vmatprep.subr.bf16.mxu0 0
        %4560 = vmatpush1.bf16.msra.mxu0 0
        %4561 = vmatprep.subr.bf16.mxu0 0
        %4562 = vmatpush1.bf16.msra.mxu0 0
        %4563 = vmatprep.subr.bf16.mxu0 0
        %4564 = vmatpush1.bf16.msra.mxu0 0
        %4565 = vmatprep.mubr.bf16.mxu0 0
        %4566 = vmatmul.mubr.bf16.gmra.mrb[0].mxu0 %v4528
        %v4567 = vpop.f32.mrb[0].mxu0
        %v4568 = vadd.f32 0.0, %v4567
        %v4569 = vpop.f32.mrb[0].mxu0
        %v4570 = vpop.f32.mrb[0].mxu0
        %v4571 = vpop.f32.mrb[0].mxu0
        %4572 = vdwg.mxu0
        %4574 = vrot.lane.b32.xlu0 %v4472, 8
        %v4575 = vpop.permute.xlu0 %4574
        %4578 = vrot.lane.b32.xlu0 %v4520, 16
        %v4579 = vpop.permute.xlu0 %4578
        %4582 = vrot.lane.b32.xlu0 %v4568, 24
        %v4583 = vpop.permute.xlu0 %4582
        %v4585 = vsel %vm2528, %v4424, %v4575
        %v4586 = vsel %vm2404, %v4585, %v4579
        %v4587 = vsel %vm2981, %v4586, %v4583
        %v4588 = vpack.c.bf16 %v4587, %v4587
        %v4590 = vlaneseq
        %v4591 = vshrl.u32 %v4590, 7
        %v4592 = vsub.s32 0, %v4591
        %v4593 = vrot.slane %v2253, %v4592
        %v4599 = vunpack.c.l.b16 %v2255
        %v4600 = vunpack.c.l.b16 %v2256
        %v4601 = vunpack.c.l.b16 %v2257
        %v4602 = vunpack.c.l.b16 %v2258
        %v4603 = vpack.c.b16 %v4600, %v4599
        %v4604 = vpack.c.b16 %v4602, %v4601
        %v4608 = vsel %vm2467, %v4588, 0
        %4610 = vmatprep.subr.bf16.mxu0 0
        %4611 = vmatpush1.bf16.msra.mxu0 %v4603
        %4612 = vmatprep.subr.bf16.mxu0 0
        %4613 = vmatpush1.bf16.msra.mxu0 %v4604
        %4614 = vmatprep.subr.bf16.mxu0 0
        %4615 = vmatpush1.bf16.msra.mxu0 0
        %4616 = vmatprep.subr.bf16.mxu0 0
        %4617 = vmatpush1.bf16.msra.mxu0 0
        %4618 = vmatprep.subr.bf16.mxu0 0
        %4619 = vmatpush1.bf16.msra.mxu0 0
        %4620 = vmatprep.subr.bf16.mxu0 0
        %4621 = vmatpush1.bf16.msra.mxu0 0
        %4622 = vmatprep.subr.bf16.mxu0 0
        %4623 = vmatpush1.bf16.msra.mxu0 0
        %4624 = vmatprep.subr.bf16.mxu0 0
        %4625 = vmatpush1.bf16.msra.mxu0 0
        %4626 = vmatprep.subr.bf16.mxu0 0
        %4627 = vmatpush1.bf16.msra.mxu0 0
        %4628 = vmatprep.subr.bf16.mxu0 0
        %4629 = vmatpush1.bf16.msra.mxu0 0
        %4630 = vmatprep.subr.bf16.mxu0 0
        %4631 = vmatpush1.bf16.msra.mxu0 0
        %4632 = vmatprep.subr.bf16.mxu0 0
        %4633 = vmatpush1.bf16.msra.mxu0 0
        %4634 = vmatprep.subr.bf16.mxu0 0
        %4635 = vmatpush1.bf16.msra.mxu0 0
        %4636 = vmatprep.subr.bf16.mxu0 0
        %4637 = vmatpush1.bf16.msra.mxu0 0
        %4638 = vmatprep.subr.bf16.mxu0 0
        %4639 = vmatpush1.bf16.msra.mxu0 0
        %4640 = vmatprep.subr.bf16.mxu0 0
        %4641 = vmatpush1.bf16.msra.mxu0 0
        %4642 = vmatprep.mubr.bf16.mxu0 0
        %4643 = vmatmul.mubr.bf16.gmra.mrb[0].mxu0 %v4608
        %v4644 = vpop.f32.mrb[0].mxu0
        %v4645 = vadd.f32 %v4593, %v4644
        %v4646 = vpop.f32.mrb[0].mxu0
        %v4647 = vpop.f32.mrb[0].mxu0
        %v4648 = vpop.f32.mrb[0].mxu0
        %4649 = vdwg.mxu0
        %v4650 = vadd.f32 %v2389, %v4645
        %v4651 = vsel %vm2467, %v4650, 0.0
        %4652 = vadd.xlane.f32.xlu0 %v4651
        %v4653 = vpop.xlane.xlu0 %4652
        %v4654 = vmul.f32 %v4653, %v3049
        %v4655 = vsub.f32 %v4650, %v4654
        %v4656 = vmul.f32 %v4655, %v4655
        %v4657 = vsel %vm2467, %v4656, 0.0
        %4658 = vadd.xlane.f32.xlu0 %v4657
        %v4659 = vpop.xlane.xlu0 %4658
        %v4660 = vmul.f32 %v4659, %v3049
        %v4661 = vadd.f32 %v4660, 1e-05
        %v4662 = vrsqrt.pop %v4661
        %v4663 = vmul.f32 %v4655, %v4662
        %v4665 = vlaneseq
        %v4666 = vshrl.u32 %v4665, 7
        %v4667 = vsub.s32 0, %v4666
        %v4668 = vrot.slane %v2248, %v4667
        %v4670 = vmul.f32 %v4663, %v4668
        %v4672 = vlaneseq
        %v4673 = vshrl.u32 %v4672, 7
        %v4674 = vsub.s32 0, %v4673
        %v4675 = vrot.slane %v2247, %v4674
        %v4677 = vadd.f32 %v4670, %v4675
        %v4678 = vpack.c.bf16 %v4677, %v4677
        %v4680 = vlaneseq
        %v4681 = vshrl.u32 %v4680, 7
        %v4682 = vsub.s32 0, %v4681
        %v4683 = vrot.slane %v2234, %v4682
        %v4689 = vunpack.c.l.b16 %v2243
        %v4690 = vunpack.c.l.b16 %v2244
        %v4691 = vunpack.c.l.b16 %v2245
        %v4692 = vunpack.c.l.b16 %v2246
        %v4693 = vpack.c.b16 %v4690, %v4689
        %v4694 = vpack.c.b16 %v4692, %v4691
        %v4698 = vsel %vm2467, %v4678, 0
        %4700 = vmatprep.subr.bf16.mxu0 0
        %4701 = vmatpush1.bf16.msra.mxu0 %v4693
        %4702 = vmatprep.subr.bf16.mxu0 0
        %4703 = vmatpush1.bf16.msra.mxu0 %v4694
        %4704 = vmatprep.subr.bf16.mxu0 0
        %4705 = vmatpush1.bf16.msra.mxu0 0
        %4706 = vmatprep.subr.bf16.mxu0 0
        %4707 = vmatpush1.bf16.msra.mxu0 0
        %4708 = vmatprep.subr.bf16.mxu0 0
        %4709 = vmatpush1.bf16.msra.mxu0 0
        %4710 = vmatprep.subr.bf16.mxu0 0
        %4711 = vmatpush1.bf16.msra.mxu0 0
        %4712 = vmatprep.subr.bf16.mxu0 0
        %4713 = vmatpush1.bf16.msra.mxu0 0
        %4714 = vmatprep.subr.bf16.mxu0 0
        %4715 = vmatpush1.bf16.msra.mxu0 0
        %4716 = vmatprep.subr.bf16.mxu0 0
        %4717 = vmatpush1.bf16.msra.mxu0 0
        %4718 = vmatprep.subr.bf16.mxu0 0
        %4719 = vmatpush1.bf16.msra.mxu0 0
        %4720 = vmatprep.subr.bf16.mxu0 0
        %4721 = vmatpush1.bf16.msra.mxu0 0
        %4722 = vmatprep.subr.bf16.mxu0 0
        %4723 = vmatpush1.bf16.msra.mxu0 0
        %4724 = vmatprep.subr.bf16.mxu0 0
        %4725 = vmatpush1.bf16.msra.mxu0 0
        %4726 = vmatprep.subr.bf16.mxu0 0
        %4727 = vmatpush1.bf16.msra.mxu0 0
        %4728 = vmatprep.subr.bf16.mxu0 0
        %4729 = vmatpush1.bf16.msra.mxu0 0
        %4730 = vmatprep.subr.bf16.mxu0 0
        %4731 = vmatpush1.bf16.msra.mxu0 0
        %4732 = vmatprep.mubr.bf16.mxu0 0
        %4733 = vmatmul.mubr.bf16.gmra.mrb[0].mxu0 %v4698
        %v4734 = vpop.f32.mrb[0].mxu0
        %v4735 = vadd.f32 %v4683, %v4734
        %v4736 = vpop.f32.mrb[0].mxu0
        %v4737 = vpop.f32.mrb[0].mxu0
        %v4738 = vpop.f32.mrb[0].mxu0
        %4739 = vdwg.mxu0
        %v4740 = vpack.c.bf16 %v4052, %v4052
        %v4742 = vlaneseq
        %v4743 = vshrl.u32 %v4742, 7
        %v4744 = vsub.s32 0, %v4743
        %v4745 = vrot.slane %v2232, %v4744
        %v4751 = vunpack.c.l.b16 %v2235
        %v4752 = vunpack.c.l.b16 %v2236
        %v4753 = vunpack.c.l.b16 %v2237
        %v4754 = vunpack.c.l.b16 %v2238
        %v4755 = vpack.c.b16 %v4752, %v4751
        %v4756 = vpack.c.b16 %v4754, %v4753
        %v4760 = vsel %vm2467, %v4740, 0
        %4762 = vmatprep.subr.bf16.mxu0 0
        %4763 = vmatpush1.bf16.msra.mxu0 %v4755
        %4764 = vmatprep.subr.bf16.mxu0 0
        %4765 = vmatpush1.bf16.msra.mxu0 %v4756
        %4766 = vmatprep.subr.bf16.mxu0 0
        %4767 = vmatpush1.bf16.msra.mxu0 0
        %4768 = vmatprep.subr.bf16.mxu0 0
        %4769 = vmatpush1.bf16.msra.mxu0 0
        %4770 = vmatprep.subr.bf16.mxu0 0
        %4771 = vmatpush1.bf16.msra.mxu0 0
        %4772 = vmatprep.subr.bf16.mxu0 0
        %4773 = vmatpush1.bf16.msra.mxu0 0
        %4774 = vmatprep.subr.bf16.mxu0 0
        %4775 = vmatpush1.bf16.msra.mxu0 0
        %4776 = vmatprep.subr.bf16.mxu0 0
        %4777 = vmatpush1.bf16.msra.mxu0 0
        %4778 = vmatprep.subr.bf16.mxu0 0
        %4779 = vmatpush1.bf16.msra.mxu0 0
        %4780 = vmatprep.subr.bf16.mxu0 0
        %4781 = vmatpush1.bf16.msra.mxu0 0
        %4782 = vmatprep.subr.bf16.mxu0 0
        %4783 = vmatpush1.bf16.msra.mxu0 0
        %4784 = vmatprep.subr.bf16.mxu0 0
        %4785 = vmatpush1.bf16.msra.mxu0 0
        %4786 = vmatprep.subr.bf16.mxu0 0
        %4787 = vmatpush1.bf16.msra.mxu0 0
        %4788 = vmatprep.subr.bf16.mxu0 0
        %4789 = vmatpush1.bf16.msra.mxu0 0
        %4790 = vmatprep.subr.bf16.mxu0 0
        %4791 = vmatpush1.bf16.msra.mxu0 0
        %4792 = vmatprep.subr.bf16.mxu0 0
        %4793 = vmatpush1.bf16.msra.mxu0 0
        %4794 = vmatprep.mubr.bf16.mxu0 0
        %4795 = vmatmul.mubr.bf16.gmra.mrb[0].mxu0 %v4760
        %v4796 = vpop.f32.mrb[0].mxu0
        %v4797 = vadd.f32 %v4745, %v4796
        %v4798 = vpop.f32.mrb[0].mxu0
        %v4799 = vpop.f32.mrb[0].mxu0
        %v4800 = vpop.f32.mrb[0].mxu0
        %4801 = vdwg.mxu0
        %4803 = vrot.lane.b32.xlu0 %v4735, 120
        %v4804 = vpop.permute.xlu0 %4803
        %4806 = vrot.lane.b32.xlu0 %v4735, 112
        %v4807 = vpop.permute.xlu0 %4806
        %4809 = vrot.lane.b32.xlu0 %v4735, 104
        %v4810 = vpop.permute.xlu0 %4809
        %4813 = vrot.lane.b32.xlu0 %v4797, 120
        %v4814 = vpop.permute.xlu0 %4813
        %4816 = vrot.lane.b32.xlu0 %v4797, 112
        %v4817 = vpop.permute.xlu0 %4816
        %4819 = vrot.lane.b32.xlu0 %v4797, 104
        %v4820 = vpop.permute.xlu0 %4819
        %v4822 = vpack.c.bf16 %v4735, %v4735
        %v4823 = vpack.c.bf16 %v4804, %v4804
        %v4824 = vpack.c.bf16 %v4807, %v4807
        %v4825 = vpack.c.bf16 %v4810, %v4810
        %v4826 = vpack.c.bf16 %v4797, %v4797
        %v4827 = vpack.c.bf16 %v4814, %v4814
        %v4828 = vpack.c.bf16 %v4817, %v4817
        %v4829 = vpack.c.bf16 %v4820, %v4820
        %v4831 = vsel %vm2528, %v4822, 0
        %v4834 = vsel %vm2528, %v4826, 0
        %4836 = vmatprep.subr.bf16.mxu0 0
        %4837 = vmatpush1.bf16.xpose.msra.mxu0 %v4834
        %4838 = vmatprep.subr.bf16.mxu0 0
        %4839 = vmatpush1.bf16.xpose.msra.mxu0 0
        %4840 = vmatprep.subr.bf16.mxu0 0
        %4841 = vmatpush1.bf16.xpose.msra.mxu0 0
        %4842 = vmatprep.subr.bf16.mxu0 0
        %4843 = vmatpush1.bf16.xpose.msra.mxu0 0
        %4844 = vmatprep.subr.bf16.mxu0 0
        %4845 = vmatpush1.bf16.xpose.msra.mxu0 0
        %4846 = vmatprep.subr.bf16.mxu0 0
        %4847 = vmatpush1.bf16.xpose.msra.mxu0 0
        %4848 = vmatprep.subr.bf16.mxu0 0
        %4849 = vmatpush1.bf16.xpose.msra.mxu0 0
        %4850 = vmatprep.subr.bf16.mxu0 0
        %4851 = vmatpush1.bf16.xpose.msra.mxu0 0
        %4852 = vmatprep.subr.bf16.mxu0 0
        %4853 = vmatpush1.bf16.xpose.msra.mxu0 0
        %4854 = vmatprep.subr.bf16.mxu0 0
        %4855 = vmatpush1.bf16.xpose.msra.mxu0 0
        %4856 = vmatprep.subr.bf16.mxu0 0
        %4857 = vmatpush1.bf16.xpose.msra.mxu0 0
        %4858 = vmatprep.subr.bf16.mxu0 0
        %4859 = vmatpush1.bf16.xpose.msra.mxu0 0
        %4860 = vmatprep.subr.bf16.mxu0 0
        %4861 = vmatpush1.bf16.xpose.msra.mxu0 0
        %4862 = vmatprep.subr.bf16.mxu0 0
        %4863 = vmatpush1.bf16.xpose.msra.mxu0 0
        %4864 = vmatprep.subr.bf16.mxu0 0
        %4865 = vmatpush1.bf16.xpose.msra.mxu0 0
        %4866 = vmatprep.subr.bf16.mxu0 0
        %4867 = vmatpush1.bf16.xpose.msra.mxu0 0
        %4868 = vmatprep.mubr.bf16.mxu0 0
        %4869 = vmatmul.mubr.bf16.gmra.mrb[0].mxu0 %v4831
        %v4870 = vpop.f32.mrb[0].mxu0
        %v4871 = vadd.f32 0.0, %v4870
        %v4872 = vpop.f32.mrb[0].mxu0
        %v4873 = vpop.f32.mrb[0].mxu0
        %v4874 = vpop.f32.mrb[0].mxu0
        %4875 = vdwg.mxu0
        %v4877 = vsel %vm2528, %v4823, 0
        %v4880 = vsel %vm2528, %v4827, 0
        %4882 = vmatprep.subr.bf16.mxu0 0
        %4883 = vmatpush1.bf16.xpose.msra.mxu0 %v4880
        %4884 = vmatprep.subr.bf16.mxu0 0
        %4885 = vmatpush1.bf16.xpose.msra.mxu0 0
        %4886 = vmatprep.subr.bf16.mxu0 0
        %4887 = vmatpush1.bf16.xpose.msra.mxu0 0
        %4888 = vmatprep.subr.bf16.mxu0 0
        %4889 = vmatpush1.bf16.xpose.msra.mxu0 0
        %4890 = vmatprep.subr.bf16.mxu0 0
        %4891 = vmatpush1.bf16.xpose.msra.mxu0 0
        %4892 = vmatprep.subr.bf16.mxu0 0
        %4893 = vmatpush1.bf16.xpose.msra.mxu0 0
        %4894 = vmatprep.subr.bf16.mxu0 0
        %4895 = vmatpush1.bf16.xpose.msra.mxu0 0
        %4896 = vmatprep.subr.bf16.mxu0 0
        %4897 = vmatpush1.bf16.xpose.msra.mxu0 0
        %4898 = vmatprep.subr.bf16.mxu0 0
        %4899 = vmatpush1.bf16.xpose.msra.mxu0 0
        %4900 = vmatprep.subr.bf16.mxu0 0
        %4901 = vmatpush1.bf16.xpose.msra.mxu0 0
        %4902 = vmatprep.subr.bf16.mxu0 0
        %4903 = vmatpush1.bf16.xpose.msra.mxu0 0
        %4904 = vmatprep.subr.bf16.mxu0 0
        %4905 = vmatpush1.bf16.xpose.msra.mxu0 0
        %4906 = vmatprep.subr.bf16.mxu0 0
        %4907 = vmatpush1.bf16.xpose.msra.mxu0 0
        %4908 = vmatprep.subr.bf16.mxu0 0
        %4909 = vmatpush1.bf16.xpose.msra.mxu0 0
        %4910 = vmatprep.subr.bf16.mxu0 0
        %4911 = vmatpush1.bf16.xpose.msra.mxu0 0
        %4912 = vmatprep.subr.bf16.mxu0 0
        %4913 = vmatpush1.bf16.xpose.msra.mxu0 0
        %4914 = vmatprep.mubr.bf16.mxu0 0
        %4915 = vmatmul.mubr.bf16.gmra.mrb[0].mxu0 %v4877
        %v4916 = vpop.f32.mrb[0].mxu0
        %v4917 = vadd.f32 0.0, %v4916
        %v4918 = vpop.f32.mrb[0].mxu0
        %v4919 = vpop.f32.mrb[0].mxu0
        %v4920 = vpop.f32.mrb[0].mxu0
        %4921 = vdwg.mxu0
        %v4923 = vsel %vm2528, %v4824, 0
        %v4926 = vsel %vm2528, %v4828, 0
        %4928 = vmatprep.subr.bf16.mxu0 0
        %4929 = vmatpush1.bf16.xpose.msra.mxu0 %v4926
        %4930 = vmatprep.subr.bf16.mxu0 0
        %4931 = vmatpush1.bf16.xpose.msra.mxu0 0
        %4932 = vmatprep.subr.bf16.mxu0 0
        %4933 = vmatpush1.bf16.xpose.msra.mxu0 0
        %4934 = vmatprep.subr.bf16.mxu0 0
        %4935 = vmatpush1.bf16.xpose.msra.mxu0 0
        %4936 = vmatprep.subr.bf16.mxu0 0
        %4937 = vmatpush1.bf16.xpose.msra.mxu0 0
        %4938 = vmatprep.subr.bf16.mxu0 0
        %4939 = vmatpush1.bf16.xpose.msra.mxu0 0
        %4940 = vmatprep.subr.bf16.mxu0 0
        %4941 = vmatpush1.bf16.xpose.msra.mxu0 0
        %4942 = vmatprep.subr.bf16.mxu0 0
        %4943 = vmatpush1.bf16.xpose.msra.mxu0 0
        %4944 = vmatprep.subr.bf16.mxu0 0
        %4945 = vmatpush1.bf16.xpose.msra.mxu0 0
        %4946 = vmatprep.subr.bf16.mxu0 0
        %4947 = vmatpush1.bf16.xpose.msra.mxu0 0
        %4948 = vmatprep.subr.bf16.mxu0 0
        %4949 = vmatpush1.bf16.xpose.msra.mxu0 0
        %4950 = vmatprep.subr.bf16.mxu0 0
        %4951 = vmatpush1.bf16.xpose.msra.mxu0 0
        %4952 = vmatprep.subr.bf16.mxu0 0
        %4953 = vmatpush1.bf16.xpose.msra.mxu0 0
        %4954 = vmatprep.subr.bf16.mxu0 0
        %4955 = vmatpush1.bf16.xpose.msra.mxu0 0
        %4956 = vmatprep.subr.bf16.mxu0 0
        %4957 = vmatpush1.bf16.xpose.msra.mxu0 0
        %4958 = vmatprep.subr.bf16.mxu0 0
        %4959 = vmatpush1.bf16.xpose.msra.mxu0 0
        %4960 = vmatprep.mubr.bf16.mxu0 0
        %4961 = vmatmul.mubr.bf16.gmra.mrb[0].mxu0 %v4923
        %v4962 = vpop.f32.mrb[0].mxu0
        %v4963 = vadd.f32 0.0, %v4962
        %v4964 = vpop.f32.mrb[0].mxu0
        %v4965 = vpop.f32.mrb[0].mxu0
        %v4966 = vpop.f32.mrb[0].mxu0
        %4967 = vdwg.mxu0
        %v4969 = vsel %vm2528, %v4825, 0
        %v4972 = vsel %vm2528, %v4829, 0
        %4974 = vmatprep.subr.bf16.mxu0 0
        %4975 = vmatpush1.bf16.xpose.msra.mxu0 %v4972
        %4976 = vmatprep.subr.bf16.mxu0 0
        %4977 = vmatpush1.bf16.xpose.msra.mxu0 0
        %4978 = vmatprep.subr.bf16.mxu0 0
        %4979 = vmatpush1.bf16.xpose.msra.mxu0 0
        %4980 = vmatprep.subr.bf16.mxu0 0
        %4981 = vmatpush1.bf16.xpose.msra.mxu0 0
        %4982 = vmatprep.subr.bf16.mxu0 0
        %4983 = vmatpush1.bf16.xpose.msra.mxu0 0
        %4984 = vmatprep.subr.bf16.mxu0 0
        %4985 = vmatpush1.bf16.xpose.msra.mxu0 0
        %4986 = vmatprep.subr.bf16.mxu0 0
        %4987 = vmatpush1.bf16.xpose.msra.mxu0 0
        %4988 = vmatprep.subr.bf16.mxu0 0
        %4989 = vmatpush1.bf16.xpose.msra.mxu0 0
        %4990 = vmatprep.subr.bf16.mxu0 0
        %4991 = vmatpush1.bf16.xpose.msra.mxu0 0
        %4992 = vmatprep.subr.bf16.mxu0 0
        %4993 = vmatpush1.bf16.xpose.msra.mxu0 0
        %4994 = vmatprep.subr.bf16.mxu0 0
        %4995 = vmatpush1.bf16.xpose.msra.mxu0 0
        %4996 = vmatprep.subr.bf16.mxu0 0
        %4997 = vmatpush1.bf16.xpose.msra.mxu0 0
        %4998 = vmatprep.subr.bf16.mxu0 0
        %4999 = vmatpush1.bf16.xpose.msra.mxu0 0
        %5000 = vmatprep.subr.bf16.mxu0 0
        %5001 = vmatpush1.bf16.xpose.msra.mxu0 0
        %5002 = vmatprep.subr.bf16.mxu0 0
        %5003 = vmatpush1.bf16.xpose.msra.mxu0 0
        %5004 = vmatprep.subr.bf16.mxu0 0
        %5005 = vmatpush1.bf16.xpose.msra.mxu0 0
        %5006 = vmatprep.mubr.bf16.mxu0 0
        %5007 = vmatmul.mubr.bf16.gmra.mrb[0].mxu0 %v4969
        %v5008 = vpop.f32.mrb[0].mxu0
        %v5009 = vadd.f32 0.0, %v5008
        %v5010 = vpop.f32.mrb[0].mxu0
        %v5011 = vpop.f32.mrb[0].mxu0
        %v5012 = vpop.f32.mrb[0].mxu0
        %5013 = vdwg.mxu0
        %v5014 = vmul.f32 %v4871, 0.35355338
        %v5015 = vmul.f32 %v4917, 0.35355338
        %v5016 = vmul.f32 %v4963, 0.35355338
        %v5017 = vmul.f32 %v5009, 0.35355338
        %v5018 = vsel %vm2528, %v5014, -inf
        %5019 = vmax.xlane.f32.xlu0 %v5018
        %v5020 = vpop.xlane.xlu0 %5019
        %v5021 = vsel %vm2528, %v5015, -inf
        %5022 = vmax.xlane.f32.xlu0 %v5021
        %v5023 = vpop.xlane.xlu0 %5022
        %v5024 = vsel %vm2528, %v5016, -inf
        %5025 = vmax.xlane.f32.xlu0 %v5024
        %v5026 = vpop.xlane.xlu0 %5025
        %v5027 = vsel %vm2528, %v5017, -inf
        %5028 = vmax.xlane.f32.xlu0 %v5027
        %v5029 = vpop.xlane.xlu0 %5028
        %v5030 = vsub.f32 %v5014, %v5020
        %v5031 = vsub.f32 %v5015, %v5023
        %v5032 = vsub.f32 %v5016, %v5026
        %v5033 = vsub.f32 %v5017, %v5029
        %v5034 = vmul.f32 %v5030, 1.442695
        %v5035 = vpow.pop %v5034
        %v5036 = vmul.f32 %v5031, 1.442695
        %v5037 = vpow.pop %v5036
        %v5038 = vmul.f32 %v5032, 1.442695
        %v5039 = vpow.pop %v5038
        %v5040 = vmul.f32 %v5033, 1.442695
        %v5041 = vpow.pop %v5040
        %v5042 = vsel %vm2528, %v5035, 0.0
        %5043 = vadd.xlane.f32.xlu0 %v5042
        %v5044 = vpop.xlane.xlu0 %5043
        %v5045 = vsel %vm2528, %v5037, 0.0
        %5046 = vadd.xlane.f32.xlu0 %v5045
        %v5047 = vpop.xlane.xlu0 %5046
        %v5048 = vsel %vm2528, %v5039, 0.0
        %5049 = vadd.xlane.f32.xlu0 %v5048
        %v5050 = vpop.xlane.xlu0 %5049
        %v5051 = vsel %vm2528, %v5041, 0.0
        %5052 = vadd.xlane.f32.xlu0 %v5051
        %v5053 = vpop.xlane.xlu0 %5052
        %v5054 = vrcp.pop %v5044
        %v5055 = vrcp.pop %v5047
        %v5056 = vrcp.pop %v5050
        %v5057 = vrcp.pop %v5053
        %v5058 = vmul.f32 %v5035, %v5054
        %v5059 = vmul.f32 %v5037, %v5055
        %v5060 = vmul.f32 %v5039, %v5056
        %v5061 = vmul.f32 %v5041, %v5057
        %v5062 = vpack.c.bf16 %v5058, %v5058
        %v5063 = vpack.c.bf16 %v5059, %v5059
        %v5064 = vpack.c.bf16 %v5060, %v5060
        %v5065 = vpack.c.bf16 %v5061, %v5061
        %5067 = vrot.lane.b32.xlu0 %v4826, 96
        %v5068 = vpop.permute.xlu0 %5067
        %v5070 = vsel %vm2528, %v5062, 0
        %v5073 = vsel %vm2779, %v5068, 0
        %5075 = vmatprep.subr.bf16.mxu0 0
        %5076 = vmatpush1.bf16.msra.mxu0 %v5073
        %5077 = vmatprep.subr.bf16.mxu0 0
        %5078 = vmatpush1.bf16.msra.mxu0 0
        %5079 = vmatprep.subr.bf16.mxu0 0
        %5080 = vmatpush1.bf16.msra.mxu0 0
        %5081 = vmatprep.subr.bf16.mxu0 0
        %5082 = vmatpush1.bf16.msra.mxu0 0
        %5083 = vmatprep.subr.bf16.mxu0 0
        %5084 = vmatpush1.bf16.msra.mxu0 0
        %5085 = vmatprep.subr.bf16.mxu0 0
        %5086 = vmatpush1.bf16.msra.mxu0 0
        %5087 = vmatprep.subr.bf16.mxu0 0
        %5088 = vmatpush1.bf16.msra.mxu0 0
        %5089 = vmatprep.subr.bf16.mxu0 0
        %5090 = vmatpush1.bf16.msra.mxu0 0
        %5091 = vmatprep.subr.bf16.mxu0 0
        %5092 = vmatpush1.bf16.msra.mxu0 0
        %5093 = vmatprep.subr.bf16.mxu0 0
        %5094 = vmatpush1.bf16.msra.mxu0 0
        %5095 = vmatprep.subr.bf16.mxu0 0
        %5096 = vmatpush1.bf16.msra.mxu0 0
        %5097 = vmatprep.subr.bf16.mxu0 0
        %5098 = vmatpush1.bf16.msra.mxu0 0
        %5099 = vmatprep.subr.bf16.mxu0 0
        %5100 = vmatpush1.bf16.msra.mxu0 0
        %5101 = vmatprep.subr.bf16.mxu0 0
        %5102 = vmatpush1.bf16.msra.mxu0 0
        %5103 = vmatprep.subr.bf16.mxu0 0
        %5104 = vmatpush1.bf16.msra.mxu0 0
        %5105 = vmatprep.subr.bf16.mxu0 0
        %5106 = vmatpush1.bf16.msra.mxu0 0
        %5107 = vmatprep.mubr.bf16.mxu0 0
        %5108 = vmatmul.mubr.bf16.gmra.mrb[0].mxu0 %v5070
        %v5109 = vpop.f32.mrb[0].mxu0
        %v5110 = vadd.f32 0.0, %v5109
        %v5111 = vpop.f32.mrb[0].mxu0
        %v5112 = vpop.f32.mrb[0].mxu0
        %v5113 = vpop.f32.mrb[0].mxu0
        %5114 = vdwg.mxu0
        %5116 = vrot.lane.b32.xlu0 %v4827, 96
        %v5117 = vpop.permute.xlu0 %5116
        %v5119 = vsel %vm2528, %v5063, 0
        %v5122 = vsel %vm2779, %v5117, 0
        %5124 = vmatprep.subr.bf16.mxu0 0
        %5125 = vmatpush1.bf16.msra.mxu0 %v5122
        %5126 = vmatprep.subr.bf16.mxu0 0
        %5127 = vmatpush1.bf16.msra.mxu0 0
        %5128 = vmatprep.subr.bf16.mxu0 0
        %5129 = vmatpush1.bf16.msra.mxu0 0
        %5130 = vmatprep.subr.bf16.mxu0 0
        %5131 = vmatpush1.bf16.msra.mxu0 0
        %5132 = vmatprep.subr.bf16.mxu0 0
        %5133 = vmatpush1.bf16.msra.mxu0 0
        %5134 = vmatprep.subr.bf16.mxu0 0
        %5135 = vmatpush1.bf16.msra.mxu0 0
        %5136 = vmatprep.subr.bf16.mxu0 0
        %5137 = vmatpush1.bf16.msra.mxu0 0
        %5138 = vmatprep.subr.bf16.mxu0 0
        %5139 = vmatpush1.bf16.msra.mxu0 0
        %5140 = vmatprep.subr.bf16.mxu0 0
        %5141 = vmatpush1.bf16.msra.mxu0 0
        %5142 = vmatprep.subr.bf16.mxu0 0
        %5143 = vmatpush1.bf16.msra.mxu0 0
        %5144 = vmatprep.subr.bf16.mxu0 0
        %5145 = vmatpush1.bf16.msra.mxu0 0
        %5146 = vmatprep.subr.bf16.mxu0 0
        %5147 = vmatpush1.bf16.msra.mxu0 0
        %5148 = vmatprep.subr.bf16.mxu0 0
        %5149 = vmatpush1.bf16.msra.mxu0 0
        %5150 = vmatprep.subr.bf16.mxu0 0
        %5151 = vmatpush1.bf16.msra.mxu0 0
        %5152 = vmatprep.subr.bf16.mxu0 0
        %5153 = vmatpush1.bf16.msra.mxu0 0
        %5154 = vmatprep.subr.bf16.mxu0 0
        %5155 = vmatpush1.bf16.msra.mxu0 0
        %5156 = vmatprep.mubr.bf16.mxu0 0
        %5157 = vmatmul.mubr.bf16.gmra.mrb[0].mxu0 %v5119
        %v5158 = vpop.f32.mrb[0].mxu0
        %v5159 = vadd.f32 0.0, %v5158
        %v5160 = vpop.f32.mrb[0].mxu0
        %v5161 = vpop.f32.mrb[0].mxu0
        %v5162 = vpop.f32.mrb[0].mxu0
        %5163 = vdwg.mxu0
        %5165 = vrot.lane.b32.xlu0 %v4828, 96
        %v5166 = vpop.permute.xlu0 %5165
        %v5168 = vsel %vm2528, %v5064, 0
        %v5171 = vsel %vm2779, %v5166, 0
        %5173 = vmatprep.subr.bf16.mxu0 0
        %5174 = vmatpush1.bf16.msra.mxu0 %v5171
        %5175 = vmatprep.subr.bf16.mxu0 0
        %5176 = vmatpush1.bf16.msra.mxu0 0
        %5177 = vmatprep.subr.bf16.mxu0 0
        %5178 = vmatpush1.bf16.msra.mxu0 0
        %5179 = vmatprep.subr.bf16.mxu0 0
        %5180 = vmatpush1.bf16.msra.mxu0 0
        %5181 = vmatprep.subr.bf16.mxu0 0
        %5182 = vmatpush1.bf16.msra.mxu0 0
        %5183 = vmatprep.subr.bf16.mxu0 0
        %5184 = vmatpush1.bf16.msra.mxu0 0
        %5185 = vmatprep.subr.bf16.mxu0 0
        %5186 = vmatpush1.bf16.msra.mxu0 0
        %5187 = vmatprep.subr.bf16.mxu0 0
        %5188 = vmatpush1.bf16.msra.mxu0 0
        %5189 = vmatprep.subr.bf16.mxu0 0
        %5190 = vmatpush1.bf16.msra.mxu0 0
        %5191 = vmatprep.subr.bf16.mxu0 0
        %5192 = vmatpush1.bf16.msra.mxu0 0
        %5193 = vmatprep.subr.bf16.mxu0 0
        %5194 = vmatpush1.bf16.msra.mxu0 0
        %5195 = vmatprep.subr.bf16.mxu0 0
        %5196 = vmatpush1.bf16.msra.mxu0 0
        %5197 = vmatprep.subr.bf16.mxu0 0
        %5198 = vmatpush1.bf16.msra.mxu0 0
        %5199 = vmatprep.subr.bf16.mxu0 0
        %5200 = vmatpush1.bf16.msra.mxu0 0
        %5201 = vmatprep.subr.bf16.mxu0 0
        %5202 = vmatpush1.bf16.msra.mxu0 0
        %5203 = vmatprep.subr.bf16.mxu0 0
        %5204 = vmatpush1.bf16.msra.mxu0 0
        %5205 = vmatprep.mubr.bf16.mxu0 0
        %5206 = vmatmul.mubr.bf16.gmra.mrb[0].mxu0 %v5168
        %v5207 = vpop.f32.mrb[0].mxu0
        %v5208 = vadd.f32 0.0, %v5207
        %v5209 = vpop.f32.mrb[0].mxu0
        %v5210 = vpop.f32.mrb[0].mxu0
        %v5211 = vpop.f32.mrb[0].mxu0
        %5212 = vdwg.mxu0
        %5214 = vrot.lane.b32.xlu0 %v4829, 96
        %v5215 = vpop.permute.xlu0 %5214
        %v5217 = vsel %vm2528, %v5065, 0
        %v5220 = vsel %vm2779, %v5215, 0
        %5222 = vmatprep.subr.bf16.mxu0 0
        %5223 = vmatpush1.bf16.msra.mxu0 %v5220
        %5224 = vmatprep.subr.bf16.mxu0 0
        %5225 = vmatpush1.bf16.msra.mxu0 0
        %5226 = vmatprep.subr.bf16.mxu0 0
        %5227 = vmatpush1.bf16.msra.mxu0 0
        %5228 = vmatprep.subr.bf16.mxu0 0
        %5229 = vmatpush1.bf16.msra.mxu0 0
        %5230 = vmatprep.subr.bf16.mxu0 0
        %5231 = vmatpush1.bf16.msra.mxu0 0
        %5232 = vmatprep.subr.bf16.mxu0 0
        %5233 = vmatpush1.bf16.msra.mxu0 0
        %5234 = vmatprep.subr.bf16.mxu0 0
        %5235 = vmatpush1.bf16.msra.mxu0 0
        %5236 = vmatprep.subr.bf16.mxu0 0
        %5237 = vmatpush1.bf16.msra.mxu0 0
        %5238 = vmatprep.subr.bf16.mxu0 0
        %5239 = vmatpush1.bf16.msra.mxu0 0
        %5240 = vmatprep.subr.bf16.mxu0 0
        %5241 = vmatpush1.bf16.msra.mxu0 0
        %5242 = vmatprep.subr.bf16.mxu0 0
        %5243 = vmatpush1.bf16.msra.mxu0 0
        %5244 = vmatprep.subr.bf16.mxu0 0
        %5245 = vmatpush1.bf16.msra.mxu0 0
        %5246 = vmatprep.subr.bf16.mxu0 0
        %5247 = vmatpush1.bf16.msra.mxu0 0
        %5248 = vmatprep.subr.bf16.mxu0 0
        %5249 = vmatpush1.bf16.msra.mxu0 0
        %5250 = vmatprep.subr.bf16.mxu0 0
        %5251 = vmatpush1.bf16.msra.mxu0 0
        %5252 = vmatprep.subr.bf16.mxu0 0
        %5253 = vmatpush1.bf16.msra.mxu0 0
        %5254 = vmatprep.mubr.bf16.mxu0 0
        %5255 = vmatmul.mubr.bf16.gmra.mrb[0].mxu0 %v5217
        %v5256 = vpop.f32.mrb[0].mxu0
        %v5257 = vadd.f32 0.0, %v5256
        %v5258 = vpop.f32.mrb[0].mxu0
        %v5259 = vpop.f32.mrb[0].mxu0
        %v5260 = vpop.f32.mrb[0].mxu0
        %5261 = vdwg.mxu0
        %5263 = vrot.lane.b32.xlu0 %v5159, 8
        %v5264 = vpop.permute.xlu0 %5263
        %5267 = vrot.lane.b32.xlu0 %v5208, 16
        %v5268 = vpop.permute.xlu0 %5267
        %5271 = vrot.lane.b32.xlu0 %v5257, 24
        %v5272 = vpop.permute.xlu0 %5271
        %v5274 = vsel %vm2528, %v5110, %v5264
        %v5275 = vsel %vm2404, %v5274, %v5268
        %v5276 = vsel %vm2981, %v5275, %v5272
        %v5277 = vpack.c.bf16 %v5276, %v5276
        %v5279 = vlaneseq
        %v5280 = vshrl.u32 %v5279, 7
        %v5281 = vsub.s32 0, %v5280
        %v5282 = vrot.slane %v2233, %v5281
        %v5288 = vunpack.c.l.b16 %v2239
        %v5289 = vunpack.c.l.b16 %v2240
        %v5290 = vunpack.c.l.b16 %v2241
        %v5291 = vunpack.c.l.b16 %v2242
        %v5292 = vpack.c.b16 %v5289, %v5288
        %v5293 = vpack.c.b16 %v5291, %v5290
        %v5297 = vsel %vm2467, %v5277, 0
        %5299 = vmatprep.subr.bf16.mxu0 0
        %5300 = vmatpush1.bf16.msra.mxu0 %v5292
        %5301 = vmatprep.subr.bf16.mxu0 0
        %5302 = vmatpush1.bf16.msra.mxu0 %v5293
        %5303 = vmatprep.subr.bf16.mxu0 0
        %5304 = vmatpush1.bf16.msra.mxu0 0
        %5305 = vmatprep.subr.bf16.mxu0 0
        %5306 = vmatpush1.bf16.msra.mxu0 0
        %5307 = vmatprep.subr.bf16.mxu0 0
        %5308 = vmatpush1.bf16.msra.mxu0 0
        %5309 = vmatprep.subr.bf16.mxu0 0
        %5310 = vmatpush1.bf16.msra.mxu0 0
        %5311 = vmatprep.subr.bf16.mxu0 0
        %5312 = vmatpush1.bf16.msra.mxu0 0
        %5313 = vmatprep.subr.bf16.mxu0 0
        %5314 = vmatpush1.bf16.msra.mxu0 0
        %5315 = vmatprep.subr.bf16.mxu0 0
        %5316 = vmatpush1.bf16.msra.mxu0 0
        %5317 = vmatprep.subr.bf16.mxu0 0
        %5318 = vmatpush1.bf16.msra.mxu0 0
        %5319 = vmatprep.subr.bf16.mxu0 0
        %5320 = vmatpush1.bf16.msra.mxu0 0
        %5321 = vmatprep.subr.bf16.mxu0 0
        %5322 = vmatpush1.bf16.msra.mxu0 0
        %5323 = vmatprep.subr.bf16.mxu0 0
        %5324 = vmatpush1.bf16.msra.mxu0 0
        %5325 = vmatprep.subr.bf16.mxu0 0
        %5326 = vmatpush1.bf16.msra.mxu0 0
        %5327 = vmatprep.subr.bf16.mxu0 0
        %5328 = vmatpush1.bf16.msra.mxu0 0
        %5329 = vmatprep.subr.bf16.mxu0 0
        %5330 = vmatpush1.bf16.msra.mxu0 0
        %5331 = vmatprep.mubr.bf16.mxu0 0
        %5332 = vmatmul.mubr.bf16.gmra.mrb[0].mxu0 %v5297
        %v5333 = vpop.f32.mrb[0].mxu0
        %v5334 = vadd.f32 %v5282, %v5333
        %v5335 = vpop.f32.mrb[0].mxu0
        %v5336 = vpop.f32.mrb[0].mxu0
        %v5337 = vpop.f32.mrb[0].mxu0
        %5338 = vdwg.mxu0
        %v5339 = vadd.f32 %v4677, %v5334
        %v5340 = vsel %vm2467, %v5339, 0.0
        %5341 = vadd.xlane.f32.xlu0 %v5340
        %v5342 = vpop.xlane.xlu0 %5341
        %v5343 = vmul.f32 %v5342, %v3049
        %v5344 = vsub.f32 %v5339, %v5343
        %v5345 = vmul.f32 %v5344, %v5344
        %v5346 = vsel %vm2467, %v5345, 0.0
        %5347 = vadd.xlane.f32.xlu0 %v5346
        %v5348 = vpop.xlane.xlu0 %5347
        %v5349 = vmul.f32 %v5348, %v3049
        %v5350 = vadd.f32 %v5349, 1e-05
        %v5351 = vrsqrt.pop %v5350
        %v5352 = vmul.f32 %v5344, %v5351
        %v5354 = vlaneseq
        %v5355 = vshrl.u32 %v5354, 7
        %v5356 = vsub.s32 0, %v5355
        %v5357 = vrot.slane %v2250, %v5356
        %v5359 = vmul.f32 %v5352, %v5357
        %v5361 = vlaneseq
        %v5362 = vshrl.u32 %v5361, 7
        %v5363 = vsub.s32 0, %v5362
        %v5364 = vrot.slane %v2249, %v5363
        %v5366 = vadd.f32 %v5359, %v5364
        %v5367 = vpack.c.bf16 %v5366, %v5366
        %v5369 = vlaneseq
        %v5370 = vshrl.u32 %v5369, 7
        %v5371 = vsub.s32 0, %v5370
        %v5372 = vrot.slane %v2230, %v5371
        %v5378 = vunpack.c.l.b16 %v2263
        %v5379 = vunpack.c.l.b16 %v2264
        %v5380 = vunpack.c.l.b16 %v2265
        %v5381 = vunpack.c.l.b16 %v2266
        %v5382 = vpack.c.b16 %v5379, %v5378
        %v5383 = vpack.c.b16 %v5381, %v5380
        %v5387 = vsel %vm2467, %v5367, 0
        %5389 = vmatprep.subr.bf16.mxu0 0
        %5390 = vmatpush1.bf16.msra.mxu0 %v5382
        %5391 = vmatprep.subr.bf16.mxu0 0
        %5392 = vmatpush1.bf16.msra.mxu0 %v5383
        %5393 = vmatprep.subr.bf16.mxu0 0
        %5394 = vmatpush1.bf16.msra.mxu0 0
        %5395 = vmatprep.subr.bf16.mxu0 0
        %5396 = vmatpush1.bf16.msra.mxu0 0
        %5397 = vmatprep.subr.bf16.mxu0 0
        %5398 = vmatpush1.bf16.msra.mxu0 0
        %5399 = vmatprep.subr.bf16.mxu0 0
        %5400 = vmatpush1.bf16.msra.mxu0 0
        %5401 = vmatprep.subr.bf16.mxu0 0
        %5402 = vmatpush1.bf16.msra.mxu0 0
        %5403 = vmatprep.subr.bf16.mxu0 0
        %5404 = vmatpush1.bf16.msra.mxu0 0
        %5405 = vmatprep.subr.bf16.mxu0 0
        %5406 = vmatpush1.bf16.msra.mxu0 0
        %5407 = vmatprep.subr.bf16.mxu0 0
        %5408 = vmatpush1.bf16.msra.mxu0 0
        %5409 = vmatprep.subr.bf16.mxu0 0
        %5410 = vmatpush1.bf16.msra.mxu0 0
        %5411 = vmatprep.subr.bf16.mxu0 0
        %5412 = vmatpush1.bf16.msra.mxu0 0
        %5413 = vmatprep.subr.bf16.mxu0 0
        %5414 = vmatpush1.bf16.msra.mxu0 0
        %5415 = vmatprep.subr.bf16.mxu0 0
        %5416 = vmatpush1.bf16.msra.mxu0 0
        %5417 = vmatprep.subr.bf16.mxu0 0
        %5418 = vmatpush1.bf16.msra.mxu0 0
        %5419 = vmatprep.subr.bf16.mxu0 0
        %5420 = vmatpush1.bf16.msra.mxu0 0
        %5421 = vmatprep.mubr.bf16.mxu0 0
        %5422 = vmatmul.mubr.bf16.gmra.mrb[0].mxu0 %v5387
        %v5423 = vpop.f32.mrb[0].mxu0
        %v5424 = vadd.f32 %v5372, %v5423
        %v5425 = vpop.f32.mrb[0].mxu0
        %v5426 = vpop.f32.mrb[0].mxu0
        %v5427 = vpop.f32.mrb[0].mxu0
        %5428 = vdwg.mxu0
        %v5429 = vmax.f32 %v5424, 0.0
        %v5430 = vpack.c.bf16 %v5429, %v5429
        %v5432 = vlaneseq
        %v5433 = vshrl.u32 %v5432, 7
        %v5434 = vsub.s32 0, %v5433
        %v5435 = vrot.slane %v2231, %v5434
        %v5445 = vunpack.c.l.b16 %v2267
        %v5446 = vunpack.c.l.b16 %v2268
        %v5447 = vunpack.c.l.b16 %v2269
        %v5448 = vunpack.c.l.b16 %v2270
        %v5449 = vunpack.c.l.b16 %v2271
        %v5450 = vunpack.c.l.b16 %v2272
        %v5451 = vunpack.c.l.b16 %v2273
        %v5452 = vunpack.c.l.b16 %v2274
        %v5453 = vpack.c.b16 %v5446, %v5445
        %v5454 = vpack.c.b16 %v5448, %v5447
        %v5455 = vpack.c.b16 %v5450, %v5449
        %v5456 = vpack.c.b16 %v5452, %v5451
        %v5462 = vsel %vm3168, %v5430, 0
        %5464 = vmatprep.subr.bf16.mxu0 0
        %5465 = vmatpush1.bf16.msra.mxu0 %v5453
        %5466 = vmatprep.subr.bf16.mxu0 0
        %5467 = vmatpush1.bf16.msra.mxu0 %v5454
        %5468 = vmatprep.subr.bf16.mxu0 0
        %5469 = vmatpush1.bf16.msra.mxu0 %v5455
        %5470 = vmatprep.subr.bf16.mxu0 0
        %5471 = vmatpush1.bf16.msra.mxu0 %v5456
        %5472 = vmatprep.subr.bf16.mxu0 0
        %5473 = vmatpush1.bf16.msra.mxu0 0
        %5474 = vmatprep.subr.bf16.mxu0 0
        %5475 = vmatpush1.bf16.msra.mxu0 0
        %5476 = vmatprep.subr.bf16.mxu0 0
        %5477 = vmatpush1.bf16.msra.mxu0 0
        %5478 = vmatprep.subr.bf16.mxu0 0
        %5479 = vmatpush1.bf16.msra.mxu0 0
        %5480 = vmatprep.subr.bf16.mxu0 0
        %5481 = vmatpush1.bf16.msra.mxu0 0
        %5482 = vmatprep.subr.bf16.mxu0 0
        %5483 = vmatpush1.bf16.msra.mxu0 0
        %5484 = vmatprep.subr.bf16.mxu0 0
        %5485 = vmatpush1.bf16.msra.mxu0 0
        %5486 = vmatprep.subr.bf16.mxu0 0
        %5487 = vmatpush1.bf16.msra.mxu0 0
        %5488 = vmatprep.subr.bf16.mxu0 0
        %5489 = vmatpush1.bf16.msra.mxu0 0
        %5490 = vmatprep.subr.bf16.mxu0 0
        %5491 = vmatpush1.bf16.msra.mxu0 0
        %5492 = vmatprep.subr.bf16.mxu0 0
        %5493 = vmatpush1.bf16.msra.mxu0 0
        %5494 = vmatprep.subr.bf16.mxu0 0
        %5495 = vmatpush1.bf16.msra.mxu0 0
        %5496 = vmatprep.mubr.bf16.mxu0 0
        %5497 = vmatmul.mubr.bf16.gmra.mrb[0].mxu0 %v5462
        %v5498 = vpop.f32.mrb[0].mxu0
        %v5499 = vadd.f32 %v5435, %v5498
        %v5500 = vpop.f32.mrb[0].mxu0
        %v5501 = vpop.f32.mrb[0].mxu0
        %v5502 = vpop.f32.mrb[0].mxu0
        %5503 = vdwg.mxu0
        %v5504 = vadd.f32 %v5366, %v5499
        %v5505 = vsel %vm2467, %v5504, 0.0
        %5506 = vadd.xlane.f32.xlu0 %v5505
        %v5507 = vpop.xlane.xlu0 %5506
        %v5508 = vmul.f32 %v5507, %v3049
        %v5509 = vsub.f32 %v5504, %v5508
        %v5510 = vmul.f32 %v5509, %v5509
        %v5511 = vsel %vm2467, %v5510, 0.0
        %5512 = vadd.xlane.f32.xlu0 %v5511
        %v5513 = vpop.xlane.xlu0 %5512
        %v5514 = vmul.f32 %v5513, %v3049
        %v5515 = vadd.f32 %v5514, 1e-05
        %v5516 = vrsqrt.pop %v5515
        %v5517 = vmul.f32 %v5509, %v5516
        %v5519 = vlaneseq
        %v5520 = vshrl.u32 %v5519, 7
        %v5521 = vsub.s32 0, %v5520
        %v5522 = vrot.slane %v2252, %v5521
        %v5524 = vmul.f32 %v5517, %v5522
        %v5526 = vlaneseq
        %v5527 = vshrl.u32 %v5526, 7
        %v5528 = vsub.s32 0, %v5527
        %v5529 = vrot.slane %v2251, %v5528
        %v5531 = vadd.f32 %v5524, %v5529
        %v5532 = vpack.c.bf16 %v5531, %v5531
        %v5534 = vlaneseq
        %v5535 = vshrl.u32 %v5534, 7
        %v5536 = vsub.s32 0, %v5535
        %v5537 = vrot.slane %v2299, %v5536
        %v5543 = vunpack.c.l.b16 %v2304
        %v5544 = vunpack.c.l.b16 %v2305
        %v5545 = vunpack.c.l.b16 %v2306
        %v5546 = vunpack.c.l.b16 %v2307
        %v5547 = vpack.c.b16 %v5544, %v5543
        %v5548 = vpack.c.b16 %v5546, %v5545
        %v5552 = vsel %vm2467, %v5532, 0
        %5554 = vmatprep.subr.bf16.mxu0 0
        %5555 = vmatpush1.bf16.msra.mxu0 %v5547
        %5556 = vmatprep.subr.bf16.mxu0 0
        %5557 = vmatpush1.bf16.msra.mxu0 %v5548
        %5558 = vmatprep.subr.bf16.mxu0 0
        %5559 = vmatpush1.bf16.msra.mxu0 0
        %5560 = vmatprep.subr.bf16.mxu0 0
        %5561 = vmatpush1.bf16.msra.mxu0 0
        %5562 = vmatprep.subr.bf16.mxu0 0
        %5563 = vmatpush1.bf16.msra.mxu0 0
        %5564 = vmatprep.subr.bf16.mxu0 0
        %5565 = vmatpush1.bf16.msra.mxu0 0
        %5566 = vmatprep.subr.bf16.mxu0 0
        %5567 = vmatpush1.bf16.msra.mxu0 0
        %5568 = vmatprep.subr.bf16.mxu0 0
        %5569 = vmatpush1.bf16.msra.mxu0 0
        %5570 = vmatprep.subr.bf16.mxu0 0
        %5571 = vmatpush1.bf16.msra.mxu0 0
        %5572 = vmatprep.subr.bf16.mxu0 0
        %5573 = vmatpush1.bf16.msra.mxu0 0
        %5574 = vmatprep.subr.bf16.mxu0 0
        %5575 = vmatpush1.bf16.msra.mxu0 0
        %5576 = vmatprep.subr.bf16.mxu0 0
        %5577 = vmatpush1.bf16.msra.mxu0 0
        %5578 = vmatprep.subr.bf16.mxu0 0
        %5579 = vmatpush1.bf16.msra.mxu0 0
        %5580 = vmatprep.subr.bf16.mxu0 0
        %5581 = vmatpush1.bf16.msra.mxu0 0
        %5582 = vmatprep.subr.bf16.mxu0 0
        %5583 = vmatpush1.bf16.msra.mxu0 0
        %5584 = vmatprep.subr.bf16.mxu0 0
        %5585 = vmatpush1.bf16.msra.mxu0 0
        %5586 = vmatprep.mubr.bf16.mxu0 0
        %5587 = vmatmul.mubr.bf16.gmra.mrb[0].mxu0 %v5552
        %v5588 = vpop.f32.mrb[0].mxu0
        %v5589 = vadd.f32 %v5537, %v5588
        %v5590 = vpop.f32.mrb[0].mxu0
        %v5591 = vpop.f32.mrb[0].mxu0
        %v5592 = vpop.f32.mrb[0].mxu0
        %5593 = vdwg.mxu0
        %5595 = vrot.lane.b32.xlu0 %v5589, 120
        %v5596 = vpop.permute.xlu0 %5595
        %5598 = vrot.lane.b32.xlu0 %v5589, 112
        %v5599 = vpop.permute.xlu0 %5598
        %5601 = vrot.lane.b32.xlu0 %v5589, 104
        %v5602 = vpop.permute.xlu0 %5601
        %v5604 = vpack.c.bf16 %v5589, %v5589
        %v5605 = vpack.c.bf16 %v5596, %v5596
        %v5606 = vpack.c.bf16 %v5599, %v5599
        %v5607 = vpack.c.bf16 %v5602, %v5602
        %5609 = vrot.lane.b32.xlu0 %v5604, 96
        %v5610 = vpop.permute.xlu0 %5609
        %v5612 = vsel %vm2528, %v5604, 0
        %v5615 = vsel %vm2528, %v5610, 0
        %5617 = vmatprep.subr.bf16.mxu0 0
        %5618 = vmatpush1.bf16.xpose.msra.mxu0 %v5615
        %5619 = vmatprep.subr.bf16.mxu0 0
        %5620 = vmatpush1.bf16.xpose.msra.mxu0 0
        %5621 = vmatprep.subr.bf16.mxu0 0
        %5622 = vmatpush1.bf16.xpose.msra.mxu0 0
        %5623 = vmatprep.subr.bf16.mxu0 0
        %5624 = vmatpush1.bf16.xpose.msra.mxu0 0
        %5625 = vmatprep.subr.bf16.mxu0 0
        %5626 = vmatpush1.bf16.xpose.msra.mxu0 0
        %5627 = vmatprep.subr.bf16.mxu0 0
        %5628 = vmatpush1.bf16.xpose.msra.mxu0 0
        %5629 = vmatprep.subr.bf16.mxu0 0
        %5630 = vmatpush1.bf16.xpose.msra.mxu0 0
        %5631 = vmatprep.subr.bf16.mxu0 0
        %5632 = vmatpush1.bf16.xpose.msra.mxu0 0
        %5633 = vmatprep.subr.bf16.mxu0 0
        %5634 = vmatpush1.bf16.xpose.msra.mxu0 0
        %5635 = vmatprep.subr.bf16.mxu0 0
        %5636 = vmatpush1.bf16.xpose.msra.mxu0 0
        %5637 = vmatprep.subr.bf16.mxu0 0
        %5638 = vmatpush1.bf16.xpose.msra.mxu0 0
        %5639 = vmatprep.subr.bf16.mxu0 0
        %5640 = vmatpush1.bf16.xpose.msra.mxu0 0
        %5641 = vmatprep.subr.bf16.mxu0 0
        %5642 = vmatpush1.bf16.xpose.msra.mxu0 0
        %5643 = vmatprep.subr.bf16.mxu0 0
        %5644 = vmatpush1.bf16.xpose.msra.mxu0 0
        %5645 = vmatprep.subr.bf16.mxu0 0
        %5646 = vmatpush1.bf16.xpose.msra.mxu0 0
        %5647 = vmatprep.subr.bf16.mxu0 0
        %5648 = vmatpush1.bf16.xpose.msra.mxu0 0
        %5649 = vmatprep.mubr.bf16.mxu0 0
        %5650 = vmatmul.mubr.bf16.gmra.mrb[0].mxu0 %v5612
        %v5651 = vpop.f32.mrb[0].mxu0
        %v5652 = vadd.f32 0.0, %v5651
        %v5653 = vpop.f32.mrb[0].mxu0
        %v5654 = vpop.f32.mrb[0].mxu0
        %v5655 = vpop.f32.mrb[0].mxu0
        %5656 = vdwg.mxu0
        %5658 = vrot.lane.b32.xlu0 %v5605, 96
        %v5659 = vpop.permute.xlu0 %5658
        %v5661 = vsel %vm2528, %v5605, 0
        %v5664 = vsel %vm2528, %v5659, 0
        %5666 = vmatprep.subr.bf16.mxu0 0
        %5667 = vmatpush1.bf16.xpose.msra.mxu0 %v5664
        %5668 = vmatprep.subr.bf16.mxu0 0
        %5669 = vmatpush1.bf16.xpose.msra.mxu0 0
        %5670 = vmatprep.subr.bf16.mxu0 0
        %5671 = vmatpush1.bf16.xpose.msra.mxu0 0
        %5672 = vmatprep.subr.bf16.mxu0 0
        %5673 = vmatpush1.bf16.xpose.msra.mxu0 0
        %5674 = vmatprep.subr.bf16.mxu0 0
        %5675 = vmatpush1.bf16.xpose.msra.mxu0 0
        %5676 = vmatprep.subr.bf16.mxu0 0
        %5677 = vmatpush1.bf16.xpose.msra.mxu0 0
        %5678 = vmatprep.subr.bf16.mxu0 0
        %5679 = vmatpush1.bf16.xpose.msra.mxu0 0
        %5680 = vmatprep.subr.bf16.mxu0 0
        %5681 = vmatpush1.bf16.xpose.msra.mxu0 0
        %5682 = vmatprep.subr.bf16.mxu0 0
        %5683 = vmatpush1.bf16.xpose.msra.mxu0 0
        %5684 = vmatprep.subr.bf16.mxu0 0
        %5685 = vmatpush1.bf16.xpose.msra.mxu0 0
        %5686 = vmatprep.subr.bf16.mxu0 0
        %5687 = vmatpush1.bf16.xpose.msra.mxu0 0
        %5688 = vmatprep.subr.bf16.mxu0 0
        %5689 = vmatpush1.bf16.xpose.msra.mxu0 0
        %5690 = vmatprep.subr.bf16.mxu0 0
        %5691 = vmatpush1.bf16.xpose.msra.mxu0 0
        %5692 = vmatprep.subr.bf16.mxu0 0
        %5693 = vmatpush1.bf16.xpose.msra.mxu0 0
        %5694 = vmatprep.subr.bf16.mxu0 0
        %5695 = vmatpush1.bf16.xpose.msra.mxu0 0
        %5696 = vmatprep.subr.bf16.mxu0 0
        %5697 = vmatpush1.bf16.xpose.msra.mxu0 0
        %5698 = vmatprep.mubr.bf16.mxu0 0
        %5699 = vmatmul.mubr.bf16.gmra.mrb[0].mxu0 %v5661
        %v5700 = vpop.f32.mrb[0].mxu0
        %v5701 = vadd.f32 0.0, %v5700
        %v5702 = vpop.f32.mrb[0].mxu0
        %v5703 = vpop.f32.mrb[0].mxu0
        %v5704 = vpop.f32.mrb[0].mxu0
        %5705 = vdwg.mxu0
        %5707 = vrot.lane.b32.xlu0 %v5606, 96
        %v5708 = vpop.permute.xlu0 %5707
        %v5710 = vsel %vm2528, %v5606, 0
        %v5713 = vsel %vm2528, %v5708, 0
        %5715 = vmatprep.subr.bf16.mxu0 0
        %5716 = vmatpush1.bf16.xpose.msra.mxu0 %v5713
        %5717 = vmatprep.subr.bf16.mxu0 0
        %5718 = vmatpush1.bf16.xpose.msra.mxu0 0
        %5719 = vmatprep.subr.bf16.mxu0 0
        %5720 = vmatpush1.bf16.xpose.msra.mxu0 0
        %5721 = vmatprep.subr.bf16.mxu0 0
        %5722 = vmatpush1.bf16.xpose.msra.mxu0 0
        %5723 = vmatprep.subr.bf16.mxu0 0
        %5724 = vmatpush1.bf16.xpose.msra.mxu0 0
        %5725 = vmatprep.subr.bf16.mxu0 0
        %5726 = vmatpush1.bf16.xpose.msra.mxu0 0
        %5727 = vmatprep.subr.bf16.mxu0 0
        %5728 = vmatpush1.bf16.xpose.msra.mxu0 0
        %5729 = vmatprep.subr.bf16.mxu0 0
        %5730 = vmatpush1.bf16.xpose.msra.mxu0 0
        %5731 = vmatprep.subr.bf16.mxu0 0
        %5732 = vmatpush1.bf16.xpose.msra.mxu0 0
        %5733 = vmatprep.subr.bf16.mxu0 0
        %5734 = vmatpush1.bf16.xpose.msra.mxu0 0
        %5735 = vmatprep.subr.bf16.mxu0 0
        %5736 = vmatpush1.bf16.xpose.msra.mxu0 0
        %5737 = vmatprep.subr.bf16.mxu0 0
        %5738 = vmatpush1.bf16.xpose.msra.mxu0 0
        %5739 = vmatprep.subr.bf16.mxu0 0
        %5740 = vmatpush1.bf16.xpose.msra.mxu0 0
        %5741 = vmatprep.subr.bf16.mxu0 0
        %5742 = vmatpush1.bf16.xpose.msra.mxu0 0
        %5743 = vmatprep.subr.bf16.mxu0 0
        %5744 = vmatpush1.bf16.xpose.msra.mxu0 0
        %5745 = vmatprep.subr.bf16.mxu0 0
        %5746 = vmatpush1.bf16.xpose.msra.mxu0 0
        %5747 = vmatprep.mubr.bf16.mxu0 0
        %5748 = vmatmul.mubr.bf16.gmra.mrb[0].mxu0 %v5710
        %v5749 = vpop.f32.mrb[0].mxu0
        %v5750 = vadd.f32 0.0, %v5749
        %v5751 = vpop.f32.mrb[0].mxu0
        %v5752 = vpop.f32.mrb[0].mxu0
        %v5753 = vpop.f32.mrb[0].mxu0
        %5754 = vdwg.mxu0
        %5756 = vrot.lane.b32.xlu0 %v5607, 96
        %v5757 = vpop.permute.xlu0 %5756
        %v5759 = vsel %vm2528, %v5607, 0
        %v5762 = vsel %vm2528, %v5757, 0
        %5764 = vmatprep.subr.bf16.mxu0 0
        %5765 = vmatpush1.bf16.xpose.msra.mxu0 %v5762
        %5766 = vmatprep.subr.bf16.mxu0 0
        %5767 = vmatpush1.bf16.xpose.msra.mxu0 0
        %5768 = vmatprep.subr.bf16.mxu0 0
        %5769 = vmatpush1.bf16.xpose.msra.mxu0 0
        %5770 = vmatprep.subr.bf16.mxu0 0
        %5771 = vmatpush1.bf16.xpose.msra.mxu0 0
        %5772 = vmatprep.subr.bf16.mxu0 0
        %5773 = vmatpush1.bf16.xpose.msra.mxu0 0
        %5774 = vmatprep.subr.bf16.mxu0 0
        %5775 = vmatpush1.bf16.xpose.msra.mxu0 0
        %5776 = vmatprep.subr.bf16.mxu0 0
        %5777 = vmatpush1.bf16.xpose.msra.mxu0 0
        %5778 = vmatprep.subr.bf16.mxu0 0
        %5779 = vmatpush1.bf16.xpose.msra.mxu0 0
        %5780 = vmatprep.subr.bf16.mxu0 0
        %5781 = vmatpush1.bf16.xpose.msra.mxu0 0
        %5782 = vmatprep.subr.bf16.mxu0 0
        %5783 = vmatpush1.bf16.xpose.msra.mxu0 0
        %5784 = vmatprep.subr.bf16.mxu0 0
        %5785 = vmatpush1.bf16.xpose.msra.mxu0 0
        %5786 = vmatprep.subr.bf16.mxu0 0
        %5787 = vmatpush1.bf16.xpose.msra.mxu0 0
        %5788 = vmatprep.subr.bf16.mxu0 0
        %5789 = vmatpush1.bf16.xpose.msra.mxu0 0
        %5790 = vmatprep.subr.bf16.mxu0 0
        %5791 = vmatpush1.bf16.xpose.msra.mxu0 0
        %5792 = vmatprep.subr.bf16.mxu0 0
        %5793 = vmatpush1.bf16.xpose.msra.mxu0 0
        %5794 = vmatprep.subr.bf16.mxu0 0
        %5795 = vmatpush1.bf16.xpose.msra.mxu0 0
        %5796 = vmatprep.mubr.bf16.mxu0 0
        %5797 = vmatmul.mubr.bf16.gmra.mrb[0].mxu0 %v5759
        %v5798 = vpop.f32.mrb[0].mxu0
        %v5799 = vadd.f32 0.0, %v5798
        %v5800 = vpop.f32.mrb[0].mxu0
        %v5801 = vpop.f32.mrb[0].mxu0
        %v5802 = vpop.f32.mrb[0].mxu0
        %5803 = vdwg.mxu0
        %v5804 = vmul.f32 %v5652, 0.35355338
        %v5805 = vmul.f32 %v5701, 0.35355338
        %v5806 = vmul.f32 %v5750, 0.35355338
        %v5807 = vmul.f32 %v5799, 0.35355338
        %v5808 = vadd.f32 %v5804, %v2390
        %v5809 = vadd.f32 %v5805, %v2390
        %v5810 = vadd.f32 %v5806, %v2390
        %v5811 = vadd.f32 %v5807, %v2390
        %v5812 = vsel %vm2528, %v5808, -inf
        %5813 = vmax.xlane.f32.xlu0 %v5812
        %v5814 = vpop.xlane.xlu0 %5813
        %v5815 = vsel %vm2528, %v5809, -inf
        %5816 = vmax.xlane.f32.xlu0 %v5815
        %v5817 = vpop.xlane.xlu0 %5816
        %v5818 = vsel %vm2528, %v5810, -inf
        %5819 = vmax.xlane.f32.xlu0 %v5818
        %v5820 = vpop.xlane.xlu0 %5819
        %v5821 = vsel %vm2528, %v5811, -inf
        %5822 = vmax.xlane.f32.xlu0 %v5821
        %v5823 = vpop.xlane.xlu0 %5822
        %v5824 = vsub.f32 %v5808, %v5814
        %v5825 = vsub.f32 %v5809, %v5817
        %v5826 = vsub.f32 %v5810, %v5820
        %v5827 = vsub.f32 %v5811, %v5823
        %v5828 = vmul.f32 %v5824, 1.442695
        %v5829 = vpow.pop %v5828
        %v5830 = vmul.f32 %v5825, 1.442695
        %v5831 = vpow.pop %v5830
        %v5832 = vmul.f32 %v5826, 1.442695
        %v5833 = vpow.pop %v5832
        %v5834 = vmul.f32 %v5827, 1.442695
        %v5835 = vpow.pop %v5834
        %v5836 = vsel %vm2528, %v5829, 0.0
        %5837 = vadd.xlane.f32.xlu0 %v5836
        %v5838 = vpop.xlane.xlu0 %5837
        %v5839 = vsel %vm2528, %v5831, 0.0
        %5840 = vadd.xlane.f32.xlu0 %v5839
        %v5841 = vpop.xlane.xlu0 %5840
        %v5842 = vsel %vm2528, %v5833, 0.0
        %5843 = vadd.xlane.f32.xlu0 %v5842
        %v5844 = vpop.xlane.xlu0 %5843
        %v5845 = vsel %vm2528, %v5835, 0.0
        %5846 = vadd.xlane.f32.xlu0 %v5845
        %v5847 = vpop.xlane.xlu0 %5846
        %v5848 = vrcp.pop %v5838
        %v5849 = vrcp.pop %v5841
        %v5850 = vrcp.pop %v5844
        %v5851 = vrcp.pop %v5847
        %v5852 = vmul.f32 %v5829, %v5848
        %v5853 = vmul.f32 %v5831, %v5849
        %v5854 = vmul.f32 %v5833, %v5850
        %v5855 = vmul.f32 %v5835, %v5851
        %v5856 = vpack.c.bf16 %v5852, %v5852
        %v5857 = vpack.c.bf16 %v5853, %v5853
        %v5858 = vpack.c.bf16 %v5854, %v5854
        %v5859 = vpack.c.bf16 %v5855, %v5855
        %5860 = vrot.lane.b32.xlu0 %v5604, 64
        %v5861 = vpop.permute.xlu0 %5860
        %v5863 = vsel %vm2528, %v5856, 0
        %v5866 = vsel %vm2779, %v5861, 0
        %5868 = vmatprep.subr.bf16.mxu0 0
        %5869 = vmatpush1.bf16.msra.mxu0 %v5866
        %5870 = vmatprep.subr.bf16.mxu0 0
        %5871 = vmatpush1.bf16.msra.mxu0 0
        %5872 = vmatprep.subr.bf16.mxu0 0
        %5873 = vmatpush1.bf16.msra.mxu0 0
        %5874 = vmatprep.subr.bf16.mxu0 0
        %5875 = vmatpush1.bf16.msra.mxu0 0
        %5876 = vmatprep.subr.bf16.mxu0 0
        %5877 = vmatpush1.bf16.msra.mxu0 0
        %5878 = vmatprep.subr.bf16.mxu0 0
        %5879 = vmatpush1.bf16.msra.mxu0 0
        %5880 = vmatprep.subr.bf16.mxu0 0
        %5881 = vmatpush1.bf16.msra.mxu0 0
        %5882 = vmatprep.subr.bf16.mxu0 0
        %5883 = vmatpush1.bf16.msra.mxu0 0
        %5884 = vmatprep.subr.bf16.mxu0 0
        %5885 = vmatpush1.bf16.msra.mxu0 0
        %5886 = vmatprep.subr.bf16.mxu0 0
        %5887 = vmatpush1.bf16.msra.mxu0 0
        %5888 = vmatprep.subr.bf16.mxu0 0
        %5889 = vmatpush1.bf16.msra.mxu0 0
        %5890 = vmatprep.subr.bf16.mxu0 0
        %5891 = vmatpush1.bf16.msra.mxu0 0
        %5892 = vmatprep.subr.bf16.mxu0 0
        %5893 = vmatpush1.bf16.msra.mxu0 0
        %5894 = vmatprep.subr.bf16.mxu0 0
        %5895 = vmatpush1.bf16.msra.mxu0 0
        %5896 = vmatprep.subr.bf16.mxu0 0
        %5897 = vmatpush1.bf16.msra.mxu0 0
        %5898 = vmatprep.subr.bf16.mxu0 0
        %5899 = vmatpush1.bf16.msra.mxu0 0
        %5900 = vmatprep.mubr.bf16.mxu0 0
        %5901 = vmatmul.mubr.bf16.gmra.mrb[0].mxu0 %v5863
        %v5902 = vpop.f32.mrb[0].mxu0
        %v5903 = vadd.f32 0.0, %v5902
        %v5904 = vpop.f32.mrb[0].mxu0
        %v5905 = vpop.f32.mrb[0].mxu0
        %v5906 = vpop.f32.mrb[0].mxu0
        %5907 = vdwg.mxu0
        %5908 = vrot.lane.b32.xlu0 %v5605, 64
        %v5909 = vpop.permute.xlu0 %5908
        %v5911 = vsel %vm2528, %v5857, 0
        %v5914 = vsel %vm2779, %v5909, 0
        %5916 = vmatprep.subr.bf16.mxu0 0
        %5917 = vmatpush1.bf16.msra.mxu0 %v5914
        %5918 = vmatprep.subr.bf16.mxu0 0
        %5919 = vmatpush1.bf16.msra.mxu0 0
        %5920 = vmatprep.subr.bf16.mxu0 0
        %5921 = vmatpush1.bf16.msra.mxu0 0
        %5922 = vmatprep.subr.bf16.mxu0 0
        %5923 = vmatpush1.bf16.msra.mxu0 0
        %5924 = vmatprep.subr.bf16.mxu0 0
        %5925 = vmatpush1.bf16.msra.mxu0 0
        %5926 = vmatprep.subr.bf16.mxu0 0
        %5927 = vmatpush1.bf16.msra.mxu0 0
        %5928 = vmatprep.subr.bf16.mxu0 0
        %5929 = vmatpush1.bf16.msra.mxu0 0
        %5930 = vmatprep.subr.bf16.mxu0 0
        %5931 = vmatpush1.bf16.msra.mxu0 0
        %5932 = vmatprep.subr.bf16.mxu0 0
        %5933 = vmatpush1.bf16.msra.mxu0 0
        %5934 = vmatprep.subr.bf16.mxu0 0
        %5935 = vmatpush1.bf16.msra.mxu0 0
        %5936 = vmatprep.subr.bf16.mxu0 0
        %5937 = vmatpush1.bf16.msra.mxu0 0
        %5938 = vmatprep.subr.bf16.mxu0 0
        %5939 = vmatpush1.bf16.msra.mxu0 0
        %5940 = vmatprep.subr.bf16.mxu0 0
        %5941 = vmatpush1.bf16.msra.mxu0 0
        %5942 = vmatprep.subr.bf16.mxu0 0
        %5943 = vmatpush1.bf16.msra.mxu0 0
        %5944 = vmatprep.subr.bf16.mxu0 0
        %5945 = vmatpush1.bf16.msra.mxu0 0
        %5946 = vmatprep.subr.bf16.mxu0 0
        %5947 = vmatpush1.bf16.msra.mxu0 0
        %5948 = vmatprep.mubr.bf16.mxu0 0
        %5949 = vmatmul.mubr.bf16.gmra.mrb[0].mxu0 %v5911
        %v5950 = vpop.f32.mrb[0].mxu0
        %v5951 = vadd.f32 0.0, %v5950
        %v5952 = vpop.f32.mrb[0].mxu0
        %v5953 = vpop.f32.mrb[0].mxu0
        %v5954 = vpop.f32.mrb[0].mxu0
        %5955 = vdwg.mxu0
        %5956 = vrot.lane.b32.xlu0 %v5606, 64
        %v5957 = vpop.permute.xlu0 %5956
        %v5959 = vsel %vm2528, %v5858, 0
        %v5962 = vsel %vm2779, %v5957, 0
        %5964 = vmatprep.subr.bf16.mxu0 0
        %5965 = vmatpush1.bf16.msra.mxu0 %v5962
        %5966 = vmatprep.subr.bf16.mxu0 0
        %5967 = vmatpush1.bf16.msra.mxu0 0
        %5968 = vmatprep.subr.bf16.mxu0 0
        %5969 = vmatpush1.bf16.msra.mxu0 0
        %5970 = vmatprep.subr.bf16.mxu0 0
        %5971 = vmatpush1.bf16.msra.mxu0 0
        %5972 = vmatprep.subr.bf16.mxu0 0
        %5973 = vmatpush1.bf16.msra.mxu0 0
        %5974 = vmatprep.subr.bf16.mxu0 0
        %5975 = vmatpush1.bf16.msra.mxu0 0
        %5976 = vmatprep.subr.bf16.mxu0 0
        %5977 = vmatpush1.bf16.msra.mxu0 0
        %5978 = vmatprep.subr.bf16.mxu0 0
        %5979 = vmatpush1.bf16.msra.mxu0 0
        %5980 = vmatprep.subr.bf16.mxu0 0
        %5981 = vmatpush1.bf16.msra.mxu0 0
        %5982 = vmatprep.subr.bf16.mxu0 0
        %5983 = vmatpush1.bf16.msra.mxu0 0
        %5984 = vmatprep.subr.bf16.mxu0 0
        %5985 = vmatpush1.bf16.msra.mxu0 0
        %5986 = vmatprep.subr.bf16.mxu0 0
        %5987 = vmatpush1.bf16.msra.mxu0 0
        %5988 = vmatprep.subr.bf16.mxu0 0
        %5989 = vmatpush1.bf16.msra.mxu0 0
        %5990 = vmatprep.subr.bf16.mxu0 0
        %5991 = vmatpush1.bf16.msra.mxu0 0
        %5992 = vmatprep.subr.bf16.mxu0 0
        %5993 = vmatpush1.bf16.msra.mxu0 0
        %5994 = vmatprep.subr.bf16.mxu0 0
        %5995 = vmatpush1.bf16.msra.mxu0 0
        %5996 = vmatprep.mubr.bf16.mxu0 0
        %5997 = vmatmul.mubr.bf16.gmra.mrb[0].mxu0 %v5959
        %v5998 = vpop.f32.mrb[0].mxu0
        %v5999 = vadd.f32 0.0, %v5998
        %v6000 = vpop.f32.mrb[0].mxu0
        %v6001 = vpop.f32.mrb[0].mxu0
        %v6002 = vpop.f32.mrb[0].mxu0
        %6003 = vdwg.mxu0
        %6004 = vrot.lane.b32.xlu0 %v5607, 64
        %v6005 = vpop.permute.xlu0 %6004
        %v6007 = vsel %vm2528, %v5859, 0
        %v6010 = vsel %vm2779, %v6005, 0
        %6012 = vmatprep.subr.bf16.mxu0 0
        %6013 = vmatpush1.bf16.msra.mxu0 %v6010
        %6014 = vmatprep.subr.bf16.mxu0 0
        %6015 = vmatpush1.bf16.msra.mxu0 0
        %6016 = vmatprep.subr.bf16.mxu0 0
        %6017 = vmatpush1.bf16.msra.mxu0 0
        %6018 = vmatprep.subr.bf16.mxu0 0
        %6019 = vmatpush1.bf16.msra.mxu0 0
        %6020 = vmatprep.subr.bf16.mxu0 0
        %6021 = vmatpush1.bf16.msra.mxu0 0
        %6022 = vmatprep.subr.bf16.mxu0 0
        %6023 = vmatpush1.bf16.msra.mxu0 0
        %6024 = vmatprep.subr.bf16.mxu0 0
        %6025 = vmatpush1.bf16.msra.mxu0 0
        %6026 = vmatprep.subr.bf16.mxu0 0
        %6027 = vmatpush1.bf16.msra.mxu0 0
        %6028 = vmatprep.subr.bf16.mxu0 0
        %6029 = vmatpush1.bf16.msra.mxu0 0
        %6030 = vmatprep.subr.bf16.mxu0 0
        %6031 = vmatpush1.bf16.msra.mxu0 0
        %6032 = vmatprep.subr.bf16.mxu0 0
        %6033 = vmatpush1.bf16.msra.mxu0 0
        %6034 = vmatprep.subr.bf16.mxu0 0
        %6035 = vmatpush1.bf16.msra.mxu0 0
        %6036 = vmatprep.subr.bf16.mxu0 0
        %6037 = vmatpush1.bf16.msra.mxu0 0
        %6038 = vmatprep.subr.bf16.mxu0 0
        %6039 = vmatpush1.bf16.msra.mxu0 0
        %6040 = vmatprep.subr.bf16.mxu0 0
        %6041 = vmatpush1.bf16.msra.mxu0 0
        %6042 = vmatprep.subr.bf16.mxu0 0
        %6043 = vmatpush1.bf16.msra.mxu0 0
        %6044 = vmatprep.mubr.bf16.mxu0 0
        %6045 = vmatmul.mubr.bf16.gmra.mrb[0].mxu0 %v6007
        %v6046 = vpop.f32.mrb[0].mxu0
        %v6047 = vadd.f32 0.0, %v6046
        %v6048 = vpop.f32.mrb[0].mxu0
        %v6049 = vpop.f32.mrb[0].mxu0
        %v6050 = vpop.f32.mrb[0].mxu0
        %6051 = vdwg.mxu0
        %6053 = vrot.lane.b32.xlu0 %v5951, 8
        %v6054 = vpop.permute.xlu0 %6053
        %6057 = vrot.lane.b32.xlu0 %v5999, 16
        %v6058 = vpop.permute.xlu0 %6057
        %6061 = vrot.lane.b32.xlu0 %v6047, 24
        %v6062 = vpop.permute.xlu0 %6061
        %v6064 = vsel %vm2528, %v5903, %v6054
        %v6065 = vsel %vm2404, %v6064, %v6058
        %v6066 = vsel %vm2981, %v6065, %v6062
        %v6067 = vpack.c.bf16 %v6066, %v6066
        %v6069 = vlaneseq
        %v6070 = vshrl.u32 %v6069, 7
        %v6071 = vsub.s32 0, %v6070
        %v6072 = vrot.slane %v2298, %v6071
        %v6078 = vunpack.c.l.b16 %v2300
        %v6079 = vunpack.c.l.b16 %v2301
        %v6080 = vunpack.c.l.b16 %v2302
        %v6081 = vunpack.c.l.b16 %v2303
        %v6082 = vpack.c.b16 %v6079, %v6078
        %v6083 = vpack.c.b16 %v6081, %v6080
        %v6087 = vsel %vm2467, %v6067, 0
        %6089 = vmatprep.subr.bf16.mxu0 0
        %6090 = vmatpush1.bf16.msra.mxu0 %v6082
        %6091 = vmatprep.subr.bf16.mxu0 0
        %6092 = vmatpush1.bf16.msra.mxu0 %v6083
        %6093 = vmatprep.subr.bf16.mxu0 0
        %6094 = vmatpush1.bf16.msra.mxu0 0
        %6095 = vmatprep.subr.bf16.mxu0 0
        %6096 = vmatpush1.bf16.msra.mxu0 0
        %6097 = vmatprep.subr.bf16.mxu0 0
        %6098 = vmatpush1.bf16.msra.mxu0 0
        %6099 = vmatprep.subr.bf16.mxu0 0
        %6100 = vmatpush1.bf16.msra.mxu0 0
        %6101 = vmatprep.subr.bf16.mxu0 0
        %6102 = vmatpush1.bf16.msra.mxu0 0
        %6103 = vmatprep.subr.bf16.mxu0 0
        %6104 = vmatpush1.bf16.msra.mxu0 0
        %6105 = vmatprep.subr.bf16.mxu0 0
        %6106 = vmatpush1.bf16.msra.mxu0 0
        %6107 = vmatprep.subr.bf16.mxu0 0
        %6108 = vmatpush1.bf16.msra.mxu0 0
        %6109 = vmatprep.subr.bf16.mxu0 0
        %6110 = vmatpush1.bf16.msra.mxu0 0
        %6111 = vmatprep.subr.bf16.mxu0 0
        %6112 = vmatpush1.bf16.msra.mxu0 0
        %6113 = vmatprep.subr.bf16.mxu0 0
        %6114 = vmatpush1.bf16.msra.mxu0 0
        %6115 = vmatprep.subr.bf16.mxu0 0
        %6116 = vmatpush1.bf16.msra.mxu0 0
        %6117 = vmatprep.subr.bf16.mxu0 0
        %6118 = vmatpush1.bf16.msra.mxu0 0
        %6119 = vmatprep.subr.bf16.mxu0 0
        %6120 = vmatpush1.bf16.msra.mxu0 0
        %6121 = vmatprep.mubr.bf16.mxu0 0
        %6122 = vmatmul.mubr.bf16.gmra.mrb[0].mxu0 %v6087
        %v6123 = vpop.f32.mrb[0].mxu0
        %v6124 = vadd.f32 %v6072, %v6123
        %v6125 = vpop.f32.mrb[0].mxu0
        %v6126 = vpop.f32.mrb[0].mxu0
        %v6127 = vpop.f32.mrb[0].mxu0
        %6128 = vdwg.mxu0
        %v6129 = vadd.f32 %v5531, %v6124
        %v6130 = vsel %vm2467, %v6129, 0.0
        %6131 = vadd.xlane.f32.xlu0 %v6130
        %v6132 = vpop.xlane.xlu0 %6131
        %v6133 = vmul.f32 %v6132, %v3049
        %v6134 = vsub.f32 %v6129, %v6133
        %v6135 = vmul.f32 %v6134, %v6134
        %v6136 = vsel %vm2467, %v6135, 0.0
        %6137 = vadd.xlane.f32.xlu0 %v6136
        %v6138 = vpop.xlane.xlu0 %6137
        %v6139 = vmul.f32 %v6138, %v3049
        %v6140 = vadd.f32 %v6139, 1e-05
        %v6141 = vrsqrt.pop %v6140
        %v6142 = vmul.f32 %v6134, %v6141
        %v6144 = vlaneseq
        %v6145 = vshrl.u32 %v6144, 7
        %v6146 = vsub.s32 0, %v6145
        %v6147 = vrot.slane %v2293, %v6146
        %v6149 = vmul.f32 %v6142, %v6147
        %v6151 = vlaneseq
        %v6152 = vshrl.u32 %v6151, 7
        %v6153 = vsub.s32 0, %v6152
        %v6154 = vrot.slane %v2292, %v6153
        %v6156 = vadd.f32 %v6149, %v6154
        %v6157 = vpack.c.bf16 %v6156, %v6156
        %v6159 = vlaneseq
        %v6160 = vshrl.u32 %v6159, 7
        %v6161 = vsub.s32 0, %v6160
        %v6162 = vrot.slane %v2279, %v6161
        %v6168 = vunpack.c.l.b16 %v2288
        %v6169 = vunpack.c.l.b16 %v2289
        %v6170 = vunpack.c.l.b16 %v2290
        %v6171 = vunpack.c.l.b16 %v2291
        %v6172 = vpack.c.b16 %v6169, %v6168
        %v6173 = vpack.c.b16 %v6171, %v6170
        %v6177 = vsel %vm2467, %v6157, 0
        %6179 = vmatprep.subr.bf16.mxu0 0
        %6180 = vmatpush1.bf16.msra.mxu0 %v6172
        %6181 = vmatprep.subr.bf16.mxu0 0
        %6182 = vmatpush1.bf16.msra.mxu0 %v6173
        %6183 = vmatprep.subr.bf16.mxu0 0
        %6184 = vmatpush1.bf16.msra.mxu0 0
        %6185 = vmatprep.subr.bf16.mxu0 0
        %6186 = vmatpush1.bf16.msra.mxu0 0
        %6187 = vmatprep.subr.bf16.mxu0 0
        %6188 = vmatpush1.bf16.msra.mxu0 0
        %6189 = vmatprep.subr.bf16.mxu0 0
        %6190 = vmatpush1.bf16.msra.mxu0 0
        %6191 = vmatprep.subr.bf16.mxu0 0
        %6192 = vmatpush1.bf16.msra.mxu0 0
        %6193 = vmatprep.subr.bf16.mxu0 0
        %6194 = vmatpush1.bf16.msra.mxu0 0
        %6195 = vmatprep.subr.bf16.mxu0 0
        %6196 = vmatpush1.bf16.msra.mxu0 0
        %6197 = vmatprep.subr.bf16.mxu0 0
        %6198 = vmatpush1.bf16.msra.mxu0 0
        %6199 = vmatprep.subr.bf16.mxu0 0
        %6200 = vmatpush1.bf16.msra.mxu0 0
        %6201 = vmatprep.subr.bf16.mxu0 0
        %6202 = vmatpush1.bf16.msra.mxu0 0
        %6203 = vmatprep.subr.bf16.mxu0 0
        %6204 = vmatpush1.bf16.msra.mxu0 0
        %6205 = vmatprep.subr.bf16.mxu0 0
        %6206 = vmatpush1.bf16.msra.mxu0 0
        %6207 = vmatprep.subr.bf16.mxu0 0
        %6208 = vmatpush1.bf16.msra.mxu0 0
        %6209 = vmatprep.subr.bf16.mxu0 0
        %6210 = vmatpush1.bf16.msra.mxu0 0
        %6211 = vmatprep.mubr.bf16.mxu0 0
        %6212 = vmatmul.mubr.bf16.gmra.mrb[0].mxu0 %v6177
        %v6213 = vpop.f32.mrb[0].mxu0
        %v6214 = vadd.f32 %v6162, %v6213
        %v6215 = vpop.f32.mrb[0].mxu0
        %v6216 = vpop.f32.mrb[0].mxu0
        %v6217 = vpop.f32.mrb[0].mxu0
        %6218 = vdwg.mxu0
        %v6220 = vlaneseq
        %v6221 = vshrl.u32 %v6220, 7
        %v6222 = vsub.s32 0, %v6221
        %v6223 = vrot.slane %v2277, %v6222
        %v6229 = vunpack.c.l.b16 %v2280
        %v6230 = vunpack.c.l.b16 %v2281
        %v6231 = vunpack.c.l.b16 %v2282
        %v6232 = vunpack.c.l.b16 %v2283
        %v6233 = vpack.c.b16 %v6230, %v6229
        %v6234 = vpack.c.b16 %v6232, %v6231
        %6237 = vmatprep.subr.bf16.mxu0 0
        %6238 = vmatpush1.bf16.msra.mxu0 %v6233
        %6239 = vmatprep.subr.bf16.mxu0 0
        %6240 = vmatpush1.bf16.msra.mxu0 %v6234
        %6241 = vmatprep.subr.bf16.mxu0 0
        %6242 = vmatpush1.bf16.msra.mxu0 0
        %6243 = vmatprep.subr.bf16.mxu0 0
        %6244 = vmatpush1.bf16.msra.mxu0 0
        %6245 = vmatprep.subr.bf16.mxu0 0
        %6246 = vmatpush1.bf16.msra.mxu0 0
        %6247 = vmatprep.subr.bf16.mxu0 0
        %6248 = vmatpush1.bf16.msra.mxu0 0
        %6249 = vmatprep.subr.bf16.mxu0 0
        %6250 = vmatpush1.bf16.msra.mxu0 0
        %6251 = vmatprep.subr.bf16.mxu0 0
        %6252 = vmatpush1.bf16.msra.mxu0 0
        %6253 = vmatprep.subr.bf16.mxu0 0
        %6254 = vmatpush1.bf16.msra.mxu0 0
        %6255 = vmatprep.subr.bf16.mxu0 0
        %6256 = vmatpush1.bf16.msra.mxu0 0
        %6257 = vmatprep.subr.bf16.mxu0 0
        %6258 = vmatpush1.bf16.msra.mxu0 0
        %6259 = vmatprep.subr.bf16.mxu0 0
        %6260 = vmatpush1.bf16.msra.mxu0 0
        %6261 = vmatprep.subr.bf16.mxu0 0
        %6262 = vmatpush1.bf16.msra.mxu0 0
        %6263 = vmatprep.subr.bf16.mxu0 0
        %6264 = vmatpush1.bf16.msra.mxu0 0
        %6265 = vmatprep.subr.bf16.mxu0 0
        %6266 = vmatpush1.bf16.msra.mxu0 0
        %6267 = vmatprep.subr.bf16.mxu0 0
        %6268 = vmatpush1.bf16.msra.mxu0 0
        %6269 = vmatprep.mubr.bf16.mxu0 0
        %6270 = vmatmul.mubr.bf16.gmra.mrb[0].mxu0 %v4760
        %v6271 = vpop.f32.mrb[0].mxu0
        %v6272 = vadd.f32 %v6223, %v6271
        %v6273 = vpop.f32.mrb[0].mxu0
        %v6274 = vpop.f32.mrb[0].mxu0
        %v6275 = vpop.f32.mrb[0].mxu0
        %6276 = vdwg.mxu0
        %6278 = vrot.lane.b32.xlu0 %v6214, 120
        %v6279 = vpop.permute.xlu0 %6278
        %6281 = vrot.lane.b32.xlu0 %v6214, 112
        %v6282 = vpop.permute.xlu0 %6281
        %6284 = vrot.lane.b32.xlu0 %v6214, 104
        %v6285 = vpop.permute.xlu0 %6284
        %6288 = vrot.lane.b32.xlu0 %v6272, 120
        %v6289 = vpop.permute.xlu0 %6288
        %6291 = vrot.lane.b32.xlu0 %v6272, 112
        %v6292 = vpop.permute.xlu0 %6291
        %6294 = vrot.lane.b32.xlu0 %v6272, 104
        %v6295 = vpop.permute.xlu0 %6294
        %v6297 = vpack.c.bf16 %v6214, %v6214
        %v6298 = vpack.c.bf16 %v6279, %v6279
        %v6299 = vpack.c.bf16 %v6282, %v6282
        %v6300 = vpack.c.bf16 %v6285, %v6285
        %v6301 = vpack.c.bf16 %v6272, %v6272
        %v6302 = vpack.c.bf16 %v6289, %v6289
        %v6303 = vpack.c.bf16 %v6292, %v6292
        %v6304 = vpack.c.bf16 %v6295, %v6295
        %v6306 = vsel %vm2528, %v6297, 0
        %v6309 = vsel %vm2528, %v6301, 0
        %6311 = vmatprep.subr.bf16.mxu0 0
        %6312 = vmatpush1.bf16.xpose.msra.mxu0 %v6309
        %6313 = vmatprep.subr.bf16.mxu0 0
        %6314 = vmatpush1.bf16.xpose.msra.mxu0 0
        %6315 = vmatprep.subr.bf16.mxu0 0
        %6316 = vmatpush1.bf16.xpose.msra.mxu0 0
        %6317 = vmatprep.subr.bf16.mxu0 0
        %6318 = vmatpush1.bf16.xpose.msra.mxu0 0
        %6319 = vmatprep.subr.bf16.mxu0 0
        %6320 = vmatpush1.bf16.xpose.msra.mxu0 0
        %6321 = vmatprep.subr.bf16.mxu0 0
        %6322 = vmatpush1.bf16.xpose.msra.mxu0 0
        %6323 = vmatprep.subr.bf16.mxu0 0
        %6324 = vmatpush1.bf16.xpose.msra.mxu0 0
        %6325 = vmatprep.subr.bf16.mxu0 0
        %6326 = vmatpush1.bf16.xpose.msra.mxu0 0
        %6327 = vmatprep.subr.bf16.mxu0 0
        %6328 = vmatpush1.bf16.xpose.msra.mxu0 0
        %6329 = vmatprep.subr.bf16.mxu0 0
        %6330 = vmatpush1.bf16.xpose.msra.mxu0 0
        %6331 = vmatprep.subr.bf16.mxu0 0
        %6332 = vmatpush1.bf16.xpose.msra.mxu0 0
        %6333 = vmatprep.subr.bf16.mxu0 0
        %6334 = vmatpush1.bf16.xpose.msra.mxu0 0
        %6335 = vmatprep.subr.bf16.mxu0 0
        %6336 = vmatpush1.bf16.xpose.msra.mxu0 0
        %6337 = vmatprep.subr.bf16.mxu0 0
        %6338 = vmatpush1.bf16.xpose.msra.mxu0 0
        %6339 = vmatprep.subr.bf16.mxu0 0
        %6340 = vmatpush1.bf16.xpose.msra.mxu0 0
        %6341 = vmatprep.subr.bf16.mxu0 0
        %6342 = vmatpush1.bf16.xpose.msra.mxu0 0
        %6343 = vmatprep.mubr.bf16.mxu0 0
        %6344 = vmatmul.mubr.bf16.gmra.mrb[0].mxu0 %v6306
        %v6345 = vpop.f32.mrb[0].mxu0
        %v6346 = vadd.f32 0.0, %v6345
        %v6347 = vpop.f32.mrb[0].mxu0
        %v6348 = vpop.f32.mrb[0].mxu0
        %v6349 = vpop.f32.mrb[0].mxu0
        %6350 = vdwg.mxu0
        %v6352 = vsel %vm2528, %v6298, 0
        %v6355 = vsel %vm2528, %v6302, 0
        %6357 = vmatprep.subr.bf16.mxu0 0
        %6358 = vmatpush1.bf16.xpose.msra.mxu0 %v6355
        %6359 = vmatprep.subr.bf16.mxu0 0
        %6360 = vmatpush1.bf16.xpose.msra.mxu0 0
        %6361 = vmatprep.subr.bf16.mxu0 0
        %6362 = vmatpush1.bf16.xpose.msra.mxu0 0
        %6363 = vmatprep.subr.bf16.mxu0 0
        %6364 = vmatpush1.bf16.xpose.msra.mxu0 0
        %6365 = vmatprep.subr.bf16.mxu0 0
        %6366 = vmatpush1.bf16.xpose.msra.mxu0 0
        %6367 = vmatprep.subr.bf16.mxu0 0
        %6368 = vmatpush1.bf16.xpose.msra.mxu0 0
        %6369 = vmatprep.subr.bf16.mxu0 0
        %6370 = vmatpush1.bf16.xpose.msra.mxu0 0
        %6371 = vmatprep.subr.bf16.mxu0 0
        %6372 = vmatpush1.bf16.xpose.msra.mxu0 0
        %6373 = vmatprep.subr.bf16.mxu0 0
        %6374 = vmatpush1.bf16.xpose.msra.mxu0 0
        %6375 = vmatprep.subr.bf16.mxu0 0
        %6376 = vmatpush1.bf16.xpose.msra.mxu0 0
        %6377 = vmatprep.subr.bf16.mxu0 0
        %6378 = vmatpush1.bf16.xpose.msra.mxu0 0
        %6379 = vmatprep.subr.bf16.mxu0 0
        %6380 = vmatpush1.bf16.xpose.msra.mxu0 0
        %6381 = vmatprep.subr.bf16.mxu0 0
        %6382 = vmatpush1.bf16.xpose.msra.mxu0 0
        %6383 = vmatprep.subr.bf16.mxu0 0
        %6384 = vmatpush1.bf16.xpose.msra.mxu0 0
        %6385 = vmatprep.subr.bf16.mxu0 0
        %6386 = vmatpush1.bf16.xpose.msra.mxu0 0
        %6387 = vmatprep.subr.bf16.mxu0 0
        %6388 = vmatpush1.bf16.xpose.msra.mxu0 0
        %6389 = vmatprep.mubr.bf16.mxu0 0
        %6390 = vmatmul.mubr.bf16.gmra.mrb[0].mxu0 %v6352
        %v6391 = vpop.f32.mrb[0].mxu0
        %v6392 = vadd.f32 0.0, %v6391
        %v6393 = vpop.f32.mrb[0].mxu0
        %v6394 = vpop.f32.mrb[0].mxu0
        %v6395 = vpop.f32.mrb[0].mxu0
        %6396 = vdwg.mxu0
        %v6398 = vsel %vm2528, %v6299, 0
        %v6401 = vsel %vm2528, %v6303, 0
        %6403 = vmatprep.subr.bf16.mxu0 0
        %6404 = vmatpush1.bf16.xpose.msra.mxu0 %v6401
        %6405 = vmatprep.subr.bf16.mxu0 0
        %6406 = vmatpush1.bf16.xpose.msra.mxu0 0
        %6407 = vmatprep.subr.bf16.mxu0 0
        %6408 = vmatpush1.bf16.xpose.msra.mxu0 0
        %6409 = vmatprep.subr.bf16.mxu0 0
        %6410 = vmatpush1.bf16.xpose.msra.mxu0 0
        %6411 = vmatprep.subr.bf16.mxu0 0
        %6412 = vmatpush1.bf16.xpose.msra.mxu0 0
        %6413 = vmatprep.subr.bf16.mxu0 0
        %6414 = vmatpush1.bf16.xpose.msra.mxu0 0
        %6415 = vmatprep.subr.bf16.mxu0 0
        %6416 = vmatpush1.bf16.xpose.msra.mxu0 0
        %6417 = vmatprep.subr.bf16.mxu0 0
        %6418 = vmatpush1.bf16.xpose.msra.mxu0 0
        %6419 = vmatprep.subr.bf16.mxu0 0
        %6420 = vmatpush1.bf16.xpose.msra.mxu0 0
        %6421 = vmatprep.subr.bf16.mxu0 0
        %6422 = vmatpush1.bf16.xpose.msra.mxu0 0
        %6423 = vmatprep.subr.bf16.mxu0 0
        %6424 = vmatpush1.bf16.xpose.msra.mxu0 0
        %6425 = vmatprep.subr.bf16.mxu0 0
        %6426 = vmatpush1.bf16.xpose.msra.mxu0 0
        %6427 = vmatprep.subr.bf16.mxu0 0
        %6428 = vmatpush1.bf16.xpose.msra.mxu0 0
        %6429 = vmatprep.subr.bf16.mxu0 0
        %6430 = vmatpush1.bf16.xpose.msra.mxu0 0
        %6431 = vmatprep.subr.bf16.mxu0 0
        %6432 = vmatpush1.bf16.xpose.msra.mxu0 0
        %6433 = vmatprep.subr.bf16.mxu0 0
        %6434 = vmatpush1.bf16.xpose.msra.mxu0 0
        %6435 = vmatprep.mubr.bf16.mxu0 0
        %6436 = vmatmul.mubr.bf16.gmra.mrb[0].mxu0 %v6398
        %v6437 = vpop.f32.mrb[0].mxu0
        %v6438 = vadd.f32 0.0, %v6437
        %v6439 = vpop.f32.mrb[0].mxu0
        %v6440 = vpop.f32.mrb[0].mxu0
        %v6441 = vpop.f32.mrb[0].mxu0
        %6442 = vdwg.mxu0
        %v6444 = vsel %vm2528, %v6300, 0
        %v6447 = vsel %vm2528, %v6304, 0
        %6449 = vmatprep.subr.bf16.mxu0 0
        %6450 = vmatpush1.bf16.xpose.msra.mxu0 %v6447
        %6451 = vmatprep.subr.bf16.mxu0 0
        %6452 = vmatpush1.bf16.xpose.msra.mxu0 0
        %6453 = vmatprep.subr.bf16.mxu0 0
        %6454 = vmatpush1.bf16.xpose.msra.mxu0 0
        %6455 = vmatprep.subr.bf16.mxu0 0
        %6456 = vmatpush1.bf16.xpose.msra.mxu0 0
        %6457 = vmatprep.subr.bf16.mxu0 0
        %6458 = vmatpush1.bf16.xpose.msra.mxu0 0
        %6459 = vmatprep.subr.bf16.mxu0 0
        %6460 = vmatpush1.bf16.xpose.msra.mxu0 0
        %6461 = vmatprep.subr.bf16.mxu0 0
        %6462 = vmatpush1.bf16.xpose.msra.mxu0 0
        %6463 = vmatprep.subr.bf16.mxu0 0
        %6464 = vmatpush1.bf16.xpose.msra.mxu0 0
        %6465 = vmatprep.subr.bf16.mxu0 0
        %6466 = vmatpush1.bf16.xpose.msra.mxu0 0
        %6467 = vmatprep.subr.bf16.mxu0 0
        %6468 = vmatpush1.bf16.xpose.msra.mxu0 0
        %6469 = vmatprep.subr.bf16.mxu0 0
        %6470 = vmatpush1.bf16.xpose.msra.mxu0 0
        %6471 = vmatprep.subr.bf16.mxu0 0
        %6472 = vmatpush1.bf16.xpose.msra.mxu0 0
        %6473 = vmatprep.subr.bf16.mxu0 0
        %6474 = vmatpush1.bf16.xpose.msra.mxu0 0
        %6475 = vmatprep.subr.bf16.mxu0 0
        %6476 = vmatpush1.bf16.xpose.msra.mxu0 0
        %6477 = vmatprep.subr.bf16.mxu0 0
        %6478 = vmatpush1.bf16.xpose.msra.mxu0 0
        %6479 = vmatprep.subr.bf16.mxu0 0
        %6480 = vmatpush1.bf16.xpose.msra.mxu0 0
        %6481 = vmatprep.mubr.bf16.mxu0 0
        %6482 = vmatmul.mubr.bf16.gmra.mrb[0].mxu0 %v6444
        %v6483 = vpop.f32.mrb[0].mxu0
        %v6484 = vadd.f32 0.0, %v6483
        %v6485 = vpop.f32.mrb[0].mxu0
        %v6486 = vpop.f32.mrb[0].mxu0
        %v6487 = vpop.f32.mrb[0].mxu0
        %6488 = vdwg.mxu0
        %v6489 = vmul.f32 %v6346, 0.35355338
        %v6490 = vmul.f32 %v6392, 0.35355338
        %v6491 = vmul.f32 %v6438, 0.35355338
        %v6492 = vmul.f32 %v6484, 0.35355338
        %v6493 = vsel %vm2528, %v6489, -inf
        %6494 = vmax.xlane.f32.xlu0 %v6493
        %v6495 = vpop.xlane.xlu0 %6494
        %v6496 = vsel %vm2528, %v6490, -inf
        %6497 = vmax.xlane.f32.xlu0 %v6496
        %v6498 = vpop.xlane.xlu0 %6497
        %v6499 = vsel %vm2528, %v6491, -inf
        %6500 = vmax.xlane.f32.xlu0 %v6499
        %v6501 = vpop.xlane.xlu0 %6500
        %v6502 = vsel %vm2528, %v6492, -inf
        %6503 = vmax.xlane.f32.xlu0 %v6502
        %v6504 = vpop.xlane.xlu0 %6503
        %v6505 = vsub.f32 %v6489, %v6495
        %v6506 = vsub.f32 %v6490, %v6498
        %v6507 = vsub.f32 %v6491, %v6501
        %v6508 = vsub.f32 %v6492, %v6504
        %v6509 = vmul.f32 %v6505, 1.442695
        %v6510 = vpow.pop %v6509
        %v6511 = vmul.f32 %v6506, 1.442695
        %v6512 = vpow.pop %v6511
        %v6513 = vmul.f32 %v6507, 1.442695
        %v6514 = vpow.pop %v6513
        %v6515 = vmul.f32 %v6508, 1.442695
        %v6516 = vpow.pop %v6515
        %v6517 = vsel %vm2528, %v6510, 0.0
        %6518 = vadd.xlane.f32.xlu0 %v6517
        %v6519 = vpop.xlane.xlu0 %6518
        %v6520 = vsel %vm2528, %v6512, 0.0
        %6521 = vadd.xlane.f32.xlu0 %v6520
        %v6522 = vpop.xlane.xlu0 %6521
        %v6523 = vsel %vm2528, %v6514, 0.0
        %6524 = vadd.xlane.f32.xlu0 %v6523
        %v6525 = vpop.xlane.xlu0 %6524
        %v6526 = vsel %vm2528, %v6516, 0.0
        %6527 = vadd.xlane.f32.xlu0 %v6526
        %v6528 = vpop.xlane.xlu0 %6527
        %v6529 = vrcp.pop %v6519
        %v6530 = vrcp.pop %v6522
        %v6531 = vrcp.pop %v6525
        %v6532 = vrcp.pop %v6528
        %v6533 = vmul.f32 %v6510, %v6529
        %v6534 = vmul.f32 %v6512, %v6530
        %v6535 = vmul.f32 %v6514, %v6531
        %v6536 = vmul.f32 %v6516, %v6532
        %v6537 = vpack.c.bf16 %v6533, %v6533
        %v6538 = vpack.c.bf16 %v6534, %v6534
        %v6539 = vpack.c.bf16 %v6535, %v6535
        %v6540 = vpack.c.bf16 %v6536, %v6536
        %6542 = vrot.lane.b32.xlu0 %v6301, 96
        %v6543 = vpop.permute.xlu0 %6542
        %v6545 = vsel %vm2528, %v6537, 0
        %v6548 = vsel %vm2779, %v6543, 0
        %6550 = vmatprep.subr.bf16.mxu0 0
        %6551 = vmatpush1.bf16.msra.mxu0 %v6548
        %6552 = vmatprep.subr.bf16.mxu0 0
        %6553 = vmatpush1.bf16.msra.mxu0 0
        %6554 = vmatprep.subr.bf16.mxu0 0
        %6555 = vmatpush1.bf16.msra.mxu0 0
        %6556 = vmatprep.subr.bf16.mxu0 0
        %6557 = vmatpush1.bf16.msra.mxu0 0
        %6558 = vmatprep.subr.bf16.mxu0 0
        %6559 = vmatpush1.bf16.msra.mxu0 0
        %6560 = vmatprep.subr.bf16.mxu0 0
        %6561 = vmatpush1.bf16.msra.mxu0 0
        %6562 = vmatprep.subr.bf16.mxu0 0
        %6563 = vmatpush1.bf16.msra.mxu0 0
        %6564 = vmatprep.subr.bf16.mxu0 0
        %6565 = vmatpush1.bf16.msra.mxu0 0
        %6566 = vmatprep.subr.bf16.mxu0 0
        %6567 = vmatpush1.bf16.msra.mxu0 0
        %6568 = vmatprep.subr.bf16.mxu0 0
        %6569 = vmatpush1.bf16.msra.mxu0 0
        %6570 = vmatprep.subr.bf16.mxu0 0
        %6571 = vmatpush1.bf16.msra.mxu0 0
        %6572 = vmatprep.subr.bf16.mxu0 0
        %6573 = vmatpush1.bf16.msra.mxu0 0
        %6574 = vmatprep.subr.bf16.mxu0 0
        %6575 = vmatpush1.bf16.msra.mxu0 0
        %6576 = vmatprep.subr.bf16.mxu0 0
        %6577 = vmatpush1.bf16.msra.mxu0 0
        %6578 = vmatprep.subr.bf16.mxu0 0
        %6579 = vmatpush1.bf16.msra.mxu0 0
        %6580 = vmatprep.subr.bf16.mxu0 0
        %6581 = vmatpush1.bf16.msra.mxu0 0
        %6582 = vmatprep.mubr.bf16.mxu0 0
        %6583 = vmatmul.mubr.bf16.gmra.mrb[0].mxu0 %v6545
        %v6584 = vpop.f32.mrb[0].mxu0
        %v6585 = vadd.f32 0.0, %v6584
        %v6586 = vpop.f32.mrb[0].mxu0
        %v6587 = vpop.f32.mrb[0].mxu0
        %v6588 = vpop.f32.mrb[0].mxu0
        %6589 = vdwg.mxu0
        %6591 = vrot.lane.b32.xlu0 %v6302, 96
        %v6592 = vpop.permute.xlu0 %6591
        %v6594 = vsel %vm2528, %v6538, 0
        %v6597 = vsel %vm2779, %v6592, 0
        %6599 = vmatprep.subr.bf16.mxu0 0
        %6600 = vmatpush1.bf16.msra.mxu0 %v6597
        %6601 = vmatprep.subr.bf16.mxu0 0
        %6602 = vmatpush1.bf16.msra.mxu0 0
        %6603 = vmatprep.subr.bf16.mxu0 0
        %6604 = vmatpush1.bf16.msra.mxu0 0
        %6605 = vmatprep.subr.bf16.mxu0 0
        %6606 = vmatpush1.bf16.msra.mxu0 0
        %6607 = vmatprep.subr.bf16.mxu0 0
        %6608 = vmatpush1.bf16.msra.mxu0 0
        %6609 = vmatprep.subr.bf16.mxu0 0
        %6610 = vmatpush1.bf16.msra.mxu0 0
        %6611 = vmatprep.subr.bf16.mxu0 0
        %6612 = vmatpush1.bf16.msra.mxu0 0
        %6613 = vmatprep.subr.bf16.mxu0 0
        %6614 = vmatpush1.bf16.msra.mxu0 0
        %6615 = vmatprep.subr.bf16.mxu0 0
        %6616 = vmatpush1.bf16.msra.mxu0 0
        %6617 = vmatprep.subr.bf16.mxu0 0
        %6618 = vmatpush1.bf16.msra.mxu0 0
        %6619 = vmatprep.subr.bf16.mxu0 0
        %6620 = vmatpush1.bf16.msra.mxu0 0
        %6621 = vmatprep.subr.bf16.mxu0 0
        %6622 = vmatpush1.bf16.msra.mxu0 0
        %6623 = vmatprep.subr.bf16.mxu0 0
        %6624 = vmatpush1.bf16.msra.mxu0 0
        %6625 = vmatprep.subr.bf16.mxu0 0
        %6626 = vmatpush1.bf16.msra.mxu0 0
        %6627 = vmatprep.subr.bf16.mxu0 0
        %6628 = vmatpush1.bf16.msra.mxu0 0
        %6629 = vmatprep.subr.bf16.mxu0 0
        %6630 = vmatpush1.bf16.msra.mxu0 0
        %6631 = vmatprep.mubr.bf16.mxu0 0
        %6632 = vmatmul.mubr.bf16.gmra.mrb[0].mxu0 %v6594
        %v6633 = vpop.f32.mrb[0].mxu0
        %v6634 = vadd.f32 0.0, %v6633
        %v6635 = vpop.f32.mrb[0].mxu0
        %v6636 = vpop.f32.mrb[0].mxu0
        %v6637 = vpop.f32.mrb[0].mxu0
        %6638 = vdwg.mxu0
        %6640 = vrot.lane.b32.xlu0 %v6303, 96
        %v6641 = vpop.permute.xlu0 %6640
        %v6643 = vsel %vm2528, %v6539, 0
        %v6646 = vsel %vm2779, %v6641, 0
        %6648 = vmatprep.subr.bf16.mxu0 0
        %6649 = vmatpush1.bf16.msra.mxu0 %v6646
        %6650 = vmatprep.subr.bf16.mxu0 0
        %6651 = vmatpush1.bf16.msra.mxu0 0
        %6652 = vmatprep.subr.bf16.mxu0 0
        %6653 = vmatpush1.bf16.msra.mxu0 0
        %6654 = vmatprep.subr.bf16.mxu0 0
        %6655 = vmatpush1.bf16.msra.mxu0 0
        %6656 = vmatprep.subr.bf16.mxu0 0
        %6657 = vmatpush1.bf16.msra.mxu0 0
        %6658 = vmatprep.subr.bf16.mxu0 0
        %6659 = vmatpush1.bf16.msra.mxu0 0
        %6660 = vmatprep.subr.bf16.mxu0 0
        %6661 = vmatpush1.bf16.msra.mxu0 0
        %6662 = vmatprep.subr.bf16.mxu0 0
        %6663 = vmatpush1.bf16.msra.mxu0 0
        %6664 = vmatprep.subr.bf16.mxu0 0
        %6665 = vmatpush1.bf16.msra.mxu0 0
        %6666 = vmatprep.subr.bf16.mxu0 0
        %6667 = vmatpush1.bf16.msra.mxu0 0
        %6668 = vmatprep.subr.bf16.mxu0 0
        %6669 = vmatpush1.bf16.msra.mxu0 0
        %6670 = vmatprep.subr.bf16.mxu0 0
        %6671 = vmatpush1.bf16.msra.mxu0 0
        %6672 = vmatprep.subr.bf16.mxu0 0
        %6673 = vmatpush1.bf16.msra.mxu0 0
        %6674 = vmatprep.subr.bf16.mxu0 0
        %6675 = vmatpush1.bf16.msra.mxu0 0
        %6676 = vmatprep.subr.bf16.mxu0 0
        %6677 = vmatpush1.bf16.msra.mxu0 0
        %6678 = vmatprep.subr.bf16.mxu0 0
        %6679 = vmatpush1.bf16.msra.mxu0 0
        %6680 = vmatprep.mubr.bf16.mxu0 0
        %6681 = vmatmul.mubr.bf16.gmra.mrb[0].mxu0 %v6643
        %v6682 = vpop.f32.mrb[0].mxu0
        %v6683 = vadd.f32 0.0, %v6682
        %v6684 = vpop.f32.mrb[0].mxu0
        %v6685 = vpop.f32.mrb[0].mxu0
        %v6686 = vpop.f32.mrb[0].mxu0
        %6687 = vdwg.mxu0
        %6689 = vrot.lane.b32.xlu0 %v6304, 96
        %v6690 = vpop.permute.xlu0 %6689
        %v6692 = vsel %vm2528, %v6540, 0
        %v6695 = vsel %vm2779, %v6690, 0
        %6697 = vmatprep.subr.bf16.mxu0 0
        %6698 = vmatpush1.bf16.msra.mxu0 %v6695
        %6699 = vmatprep.subr.bf16.mxu0 0
        %6700 = vmatpush1.bf16.msra.mxu0 0
        %6701 = vmatprep.subr.bf16.mxu0 0
        %6702 = vmatpush1.bf16.msra.mxu0 0
        %6703 = vmatprep.subr.bf16.mxu0 0
        %6704 = vmatpush1.bf16.msra.mxu0 0
        %6705 = vmatprep.subr.bf16.mxu0 0
        %6706 = vmatpush1.bf16.msra.mxu0 0
        %6707 = vmatprep.subr.bf16.mxu0 0
        %6708 = vmatpush1.bf16.msra.mxu0 0
        %6709 = vmatprep.subr.bf16.mxu0 0
        %6710 = vmatpush1.bf16.msra.mxu0 0
        %6711 = vmatprep.subr.bf16.mxu0 0
        %6712 = vmatpush1.bf16.msra.mxu0 0
        %6713 = vmatprep.subr.bf16.mxu0 0
        %6714 = vmatpush1.bf16.msra.mxu0 0
        %6715 = vmatprep.subr.bf16.mxu0 0
        %6716 = vmatpush1.bf16.msra.mxu0 0
        %6717 = vmatprep.subr.bf16.mxu0 0
        %6718 = vmatpush1.bf16.msra.mxu0 0
        %6719 = vmatprep.subr.bf16.mxu0 0
        %6720 = vmatpush1.bf16.msra.mxu0 0
        %6721 = vmatprep.subr.bf16.mxu0 0
        %6722 = vmatpush1.bf16.msra.mxu0 0
        %6723 = vmatprep.subr.bf16.mxu0 0
        %6724 = vmatpush1.bf16.msra.mxu0 0
        %6725 = vmatprep.subr.bf16.mxu0 0
        %6726 = vmatpush1.bf16.msra.mxu0 0
        %6727 = vmatprep.subr.bf16.mxu0 0
        %6728 = vmatpush1.bf16.msra.mxu0 0
        %6729 = vmatprep.mubr.bf16.mxu0 0
        %6730 = vmatmul.mubr.bf16.gmra.mrb[0].mxu0 %v6692
        %v6731 = vpop.f32.mrb[0].mxu0
        %v6732 = vadd.f32 0.0, %v6731
        %v6733 = vpop.f32.mrb[0].mxu0
        %v6734 = vpop.f32.mrb[0].mxu0
        %v6735 = vpop.f32.mrb[0].mxu0
        %6736 = vdwg.mxu0
        %6738 = vrot.lane.b32.xlu0 %v6634, 8
        %v6739 = vpop.permute.xlu0 %6738
        %6742 = vrot.lane.b32.xlu0 %v6683, 16
        %v6743 = vpop.permute.xlu0 %6742
        %6746 = vrot.lane.b32.xlu0 %v6732, 24
        %v6747 = vpop.permute.xlu0 %6746
        %v6749 = vsel %vm2528, %v6585, %v6739
        %v6750 = vsel %vm2404, %v6749, %v6743
        %v6751 = vsel %vm2981, %v6750, %v6747
        %v6752 = vpack.c.bf16 %v6751, %v6751
        %v6754 = vlaneseq
        %v6755 = vshrl.u32 %v6754, 7
        %v6756 = vsub.s32 0, %v6755
        %v6757 = vrot.slane %v2278, %v6756
        %v6763 = vunpack.c.l.b16 %v2284
        %v6764 = vunpack.c.l.b16 %v2285
        %v6765 = vunpack.c.l.b16 %v2286
        %v6766 = vunpack.c.l.b16 %v2287
        %v6767 = vpack.c.b16 %v6764, %v6763
        %v6768 = vpack.c.b16 %v6766, %v6765
        %v6772 = vsel %vm2467, %v6752, 0
        %6774 = vmatprep.subr.bf16.mxu0 0
        %6775 = vmatpush1.bf16.msra.mxu0 %v6767
        %6776 = vmatprep.subr.bf16.mxu0 0
        %6777 = vmatpush1.bf16.msra.mxu0 %v6768
        %6778 = vmatprep.subr.bf16.mxu0 0
        %6779 = vmatpush1.bf16.msra.mxu0 0
        %6780 = vmatprep.subr.bf16.mxu0 0
        %6781 = vmatpush1.bf16.msra.mxu0 0
        %6782 = vmatprep.subr.bf16.mxu0 0
        %6783 = vmatpush1.bf16.msra.mxu0 0
        %6784 = vmatprep.subr.bf16.mxu0 0
        %6785 = vmatpush1.bf16.msra.mxu0 0
        %6786 = vmatprep.subr.bf16.mxu0 0
        %6787 = vmatpush1.bf16.msra.mxu0 0
        %6788 = vmatprep.subr.bf16.mxu0 0
        %6789 = vmatpush1.bf16.msra.mxu0 0
        %6790 = vmatprep.subr.bf16.mxu0 0
        %6791 = vmatpush1.bf16.msra.mxu0 0
        %6792 = vmatprep.subr.bf16.mxu0 0
        %6793 = vmatpush1.bf16.msra.mxu0 0
        %6794 = vmatprep.subr.bf16.mxu0 0
        %6795 = vmatpush1.bf16.msra.mxu0 0
        %6796 = vmatprep.subr.bf16.mxu0 0
        %6797 = vmatpush1.bf16.msra.mxu0 0
        %6798 = vmatprep.subr.bf16.mxu0 0
        %6799 = vmatpush1.bf16.msra.mxu0 0
        %6800 = vmatprep.subr.bf16.mxu0 0
        %6801 = vmatpush1.bf16.msra.mxu0 0
        %6802 = vmatprep.subr.bf16.mxu0 0
        %6803 = vmatpush1.bf16.msra.mxu0 0
        %6804 = vmatprep.subr.bf16.mxu0 0
        %6805 = vmatpush1.bf16.msra.mxu0 0
        %6806 = vmatprep.mubr.bf16.mxu0 0
        %6807 = vmatmul.mubr.bf16.gmra.mrb[0].mxu0 %v6772
        %v6808 = vpop.f32.mrb[0].mxu0
        %v6809 = vadd.f32 %v6757, %v6808
        %v6810 = vpop.f32.mrb[0].mxu0
        %v6811 = vpop.f32.mrb[0].mxu0
        %v6812 = vpop.f32.mrb[0].mxu0
        %6813 = vdwg.mxu0
        %v6814 = vadd.f32 %v6156, %v6809
        %v6815 = vsel %vm2467, %v6814, 0.0
        %6816 = vadd.xlane.f32.xlu0 %v6815
        %v6817 = vpop.xlane.xlu0 %6816
        %v6818 = vmul.f32 %v6817, %v3049
        %v6819 = vsub.f32 %v6814, %v6818
        %v6820 = vmul.f32 %v6819, %v6819
        %v6821 = vsel %vm2467, %v6820, 0.0
        %6822 = vadd.xlane.f32.xlu0 %v6821
        %v6823 = vpop.xlane.xlu0 %6822
        %v6824 = vmul.f32 %v6823, %v3049
        %v6825 = vadd.f32 %v6824, 1e-05
        %v6826 = vrsqrt.pop %v6825
        %v6827 = vmul.f32 %v6819, %v6826
        %v6829 = vlaneseq
        %v6830 = vshrl.u32 %v6829, 7
        %v6831 = vsub.s32 0, %v6830
        %v6832 = vrot.slane %v2295, %v6831
        %v6834 = vmul.f32 %v6827, %v6832
        %v6836 = vlaneseq
        %v6837 = vshrl.u32 %v6836, 7
        %v6838 = vsub.s32 0, %v6837
        %v6839 = vrot.slane %v2294, %v6838
        %v6841 = vadd.f32 %v6834, %v6839
        %v6842 = vpack.c.bf16 %v6841, %v6841
        %v6844 = vlaneseq
        %v6845 = vshrl.u32 %v6844, 7
        %v6846 = vsub.s32 0, %v6845
        %v6847 = vrot.slane %v2275, %v6846
        %v6853 = vunpack.c.l.b16 %v2308
        %v6854 = vunpack.c.l.b16 %v2309
        %v6855 = vunpack.c.l.b16 %v2310
        %v6856 = vunpack.c.l.b16 %v2311
        %v6857 = vpack.c.b16 %v6854, %v6853
        %v6858 = vpack.c.b16 %v6856, %v6855
        %v6862 = vsel %vm2467, %v6842, 0
        %6864 = vmatprep.subr.bf16.mxu0 0
        %6865 = vmatpush1.bf16.msra.mxu0 %v6857
        %6866 = vmatprep.subr.bf16.mxu0 0
        %6867 = vmatpush1.bf16.msra.mxu0 %v6858
        %6868 = vmatprep.subr.bf16.mxu0 0
        %6869 = vmatpush1.bf16.msra.mxu0 0
        %6870 = vmatprep.subr.bf16.mxu0 0
        %6871 = vmatpush1.bf16.msra.mxu0 0
        %6872 = vmatprep.subr.bf16.mxu0 0
        %6873 = vmatpush1.bf16.msra.mxu0 0
        %6874 = vmatprep.subr.bf16.mxu0 0
        %6875 = vmatpush1.bf16.msra.mxu0 0
        %6876 = vmatprep.subr.bf16.mxu0 0
        %6877 = vmatpush1.bf16.msra.mxu0 0
        %6878 = vmatprep.subr.bf16.mxu0 0
        %6879 = vmatpush1.bf16.msra.mxu0 0
        %6880 = vmatprep.subr.bf16.mxu0 0
        %6881 = vmatpush1.bf16.msra.mxu0 0
        %6882 = vmatprep.subr.bf16.mxu0 0
        %6883 = vmatpush1.bf16.msra.mxu0 0
        %6884 = vmatprep.subr.bf16.mxu0 0
        %6885 = vmatpush1.bf16.msra.mxu0 0
        %6886 = vmatprep.subr.bf16.mxu0 0
        %6887 = vmatpush1.bf16.msra.mxu0 0
        %6888 = vmatprep.subr.bf16.mxu0 0
        %6889 = vmatpush1.bf16.msra.mxu0 0
        %6890 = vmatprep.subr.bf16.mxu0 0
        %6891 = vmatpush1.bf16.msra.mxu0 0
        %6892 = vmatprep.subr.bf16.mxu0 0
        %6893 = vmatpush1.bf16.msra.mxu0 0
        %6894 = vmatprep.subr.bf16.mxu0 0
        %6895 = vmatpush1.bf16.msra.mxu0 0
        %6896 = vmatprep.mubr.bf16.mxu0 0
        %6897 = vmatmul.mubr.bf16.gmra.mrb[0].mxu0 %v6862
        %v6898 = vpop.f32.mrb[0].mxu0
        %v6899 = vadd.f32 %v6847, %v6898
        %v6900 = vpop.f32.mrb[0].mxu0
        %v6901 = vpop.f32.mrb[0].mxu0
        %v6902 = vpop.f32.mrb[0].mxu0
        %6903 = vdwg.mxu0
        %v6904 = vmax.f32 %v6899, 0.0
        %v6905 = vpack.c.bf16 %v6904, %v6904
        %v6907 = vlaneseq
        %v6908 = vshrl.u32 %v6907, 7
        %v6909 = vsub.s32 0, %v6908
        %v6910 = vrot.slane %v2276, %v6909
        %v6920 = vunpack.c.l.b16 %v2312
        %v6921 = vunpack.c.l.b16 %v2313
        %v6922 = vunpack.c.l.b16 %v2314
        %v6923 = vunpack.c.l.b16 %v2315
        %v6924 = vunpack.c.l.b16 %v2316
        %v6925 = vunpack.c.l.b16 %v2317
        %v6926 = vunpack.c.l.b16 %v2318
        %v6927 = vunpack.c.l.b16 %v2319
        %v6928 = vpack.c.b16 %v6921, %v6920
        %v6929 = vpack.c.b16 %v6923, %v6922
        %v6930 = vpack.c.b16 %v6925, %v6924
        %v6931 = vpack.c.b16 %v6927, %v6926
        %v6937 = vsel %vm3168, %v6905, 0
        %6939 = vmatprep.subr.bf16.mxu0 0
        %6940 = vmatpush1.bf16.msra.mxu0 %v6928
        %6941 = vmatprep.subr.bf16.mxu0 0
        %6942 = vmatpush1.bf16.msra.mxu0 %v6929
        %6943 = vmatprep.subr.bf16.mxu0 0
        %6944 = vmatpush1.bf16.msra.mxu0 %v6930
        %6945 = vmatprep.subr.bf16.mxu0 0
        %6946 = vmatpush1.bf16.msra.mxu0 %v6931
        %6947 = vmatprep.subr.bf16.mxu0 0
        %6948 = vmatpush1.bf16.msra.mxu0 0
        %6949 = vmatprep.subr.bf16.mxu0 0
        %6950 = vmatpush1.bf16.msra.mxu0 0
        %6951 = vmatprep.subr.bf16.mxu0 0
        %6952 = vmatpush1.bf16.msra.mxu0 0
        %6953 = vmatprep.subr.bf16.mxu0 0
        %6954 = vmatpush1.bf16.msra.mxu0 0
        %6955 = vmatprep.subr.bf16.mxu0 0
        %6956 = vmatpush1.bf16.msra.mxu0 0
        %6957 = vmatprep.subr.bf16.mxu0 0
        %6958 = vmatpush1.bf16.msra.mxu0 0
        %6959 = vmatprep.subr.bf16.mxu0 0
        %6960 = vmatpush1.bf16.msra.mxu0 0
        %6961 = vmatprep.subr.bf16.mxu0 0
        %6962 = vmatpush1.bf16.msra.mxu0 0
        %6963 = vmatprep.subr.bf16.mxu0 0
        %6964 = vmatpush1.bf16.msra.mxu0 0
        %6965 = vmatprep.subr.bf16.mxu0 0
        %6966 = vmatpush1.bf16.msra.mxu0 0
        %6967 = vmatprep.subr.bf16.mxu0 0
        %6968 = vmatpush1.bf16.msra.mxu0 0
        %6969 = vmatprep.subr.bf16.mxu0 0
        %6970 = vmatpush1.bf16.msra.mxu0 0
        %6971 = vmatprep.mubr.bf16.mxu0 0
        %6972 = vmatmul.mubr.bf16.gmra.mrb[0].mxu0 %v6937
        %v6973 = vpop.f32.mrb[0].mxu0
        %v6974 = vadd.f32 %v6910, %v6973
        %v6975 = vpop.f32.mrb[0].mxu0
        %v6976 = vpop.f32.mrb[0].mxu0
        %v6977 = vpop.f32.mrb[0].mxu0
        %6978 = vdwg.mxu0
        %v6979 = vadd.f32 %v6841, %v6974
        %v6980 = vsel %vm2467, %v6979, 0.0
        %6981 = vadd.xlane.f32.xlu0 %v6980
        %v6982 = vpop.xlane.xlu0 %6981
        %v6983 = vmul.f32 %v6982, %v3049
        %v6984 = vsub.f32 %v6979, %v6983
        %v6985 = vmul.f32 %v6984, %v6984
        %v6986 = vsel %vm2467, %v6985, 0.0
        %6987 = vadd.xlane.f32.xlu0 %v6986
        %v6988 = vpop.xlane.xlu0 %6987
        %v6989 = vmul.f32 %v6988, %v3049
        %v6990 = vadd.f32 %v6989, 1e-05
        %v6991 = vrsqrt.pop %v6990
        %v6992 = vmul.f32 %v6984, %v6991
        %v6994 = vlaneseq
        %v6995 = vshrl.u32 %v6994, 7
        %v6996 = vsub.s32 0, %v6995
        %v6997 = vrot.slane %v2297, %v6996
        %v6999 = vmul.f32 %v6992, %v6997
        %v7001 = vlaneseq
        %v7002 = vshrl.u32 %v7001, 7
        %v7003 = vsub.s32 0, %v7002
        %v7004 = vrot.slane %v2296, %v7003
        %v7006 = vadd.f32 %v6999, %v7004
        %v7007 = vsel %vm2467, %v7006, 0.0
        %7008 = vadd.xlane.f32.xlu0 %v7007
        %v7009 = vpop.xlane.xlu0 %7008
        %v7010 = vmul.f32 %v7009, %v3049
        %v7011 = vsub.f32 %v7006, %v7010
        %v7012 = vmul.f32 %v7011, %v7011
        %v7013 = vsel %vm2467, %v7012, 0.0
        %7014 = vadd.xlane.f32.xlu0 %v7013
        %v7015 = vpop.xlane.xlu0 %7014
        %v7016 = vmul.f32 %v7015, %v3049
        %v7017 = vadd.f32 %v7016, 1e-05
        %v7018 = vrsqrt.pop %v7017
        %v7019 = vmul.f32 %v7011, %v7018
        %v7021 = vlaneseq
        %v7022 = vshrl.u32 %v7021, 7
        %v7023 = vsub.s32 0, %v7022
        %v7024 = vrot.slane %v2321, %v7023
        %v7026 = vmul.f32 %v7019, %v7024
        %v7028 = vlaneseq
        %v7029 = vshrl.u32 %v7028, 7
        %v7030 = vsub.s32 0, %v7029
        %v7031 = vrot.slane %v2320, %v7030
        %v7033 = vadd.f32 %v7026, %v7031
        %v7034 = vpack.c.bf16 %v7033, %v7033
        %v7036 = vlaneseq
        %v7037 = vshrl.u32 %v7036, 7
        %v7038 = vsub.s32 0, %v7037
        %v7039 = vrot.slane %v2380, %v7038
        %v7045 = vunpack.c.l.b16 %v2381
        %v7046 = vunpack.c.l.b16 %v2382
        %v7047 = vunpack.c.l.b16 %v2383
        %v7048 = vunpack.c.l.b16 %v2384
        %v7049 = vpack.c.b16 %v7046, %v7045
        %v7050 = vpack.c.b16 %v7048, %v7047
        %v7054 = vsel %vm2467, %v7034, 0
        %7056 = vmatprep.subr.bf16.mxu0 0
        %7057 = vmatpush1.bf16.msra.mxu0 %v7049
        %7058 = vmatprep.subr.bf16.mxu0 0
        %7059 = vmatpush1.bf16.msra.mxu0 %v7050
        %7060 = vmatprep.subr.bf16.mxu0 0
        %7061 = vmatpush1.bf16.msra.mxu0 0
        %7062 = vmatprep.subr.bf16.mxu0 0
        %7063 = vmatpush1.bf16.msra.mxu0 0
        %7064 = vmatprep.subr.bf16.mxu0 0
        %7065 = vmatpush1.bf16.msra.mxu0 0
        %7066 = vmatprep.subr.bf16.mxu0 0
        %7067 = vmatpush1.bf16.msra.mxu0 0
        %7068 = vmatprep.subr.bf16.mxu0 0
        %7069 = vmatpush1.bf16.msra.mxu0 0
        %7070 = vmatprep.subr.bf16.mxu0 0
        %7071 = vmatpush1.bf16.msra.mxu0 0
        %7072 = vmatprep.subr.bf16.mxu0 0
        %7073 = vmatpush1.bf16.msra.mxu0 0
        %7074 = vmatprep.subr.bf16.mxu0 0
        %7075 = vmatpush1.bf16.msra.mxu0 0
        %7076 = vmatprep.subr.bf16.mxu0 0
        %7077 = vmatpush1.bf16.msra.mxu0 0
        %7078 = vmatprep.subr.bf16.mxu0 0
        %7079 = vmatpush1.bf16.msra.mxu0 0
        %7080 = vmatprep.subr.bf16.mxu0 0
        %7081 = vmatpush1.bf16.msra.mxu0 0
        %7082 = vmatprep.subr.bf16.mxu0 0
        %7083 = vmatpush1.bf16.msra.mxu0 0
        %7084 = vmatprep.subr.bf16.mxu0 0
        %7085 = vmatpush1.bf16.msra.mxu0 0
        %7086 = vmatprep.subr.bf16.mxu0 0
        %7087 = vmatpush1.bf16.msra.mxu0 0
        %7088 = vmatprep.mubr.bf16.mxu0 0
        %7089 = vmatmul.mubr.bf16.gmra.mrb[0].mxu0 %v7054
        %v7090 = vpop.f32.mrb[0].mxu0
        %v7091 = vadd.f32 %v7039, %v7090
        %v7092 = vpop.f32.mrb[0].mxu0
        %v7093 = vpop.f32.mrb[0].mxu0
        %v7094 = vpop.f32.mrb[0].mxu0
        %7095 = vdwg.mxu0
        %vm7096 = vcmask 97280
        %7097 = vst.msk [vmem:[%s2228] sm:$0xff] %vm7096, %v7091
        %p7098 = scmp.lt.s32.totalorder %s164, 1
        %s7099 = scalar_select %p7098, %s164, 1
        %s7100 = smul.addr %s7099, 8
        %s7101 = scalar_lea.vmem %s151, %s7100
        // Predicated region
        $region329: #{cont_disc_transformer_forward.1} parent=319 // pred_check
          %p7102 = pneg %p1767
        $region330: #{cont_disc_transformer_forward.1} parent=319 // pred_check_branch
          %7104 = sbr.rel (%p7102) target = $region332
        $region331: #{cont_disc_transformer_forward.1} parent=319 // pred_region
          _
        $region332: #{cont_disc_transformer_forward.1} parent=319 // pred_fallthru
          _
      $region320: #{cont_disc_transformer_forward.1} parent=5 // pred_fallthru
        _
      %p7105 = scmp.le.s32.totalorder 2, %s159
      // Predicated region
      $region333: #{cont_disc_transformer_forward.1} parent=5 // pred_check
        %p7106 = pneg %p7105
      $region334: #{cont_disc_transformer_forward.1} parent=5 // pred_check_branch
        %7108 = sbr.rel (%p7106) target = $region336
      $region335: #{cont_disc_transformer_forward.1} parent=5 // pred_region
        %s7109 = ssub.s32 %s159, 2
        // Predicated region
        $region337: #{cont_disc_transformer_forward.1} parent=335 // pred_check
          %p7110 = pneg %p1773
        $region338: #{cont_disc_transformer_forward.1} parent=335 // pred_check_branch
          %7112 = sbr.rel (%p7110) target = $region340
        $region339: #{cont_disc_transformer_forward.1} parent=335 // pred_region
          %p7113 = scmp.lt.s32.totalorder %s165, 1
          %s7114 = scalar_select %p7113, %s165, 1
          %s7115 = smul.addr %s7114, 8
          %s7116 = scalar_lea.vmem %s151, %s7115
        $region340: #{cont_disc_transformer_forward.1} parent=335 // pred_fallthru
          _
      $region336: #{cont_disc_transformer_forward.1} parent=5 // pred_fallthru
        _
    $region6: #{cont_disc_transformer_forward.1} parent=1 // loop_footer
      %s163 = sadd.s32 1, %s159
    $region7: #{cont_disc_transformer_forward.1} parent=1 // loop_footer_branch
      %158 = sbr.rel target = $region3
    $region8: #{cont_disc_transformer_forward.1} parent=1 // loop_exit
      _
    %7117 = vsyncpa [#allocation3], 1
    %s7118 = scalar_lea.sflag [#allocation3], 1
    %7119 = vsyncpa %s7118, 1
    %7120 = vsyncpa [#allocation5], 1

</llo_original>
